<compile_context>
chip_gen: v5e
topology: v5e:2x2
jax: 0.10.0
libtpu: 0.0.40
codegen_flags: <defaults>
</compile_context>

<pallas_src>
import functools

import jax
import jax.numpy as jnp
import numpy as np
from jax.experimental import pallas as pl
from jax.experimental.pallas import tpu as pltpu


# ----------------------------------------------------------------------------
# In-kernel helpers
# ----------------------------------------------------------------------------
def _gelu_tanh(x):
    # tanh-form GELU: transcendental goes to the EUP slot instead of a ~10-op VALU erf
    # polynomial; |diff| vs exact-erf GELU < 4e-3 (covered by the test tolerance).
    return 0.5 * x * (1.0 + jnp.tanh(0.7978845608028654 * (x + 0.044715 * x * x * x)))


# ----------------------------------------------------------------------------
# Fused backbone kernel: conv1 -> conv2 + AvgPool(2) -> conv3 -> Transformer block
# One grid step == one full per-sample forward (channels-last layout).
# ----------------------------------------------------------------------------
def _backbone_kernel(x_ref, w1_ref, b1_ref, w2_ref, b2_ref, pool_ref,
                     w3_ref, b3_ref, wqkv_ref, lnw_ref, lnb_ref,
                     wproj_ref, bproj_ref, wff_ref, bff_ref, o_ref, *, num_head):
    f32, bf16 = jnp.float32, jnp.bfloat16

    def conv3_relu(h, w_ref, b_ref):
        # Conv1d(k=3, stride=1, pad=1) + ReLU.  Halo handled in VMEM (zero boundary rows),
        # computed as three shifted (L, Cin) @ (Cin, Cout) bf16 MXU matmuls, f32 accum.
        # (The two shifted copies could be pltpu.roll + one-row mask to offload to the
        #  XLU; kept as concatenates for robust lowering -- the backbone is a small slice
        #  of total wall clock.)
        L, Cin = h.shape
        hb = h.astype(bf16)
        zero = jnp.zeros((1, Cin), bf16)
        h_prev = jnp.concatenate([zero, hb[:L - 1, :]], axis=0)   # h[l-1] (zero at l=0)
        h_next = jnp.concatenate([hb[1:, :], zero], axis=0)       # h[l+1] (zero at l=L-1)
        acc = jnp.dot(h_prev, w_ref[0], preferred_element_type=f32)
        acc += jnp.dot(hb, w_ref[1], preferred_element_type=f32)
        acc += jnp.dot(h_next, w_ref[2], preferred_element_type=f32)
        return jnp.maximum(acc + b_ref[...], 0.0)

    x = x_ref[0]                                             # (L, Cin) bf16 (host-cast)
    h = conv3_relu(x, w1_ref, b1_ref)                        # (L, C)
    h = conv3_relu(h, w2_ref, b2_ref)                        # (L, C)
    # Dropout(0.5) -> inference identity.  AvgPool1d(2) via a constant (L/2, L) pooling
    # matrix (one tiny MXU op, no per-step VALU rebuild).
    h = jnp.dot(pool_ref[...], h.astype(bf16), preferred_element_type=f32)   # (L/2, C)
    h = conv3_relu(h, w3_ref, b3_ref)                        # (L/2, C); Dropout identity

    # ------------------------- Transformer block -------------------------
    Lh, C = h.shape
    hd = C // num_head
    # Single fused QKV projection at full lane width (C -> 3C); qkv_bias=False.
    # The 1/sqrt(hd) attention scale is already folded into the Q columns of wqkv.
    qkv = jnp.dot(h.astype(bf16), wqkv_ref[...], preferred_element_type=f32)  # (Lh, 3C)
    qkvb = qkv.astype(bf16)
    # Head-batched attention: stack per-head lane slices into (H, Lh, hd) and run the
    # score / PV matmuls as batched dot_generals with a single batched softmax.
    qh = jnp.stack([qkvb[:, i * hd:(i + 1) * hd] for i in range(num_head)], axis=0)
    kh = jnp.stack([qkvb[:, C + i * hd:C + (i + 1) * hd] for i in range(num_head)], axis=0)
    vh = jnp.stack([qkvb[:, 2 * C + i * hd:2 * C + (i + 1) * hd] for i in range(num_head)],
                   axis=0)
    s = jnp.einsum('hqd,hkd->hqk', qh, kh, preferred_element_type=f32)        # (H, Lh, Lh)
    s = s - jnp.max(s, axis=-1, keepdims=True)
    p = jnp.exp(s)
    p = p * pl.reciprocal(jnp.sum(p, axis=-1, keepdims=True), approx=True)
    o = jnp.einsum('hqk,hkd->hqd', p.astype(bf16), vh, preferred_element_type=f32)
    xa = jnp.concatenate([o[i] for i in range(num_head)], axis=-1)    # (Lh, C) == torch order
    # LayerNorm(C), eps=1e-5 (f32 VPU math)
    mu = jnp.mean(xa, axis=-1, keepdims=True)
    var = jnp.mean((xa - mu) ** 2, axis=-1, keepdims=True)
    xn = (xa - mu) * jax.lax.rsqrt(var + 1e-5) * lnw_ref[...] + lnb_ref[...]
    # proj (Linear C->C) ; proj_drop identity
    xp = jnp.dot(xn.astype(bf16), wproj_ref[...], preferred_element_type=f32) + bproj_ref[...]
    # x += GELU(attn(x))
    y1 = h + _gelu_tanh(xp)
    # x += FeedForward(x) = Dropout(identity) + Linear(C->C)
    y2 = y1 + jnp.dot(y1.astype(bf16), wff_ref[...], preferred_element_type=f32) + bff_ref[...]
    o_ref[0] = y2.astype(o_ref.dtype)


def backbone_forward(x_blc, p, num_head):
    """x_blc: (B, L, Cin) channels-last bf16.  Returns (B, L//2, C) bf16."""
    B, L, Cin = x_blc.shape
    C = p["w1"].shape[-1]
    Lh = L // 2
    # Constant AvgPool1d(2) matrix (constant-folded under jit; DMA'd once).
    pool_mat = (0.5 * jnp.repeat(jnp.eye(Lh, dtype=jnp.float32), 2, axis=1)).astype(jnp.bfloat16)

    def const(*shape):
        return pl.BlockSpec(shape, lambda *_: (0,) * len(shape))

    weights = (p["w1"], p["b1"].reshape(1, C),
               p["w2"], p["b2"].reshape(1, C),
               pool_mat,
               p["w3"], p["b3"].reshape(1, C),
               p["wqkv_scaled"],
               p["ln_w"].reshape(1, C), p["ln_b"].reshape(1, C),
               p["w_proj"], p["b_proj"].reshape(1, C),
               p["w_ff"], p["b_ff"].reshape(1, C))

    # Scoped-VMEM budget: double-buffered operands (grid-invariant weights still get two
    # buffers under the default pipeliner) + headroom for the f32 in-kernel intermediates.
    # Setting this explicitly is what keeps the real 512-channel dims under control on
    # v5e (16 MiB default scoped VMEM); it stays well under v7x's 64 MiB physical VMEM.
    w_bytes = sum(int(w.size) * w.dtype.itemsize for w in weights)
    io_bytes = L * Cin * 2 + Lh * C * 2          # bf16 input block + bf16 output block
    vmem_limit = int(2 * (w_bytes + io_bytes) + (16 << 20))

    kern = functools.partial(_backbone_kernel, num_head=num_head)
    # NOTE(v7x): grid=(B,) parallelism only feeds both TensorCores when B >= 2; for B=1
    # serving shapes a second parallel axis (e.g. split the conv sequence dim) is needed.
    return pl.pallas_call(
        kern,
        out_shape=jax.ShapeDtypeStruct((B, Lh, C), jnp.bfloat16),
        grid=(B,),
        in_specs=[
            pl.BlockSpec((1, L, Cin), lambda b: (b, 0, 0)),
            const(3, Cin, C), const(1, C),        # w1, b1
            const(3, C, C), const(1, C),          # w2, b2
            const(Lh, L),                         # pooling matrix
            const(3, C, C), const(1, C),          # w3, b3
            const(C, 3 * C),                      # fused qkv weight (scale pre-folded)
            const(1, C), const(1, C),             # layernorm gamma / beta
            const(C, C), const(1, C),             # proj weight / bias
            const(C, C), const(1, C),             # feed-forward weight / bias
        ],
        out_specs=pl.BlockSpec((1, Lh, C), lambda b: (b, 0, 0)),
        compiler_params=pltpu.CompilerParams(
            dimension_semantics=("parallel",),
            vmem_limit_bytes=vmem_limit),
    )(x_blc, *weights)


# ----------------------------------------------------------------------------
# Dense layer: K-tiled Linear streaming large lane-dense weight slabs.
# ----------------------------------------------------------------------------
def _dense_kernel(x_ref, w_ref, b_ref, o_ref, acc_ref):
    # x_ref is the whole activation, resident in VMEM as (nk, B, tk); w_ref streams one
    # (tk, tn) slab per grid step; acc is a small f32 VMEM accumulator.
    k = pl.program_id(1)

    @pl.when(k == 0)
    def _():
        acc_ref[...] = jnp.zeros_like(acc_ref)

    acc_ref[...] += jnp.dot(x_ref[k], w_ref[...], preferred_element_type=jnp.float32)

    @pl.when(k == pl.num_programs(1) - 1)
    def _():
        o_ref[...] = (acc_ref[...] + b_ref[...]).astype(o_ref.dtype)


def _largest_tile(dim, target, align=128):
    """Largest multiple of `align` that divides `dim` and is <= target (or `dim` itself)."""
    if dim <= target:
        return dim
    t = max((target // align) * align, align)
    while dim % t:
        t -= align
    return t


def dense_layer(x_flat, w, b, *, tn_target=1024, tk_target=4096):
    """Final Linear(Din -> Dout).  Weight-bandwidth bound at the real dims
    (512*128 -> 1024, ~134 MB bf16), so the grid streams large lane-dense weight slabs:
      * tn covers the full 1024-wide output when it fits (single n step, unmasked vst);
      * tk ~ 4K deep -> <= 8 MB bf16 per (tk, tn) tile, 16 MB double-buffered: safe under
        v7x's 64 MiB VMEM / 32 MiB scoped default.  On v5e/v6e (128 MiB VMEM) tk_target
        can be raised to 8192 for slightly fewer, larger DMAs;
      * the activation is reshaped to (nk, B, tk) and kept fully VMEM-resident via a
        constant index_map, so it is DMA'd exactly once regardless of the n/k grid.
    """
    B, Din = x_flat.shape
    Dout = w.shape[1]
    assert Din % 128 == 0 and Dout % 128 == 0, (Din, Dout)
    tn = _largest_tile(Dout, tn_target)
    tk = _largest_tile(Din, tk_target)
    nk = Din // tk
    x3 = x_flat.reshape(B, nk, tk).swapaxes(0, 1)          # (nk, B, tk), k-major chunks

    w_tile_bytes = tk * tn * w.dtype.itemsize
    x_bytes = int(x3.size) * x3.dtype.itemsize
    vmem_limit = int(2 * w_tile_bytes + 2 * x_bytes + 4 * B * tn * 4 + (2 << 20))

    return pl.pallas_call(
        _dense_kernel,
        out_shape=jax.ShapeDtypeStruct((B, Dout), jnp.float32),
        grid=(Dout // tn, nk),
        in_specs=[
            pl.BlockSpec((nk, B, tk), lambda n, k: (0, 0, 0)),   # resident activation
            pl.BlockSpec((tk, tn), lambda n, k: (k, n)),         # streamed weight slab
            pl.BlockSpec((1, tn), lambda n, k: (0, n)),          # bias
        ],
        out_specs=pl.BlockSpec((B, tn), lambda n, k: (0, n)),
        scratch_shapes=[pltpu.VMEM((B, tn), jnp.float32)],
        compiler_params=pltpu.CompilerParams(
            dimension_semantics=("parallel", "arbitrary"),
            vmem_limit_bytes=vmem_limit),
    )(x3, w, b.reshape(1, Dout))


# ----------------------------------------------------------------------------
# Decoder forward (only layout plumbing outside the two pallas_calls)
# ----------------------------------------------------------------------------
def decoder_forward(x_ncl, p, num_head=4):
    """Forward of the PyTorch Decoder.  Input is NCL (B, C_in, L) like the nn.Module."""
    B, _, L = x_ncl.shape
    C = p["w1"].shape[-1]
    Lh = L // 2
    # Single cheap layout op: NCL -> channels-last + host-side bf16 cast (the kernel feeds
    # the MXU in bf16 anyway), halving the per-sample input DMA.
    x_blc = jnp.transpose(x_ncl, (0, 2, 1)).astype(jnp.bfloat16)
    feats = backbone_forward(x_blc, p, num_head)          # (B, L/2, C) bf16
    # Row-major flatten is a free contiguous reshape; PyTorch's channel-major nn.Flatten
    # order is absorbed by the one-time host-side permutation of the dense weight rows.
    flat = feats.reshape(B, Lh * C)
    return dense_layer(flat, p["wd_perm"], p["bd"])


# ----------------------------------------------------------------------------
# Deterministic synthetic parameters (shapes follow the module's __init__, scaled down)
# ----------------------------------------------------------------------------
def init_params(key, c_in, c, l_in, num_head, dense_out):
    lh = l_in // 2
    hd = c // num_head
    ks = jax.random.split(key, 16)

    def nrm(k, shape, fan_in):
        return jax.random.normal(k, shape, jnp.float32) / np.sqrt(float(fan_in))

    bf = lambda a: a.astype(jnp.bfloat16)   # MXU-side weights stored in bf16
    wqkv_f32 = nrm(ks[6], (c, 3 * c), c)
    p = {
        "w1": bf(nrm(ks[0], (3, c_in, c), 3 * c_in)),
        "b1": nrm(ks[1], (c,), c_in),
        "w2": bf(nrm(ks[2], (3, c, c), 3 * c)),
        "b2": nrm(ks[3], (c,), c),
        "w3": bf(nrm(ks[4], (3, c, c), 3 * c)),
        "b3": nrm(ks[5], (c,), c),
        "wqkv": bf(wqkv_f32),                             # fused QKV, qkv_bias=False
        "w_proj": bf(nrm(ks[7], (c, c), c)),
        "b_proj": nrm(ks[8], (c,), c),
        "w_ff": bf(nrm(ks[9], (c, c), c)),
        "b_ff": nrm(ks[10], (c,), c),
        # dense weight in PyTorch layout: rows indexed channel-major (c*Lh + l)
        "wd": bf(nrm(ks[11], (c * lh, dense_out), c * lh)),
        "bd": nrm(ks[12], (dense_out,), c * lh),
        "ln_w": 1.0 + 0.1 * jax.random.normal(ks[13], (c,), jnp.float32),
        "ln_b": 0.1 * jax.random.normal(ks[14], (c,), jnp.float32),
    }
    # One-time host-side parameter transforms:
    #  * fold the 1/sqrt(head_dim) attention scale into the Q columns of the fused QKV
    #    weight -> the kernel drops the per-sample (Lh,Lh) scale multiply.
    col_scale = jnp.concatenate([jnp.full((c,), hd ** -0.5, jnp.float32),
                                 jnp.ones((2 * c,), jnp.float32)])
    p["wqkv_scaled"] = bf(wqkv_f32 * col_scale[None, :])
    #  * permute the dense weight rows so the kernel's channels-last row-major flatten
    #    matches PyTorch's channel-major nn.Flatten (no runtime transpose).
    p["wd_perm"] = (p["wd"].reshape(c, lh, dense_out)
                    .transpose(1, 0, 2).reshape(lh * c, dense_out))
    return p


# ----------------------------------------------------------------------------
# Pure-JAX f32 reference mirroring the PyTorch forward (eval-mode dropout)
# ----------------------------------------------------------------------------
def reference_forward(x_ncl, p, num_head):
    f32 = lambda a: jnp.asarray(a, jnp.float32)
    x = jnp.transpose(x_ncl, (0, 2, 1))

    def conv(x, w, b):
        L = x.shape[1]
        xp = jnp.pad(x, ((0, 0), (1, 1), (0, 0)))
        y = sum(jnp.einsum("blc,cd->bld", xp[:, k:k + L, :], f32(w[k])) for k in range(3))
        return jax.nn.relu(y + f32(b))

    x = conv(x, p["w1"], p["b1"])
    x = conv(x, p["w2"], p["b2"])
    B, L, C = x.shape
    x = x.reshape(B, L // 2, 2, C).mean(axis=2)          # AvgPool1d(2)
    x = conv(x, p["w3"], p["b3"])

    B, Lh, C = x.shape
    hd = C // num_head
    qkv = x @ f32(p["wqkv"])                             # (B, Lh, 3C)
    q, k, v = qkv[..., :C], qkv[..., C:2 * C], qkv[..., 2 * C:]
    split = lambda t: t.reshape(B, Lh, num_head, hd).transpose(0, 2, 1, 3)
    qh, kh, vh = split(q), split(k), split(v)
    s = jnp.einsum("bhld,bhmd->bhlm", qh, kh) * hd ** -0.5
    a = jax.nn.softmax(s, axis=-1)
    o = jnp.einsum("bhlm,bhmd->bhld", a, vh)
    o = o.transpose(0, 2, 1, 3).reshape(B, Lh, C)
    mu = o.mean(-1, keepdims=True)
    var = ((o - mu) ** 2).mean(-1, keepdims=True)
    o = (o - mu) * jax.lax.rsqrt(var + 1e-5) * f32(p["ln_w"]) + f32(p["ln_b"])
    o = o @ f32(p["w_proj"]) + f32(p["b_proj"])
    x = x + jax.nn.gelu(o, approximate=False)
    x = x + (x @ f32(p["w_ff"]) + f32(p["b_ff"]))

    # PyTorch: Transformer returns NCL, nn.Flatten() flattens channel-major.
    flat = jnp.transpose(x, (0, 2, 1)).reshape(B, -1)
    return flat @ f32(p["wd"]) + f32(p["bd"])


if __name__ == "__main__":
    # Scaled-down dims mirroring the module structure (real: filters 256->512, seq 256->128,
    # Transformer dim 512, dense 512*128 -> 1024).  C=128 keeps every matmul and store
    # lane-dense; L=128 / Dout=512 make the dense grid exercise the multi-K accumulator
    # path (Din=8192 -> two 4096-deep weight slabs).
    B, C_IN, C_MID, L_IN, NUM_HEAD, DENSE_OUT = 2, 128, 128, 128, 4, 512

    key = jax.random.PRNGKey(0)
    kx, kp = jax.random.split(key)
    x = jax.random.normal(kx, (B, C_IN, L_IN), jnp.float32)      # PyTorch NCL input
    params = init_params(kp, C_IN, C_MID, L_IN, NUM_HEAD, DENSE_OUT)

    fwd = jax.jit(functools.partial(decoder_forward, num_head=NUM_HEAD))
    out = jax.block_until_ready(fwd(x, params))

    ref = reference_forward(x, params, NUM_HEAD)
    assert out.shape == (B, DENSE_OUT), out.shape
    np.testing.assert_allclose(np.asarray(out), np.asarray(ref), rtol=5e-2, atol=5e-2)
    print("KERNEL_OK")
</pallas_src>

<mosaic_0001>
module attributes {stable_mosaic.version = 11 : i64} {
  func.func @_backbone_kernel(%arg0: i32, %arg1: memref<1x128x128xbf16, #tpu.memory_space<vmem>>, %arg2: memref<3x128x128xbf16, #tpu.memory_space<vmem>>, %arg3: memref<1x128xf32, #tpu.memory_space<vmem>>, %arg4: memref<3x128x128xbf16, #tpu.memory_space<vmem>>, %arg5: memref<1x128xf32, #tpu.memory_space<vmem>>, %arg6: memref<64x128xbf16, #tpu.memory_space<vmem>>, %arg7: memref<3x128x128xbf16, #tpu.memory_space<vmem>>, %arg8: memref<1x128xf32, #tpu.memory_space<vmem>>, %arg9: memref<128x384xbf16, #tpu.memory_space<vmem>>, %arg10: memref<1x128xf32, #tpu.memory_space<vmem>>, %arg11: memref<1x128xf32, #tpu.memory_space<vmem>>, %arg12: memref<128x128xbf16, #tpu.memory_space<vmem>>, %arg13: memref<1x128xf32, #tpu.memory_space<vmem>>, %arg14: memref<128x128xbf16, #tpu.memory_space<vmem>>, %arg15: memref<1x128xf32, #tpu.memory_space<vmem>>, %arg16: memref<1x64x128xbf16, #tpu.memory_space<vmem>>) attributes {dimension_semantics = [#tpu.dimension_semantics<parallel>], iteration_bounds = array<i64: 2>, scalar_prefetch = 0 : i64, scratch_operands = 0 : i64, tpu.core_type = #tpu.core_type<tc>, window_params = [{transform_indices = @transform_0, window_bounds = array<i64: 1, 128, 128>}, {pipeline_mode = #tpu.pipeline_mode<synchronous>, transform_indices = @transform_1, window_bounds = array<i64: 3, 128, 128>}, {pipeline_mode = #tpu.pipeline_mode<synchronous>, transform_indices = @transform_2, window_bounds = array<i64: 1, 128>}, {pipeline_mode = #tpu.pipeline_mode<synchronous>, transform_indices = @transform_3, window_bounds = array<i64: 3, 128, 128>}, {pipeline_mode = #tpu.pipeline_mode<synchronous>, transform_indices = @transform_4, window_bounds = array<i64: 1, 128>}, {pipeline_mode = #tpu.pipeline_mode<synchronous>, transform_indices = @transform_5, window_bounds = array<i64: 64, 128>}, {pipeline_mode = #tpu.pipeline_mode<synchronous>, transform_indices = @transform_6, window_bounds = array<i64: 3, 128, 128>}, {pipeline_mode = #tpu.pipeline_mode<synchronous>, transform_indices = @transform_7, window_bounds = array<i64: 1, 128>}, {pipeline_mode = #tpu.pipeline_mode<synchronous>, transform_indices = @transform_8, window_bounds = array<i64: 128, 384>}, {pipeline_mode = #tpu.pipeline_mode<synchronous>, transform_indices = @transform_9, window_bounds = array<i64: 1, 128>}, {pipeline_mode = #tpu.pipeline_mode<synchronous>, transform_indices = @transform_10, window_bounds = array<i64: 1, 128>}, {pipeline_mode = #tpu.pipeline_mode<synchronous>, transform_indices = @transform_11, window_bounds = array<i64: 128, 128>}, {pipeline_mode = #tpu.pipeline_mode<synchronous>, transform_indices = @transform_12, window_bounds = array<i64: 1, 128>}, {pipeline_mode = #tpu.pipeline_mode<synchronous>, transform_indices = @transform_13, window_bounds = array<i64: 128, 128>}, {pipeline_mode = #tpu.pipeline_mode<synchronous>, transform_indices = @transform_14, window_bounds = array<i64: 1, 128>}, {transform_indices = @transform_15, window_bounds = array<i64: 1, 64, 128>}]} {
    %c0 = arith.constant 0 : index
    %c0_0 = arith.constant 0 : index
    %c0_1 = arith.constant 0 : index
    %0 = vector.load %arg1[%c0, %c0_0, %c0_1] : memref<1x128x128xbf16, #tpu.memory_space<vmem>>, vector<1x128x128xbf16>
    %1 = vector.shape_cast %0 : vector<1x128x128xbf16> to vector<128x128xbf16>
    %cst = arith.constant 0.000000e+00 : bf16
    %2 = vector.broadcast %cst : bf16 to vector<1x128xbf16>
    %3 = vector.extract_strided_slice %1 {offsets = [0, 0], sizes = [127, 128], strides = [1, 1]} : vector<128x128xbf16> to vector<127x128xbf16>
    %4 = tpu.concatenate %2, %3 in 0 : vector<1x128xbf16>, vector<127x128xbf16> -> vector<128x128xbf16>
    %5 = vector.extract_strided_slice %1 {offsets = [1, 0], sizes = [127, 128], strides = [1, 1]} : vector<128x128xbf16> to vector<127x128xbf16>
    %6 = tpu.concatenate %5, %2 in 0 : vector<127x128xbf16>, vector<1x128xbf16> -> vector<128x128xbf16>
    %c0_2 = arith.constant 0 : index
    %c0_3 = arith.constant 0 : index
    %c0_4 = arith.constant 0 : index
    %7 = vector.load %arg2[%c0_2, %c0_3, %c0_4] : memref<3x128x128xbf16, #tpu.memory_space<vmem>>, vector<1x128x128xbf16>
    %8 = vector.shape_cast %7 : vector<1x128x128xbf16> to vector<128x128xbf16>
    %cst_5 = arith.constant dense<0.000000e+00> : vector<128x128xf32>
    %9 = tpu.matmul %4, %8, %cst_5 {dimension_numbers = #tpu.dot_dimension_numbers<[1], [0], [0], [1], [0, 0, 1, 1], [], []>} : vector<128x128xbf16>, vector<128x128xbf16>, vector<128x128xf32> -> vector<128x128xf32>
    %c1 = arith.constant 1 : index
    %c0_6 = arith.constant 0 : index
    %c0_7 = arith.constant 0 : index
    %10 = vector.load %arg2[%c1, %c0_6, %c0_7] : memref<3x128x128xbf16, #tpu.memory_space<vmem>>, vector<1x128x128xbf16>
    %11 = vector.shape_cast %10 : vector<1x128x128xbf16> to vector<128x128xbf16>
    %cst_8 = arith.constant dense<0.000000e+00> : vector<128x128xf32>
    %12 = tpu.matmul %1, %11, %cst_8 {dimension_numbers = #tpu.dot_dimension_numbers<[1], [0], [0], [1], [0, 0, 1, 1], [], []>} : vector<128x128xbf16>, vector<128x128xbf16>, vector<128x128xf32> -> vector<128x128xf32>
    %13 = arith.addf %9, %12 : vector<128x128xf32>
    %c2 = arith.constant 2 : index
    %c0_9 = arith.constant 0 : index
    %c0_10 = arith.constant 0 : index
    %14 = vector.load %arg2[%c2, %c0_9, %c0_10] : memref<3x128x128xbf16, #tpu.memory_space<vmem>>, vector<1x128x128xbf16>
    %15 = vector.shape_cast %14 : vector<1x128x128xbf16> to vector<128x128xbf16>
    %cst_11 = arith.constant dense<0.000000e+00> : vector<128x128xf32>
    %16 = tpu.matmul %6, %15, %cst_11 {dimension_numbers = #tpu.dot_dimension_numbers<[1], [0], [0], [1], [0, 0, 1, 1], [], []>} : vector<128x128xbf16>, vector<128x128xbf16>, vector<128x128xf32> -> vector<128x128xf32>
    %17 = arith.addf %13, %16 : vector<128x128xf32>
    %c0_12 = arith.constant 0 : index
    %c0_13 = arith.constant 0 : index
    %18 = vector.load %arg3[%c0_12, %c0_13] : memref<1x128xf32, #tpu.memory_space<vmem>>, vector<1x128xf32>
    %19 = vector.broadcast %18 : vector<1x128xf32> to vector<128x128xf32>
    %20 = arith.addf %17, %19 : vector<128x128xf32>
    %cst_14 = arith.constant 0.000000e+00 : f32
    %21 = vector.broadcast %cst_14 : f32 to vector<128x128xf32>
    %22 = arith.maximumf %20, %21 : vector<128x128xf32>
    %23 = arith.truncf %22 : vector<128x128xf32> to vector<128x128xbf16>
    %cst_15 = arith.constant 0.000000e+00 : bf16
    %24 = vector.broadcast %cst_15 : bf16 to vector<1x128xbf16>
    %25 = vector.extract_strided_slice %23 {offsets = [0, 0], sizes = [127, 128], strides = [1, 1]} : vector<128x128xbf16> to vector<127x128xbf16>
    %26 = tpu.concatenate %24, %25 in 0 : vector<1x128xbf16>, vector<127x128xbf16> -> vector<128x128xbf16>
    %27 = vector.extract_strided_slice %23 {offsets = [1, 0], sizes = [127, 128], strides = [1, 1]} : vector<128x128xbf16> to vector<127x128xbf16>
    %28 = tpu.concatenate %27, %24 in 0 : vector<127x128xbf16>, vector<1x128xbf16> -> vector<128x128xbf16>
    %c0_16 = arith.constant 0 : index
    %c0_17 = arith.constant 0 : index
    %c0_18 = arith.constant 0 : index
    %29 = vector.load %arg4[%c0_16, %c0_17, %c0_18] : memref<3x128x128xbf16, #tpu.memory_space<vmem>>, vector<1x128x128xbf16>
    %30 = vector.shape_cast %29 : vector<1x128x128xbf16> to vector<128x128xbf16>
    %cst_19 = arith.constant dense<0.000000e+00> : vector<128x128xf32>
    %31 = tpu.matmul %26, %30, %cst_19 {dimension_numbers = #tpu.dot_dimension_numbers<[1], [0], [0], [1], [0, 0, 1, 1], [], []>} : vector<128x128xbf16>, vector<128x128xbf16>, vector<128x128xf32> -> vector<128x128xf32>
    %c1_20 = arith.constant 1 : index
    %c0_21 = arith.constant 0 : index
    %c0_22 = arith.constant 0 : index
    %32 = vector.load %arg4[%c1_20, %c0_21, %c0_22] : memref<3x128x128xbf16, #tpu.memory_space<vmem>>, vector<1x128x128xbf16>
    %33 = vector.shape_cast %32 : vector<1x128x128xbf16> to vector<128x128xbf16>
    %cst_23 = arith.constant dense<0.000000e+00> : vector<128x128xf32>
    %34 = tpu.matmul %23, %33, %cst_23 {dimension_numbers = #tpu.dot_dimension_numbers<[1], [0], [0], [1], [0, 0, 1, 1], [], []>} : vector<128x128xbf16>, vector<128x128xbf16>, vector<128x128xf32> -> vector<128x128xf32>
    %35 = arith.addf %31, %34 : vector<128x128xf32>
    %c2_24 = arith.constant 2 : index
    %c0_25 = arith.constant 0 : index
    %c0_26 = arith.constant 0 : index
    %36 = vector.load %arg4[%c2_24, %c0_25, %c0_26] : memref<3x128x128xbf16, #tpu.memory_space<vmem>>, vector<1x128x128xbf16>
    %37 = vector.shape_cast %36 : vector<1x128x128xbf16> to vector<128x128xbf16>
    %cst_27 = arith.constant dense<0.000000e+00> : vector<128x128xf32>
    %38 = tpu.matmul %28, %37, %cst_27 {dimension_numbers = #tpu.dot_dimension_numbers<[1], [0], [0], [1], [0, 0, 1, 1], [], []>} : vector<128x128xbf16>, vector<128x128xbf16>, vector<128x128xf32> -> vector<128x128xf32>
    %39 = arith.addf %35, %38 : vector<128x128xf32>
    %c0_28 = arith.constant 0 : index
    %c0_29 = arith.constant 0 : index
    %40 = vector.load %arg5[%c0_28, %c0_29] : memref<1x128xf32, #tpu.memory_space<vmem>>, vector<1x128xf32>
    %41 = vector.broadcast %40 : vector<1x128xf32> to vector<128x128xf32>
    %42 = arith.addf %39, %41 : vector<128x128xf32>
    %cst_30 = arith.constant 0.000000e+00 : f32
    %43 = vector.broadcast %cst_30 : f32 to vector<128x128xf32>
    %44 = arith.maximumf %42, %43 : vector<128x128xf32>
    %c0_31 = arith.constant 0 : index
    %c0_32 = arith.constant 0 : index
    %45 = vector.load %arg6[%c0_31, %c0_32] : memref<64x128xbf16, #tpu.memory_space<vmem>>, vector<64x128xbf16>
    %46 = arith.truncf %44 : vector<128x128xf32> to vector<128x128xbf16>
    %cst_33 = arith.constant dense<0.000000e+00> : vector<64x128xf32>
    %47 = tpu.matmul %45, %46, %cst_33 {dimension_numbers = #tpu.dot_dimension_numbers<[1], [0], [0], [1], [0, 0, 1, 1], [], []>} : vector<64x128xbf16>, vector<128x128xbf16>, vector<64x128xf32> -> vector<64x128xf32>
    %48 = arith.truncf %47 : vector<64x128xf32> to vector<64x128xbf16>
    %cst_34 = arith.constant 0.000000e+00 : bf16
    %49 = vector.broadcast %cst_34 : bf16 to vector<1x128xbf16>
    %50 = vector.extract_strided_slice %48 {offsets = [0, 0], sizes = [63, 128], strides = [1, 1]} : vector<64x128xbf16> to vector<63x128xbf16>
    %51 = tpu.concatenate %49, %50 in 0 : vector<1x128xbf16>, vector<63x128xbf16> -> vector<64x128xbf16>
    %52 = vector.extract_strided_slice %48 {offsets = [1, 0], sizes = [63, 128], strides = [1, 1]} : vector<64x128xbf16> to vector<63x128xbf16>
    %53 = tpu.concatenate %52, %49 in 0 : vector<63x128xbf16>, vector<1x128xbf16> -> vector<64x128xbf16>
    %c0_35 = arith.constant 0 : index
    %c0_36 = arith.constant 0 : index
    %c0_37 = arith.constant 0 : index
    %54 = vector.load %arg7[%c0_35, %c0_36, %c0_37] : memref<3x128x128xbf16, #tpu.memory_space<vmem>>, vector<1x128x128xbf16>
    %55 = vector.shape_cast %54 : vector<1x128x128xbf16> to vector<128x128xbf16>
    %cst_38 = arith.constant dense<0.000000e+00> : vector<64x128xf32>
    %56 = tpu.matmul %51, %55, %cst_38 {dimension_numbers = #tpu.dot_dimension_numbers<[1], [0], [0], [1], [0, 0, 1, 1], [], []>} : vector<64x128xbf16>, vector<128x128xbf16>, vector<64x128xf32> -> vector<64x128xf32>
    %c1_39 = arith.constant 1 : index
    %c0_40 = arith.constant 0 : index
    %c0_41 = arith.constant 0 : index
    %57 = vector.load %arg7[%c1_39, %c0_40, %c0_41] : memref<3x128x128xbf16, #tpu.memory_space<vmem>>, vector<1x128x128xbf16>
    %58 = vector.shape_cast %57 : vector<1x128x128xbf16> to vector<128x128xbf16>
    %cst_42 = arith.constant dense<0.000000e+00> : vector<64x128xf32>
    %59 = tpu.matmul %48, %58, %cst_42 {dimension_numbers = #tpu.dot_dimension_numbers<[1], [0], [0], [1], [0, 0, 1, 1], [], []>} : vector<64x128xbf16>, vector<128x128xbf16>, vector<64x128xf32> -> vector<64x128xf32>
    %60 = arith.addf %56, %59 : vector<64x128xf32>
    %c2_43 = arith.constant 2 : index
    %c0_44 = arith.constant 0 : index
    %c0_45 = arith.constant 0 : index
    %61 = vector.load %arg7[%c2_43, %c0_44, %c0_45] : memref<3x128x128xbf16, #tpu.memory_space<vmem>>, vector<1x128x128xbf16>
    %62 = vector.shape_cast %61 : vector<1x128x128xbf16> to vector<128x128xbf16>
    %cst_46 = arith.constant dense<0.000000e+00> : vector<64x128xf32>
    %63 = tpu.matmul %53, %62, %cst_46 {dimension_numbers = #tpu.dot_dimension_numbers<[1], [0], [0], [1], [0, 0, 1, 1], [], []>} : vector<64x128xbf16>, vector<128x128xbf16>, vector<64x128xf32> -> vector<64x128xf32>
    %64 = arith.addf %60, %63 : vector<64x128xf32>
    %c0_47 = arith.constant 0 : index
    %c0_48 = arith.constant 0 : index
    %65 = vector.load %arg8[%c0_47, %c0_48] : memref<1x128xf32, #tpu.memory_space<vmem>>, vector<1x128xf32>
    %66 = vector.broadcast %65 : vector<1x128xf32> to vector<64x128xf32>
    %67 = arith.addf %64, %66 : vector<64x128xf32>
    %cst_49 = arith.constant 0.000000e+00 : f32
    %68 = vector.broadcast %cst_49 : f32 to vector<64x128xf32>
    %69 = arith.maximumf %67, %68 : vector<64x128xf32>
    %70 = arith.truncf %69 : vector<64x128xf32> to vector<64x128xbf16>
    %c0_50 = arith.constant 0 : index
    %c0_51 = arith.constant 0 : index
    %71 = vector.load %arg9[%c0_50, %c0_51] : memref<128x384xbf16, #tpu.memory_space<vmem>>, vector<128x384xbf16>
    %cst_52 = arith.constant dense<0.000000e+00> : vector<64x384xf32>
    %72 = tpu.matmul %70, %71, %cst_52 {dimension_numbers = #tpu.dot_dimension_numbers<[1], [0], [0], [1], [0, 0, 1, 1], [], []>} : vector<64x128xbf16>, vector<128x384xbf16>, vector<64x384xf32> -> vector<64x384xf32>
    %73 = arith.truncf %72 : vector<64x384xf32> to vector<64x384xbf16>
    %74 = vector.extract_strided_slice %73 {offsets = [0, 0], sizes = [64, 32], strides = [1, 1]} : vector<64x384xbf16> to vector<64x32xbf16>
    %75 = vector.extract_strided_slice %73 {offsets = [0, 32], sizes = [64, 32], strides = [1, 1]} : vector<64x384xbf16> to vector<64x32xbf16>
    %76 = vector.extract_strided_slice %73 {offsets = [0, 64], sizes = [64, 32], strides = [1, 1]} : vector<64x384xbf16> to vector<64x32xbf16>
    %77 = vector.extract_strided_slice %73 {offsets = [0, 96], sizes = [64, 32], strides = [1, 1]} : vector<64x384xbf16> to vector<64x32xbf16>
    %78 = vector.shape_cast %74 : vector<64x32xbf16> to vector<1x64x32xbf16>
    %79 = vector.shape_cast %75 : vector<64x32xbf16> to vector<1x64x32xbf16>
    %80 = vector.shape_cast %76 : vector<64x32xbf16> to vector<1x64x32xbf16>
    %81 = vector.shape_cast %77 : vector<64x32xbf16> to vector<1x64x32xbf16>
    %82 = tpu.concatenate %78, %79, %80, %81 in 0 : vector<1x64x32xbf16>, vector<1x64x32xbf16>, vector<1x64x32xbf16>, vector<1x64x32xbf16> -> vector<4x64x32xbf16>
    %83 = vector.extract_strided_slice %73 {offsets = [0, 128], sizes = [64, 32], strides = [1, 1]} : vector<64x384xbf16> to vector<64x32xbf16>
    %84 = vector.extract_strided_slice %73 {offsets = [0, 160], sizes = [64, 32], strides = [1, 1]} : vector<64x384xbf16> to vector<64x32xbf16>
    %85 = vector.extract_strided_slice %73 {offsets = [0, 192], sizes = [64, 32], strides = [1, 1]} : vector<64x384xbf16> to vector<64x32xbf16>
    %86 = vector.extract_strided_slice %73 {offsets = [0, 224], sizes = [64, 32], strides = [1, 1]} : vector<64x384xbf16> to vector<64x32xbf16>
    %87 = vector.shape_cast %83 : vector<64x32xbf16> to vector<1x64x32xbf16>
    %88 = vector.shape_cast %84 : vector<64x32xbf16> to vector<1x64x32xbf16>
    %89 = vector.shape_cast %85 : vector<64x32xbf16> to vector<1x64x32xbf16>
    %90 = vector.shape_cast %86 : vector<64x32xbf16> to vector<1x64x32xbf16>
    %91 = tpu.concatenate %87, %88, %89, %90 in 0 : vector<1x64x32xbf16>, vector<1x64x32xbf16>, vector<1x64x32xbf16>, vector<1x64x32xbf16> -> vector<4x64x32xbf16>
    %92 = vector.extract_strided_slice %73 {offsets = [0, 256], sizes = [64, 32], strides = [1, 1]} : vector<64x384xbf16> to vector<64x32xbf16>
    %93 = vector.extract_strided_slice %73 {offsets = [0, 288], sizes = [64, 32], strides = [1, 1]} : vector<64x384xbf16> to vector<64x32xbf16>
    %94 = vector.extract_strided_slice %73 {offsets = [0, 320], sizes = [64, 32], strides = [1, 1]} : vector<64x384xbf16> to vector<64x32xbf16>
    %95 = vector.extract_strided_slice %73 {offsets = [0, 352], sizes = [64, 32], strides = [1, 1]} : vector<64x384xbf16> to vector<64x32xbf16>
    %96 = vector.shape_cast %92 : vector<64x32xbf16> to vector<1x64x32xbf16>
    %97 = vector.shape_cast %93 : vector<64x32xbf16> to vector<1x64x32xbf16>
    %98 = vector.shape_cast %94 : vector<64x32xbf16> to vector<1x64x32xbf16>
    %99 = vector.shape_cast %95 : vector<64x32xbf16> to vector<1x64x32xbf16>
    %100 = tpu.concatenate %96, %97, %98, %99 in 0 : vector<1x64x32xbf16>, vector<1x64x32xbf16>, vector<1x64x32xbf16>, vector<1x64x32xbf16> -> vector<4x64x32xbf16>
    "tpu.trace_start"() <{level = 10 : i32, message = "hqd,hkd->hqk"}> : () -> ()
    %cst_53 = arith.constant dense<0.000000e+00> : vector<4x64x64xf32>
    %101 = tpu.matmul %82, %91, %cst_53 {dimension_numbers = #tpu.dot_dimension_numbers<[2], [2], [1], [1], [0, 0, 0, 1, 1, 1], [0], [0]>} : vector<4x64x32xbf16>, vector<4x64x32xbf16>, vector<4x64x64xf32> -> vector<4x64x64xf32>
    "tpu.trace_stop"() : () -> ()
    %cst_54 = arith.constant dense<0xFF800000> : vector<4x64xf32>
    %102 = vector.multi_reduction <maximumf>, %101, %cst_54 [2] : vector<4x64x64xf32> to vector<4x64xf32>
    %103 = vector.shape_cast %102 : vector<4x64xf32> to vector<4x64x1xf32>
    %104 = vector.broadcast %103 : vector<4x64x1xf32> to vector<4x64x64xf32>
    %105 = arith.subf %101, %104 : vector<4x64x64xf32>
    %106 = math.exp %105 : vector<4x64x64xf32>
    %cst_55 = arith.constant dense<0.000000e+00> : vector<4x64xf32>
    %107 = vector.multi_reduction <add>, %106, %cst_55 [2] : vector<4x64x64xf32> to vector<4x64xf32>
    %108 = vector.shape_cast %107 : vector<4x64xf32> to vector<4x64x1xf32>
    %109 = tpu.reciprocal %108 {approx = true} : vector<4x64x1xf32> -> vector<4x64x1xf32>
    %110 = vector.broadcast %109 : vector<4x64x1xf32> to vector<4x64x64xf32>
    %111 = arith.mulf %106, %110 : vector<4x64x64xf32>
    %112 = arith.truncf %111 : vector<4x64x64xf32> to vector<4x64x64xbf16>
    "tpu.trace_start"() <{level = 10 : i32, message = "hqk,hkd->hqd"}> : () -> ()
    %cst_56 = arith.constant dense<0.000000e+00> : vector<4x64x32xf32>
    %113 = tpu.matmul %112, %100, %cst_56 {dimension_numbers = #tpu.dot_dimension_numbers<[2], [1], [1], [2], [0, 0, 0, 1, 1, 2], [0], [0]>} : vector<4x64x64xbf16>, vector<4x64x32xbf16>, vector<4x64x32xf32> -> vector<4x64x32xf32>
    "tpu.trace_stop"() : () -> ()
    %114 = vector.extract_strided_slice %113 {offsets = [0, 0, 0], sizes = [1, 64, 32], strides = [1, 1, 1]} : vector<4x64x32xf32> to vector<1x64x32xf32>
    %115 = vector.shape_cast %114 : vector<1x64x32xf32> to vector<64x32xf32>
    %116 = vector.extract_strided_slice %113 {offsets = [1, 0, 0], sizes = [1, 64, 32], strides = [1, 1, 1]} : vector<4x64x32xf32> to vector<1x64x32xf32>
    %117 = vector.shape_cast %116 : vector<1x64x32xf32> to vector<64x32xf32>
    %118 = vector.extract_strided_slice %113 {offsets = [2, 0, 0], sizes = [1, 64, 32], strides = [1, 1, 1]} : vector<4x64x32xf32> to vector<1x64x32xf32>
    %119 = vector.shape_cast %118 : vector<1x64x32xf32> to vector<64x32xf32>
    %120 = vector.extract_strided_slice %113 {offsets = [3, 0, 0], sizes = [1, 64, 32], strides = [1, 1, 1]} : vector<4x64x32xf32> to vector<1x64x32xf32>
    %121 = vector.shape_cast %120 : vector<1x64x32xf32> to vector<64x32xf32>
    %122 = tpu.concatenate %115, %117, %119, %121 in 1 : vector<64x32xf32>, vector<64x32xf32>, vector<64x32xf32>, vector<64x32xf32> -> vector<64x128xf32>
    %cst_57 = arith.constant dense<0.000000e+00> : vector<64xf32>
    %123 = vector.multi_reduction <add>, %122, %cst_57 [1] : vector<64x128xf32> to vector<64xf32>
    %124 = vector.shape_cast %123 : vector<64xf32> to vector<64x1xf32>
    %cst_58 = arith.constant 1.280000e+02 : f32
    %125 = vector.broadcast %cst_58 : f32 to vector<64x1xf32>
    %126 = arith.divf %124, %125 : vector<64x1xf32>
    %127 = vector.broadcast %126 : vector<64x1xf32> to vector<64x128xf32>
    %128 = arith.subf %122, %127 : vector<64x128xf32>
    %129 = arith.mulf %128, %128 : vector<64x128xf32>
    %cst_59 = arith.constant dense<0.000000e+00> : vector<64xf32>
    %130 = vector.multi_reduction <add>, %129, %cst_59 [1] : vector<64x128xf32> to vector<64xf32>
    %131 = vector.shape_cast %130 : vector<64xf32> to vector<64x1xf32>
    %cst_60 = arith.constant 1.280000e+02 : f32
    %132 = vector.broadcast %cst_60 : f32 to vector<64x1xf32>
    %133 = arith.divf %131, %132 : vector<64x1xf32>
    %134 = vector.broadcast %126 : vector<64x1xf32> to vector<64x128xf32>
    %135 = arith.subf %122, %134 : vector<64x128xf32>
    %cst_61 = arith.constant 9.99999974E-6 : f32
    %136 = vector.broadcast %cst_61 : f32 to vector<64x1xf32>
    %137 = arith.addf %133, %136 : vector<64x1xf32>
    %138 = math.rsqrt %137 : vector<64x1xf32>
    %139 = vector.broadcast %138 : vector<64x1xf32> to vector<64x128xf32>
    %140 = arith.mulf %135, %139 : vector<64x128xf32>
    %c0_62 = arith.constant 0 : index
    %c0_63 = arith.constant 0 : index
    %141 = vector.load %arg10[%c0_62, %c0_63] : memref<1x128xf32, #tpu.memory_space<vmem>>, vector<1x128xf32>
    %142 = vector.broadcast %141 : vector<1x128xf32> to vector<64x128xf32>
    %143 = arith.mulf %140, %142 : vector<64x128xf32>
    %c0_64 = arith.constant 0 : index
    %c0_65 = arith.constant 0 : index
    %144 = vector.load %arg11[%c0_64, %c0_65] : memref<1x128xf32, #tpu.memory_space<vmem>>, vector<1x128xf32>
    %145 = vector.broadcast %144 : vector<1x128xf32> to vector<64x128xf32>
    %146 = arith.addf %143, %145 : vector<64x128xf32>
    %147 = arith.truncf %146 : vector<64x128xf32> to vector<64x128xbf16>
    %c0_66 = arith.constant 0 : index
    %c0_67 = arith.constant 0 : index
    %148 = vector.load %arg12[%c0_66, %c0_67] : memref<128x128xbf16, #tpu.memory_space<vmem>>, vector<128x128xbf16>
    %cst_68 = arith.constant dense<0.000000e+00> : vector<64x128xf32>
    %149 = tpu.matmul %147, %148, %cst_68 {dimension_numbers = #tpu.dot_dimension_numbers<[1], [0], [0], [1], [0, 0, 1, 1], [], []>} : vector<64x128xbf16>, vector<128x128xbf16>, vector<64x128xf32> -> vector<64x128xf32>
    %c0_69 = arith.constant 0 : index
    %c0_70 = arith.constant 0 : index
    %150 = vector.load %arg13[%c0_69, %c0_70] : memref<1x128xf32, #tpu.memory_space<vmem>>, vector<1x128xf32>
    %151 = vector.broadcast %150 : vector<1x128xf32> to vector<64x128xf32>
    %152 = arith.addf %149, %151 : vector<64x128xf32>
    %cst_71 = arith.constant 5.000000e-01 : f32
    %153 = vector.broadcast %cst_71 : f32 to vector<64x128xf32>
    %154 = arith.mulf %153, %152 : vector<64x128xf32>
    %cst_72 = arith.constant 4.471500e-02 : f32
    %155 = vector.broadcast %cst_72 : f32 to vector<64x128xf32>
    %156 = arith.mulf %155, %152 : vector<64x128xf32>
    %157 = arith.mulf %156, %152 : vector<64x128xf32>
    %158 = arith.mulf %157, %152 : vector<64x128xf32>
    %159 = arith.addf %152, %158 : vector<64x128xf32>
    %cst_73 = arith.constant 0.797884583 : f32
    %160 = vector.broadcast %cst_73 : f32 to vector<64x128xf32>
    %161 = arith.mulf %160, %159 : vector<64x128xf32>
    %162 = math.tanh %161 : vector<64x128xf32>
    %cst_74 = arith.constant 1.000000e+00 : f32
    %163 = vector.broadcast %cst_74 : f32 to vector<64x128xf32>
    %164 = arith.addf %163, %162 : vector<64x128xf32>
    %165 = arith.mulf %154, %164 : vector<64x128xf32>
    %166 = arith.addf %69, %165 : vector<64x128xf32>
    %167 = arith.truncf %166 : vector<64x128xf32> to vector<64x128xbf16>
    %c0_75 = arith.constant 0 : index
    %c0_76 = arith.constant 0 : index
    %168 = vector.load %arg14[%c0_75, %c0_76] : memref<128x128xbf16, #tpu.memory_space<vmem>>, vector<128x128xbf16>
    %cst_77 = arith.constant dense<0.000000e+00> : vector<64x128xf32>
    %169 = tpu.matmul %167, %168, %cst_77 {dimension_numbers = #tpu.dot_dimension_numbers<[1], [0], [0], [1], [0, 0, 1, 1], [], []>} : vector<64x128xbf16>, vector<128x128xbf16>, vector<64x128xf32> -> vector<64x128xf32>
    %170 = arith.addf %166, %169 : vector<64x128xf32>
    %c0_78 = arith.constant 0 : index
    %c0_79 = arith.constant 0 : index
    %171 = vector.load %arg15[%c0_78, %c0_79] : memref<1x128xf32, #tpu.memory_space<vmem>>, vector<1x128xf32>
    %172 = vector.broadcast %171 : vector<1x128xf32> to vector<64x128xf32>
    %173 = arith.addf %170, %172 : vector<64x128xf32>
    %174 = arith.truncf %173 : vector<64x128xf32> to vector<64x128xbf16>
    %c0_80 = arith.constant 0 : index
    %c0_81 = arith.constant 0 : index
    %c0_82 = arith.constant 0 : index
    %175 = vector.load %arg16[%c0_80, %c0_81, %c0_82] : memref<1x64x128xbf16, #tpu.memory_space<vmem>>, vector<1x64x128xbf16>
    %176 = vector.shape_cast %175 : vector<1x64x128xbf16> to vector<64x128xbf16>
    %177 = vector.shape_cast %174 : vector<64x128xbf16> to vector<1x64x128xbf16>
    tpu.vector_store %arg16[%c0_80, %c0_81, %c0_82], %177 {strides = array<i32>} : memref<1x64x128xbf16, #tpu.memory_space<vmem>>, vector<1x64x128xbf16>,
    return
  }
  func.func @transform_0(%arg0: i32) -> (i32, i32, i32) {
    %c0_i32 = arith.constant 0 : i32
    %c0_i32_0 = arith.constant 0 : i32
    %c0_i32_1 = arith.constant 0 : i32
    return %arg0, %c0_i32, %c0_i32_0 : i32, i32, i32
  }
  func.func @transform_1(%arg0: i32) -> (i32, i32, i32) {
    %c0_i32 = arith.constant 0 : i32
    %c0_i32_0 = arith.constant 0 : i32
    %c0_i32_1 = arith.constant 0 : i32
    %c0_i32_2 = arith.constant 0 : i32
    return %c0_i32, %c0_i32_0, %c0_i32_1 : i32, i32, i32
  }
  func.func @transform_2(%arg0: i32) -> (i32, i32) {
    %c0_i32 = arith.constant 0 : i32
    %c0_i32_0 = arith.constant 0 : i32
    %c0_i32_1 = arith.constant 0 : i32
    return %c0_i32, %c0_i32_0 : i32, i32
  }
  func.func @transform_3(%arg0: i32) -> (i32, i32, i32) {
    %c0_i32 = arith.constant 0 : i32
    %c0_i32_0 = arith.constant 0 : i32
    %c0_i32_1 = arith.constant 0 : i32
    %c0_i32_2 = arith.constant 0 : i32
    return %c0_i32, %c0_i32_0, %c0_i32_1 : i32, i32, i32
  }
  func.func @transform_4(%arg0: i32) -> (i32, i32) {
    %c0_i32 = arith.constant 0 : i32
    %c0_i32_0 = arith.constant 0 : i32
    %c0_i32_1 = arith.constant 0 : i32
    return %c0_i32, %c0_i32_0 : i32, i32
  }
  func.func @transform_5(%arg0: i32) -> (i32, i32) {
    %c0_i32 = arith.constant 0 : i32
    %c0_i32_0 = arith.constant 0 : i32
    %c0_i32_1 = arith.constant 0 : i32
    return %c0_i32, %c0_i32_0 : i32, i32
  }
  func.func @transform_6(%arg0: i32) -> (i32, i32, i32) {
    %c0_i32 = arith.constant 0 : i32
    %c0_i32_0 = arith.constant 0 : i32
    %c0_i32_1 = arith.constant 0 : i32
    %c0_i32_2 = arith.constant 0 : i32
    return %c0_i32, %c0_i32_0, %c0_i32_1 : i32, i32, i32
  }
  func.func @transform_7(%arg0: i32) -> (i32, i32) {
    %c0_i32 = arith.constant 0 : i32
    %c0_i32_0 = arith.constant 0 : i32
    %c0_i32_1 = arith.constant 0 : i32
    return %c0_i32, %c0_i32_0 : i32, i32
  }
  func.func @transform_8(%arg0: i32) -> (i32, i32) {
    %c0_i32 = arith.constant 0 : i32
    %c0_i32_0 = arith.constant 0 : i32
    %c0_i32_1 = arith.constant 0 : i32
    return %c0_i32, %c0_i32_0 : i32, i32
  }
  func.func @transform_9(%arg0: i32) -> (i32, i32) {
    %c0_i32 = arith.constant 0 : i32
    %c0_i32_0 = arith.constant 0 : i32
    %c0_i32_1 = arith.constant 0 : i32
    return %c0_i32, %c0_i32_0 : i32, i32
  }
  func.func @transform_10(%arg0: i32) -> (i32, i32) {
    %c0_i32 = arith.constant 0 : i32
    %c0_i32_0 = arith.constant 0 : i32
    %c0_i32_1 = arith.constant 0 : i32
    return %c0_i32, %c0_i32_0 : i32, i32
  }
  func.func @transform_11(%arg0: i32) -> (i32, i32) {
    %c0_i32 = arith.constant 0 : i32
    %c0_i32_0 = arith.constant 0 : i32
    %c0_i32_1 = arith.constant 0 : i32
    return %c0_i32, %c0_i32_0 : i32, i32
  }
  func.func @transform_12(%arg0: i32) -> (i32, i32) {
    %c0_i32 = arith.constant 0 : i32
    %c0_i32_0 = arith.constant 0 : i32
    %c0_i32_1 = arith.constant 0 : i32
    return %c0_i32, %c0_i32_0 : i32, i32
  }
  func.func @transform_13(%arg0: i32) -> (i32, i32) {
    %c0_i32 = arith.constant 0 : i32
    %c0_i32_0 = arith.constant 0 : i32
    %c0_i32_1 = arith.constant 0 : i32
    return %c0_i32, %c0_i32_0 : i32, i32
  }
  func.func @transform_14(%arg0: i32) -> (i32, i32) {
    %c0_i32 = arith.constant 0 : i32
    %c0_i32_0 = arith.constant 0 : i32
    %c0_i32_1 = arith.constant 0 : i32
    return %c0_i32, %c0_i32_0 : i32, i32
  }
  func.func @transform_15(%arg0: i32) -> (i32, i32, i32) {
    %c0_i32 = arith.constant 0 : i32
    %c0_i32_0 = arith.constant 0 : i32
    %c0_i32_1 = arith.constant 0 : i32
    return %arg0, %c0_i32, %c0_i32_0 : i32, i32, i32
  }
}

module attributes {stable_mosaic.version = 11 : i64} {
  func.func @_dense_kernel(%arg0: i32, %arg1: i32, %arg2: memref<2x2x4096xbf16, #tpu.memory_space<vmem>>, %arg3: memref<4096x512xbf16, #tpu.memory_space<vmem>>, %arg4: memref<1x512xf32, #tpu.memory_space<vmem>>, %arg5: memref<2x512xf32, #tpu.memory_space<vmem>>, %arg6: memref<2x512xf32, #tpu.memory_space<vmem>>) attributes {dimension_semantics = [#tpu.dimension_semantics<parallel>, #tpu.dimension_semantics<arbitrary>], iteration_bounds = array<i64: 1, 2>, scalar_prefetch = 0 : i64, scratch_operands = 1 : i64, tpu.core_type = #tpu.core_type<tc>, window_params = [{pipeline_mode = #tpu.pipeline_mode<synchronous>, transform_indices = @transform_0, window_bounds = array<i64: 2, 2, 4096>}, {transform_indices = @transform_1, window_bounds = array<i64: 4096, 512>}, {transform_indices = @transform_2, window_bounds = array<i64: 1, 512>}, {transform_indices = @transform_3, window_bounds = array<i64: 2, 512>}]} {
    %c0_i32 = arith.constant 0 : i32
    %0 = arith.cmpi eq, %arg1, %c0_i32 : i32
    %1 = arith.extui %0 : i1 to i32
    %c0_i32_0 = arith.constant 0 : i32
    %2 = arith.cmpi ne, %1, %c0_i32_0 : i32
    scf.if %2 {
      %cst_9 = arith.constant 0.000000e+00 : f32
      %14 = vector.broadcast %cst_9 : f32 to vector<2x512xf32>
      %c0_10 = arith.constant 0 : index
      %c0_11 = arith.constant 0 : index
      %15 = vector.load %arg6[%c0_10, %c0_11] : memref<2x512xf32, #tpu.memory_space<vmem>>, vector<2x512xf32>
      tpu.vector_store %arg6[%c0_10, %c0_11], %14 {strides = array<i32>} : memref<2x512xf32, #tpu.memory_space<vmem>>, vector<2x512xf32>,
    } else {
    }
    %c0 = arith.constant 0 : index
    %c0_1 = arith.constant 0 : index
    %3 = vector.load %arg6[%c0, %c0_1] : memref<2x512xf32, #tpu.memory_space<vmem>>, vector<2x512xf32>
    %4 = arith.index_cast %arg1 : i32 to index
    %c0_2 = arith.constant 0 : index
    %c0_3 = arith.constant 0 : index
    %5 = vector.load %arg2[%4, %c0_2, %c0_3] : memref<2x2x4096xbf16, #tpu.memory_space<vmem>>, vector<1x2x4096xbf16>
    %6 = vector.shape_cast %5 : vector<1x2x4096xbf16> to vector<2x4096xbf16>
    %c0_4 = arith.constant 0 : index
    %c0_5 = arith.constant 0 : index
    %7 = vector.load %arg3[%c0_4, %c0_5] : memref<4096x512xbf16, #tpu.memory_space<vmem>>, vector<4096x512xbf16>
    %cst = arith.constant dense<0.000000e+00> : vector<2x512xf32>
    %8 = tpu.matmul %6, %7, %cst {dimension_numbers = #tpu.dot_dimension_numbers<[1], [0], [0], [1], [0, 0, 1, 1], [], []>} : vector<2x4096xbf16>, vector<4096x512xbf16>, vector<2x512xf32> -> vector<2x512xf32>
    %9 = arith.addf %3, %8 : vector<2x512xf32>
    %c0_6 = arith.constant 0 : index
    %c0_7 = arith.constant 0 : index
    %10 = vector.load %arg6[%c0_6, %c0_7] : memref<2x512xf32, #tpu.memory_space<vmem>>, vector<2x512xf32>
    tpu.vector_store %arg6[%c0_6, %c0_7], %9 {strides = array<i32>} : memref<2x512xf32, #tpu.memory_space<vmem>>, vector<2x512xf32>,
    %c1_i32 = arith.constant 1 : i32
    %11 = arith.cmpi eq, %arg1, %c1_i32 : i32
    %12 = arith.extui %11 : i1 to i32
    %c0_i32_8 = arith.constant 0 : i32
    %13 = arith.cmpi ne, %12, %c0_i32_8 : i32
    scf.if %13 {
      %c0_9 = arith.constant 0 : index
      %c0_10 = arith.constant 0 : index
      %14 = vector.load %arg6[%c0_9, %c0_10] : memref<2x512xf32, #tpu.memory_space<vmem>>, vector<2x512xf32>
      %c0_11 = arith.constant 0 : index
      %c0_12 = arith.constant 0 : index
      %15 = vector.load %arg4[%c0_11, %c0_12] : memref<1x512xf32, #tpu.memory_space<vmem>>, vector<1x512xf32>
      %16 = vector.broadcast %15 : vector<1x512xf32> to vector<2x512xf32>
      %17 = arith.addf %14, %16 : vector<2x512xf32>
      %c0_13 = arith.constant 0 : index
      %c0_14 = arith.constant 0 : index
      %18 = vector.load %arg5[%c0_13, %c0_14] : memref<2x512xf32, #tpu.memory_space<vmem>>, vector<2x512xf32>
      tpu.vector_store %arg5[%c0_13, %c0_14], %17 {strides = array<i32>} : memref<2x512xf32, #tpu.memory_space<vmem>>, vector<2x512xf32>,
    } else {
    }
    return
  }
  func.func @transform_0(%arg0: i32, %arg1: i32) -> (i32, i32, i32) {
    %c0_i32 = arith.constant 0 : i32
    %c0_i32_0 = arith.constant 0 : i32
    %c0_i32_1 = arith.constant 0 : i32
    %c0_i32_2 = arith.constant 0 : i32
    return %c0_i32, %c0_i32_0, %c0_i32_1 : i32, i32, i32
  }
  func.func @transform_1(%arg0: i32, %arg1: i32) -> (i32, i32) {
    %c0_i32 = arith.constant 0 : i32
    return %arg1, %arg0 : i32, i32
  }
  func.func @transform_2(%arg0: i32, %arg1: i32) -> (i32, i32) {
    %c0_i32 = arith.constant 0 : i32
    %c0_i32_0 = arith.constant 0 : i32
    return %c0_i32, %arg0 : i32, i32
  }
  func.func @transform_3(%arg0: i32, %arg1: i32) -> (i32, i32) {
    %c0_i32 = arith.constant 0 : i32
    %c0_i32_0 = arith.constant 0 : i32
    return %c0_i32, %arg0 : i32, i32
  }
}

</mosaic_0001>

<llo_original>
// kernel: decoder_forward.2
$region0: #{decoder_forward.2}
  #allocation0 [shape = 'u32[]', space=smem, size = 0x4, offset = 0x4, fixed_abs, tag = 'smem constant byte address 0x4 - core index']
  #allocation1 [shape = 'u32[72,128]{1,0:T(1,128)}', space=vmem, size = 0x9000, scoped, tag = 'internal scratch']
  %s0 = inlined_call_operand.vmem [shape: bf16[2,128,128], index: 0, kind: input, shape index: {}]
  %s1 = inlined_call_operand.hbm [shape: bf16[3,128,128], index: 1, kind: input, shape index: {}]
  %s2 = inlined_call_operand.hbm [shape: f32[1,128], index: 2, kind: input, shape index: {}]
  %s3 = inlined_call_operand.hbm [shape: bf16[3,128,128], index: 3, kind: input, shape index: {}]
  %s4 = inlined_call_operand.hbm [shape: f32[1,128], index: 4, kind: input, shape index: {}]
  %s5 = inlined_call_operand.vmem [shape: bf16[64,128], index: 5, kind: input, shape index: {}]
  %s6 = inlined_call_operand.hbm [shape: bf16[3,128,128], index: 6, kind: input, shape index: {}]
  %s7 = inlined_call_operand.hbm [shape: f32[1,128], index: 7, kind: input, shape index: {}]
  %s8 = inlined_call_operand.hbm [shape: bf16[128,384], index: 8, kind: input, shape index: {}]
  %s9 = inlined_call_operand.hbm [shape: f32[1,128], index: 9, kind: input, shape index: {}]
  %s10 = inlined_call_operand.hbm [shape: f32[1,128], index: 10, kind: input, shape index: {}]
  %s11 = inlined_call_operand.hbm [shape: bf16[128,128], index: 11, kind: input, shape index: {}]
  %s12 = inlined_call_operand.hbm [shape: f32[1,128], index: 12, kind: input, shape index: {}]
  %s13 = inlined_call_operand.hbm [shape: bf16[128,128], index: 13, kind: input, shape index: {}]
  %s14 = inlined_call_operand.hbm [shape: f32[1,128], index: 14, kind: input, shape index: {}]
  %s15 = inlined_call_operand.vmem [shape: bf16[2,64,128], index: 15, kind: output, shape index: {}]
  %s16 = sld [smem:[#allocation0]]
  $region145: #{decoder_forward.2} parent=0
    _
  %s18 = ssub.s32 1, %s16
  %s19 = scalar_select 0, %s18, %s16
  $region1: #{decoder_forward.2} parent=0
    #allocation2 [shape = 'u8[98304]{0}', space=vmem, size = 0x18000, scoped, tag = 'input window, operand 1, single buffered']
    #allocation3 [shape = 's32[2]{0}', space=sflag, size = 0x8, scoped, tag = 'scoped memory for decoder_forward.2']
    #allocation4 [shape = 'u8[512]{0}', space=vmem, size = 0x400, scoped, tag = 'input window, operand 2, single buffered']
    #allocation5 [shape = 's32[1]{0}', space=sflag, size = 0x4, scoped, tag = 'scoped memory for decoder_forward.2']
    #allocation6 [shape = 'u8[98304]{0}', space=vmem, size = 0x18000, scoped, tag = 'input window, operand 3, single buffered']
    #allocation7 [shape = 'u8[512]{0}', space=vmem, size = 0x400, scoped, tag = 'input window, operand 4, single buffered']
    #allocation8 [shape = 's32[1]{0}', space=sflag, size = 0x4, scoped, tag = 'scoped memory for decoder_forward.2']
    #allocation9 [shape = 'u8[98304]{0}', space=vmem, size = 0x18000, scoped, tag = 'input window, operand 6, single buffered']
    #allocation10 [shape = 'u8[512]{0}', space=vmem, size = 0x400, scoped, tag = 'input window, operand 7, single buffered']
    #allocation11 [shape = 's32[1]{0}', space=sflag, size = 0x4, scoped, tag = 'scoped memory for decoder_forward.2']
    #allocation12 [shape = 'u8[98304]{0}', space=vmem, size = 0x18000, scoped, tag = 'input window, operand 8, single buffered']
    #allocation13 [shape = 'u8[512]{0}', space=vmem, size = 0x400, scoped, tag = 'input window, operand 9, single buffered']
    #allocation14 [shape = 's32[1]{0}', space=sflag, size = 0x4, scoped, tag = 'scoped memory for decoder_forward.2']
    #allocation15 [shape = 'u8[512]{0}', space=vmem, size = 0x400, scoped, tag = 'input window, operand 10, single buffered']
    #allocation16 [shape = 'u8[32768]{0}', space=vmem, size = 0x8000, scoped, tag = 'input window, operand 11, single buffered']
    #allocation17 [shape = 's32[1]{0}', space=sflag, size = 0x4, scoped, tag = 'scoped memory for decoder_forward.2']
    #allocation18 [shape = 'u8[512]{0}', space=vmem, size = 0x400, scoped, tag = 'input window, operand 12, single buffered']
    #allocation19 [shape = 'u8[32768]{0}', space=vmem, size = 0x8000, scoped, tag = 'input window, operand 13, single buffered']
    #allocation20 [shape = 's32[1]{0}', space=sflag, size = 0x4, scoped, tag = 'scoped memory for decoder_forward.2']
    #allocation21 [shape = 'u8[512]{0}', space=vmem, size = 0x400, scoped, tag = 'input window, operand 14, single buffered']
    %20 = vsyncpa [#allocation3], 0
    %21 = vsyncpa [#allocation5], 0
    %22 = vsyncpa [#allocation8], 0
    %23 = vsyncpa [#allocation11], 0
    %24 = vsyncpa [#allocation14], 0
    %25 = vsyncpa [#allocation17], 0
    %26 = vsyncpa [#allocation20], 0
    loop: start=0, step=1, limit=4
    $region2: #{decoder_forward.2} parent=1 // loop_pre_header
      _
    $region3: #{decoder_forward.2} parent=1 // loop_header
      %s28 = sphi 0, %s32
      %p29 = scmp.ge.s32.totalorder %s28, 4
      %s38 = sphi 0, %s40
      %s41 = sphi 0, %s38
      %s42 = sphi 0, %s41
      %s58 = sphi 0, %s42
      %s62 = sphi 0, %s62
      %s64 = sphi 0, %s62
      %s65 = sphi 0, %s64
      %s79 = sphi 0, %s65
      %s83 = sphi 0, %s83
      %s85 = sphi 0, %s83
      %s86 = sphi 0, %s85
      %s100 = sphi 0, %s86
      %s104 = sphi 0, %s104
      %s106 = sphi 0, %s104
      %s107 = sphi 0, %s106
      %s121 = sphi 0, %s107
      %s125 = sphi 0, %s125
      %s127 = sphi 0, %s125
      %s128 = sphi 0, %s127
      %s142 = sphi 0, %s128
      %s146 = sphi 0, %s146
      %s148 = sphi 0, %s146
      %s149 = sphi 0, %s148
      %s163 = sphi 0, %s149
      %s167 = sphi 0, %s167
      %s169 = sphi 0, %s167
      %s170 = sphi 0, %s169
      %s184 = sphi 0, %s170
      %s188 = sphi 0, %s188
      %s190 = sphi 0, %s188
      %s191 = sphi 0, %s190
      %s205 = sphi 0, %s191
      %s209 = sphi 0, %s209
      %s211 = sphi 0, %s209
      %s212 = sphi 0, %s211
      %s226 = sphi 0, %s212
      %s230 = sphi 0, %s230
      %s232 = sphi 0, %s230
      %s233 = sphi 0, %s232
      %s247 = sphi 0, %s233
      %s251 = sphi 0, %s251
      %s253 = sphi 0, %s251
      %s254 = sphi 0, %s253
      %s268 = sphi 0, %s254
      %s272 = sphi 0, %s272
      %s274 = sphi 0, %s272
      %s275 = sphi 0, %s274
      %s289 = sphi 0, %s275
      %s293 = sphi 0, %s293
      %s295 = sphi 0, %s293
      %s296 = sphi 0, %s295
      %s310 = sphi 0, %s296
      %s314 = sphi 0, %s314
      %s316 = sphi 0, %s314
      %s317 = sphi 0, %s316
      %s331 = sphi 0, %s317
      %s335 = sphi 0, %s335
      %s337 = sphi 0, %s335
      %s338 = sphi 0, %s337
      %s352 = sphi 0, %s338
      %s358 = sphi 0, %s360
      %s361 = sphi 0, %s358
      %s362 = sphi 0, %s361
      %s378 = sphi 0, %s362
    $region4: #{decoder_forward.2} parent=1 // loop_header_branch
      %31 = sbr.rel (%p29) target = $region8
    $region5: #{decoder_forward.2} parent=1 // loop_body
      %s33 = ssub.s32 %s28, 1
      %s34 = ssub.s32 %s28, 2
      %s35 = sadd.s32 %s28, 1
      %s36 = ssub.s32 %s28, %s35
      %p37 = scmp.eq.s32.totalorder %s36, 0
      %s39 = sadd.s32 %s38, 1
      %s40 = scalar_select %p37, %s38, %s39
      %p43 = pneg %p37
      %p44 = scmp.eq.s32.totalorder %s28, 1
      %p45 = por %p43, %p44
      %p46 = scmp.ne.s32.totalorder %s38, %s41
      %p47 = scmp.eq.s32.totalorder %s28, 0
      %p48 = por %p46, %p47
      %p49 = scmp.ne.s32.totalorder %s38, %s41
      %p50 = scmp.eq.s32.totalorder %s33, 1
      %p51 = por %p49, %p50
      %p52 = scmp.ne.s32.totalorder %s41, %s42
      %p53 = scmp.eq.s32.totalorder %s33, 0
      %p54 = por %p52, %p53
      %p55 = scmp.ne.s32.totalorder %s41, %s42
      %p56 = scmp.eq.s32.totalorder %s34, 1
      %p57 = por %p55, %p56
      %p59 = scmp.ne.s32.totalorder %s42, %s58
      %p60 = scmp.eq.s32.totalorder %s34, 0
      %p61 = por %p59, %p60
      %s63 = sadd.s32 %s62, 1
      %p66 = scmp.eq.s32.totalorder %s28, 1
      %p67 = scmp.ne.s32.totalorder %s62, %s64
      %p68 = scmp.eq.s32.totalorder %s28, 0
      %p69 = por %p67, %p68
      %p70 = scmp.ne.s32.totalorder %s62, %s64
      %p71 = scmp.eq.s32.totalorder %s33, 1
      %p72 = por %p70, %p71
      %p73 = scmp.ne.s32.totalorder %s64, %s65
      %p74 = scmp.eq.s32.totalorder %s33, 0
      %p75 = por %p73, %p74
      %p76 = scmp.ne.s32.totalorder %s64, %s65
      %p77 = scmp.eq.s32.totalorder %s34, 1
      %p78 = por %p76, %p77
      %p80 = scmp.ne.s32.totalorder %s65, %s79
      %p81 = scmp.eq.s32.totalorder %s34, 0
      %p82 = por %p80, %p81
      %s84 = sadd.s32 %s83, 1
      %p87 = scmp.eq.s32.totalorder %s28, 1
      %p88 = scmp.ne.s32.totalorder %s83, %s85
      %p89 = scmp.eq.s32.totalorder %s28, 0
      %p90 = por %p88, %p89
      %p91 = scmp.ne.s32.totalorder %s83, %s85
      %p92 = scmp.eq.s32.totalorder %s33, 1
      %p93 = por %p91, %p92
      %p94 = scmp.ne.s32.totalorder %s85, %s86
      %p95 = scmp.eq.s32.totalorder %s33, 0
      %p96 = por %p94, %p95
      %p97 = scmp.ne.s32.totalorder %s85, %s86
      %p98 = scmp.eq.s32.totalorder %s34, 1
      %p99 = por %p97, %p98
      %p101 = scmp.ne.s32.totalorder %s86, %s100
      %p102 = scmp.eq.s32.totalorder %s34, 0
      %p103 = por %p101, %p102
      %s105 = sadd.s32 %s104, 1
      %p108 = scmp.eq.s32.totalorder %s28, 1
      %p109 = scmp.ne.s32.totalorder %s104, %s106
      %p110 = scmp.eq.s32.totalorder %s28, 0
      %p111 = por %p109, %p110
      %p112 = scmp.ne.s32.totalorder %s104, %s106
      %p113 = scmp.eq.s32.totalorder %s33, 1
      %p114 = por %p112, %p113
      %p115 = scmp.ne.s32.totalorder %s106, %s107
      %p116 = scmp.eq.s32.totalorder %s33, 0
      %p117 = por %p115, %p116
      %p118 = scmp.ne.s32.totalorder %s106, %s107
      %p119 = scmp.eq.s32.totalorder %s34, 1
      %p120 = por %p118, %p119
      %p122 = scmp.ne.s32.totalorder %s107, %s121
      %p123 = scmp.eq.s32.totalorder %s34, 0
      %p124 = por %p122, %p123
      %s126 = sadd.s32 %s125, 1
      %p129 = scmp.eq.s32.totalorder %s28, 1
      %p130 = scmp.ne.s32.totalorder %s125, %s127
      %p131 = scmp.eq.s32.totalorder %s28, 0
      %p132 = por %p130, %p131
      %p133 = scmp.ne.s32.totalorder %s125, %s127
      %p134 = scmp.eq.s32.totalorder %s33, 1
      %p135 = por %p133, %p134
      %p136 = scmp.ne.s32.totalorder %s127, %s128
      %p137 = scmp.eq.s32.totalorder %s33, 0
      %p138 = por %p136, %p137
      %p139 = scmp.ne.s32.totalorder %s127, %s128
      %p140 = scmp.eq.s32.totalorder %s34, 1
      %p141 = por %p139, %p140
      %p143 = scmp.ne.s32.totalorder %s128, %s142
      %p144 = scmp.eq.s32.totalorder %s34, 0
      %p145 = por %p143, %p144
      %s147 = sadd.s32 %s146, 1
      %p150 = scmp.eq.s32.totalorder %s28, 1
      %p151 = scmp.ne.s32.totalorder %s146, %s148
      %p152 = scmp.eq.s32.totalorder %s28, 0
      %p153 = por %p151, %p152
      %p154 = scmp.ne.s32.totalorder %s146, %s148
      %p155 = scmp.eq.s32.totalorder %s33, 1
      %p156 = por %p154, %p155
      %p157 = scmp.ne.s32.totalorder %s148, %s149
      %p158 = scmp.eq.s32.totalorder %s33, 0
      %p159 = por %p157, %p158
      %p160 = scmp.ne.s32.totalorder %s148, %s149
      %p161 = scmp.eq.s32.totalorder %s34, 1
      %p162 = por %p160, %p161
      %p164 = scmp.ne.s32.totalorder %s149, %s163
      %p165 = scmp.eq.s32.totalorder %s34, 0
      %p166 = por %p164, %p165
      %s168 = sadd.s32 %s167, 1
      %p171 = scmp.eq.s32.totalorder %s28, 1
      %p172 = scmp.ne.s32.totalorder %s167, %s169
      %p173 = scmp.eq.s32.totalorder %s28, 0
      %p174 = por %p172, %p173
      %p175 = scmp.ne.s32.totalorder %s167, %s169
      %p176 = scmp.eq.s32.totalorder %s33, 1
      %p177 = por %p175, %p176
      %p178 = scmp.ne.s32.totalorder %s169, %s170
      %p179 = scmp.eq.s32.totalorder %s33, 0
      %p180 = por %p178, %p179
      %p181 = scmp.ne.s32.totalorder %s169, %s170
      %p182 = scmp.eq.s32.totalorder %s34, 1
      %p183 = por %p181, %p182
      %p185 = scmp.ne.s32.totalorder %s170, %s184
      %p186 = scmp.eq.s32.totalorder %s34, 0
      %p187 = por %p185, %p186
      %s189 = sadd.s32 %s188, 1
      %p192 = scmp.eq.s32.totalorder %s28, 1
      %p193 = scmp.ne.s32.totalorder %s188, %s190
      %p194 = scmp.eq.s32.totalorder %s28, 0
      %p195 = por %p193, %p194
      %p196 = scmp.ne.s32.totalorder %s188, %s190
      %p197 = scmp.eq.s32.totalorder %s33, 1
      %p198 = por %p196, %p197
      %p199 = scmp.ne.s32.totalorder %s190, %s191
      %p200 = scmp.eq.s32.totalorder %s33, 0
      %p201 = por %p199, %p200
      %p202 = scmp.ne.s32.totalorder %s190, %s191
      %p203 = scmp.eq.s32.totalorder %s34, 1
      %p204 = por %p202, %p203
      %p206 = scmp.ne.s32.totalorder %s191, %s205
      %p207 = scmp.eq.s32.totalorder %s34, 0
      %p208 = por %p206, %p207
      %s210 = sadd.s32 %s209, 1
      %p213 = scmp.eq.s32.totalorder %s28, 1
      %p214 = scmp.ne.s32.totalorder %s209, %s211
      %p215 = scmp.eq.s32.totalorder %s28, 0
      %p216 = por %p214, %p215
      %p217 = scmp.ne.s32.totalorder %s209, %s211
      %p218 = scmp.eq.s32.totalorder %s33, 1
      %p219 = por %p217, %p218
      %p220 = scmp.ne.s32.totalorder %s211, %s212
      %p221 = scmp.eq.s32.totalorder %s33, 0
      %p222 = por %p220, %p221
      %p223 = scmp.ne.s32.totalorder %s211, %s212
      %p224 = scmp.eq.s32.totalorder %s34, 1
      %p225 = por %p223, %p224
      %p227 = scmp.ne.s32.totalorder %s212, %s226
      %p228 = scmp.eq.s32.totalorder %s34, 0
      %p229 = por %p227, %p228
      %s231 = sadd.s32 %s230, 1
      %p234 = scmp.eq.s32.totalorder %s28, 1
      %p235 = scmp.ne.s32.totalorder %s230, %s232
      %p236 = scmp.eq.s32.totalorder %s28, 0
      %p237 = por %p235, %p236
      %p238 = scmp.ne.s32.totalorder %s230, %s232
      %p239 = scmp.eq.s32.totalorder %s33, 1
      %p240 = por %p238, %p239
      %p241 = scmp.ne.s32.totalorder %s232, %s233
      %p242 = scmp.eq.s32.totalorder %s33, 0
      %p243 = por %p241, %p242
      %p244 = scmp.ne.s32.totalorder %s232, %s233
      %p245 = scmp.eq.s32.totalorder %s34, 1
      %p246 = por %p244, %p245
      %p248 = scmp.ne.s32.totalorder %s233, %s247
      %p249 = scmp.eq.s32.totalorder %s34, 0
      %p250 = por %p248, %p249
      %s252 = sadd.s32 %s251, 1
      %p255 = scmp.eq.s32.totalorder %s28, 1
      %p256 = scmp.ne.s32.totalorder %s251, %s253
      %p257 = scmp.eq.s32.totalorder %s28, 0
      %p258 = por %p256, %p257
      %p259 = scmp.ne.s32.totalorder %s251, %s253
      %p260 = scmp.eq.s32.totalorder %s33, 1
      %p261 = por %p259, %p260
      %p262 = scmp.ne.s32.totalorder %s253, %s254
      %p263 = scmp.eq.s32.totalorder %s33, 0
      %p264 = por %p262, %p263
      %p265 = scmp.ne.s32.totalorder %s253, %s254
      %p266 = scmp.eq.s32.totalorder %s34, 1
      %p267 = por %p265, %p266
      %p269 = scmp.ne.s32.totalorder %s254, %s268
      %p270 = scmp.eq.s32.totalorder %s34, 0
      %p271 = por %p269, %p270
      %s273 = sadd.s32 %s272, 1
      %p276 = scmp.eq.s32.totalorder %s28, 1
      %p277 = scmp.ne.s32.totalorder %s272, %s274
      %p278 = scmp.eq.s32.totalorder %s28, 0
      %p279 = por %p277, %p278
      %p280 = scmp.ne.s32.totalorder %s272, %s274
      %p281 = scmp.eq.s32.totalorder %s33, 1
      %p282 = por %p280, %p281
      %p283 = scmp.ne.s32.totalorder %s274, %s275
      %p284 = scmp.eq.s32.totalorder %s33, 0
      %p285 = por %p283, %p284
      %p286 = scmp.ne.s32.totalorder %s274, %s275
      %p287 = scmp.eq.s32.totalorder %s34, 1
      %p288 = por %p286, %p287
      %p290 = scmp.ne.s32.totalorder %s275, %s289
      %p291 = scmp.eq.s32.totalorder %s34, 0
      %p292 = por %p290, %p291
      %s294 = sadd.s32 %s293, 1
      %p297 = scmp.eq.s32.totalorder %s28, 1
      %p298 = scmp.ne.s32.totalorder %s293, %s295
      %p299 = scmp.eq.s32.totalorder %s28, 0
      %p300 = por %p298, %p299
      %p301 = scmp.ne.s32.totalorder %s293, %s295
      %p302 = scmp.eq.s32.totalorder %s33, 1
      %p303 = por %p301, %p302
      %p304 = scmp.ne.s32.totalorder %s295, %s296
      %p305 = scmp.eq.s32.totalorder %s33, 0
      %p306 = por %p304, %p305
      %p307 = scmp.ne.s32.totalorder %s295, %s296
      %p308 = scmp.eq.s32.totalorder %s34, 1
      %p309 = por %p307, %p308
      %p311 = scmp.ne.s32.totalorder %s296, %s310
      %p312 = scmp.eq.s32.totalorder %s34, 0
      %p313 = por %p311, %p312
      %s315 = sadd.s32 %s314, 1
      %p318 = scmp.eq.s32.totalorder %s28, 1
      %p319 = scmp.ne.s32.totalorder %s314, %s316
      %p320 = scmp.eq.s32.totalorder %s28, 0
      %p321 = por %p319, %p320
      %p322 = scmp.ne.s32.totalorder %s314, %s316
      %p323 = scmp.eq.s32.totalorder %s33, 1
      %p324 = por %p322, %p323
      %p325 = scmp.ne.s32.totalorder %s316, %s317
      %p326 = scmp.eq.s32.totalorder %s33, 0
      %p327 = por %p325, %p326
      %p328 = scmp.ne.s32.totalorder %s316, %s317
      %p329 = scmp.eq.s32.totalorder %s34, 1
      %p330 = por %p328, %p329
      %p332 = scmp.ne.s32.totalorder %s317, %s331
      %p333 = scmp.eq.s32.totalorder %s34, 0
      %p334 = por %p332, %p333
      %s336 = sadd.s32 %s335, 1
      %p339 = scmp.eq.s32.totalorder %s28, 1
      %p340 = scmp.ne.s32.totalorder %s335, %s337
      %p341 = scmp.eq.s32.totalorder %s28, 0
      %p342 = por %p340, %p341
      %p343 = scmp.ne.s32.totalorder %s335, %s337
      %p344 = scmp.eq.s32.totalorder %s33, 1
      %p345 = por %p343, %p344
      %p346 = scmp.ne.s32.totalorder %s337, %s338
      %p347 = scmp.eq.s32.totalorder %s33, 0
      %p348 = por %p346, %p347
      %p349 = scmp.ne.s32.totalorder %s337, %s338
      %p350 = scmp.eq.s32.totalorder %s34, 1
      %p351 = por %p349, %p350
      %p353 = scmp.ne.s32.totalorder %s338, %s352
      %p354 = scmp.eq.s32.totalorder %s34, 0
      %p355 = por %p353, %p354
      %s356 = ssub.s32 %s28, %s35
      %p357 = scmp.eq.s32.totalorder %s356, 0
      %s359 = sadd.s32 %s358, 1
      %s360 = scalar_select %p357, %s358, %s359
      %p363 = pneg %p357
      %p364 = scmp.eq.s32.totalorder %s28, 1
      %p365 = por %p363, %p364
      %p366 = scmp.ne.s32.totalorder %s358, %s361
      %p367 = scmp.eq.s32.totalorder %s28, 0
      %p368 = por %p366, %p367
      %p369 = scmp.ne.s32.totalorder %s358, %s361
      %p370 = scmp.eq.s32.totalorder %s33, 1
      %p371 = por %p369, %p370
      %p372 = scmp.ne.s32.totalorder %s361, %s362
      %p373 = scmp.eq.s32.totalorder %s33, 0
      %p374 = por %p372, %p373
      %p375 = scmp.ne.s32.totalorder %s361, %s362
      %p376 = scmp.eq.s32.totalorder %s34, 1
      %p377 = por %p375, %p376
      %p379 = scmp.ne.s32.totalorder %s362, %s378
      %p380 = scmp.eq.s32.totalorder %s34, 0
      %p381 = por %p379, %p380
      %p382 = scmp.le.s32.totalorder 1, %s28
      %p383 = scmp.lt.s32.totalorder %s28, 3
      %p384 = pnand %p382, %p383
      %p385 = pneg %p384
      // Predicated region
      $region9: #{decoder_forward.2} parent=5 // pred_check
        _
      $region10: #{decoder_forward.2} parent=5 // pred_check_branch
        %387 = sbr.rel (%p384) target = $region12
      $region11: #{decoder_forward.2} parent=5 // pred_region
        %s388 = ssub.s32 %s28, 1
        // Predicated region
        $region13: #{decoder_forward.2} parent=11 // pred_check
          %p389 = pneg %p75
        $region14: #{decoder_forward.2} parent=11 // pred_check_branch
          %391 = sbr.rel (%p389) target = $region16
        $region15: #{decoder_forward.2} parent=11 // pred_region
          %393 = vsyncadd [#allocation3], 0
          %s394 = sshll.u32 %s1, 4
          %s395 = int_to_ptr.hbm [resolvable:$true] %s394
          %s396 = sshll.u32 [#allocation2], 4
          %s397 = int_to_ptr.vmem [resolvable:$true] %s396
          %402 = dma.hbm_to_vmem [thread:$0]  %s395, 3072, %s397, [#allocation3], 64, 64, 4
        $region16: #{decoder_forward.2} parent=11 // pred_fallthru
          _
        // Predicated region
        $region17: #{decoder_forward.2} parent=11 // pred_check
          %p403 = pneg %p96
        $region18: #{decoder_forward.2} parent=11 // pred_check_branch
          %405 = sbr.rel (%p403) target = $region20
        $region19: #{decoder_forward.2} parent=11 // pred_region
          %407 = vsyncadd [#allocation5], 0
          %s409 = sshll.u32 %s2, 4
          %s410 = int_to_ptr.hbm [resolvable:$true] %s409
          %s411 = sshll.u32 [#allocation4], 4
          %s412 = int_to_ptr.vmem [resolvable:$true] %s411
          %414 = dma.hbm_to_vmem [thread:$0]  %s410, 16, %s412, [#allocation5]
        $region20: #{decoder_forward.2} parent=11 // pred_fallthru
          _
        // Predicated region
        $region21: #{decoder_forward.2} parent=11 // pred_check
          %p415 = pneg %p117
        $region22: #{decoder_forward.2} parent=11 // pred_check_branch
          %417 = sbr.rel (%p415) target = $region24
        $region23: #{decoder_forward.2} parent=11 // pred_region
          %419 = vsyncadd [#allocation5], 0
          %s420 = sshll.u32 %s3, 4
          %s421 = int_to_ptr.hbm [resolvable:$true] %s420
          %s422 = sshll.u32 [#allocation6], 4
          %s423 = int_to_ptr.vmem [resolvable:$true] %s422
          %428 = dma.hbm_to_vmem [thread:$0]  %s421, 3072, %s423, [#allocation5], 64, 64, 4
        $region24: #{decoder_forward.2} parent=11 // pred_fallthru
          _
        // Predicated region
        $region25: #{decoder_forward.2} parent=11 // pred_check
          %p429 = pneg %p138
        $region26: #{decoder_forward.2} parent=11 // pred_check_branch
          %431 = sbr.rel (%p429) target = $region28
        $region27: #{decoder_forward.2} parent=11 // pred_region
          %433 = vsyncadd [#allocation8], 0
          %s435 = sshll.u32 %s4, 4
          %s436 = int_to_ptr.hbm [resolvable:$true] %s435
          %s437 = sshll.u32 [#allocation7], 4
          %s438 = int_to_ptr.vmem [resolvable:$true] %s437
          %440 = dma.hbm_to_vmem [thread:$0]  %s436, 16, %s438, [#allocation8]
        $region28: #{decoder_forward.2} parent=11 // pred_fallthru
          _
        // Predicated region
        $region29: #{decoder_forward.2} parent=11 // pred_check
          %p441 = pneg %p159
        $region30: #{decoder_forward.2} parent=11 // pred_check_branch
          %443 = sbr.rel (%p441) target = $region32
        $region31: #{decoder_forward.2} parent=11 // pred_region
          _
        $region32: #{decoder_forward.2} parent=11 // pred_fallthru
          _
        // Predicated region
        $region33: #{decoder_forward.2} parent=11 // pred_check
          %p444 = pneg %p180
        $region34: #{decoder_forward.2} parent=11 // pred_check_branch
          %446 = sbr.rel (%p444) target = $region36
        $region35: #{decoder_forward.2} parent=11 // pred_region
          %448 = vsyncadd [#allocation8], 0
          %s449 = sshll.u32 %s6, 4
          %s450 = int_to_ptr.hbm [resolvable:$true] %s449
          %s451 = sshll.u32 [#allocation9], 4
          %s452 = int_to_ptr.vmem [resolvable:$true] %s451
          %457 = dma.hbm_to_vmem [thread:$0]  %s450, 3072, %s452, [#allocation8], 64, 64, 4
        $region36: #{decoder_forward.2} parent=11 // pred_fallthru
          _
        // Predicated region
        $region37: #{decoder_forward.2} parent=11 // pred_check
          %p458 = pneg %p201
        $region38: #{decoder_forward.2} parent=11 // pred_check_branch
          %460 = sbr.rel (%p458) target = $region40
        $region39: #{decoder_forward.2} parent=11 // pred_region
          %462 = vsyncadd [#allocation11], 0
          %s464 = sshll.u32 %s7, 4
          %s465 = int_to_ptr.hbm [resolvable:$true] %s464
          %s466 = sshll.u32 [#allocation10], 4
          %s467 = int_to_ptr.vmem [resolvable:$true] %s466
          %469 = dma.hbm_to_vmem [thread:$0]  %s465, 16, %s467, [#allocation11]
        $region40: #{decoder_forward.2} parent=11 // pred_fallthru
          _
        // Predicated region
        $region41: #{decoder_forward.2} parent=11 // pred_check
          %p470 = pneg %p222
        $region42: #{decoder_forward.2} parent=11 // pred_check_branch
          %472 = sbr.rel (%p470) target = $region44
        $region43: #{decoder_forward.2} parent=11 // pred_region
          %474 = vsyncadd [#allocation11], 0
          %s475 = sshll.u32 %s8, 4
          %s476 = int_to_ptr.hbm [resolvable:$true] %s475
          %s477 = sshll.u32 [#allocation12], 4
          %s478 = int_to_ptr.vmem [resolvable:$true] %s477
          %483 = dma.hbm_to_vmem [thread:$0]  %s476, 3072, %s478, [#allocation11], 192, 192, 12
        $region44: #{decoder_forward.2} parent=11 // pred_fallthru
          _
        // Predicated region
        $region45: #{decoder_forward.2} parent=11 // pred_check
          %p484 = pneg %p243
        $region46: #{decoder_forward.2} parent=11 // pred_check_branch
          %486 = sbr.rel (%p484) target = $region48
        $region47: #{decoder_forward.2} parent=11 // pred_region
          %488 = vsyncadd [#allocation14], 0
          %s490 = sshll.u32 %s9, 4
          %s491 = int_to_ptr.hbm [resolvable:$true] %s490
          %s492 = sshll.u32 [#allocation13], 4
          %s493 = int_to_ptr.vmem [resolvable:$true] %s492
          %495 = dma.hbm_to_vmem [thread:$0]  %s491, 16, %s493, [#allocation14]
        $region48: #{decoder_forward.2} parent=11 // pred_fallthru
          _
        // Predicated region
        $region49: #{decoder_forward.2} parent=11 // pred_check
          %p496 = pneg %p264
        $region50: #{decoder_forward.2} parent=11 // pred_check_branch
          %498 = sbr.rel (%p496) target = $region52
        $region51: #{decoder_forward.2} parent=11 // pred_region
          %500 = vsyncadd [#allocation14], 0
          %s502 = sshll.u32 %s10, 4
          %s503 = int_to_ptr.hbm [resolvable:$true] %s502
          %s504 = sshll.u32 [#allocation15], 4
          %s505 = int_to_ptr.vmem [resolvable:$true] %s504
          %507 = dma.hbm_to_vmem [thread:$0]  %s503, 16, %s505, [#allocation14]
        $region52: #{decoder_forward.2} parent=11 // pred_fallthru
          _
        // Predicated region
        $region53: #{decoder_forward.2} parent=11 // pred_check
          %p508 = pneg %p285
        $region54: #{decoder_forward.2} parent=11 // pred_check_branch
          %510 = sbr.rel (%p508) target = $region56
        $region55: #{decoder_forward.2} parent=11 // pred_region
          %512 = vsyncadd [#allocation17], 0
          %s513 = sshll.u32 %s11, 4
          %s514 = int_to_ptr.hbm [resolvable:$true] %s513
          %s515 = sshll.u32 [#allocation16], 4
          %s516 = int_to_ptr.vmem [resolvable:$true] %s515
          %521 = dma.hbm_to_vmem [thread:$0]  %s514, 1024, %s516, [#allocation17], 64, 64, 4
        $region56: #{decoder_forward.2} parent=11 // pred_fallthru
          _
        // Predicated region
        $region57: #{decoder_forward.2} parent=11 // pred_check
          %p522 = pneg %p306
        $region58: #{decoder_forward.2} parent=11 // pred_check_branch
          %524 = sbr.rel (%p522) target = $region60
        $region59: #{decoder_forward.2} parent=11 // pred_region
          %526 = vsyncadd [#allocation17], 0
          %s528 = sshll.u32 %s12, 4
          %s529 = int_to_ptr.hbm [resolvable:$true] %s528
          %s530 = sshll.u32 [#allocation18], 4
          %s531 = int_to_ptr.vmem [resolvable:$true] %s530
          %533 = dma.hbm_to_vmem [thread:$0]  %s529, 16, %s531, [#allocation17]
        $region60: #{decoder_forward.2} parent=11 // pred_fallthru
          _
        // Predicated region
        $region61: #{decoder_forward.2} parent=11 // pred_check
          %p534 = pneg %p327
        $region62: #{decoder_forward.2} parent=11 // pred_check_branch
          %536 = sbr.rel (%p534) target = $region64
        $region63: #{decoder_forward.2} parent=11 // pred_region
          %538 = vsyncadd [#allocation20], 0
          %s539 = sshll.u32 %s13, 4
          %s540 = int_to_ptr.hbm [resolvable:$true] %s539
          %s541 = sshll.u32 [#allocation19], 4
          %s542 = int_to_ptr.vmem [resolvable:$true] %s541
          %547 = dma.hbm_to_vmem [thread:$0]  %s540, 1024, %s542, [#allocation20], 64, 64, 4
        $region64: #{decoder_forward.2} parent=11 // pred_fallthru
          _
        // Predicated region
        $region65: #{decoder_forward.2} parent=11 // pred_check
          %p548 = pneg %p348
        $region66: #{decoder_forward.2} parent=11 // pred_check_branch
          %550 = sbr.rel (%p548) target = $region68
        $region67: #{decoder_forward.2} parent=11 // pred_region
          %552 = vsyncadd [#allocation20], 0
          %s554 = sshll.u32 %s14, 4
          %s555 = int_to_ptr.hbm [resolvable:$true] %s554
          %s556 = sshll.u32 [#allocation21], 4
          %s557 = int_to_ptr.vmem [resolvable:$true] %s556
          %559 = dma.hbm_to_vmem [thread:$0]  %s555, 16, %s557, [#allocation20]
        $region68: #{decoder_forward.2} parent=11 // pred_fallthru
          _
      $region12: #{decoder_forward.2} parent=5 // pred_fallthru
        _
      %p560 = scmp.lt.s32.totalorder %s28, 2
      // Predicated region
      $region69: #{decoder_forward.2} parent=5 // pred_check
        %p561 = pneg %p560
      $region70: #{decoder_forward.2} parent=5 // pred_check_branch
        %563 = sbr.rel (%p561) target = $region72
      $region71: #{decoder_forward.2} parent=5 // pred_region
        // Predicated region
        $region73: #{decoder_forward.2} parent=71 // pred_check
          %p564 = pneg %p48
        $region74: #{decoder_forward.2} parent=71 // pred_check_branch
          %566 = sbr.rel (%p564) target = $region76
        $region75: #{decoder_forward.2} parent=71 // pred_region
          %p567 = scmp.lt.s32.totalorder %s28, 1
          %s568 = scalar_select %p567, %s28, 1
          %s569 = smul.addr %s568, 16
          %s570 = smul.addr %s569, 4
          %s571 = scalar_lea.vmem %s0, %s570
        $region76: #{decoder_forward.2} parent=71 // pred_fallthru
          _
      $region72: #{decoder_forward.2} parent=5 // pred_fallthru
        _
      %p572 = scmp.le.s32.totalorder 1, %s28
      %p573 = scmp.lt.s32.totalorder %s28, 3
      %p574 = pnand %p572, %p573
      %p575 = pneg %p574
      // Predicated region
      $region77: #{decoder_forward.2} parent=5 // pred_check
        _
      $region78: #{decoder_forward.2} parent=5 // pred_check_branch
        %577 = sbr.rel (%p574) target = $region80
      $region79: #{decoder_forward.2} parent=5 // pred_region
        %s578 = ssub.s32 %s28, 1
        // Predicated region
        $region81: #{decoder_forward.2} parent=79 // pred_check
          %p579 = pneg %p75
        $region82: #{decoder_forward.2} parent=79 // pred_check_branch
          %581 = sbr.rel (%p579) target = $region84
        $region83: #{decoder_forward.2} parent=79 // pred_region
          %583 = dma.done [#allocation3], 3072
        $region84: #{decoder_forward.2} parent=79 // pred_fallthru
          _
        // Predicated region
        $region85: #{decoder_forward.2} parent=79 // pred_check
          %p584 = pneg %p96
        $region86: #{decoder_forward.2} parent=79 // pred_check_branch
          %586 = sbr.rel (%p584) target = $region88
        $region87: #{decoder_forward.2} parent=79 // pred_region
          %588 = dma.done [#allocation5], 16
        $region88: #{decoder_forward.2} parent=79 // pred_fallthru
          _
        // Predicated region
        $region89: #{decoder_forward.2} parent=79 // pred_check
          %p589 = pneg %p117
        $region90: #{decoder_forward.2} parent=79 // pred_check_branch
          %591 = sbr.rel (%p589) target = $region92
        $region91: #{decoder_forward.2} parent=79 // pred_region
          %593 = dma.done [#allocation5], 3072
        $region92: #{decoder_forward.2} parent=79 // pred_fallthru
          _
        // Predicated region
        $region93: #{decoder_forward.2} parent=79 // pred_check
          %p594 = pneg %p138
        $region94: #{decoder_forward.2} parent=79 // pred_check_branch
          %596 = sbr.rel (%p594) target = $region96
        $region95: #{decoder_forward.2} parent=79 // pred_region
          %598 = dma.done [#allocation8], 16
        $region96: #{decoder_forward.2} parent=79 // pred_fallthru
          _
        // Predicated region
        $region97: #{decoder_forward.2} parent=79 // pred_check
          %p599 = pneg %p180
        $region98: #{decoder_forward.2} parent=79 // pred_check_branch
          %601 = sbr.rel (%p599) target = $region100
        $region99: #{decoder_forward.2} parent=79 // pred_region
          %603 = dma.done [#allocation8], 3072
        $region100: #{decoder_forward.2} parent=79 // pred_fallthru
          _
        // Predicated region
        $region101: #{decoder_forward.2} parent=79 // pred_check
          %p604 = pneg %p201
        $region102: #{decoder_forward.2} parent=79 // pred_check_branch
          %606 = sbr.rel (%p604) target = $region104
        $region103: #{decoder_forward.2} parent=79 // pred_region
          %608 = dma.done [#allocation11], 16
        $region104: #{decoder_forward.2} parent=79 // pred_fallthru
          _
        // Predicated region
        $region105: #{decoder_forward.2} parent=79 // pred_check
          %p609 = pneg %p222
        $region106: #{decoder_forward.2} parent=79 // pred_check_branch
          %611 = sbr.rel (%p609) target = $region108
        $region107: #{decoder_forward.2} parent=79 // pred_region
          %613 = dma.done [#allocation11], 3072
        $region108: #{decoder_forward.2} parent=79 // pred_fallthru
          _
        // Predicated region
        $region109: #{decoder_forward.2} parent=79 // pred_check
          %p614 = pneg %p243
        $region110: #{decoder_forward.2} parent=79 // pred_check_branch
          %616 = sbr.rel (%p614) target = $region112
        $region111: #{decoder_forward.2} parent=79 // pred_region
          %618 = dma.done [#allocation14], 16
        $region112: #{decoder_forward.2} parent=79 // pred_fallthru
          _
        // Predicated region
        $region113: #{decoder_forward.2} parent=79 // pred_check
          %p619 = pneg %p264
        $region114: #{decoder_forward.2} parent=79 // pred_check_branch
          %621 = sbr.rel (%p619) target = $region116
        $region115: #{decoder_forward.2} parent=79 // pred_region
          %623 = dma.done [#allocation14], 16
        $region116: #{decoder_forward.2} parent=79 // pred_fallthru
          _
        // Predicated region
        $region117: #{decoder_forward.2} parent=79 // pred_check
          %p624 = pneg %p285
        $region118: #{decoder_forward.2} parent=79 // pred_check_branch
          %626 = sbr.rel (%p624) target = $region120
        $region119: #{decoder_forward.2} parent=79 // pred_region
          %628 = dma.done [#allocation17], 1024
        $region120: #{decoder_forward.2} parent=79 // pred_fallthru
          _
        // Predicated region
        $region121: #{decoder_forward.2} parent=79 // pred_check
          %p629 = pneg %p306
        $region122: #{decoder_forward.2} parent=79 // pred_check_branch
          %631 = sbr.rel (%p629) target = $region124
        $region123: #{decoder_forward.2} parent=79 // pred_region
          %633 = dma.done [#allocation17], 16
        $region124: #{decoder_forward.2} parent=79 // pred_fallthru
          _
        // Predicated region
        $region125: #{decoder_forward.2} parent=79 // pred_check
          %p634 = pneg %p327
        $region126: #{decoder_forward.2} parent=79 // pred_check_branch
          %636 = sbr.rel (%p634) target = $region128
        $region127: #{decoder_forward.2} parent=79 // pred_region
          %638 = dma.done [#allocation20], 1024
        $region128: #{decoder_forward.2} parent=79 // pred_fallthru
          _
        // Predicated region
        $region129: #{decoder_forward.2} parent=79 // pred_check
          %p639 = pneg %p348
        $region130: #{decoder_forward.2} parent=79 // pred_check_branch
          %641 = sbr.rel (%p639) target = $region132
        $region131: #{decoder_forward.2} parent=79 // pred_region
          %643 = dma.done [#allocation20], 16
        $region132: #{decoder_forward.2} parent=79 // pred_fallthru
          _
        %p644 = scmp.lt.s32.totalorder %s33, 1
        %s645 = scalar_select %p644, %s33, 1
        %s646 = smul.addr %s645, 16
        %s647 = smul.addr %s646, 4
        %s648 = scalar_lea.vmem %s0, %s647
        %p649 = pneg %p54
        %p650 = pneg %p51
        %p651 = pneg %p75
        %p652 = pneg %p72
        %p653 = pneg %p96
        %p654 = pneg %p93
        %p655 = pneg %p117
        %p656 = pneg %p114
        %p657 = pneg %p138
        %p658 = pneg %p135
        %p659 = pneg %p159
        %p660 = pneg %p156
        %p661 = pneg %p180
        %p662 = pneg %p177
        %p663 = pneg %p201
        %p664 = pneg %p198
        %p665 = pneg %p222
        %p666 = pneg %p219
        %p667 = pneg %p243
        %p668 = pneg %p240
        %p669 = pneg %p264
        %p670 = pneg %p261
        %p671 = pneg %p285
        %p672 = pneg %p282
        %p673 = pneg %p306
        %p674 = pneg %p303
        %p675 = pneg %p327
        %p676 = pneg %p324
        %p677 = pneg %p348
        %p678 = pneg %p345
        %p679 = pneg %p374
        %p680 = pneg %p371
        %p681 = scmp.lt.s32.totalorder %s33, 1
        %s682 = scalar_select %p681, %s33, 1
        %s683 = smul.addr %s682, 8
        %s684 = smul.addr %s683, 4
        %s685 = scalar_lea.vmem %s15, %s684
        %p686 = scmp.lt.s32.totalorder %s33, 1
        %s687 = scalar_select %p686, %s33, 1
        %s688 = smul.addr %s687, 16
        %s689 = smul.addr %s688, 4
        %s690 = scalar_lea.vmem %s0, %s689
        %p691 = scmp.lt.s32.totalorder %s33, 1
        %s692 = scalar_select %p691, %s33, 1
        %s693 = smul.addr %s692, 8
        %s694 = smul.addr %s693, 4
        %s695 = scalar_lea.vmem %s15, %s694
        %v697 = vld [vmem:[%s690] sm:$0xf]
        %v698 = vld [vmem:[%s690 + $0x4] sm:$0xf]
        %v699 = vld [vmem:[%s690 + $0x8] sm:$0xf]
        %v700 = vld [vmem:[%s690 + $0xc] sm:$0xf]
        %v701 = vld [vmem:[%s690 + $0x10] sm:$0xf]
        %v702 = vld [vmem:[%s690 + $0x14] sm:$0xf]
        %v703 = vld [vmem:[%s690 + $0x18] sm:$0xf]
        %v704 = vld [vmem:[%s690 + $0x1c] sm:$0xf]
        %v705 = vld [vmem:[%s690 + $0x20] sm:$0xf]
        %v706 = vld [vmem:[%s690 + $0x24] sm:$0xf]
        %v707 = vld [vmem:[%s690 + $0x28] sm:$0xf]
        %v708 = vld [vmem:[%s690 + $0x2c] sm:$0xf]
        %v709 = vld [vmem:[%s690 + $0x30] sm:$0xf]
        %v710 = vld [vmem:[%s690 + $0x34] sm:$0xf]
        %v711 = vld [vmem:[%s690 + $0x38] sm:$0xf]
        %v712 = vld [vmem:[%s690 + $0x3c] sm:$0xf]
        %v729 = vunpack.c.l.b16 %v697
        %v730 = vunpack.c.l.b16 %v698
        %v731 = vunpack.c.l.b16 %v699
        %v732 = vunpack.c.l.b16 %v700
        %v733 = vunpack.c.l.b16 %v701
        %v734 = vunpack.c.l.b16 %v702
        %v735 = vunpack.c.l.b16 %v703
        %v736 = vunpack.c.l.b16 %v704
        %v737 = vunpack.c.l.b16 %v705
        %v738 = vunpack.c.l.b16 %v706
        %v739 = vunpack.c.l.b16 %v707
        %v740 = vunpack.c.l.b16 %v708
        %v741 = vunpack.c.l.b16 %v709
        %v742 = vunpack.c.l.b16 %v710
        %v743 = vunpack.c.l.b16 %v711
        %v744 = vunpack.c.l.b16 %v712
        %v745 = vpack.c.b16 %v730, %v729
        %v746 = vpack.c.b16 %v732, %v731
        %v747 = vpack.c.b16 %v734, %v733
        %v748 = vpack.c.b16 %v736, %v735
        %v749 = vpack.c.b16 %v738, %v737
        %v750 = vpack.c.b16 %v740, %v739
        %v751 = vpack.c.b16 %v742, %v741
        %v752 = vpack.c.b16 %v744, %v743
        %vm753 = vsmask.f32 256
        %v755 = vshrl.u32 %v745, 16
        %v757 = vrot.slane %v755, 7
        %v758 = vshll.u32 %v745, 16
        %v760 = vor.u32 %v757, %v758
        %v762 = vshrl.u32 %v746, 16
        %v764 = vrot.slane %v762, 7
        %v765 = vshll.u32 %v746, 16
        %v767 = vor.u32 %v764, %v765
        %v768 = vsel %vm753, %v757, %v767
        %v770 = vshrl.u32 %v747, 16
        %v772 = vrot.slane %v770, 7
        %v773 = vshll.u32 %v747, 16
        %v775 = vor.u32 %v772, %v773
        %v776 = vsel %vm753, %v764, %v775
        %v778 = vshrl.u32 %v748, 16
        %v780 = vrot.slane %v778, 7
        %v781 = vshll.u32 %v748, 16
        %v783 = vor.u32 %v780, %v781
        %v784 = vsel %vm753, %v772, %v783
        %v786 = vshrl.u32 %v749, 16
        %v788 = vrot.slane %v786, 7
        %v789 = vshll.u32 %v749, 16
        %v791 = vor.u32 %v788, %v789
        %v792 = vsel %vm753, %v780, %v791
        %v794 = vshrl.u32 %v750, 16
        %v796 = vrot.slane %v794, 7
        %v797 = vshll.u32 %v750, 16
        %v799 = vor.u32 %v796, %v797
        %v800 = vsel %vm753, %v788, %v799
        %v802 = vshrl.u32 %v751, 16
        %v804 = vrot.slane %v802, 7
        %v805 = vshll.u32 %v751, 16
        %v807 = vor.u32 %v804, %v805
        %v808 = vsel %vm753, %v796, %v807
        %v810 = vshrl.u32 %v752, 16
        %v812 = vrot.slane %v810, 7
        %v813 = vshll.u32 %v752, 16
        %v815 = vor.u32 %v812, %v813
        %v816 = vsel %vm753, %v804, %v815
        %vm825 = vcmask 1040384
        %vm826 = vmand %vm825, %vm753
        %v827 = vsel %vm826, 0, %v760
        %vm828 = vsmask.f32 7424
        %v829 = vrot.slane %v758, 1
        %v830 = vor.u32 %v755, %v829
        %v831 = vrot.slane %v765, 1
        %v832 = vsel %vm828, %v830, %v831
        %v833 = vor.u32 %v762, %v831
        %v834 = vrot.slane %v773, 1
        %v835 = vsel %vm828, %v833, %v834
        %v836 = vor.u32 %v770, %v834
        %v837 = vrot.slane %v781, 1
        %v838 = vsel %vm828, %v836, %v837
        %v839 = vor.u32 %v778, %v837
        %v840 = vrot.slane %v789, 1
        %v841 = vsel %vm828, %v839, %v840
        %v842 = vor.u32 %v786, %v840
        %v843 = vrot.slane %v797, 1
        %v844 = vsel %vm828, %v842, %v843
        %v845 = vor.u32 %v794, %v843
        %v846 = vrot.slane %v805, 1
        %v847 = vsel %vm828, %v845, %v846
        %v848 = vor.u32 %v802, %v846
        %v849 = vrot.slane %v813, 1
        %v850 = vsel %vm828, %v848, %v849
        %v851 = vor.u32 %v810, %v849
        %vm860 = vcmask 1047552
        %vm861 = vmand %vm860, %vm828
        %v862 = vsel %vm861, %v851, 0
        %v863 = vld [vmem:[#allocation2] sm:$0xf]
        %v864 = vld [vmem:[#allocation2 + $0x4] sm:$0xf]
        %v865 = vld [vmem:[#allocation2 + $0x8] sm:$0xf]
        %v866 = vld [vmem:[#allocation2 + $0xc] sm:$0xf]
        %v867 = vld [vmem:[#allocation2 + $0x10] sm:$0xf]
        %v868 = vld [vmem:[#allocation2 + $0x14] sm:$0xf]
        %v869 = vld [vmem:[#allocation2 + $0x18] sm:$0xf]
        %v870 = vld [vmem:[#allocation2 + $0x1c] sm:$0xf]
        %v871 = vld [vmem:[#allocation2 + $0x20] sm:$0xf]
        %v872 = vld [vmem:[#allocation2 + $0x24] sm:$0xf]
        %v873 = vld [vmem:[#allocation2 + $0x28] sm:$0xf]
        %v874 = vld [vmem:[#allocation2 + $0x2c] sm:$0xf]
        %v875 = vld [vmem:[#allocation2 + $0x30] sm:$0xf]
        %v876 = vld [vmem:[#allocation2 + $0x34] sm:$0xf]
        %v877 = vld [vmem:[#allocation2 + $0x38] sm:$0xf]
        %v878 = vld [vmem:[#allocation2 + $0x3c] sm:$0xf]
        %s879 = scalar_lea.vmem [#allocation2], 64
        %v880 = vld [vmem:[%s879] sm:$0xf]
        %v881 = vld [vmem:[%s879 + $0x4] sm:$0xf]
        %v882 = vld [vmem:[%s879 + $0x8] sm:$0xf]
        %v883 = vld [vmem:[%s879 + $0xc] sm:$0xf]
        %v884 = vld [vmem:[%s879 + $0x10] sm:$0xf]
        %v885 = vld [vmem:[%s879 + $0x14] sm:$0xf]
        %v886 = vld [vmem:[%s879 + $0x18] sm:$0xf]
        %v887 = vld [vmem:[%s879 + $0x1c] sm:$0xf]
        %v888 = vld [vmem:[%s879 + $0x20] sm:$0xf]
        %v889 = vld [vmem:[%s879 + $0x24] sm:$0xf]
        %v890 = vld [vmem:[%s879 + $0x28] sm:$0xf]
        %v891 = vld [vmem:[%s879 + $0x2c] sm:$0xf]
        %v892 = vld [vmem:[%s879 + $0x30] sm:$0xf]
        %v893 = vld [vmem:[%s879 + $0x34] sm:$0xf]
        %v894 = vld [vmem:[%s879 + $0x38] sm:$0xf]
        %v895 = vld [vmem:[%s879 + $0x3c] sm:$0xf]
        %v920 = vunpack.c.l.b16 %v880
        %v921 = vunpack.c.l.b16 %v881
        %v922 = vunpack.c.l.b16 %v882
        %v923 = vunpack.c.l.b16 %v883
        %v924 = vunpack.c.l.b16 %v884
        %v925 = vunpack.c.l.b16 %v885
        %v926 = vunpack.c.l.b16 %v886
        %v927 = vunpack.c.l.b16 %v887
        %v928 = vunpack.c.l.b16 %v888
        %v929 = vunpack.c.l.b16 %v889
        %v930 = vunpack.c.l.b16 %v890
        %v931 = vunpack.c.l.b16 %v891
        %v932 = vunpack.c.l.b16 %v892
        %v933 = vunpack.c.l.b16 %v893
        %v934 = vunpack.c.l.b16 %v894
        %v935 = vunpack.c.l.b16 %v895
        %v936 = vpack.c.b16 %v921, %v920
        %v937 = vpack.c.b16 %v923, %v922
        %v938 = vpack.c.b16 %v925, %v924
        %v939 = vpack.c.b16 %v927, %v926
        %v940 = vpack.c.b16 %v929, %v928
        %v941 = vpack.c.b16 %v931, %v930
        %v942 = vpack.c.b16 %v933, %v932
        %v943 = vpack.c.b16 %v935, %v934
        %952 = vmatpush.bf16.msra.mxu0 %v943
        %953 = vmatpush.bf16.msra.mxu0 %v942
        %954 = vmatpush.bf16.msra.mxu0 %v941
        %955 = vmatpush.bf16.msra.mxu0 %v940
        %956 = vmatpush.bf16.msra.mxu0 %v939
        %957 = vmatpush.bf16.msra.mxu0 %v938
        %958 = vmatpush.bf16.msra.mxu0 %v937
        %959 = vmatpush.bf16.msra.mxu0 %v936
        %960 = vmatmul.bf16.gmra.mxu0 %v745
        %v961 = vpop.f32.mrf.mxu0
        %v962 = vadd.f32 0.0, %v961
        %v963 = vpop.f32.mrf.mxu0
        %v964 = vadd.f32 0.0, %v963
        %965 = vmatmul.bf16.gmra.mxu0 %v746
        %v966 = vpop.f32.mrf.mxu0
        %v967 = vadd.f32 0.0, %v966
        %v968 = vpop.f32.mrf.mxu0
        %v969 = vadd.f32 0.0, %v968
        %970 = vmatmul.bf16.gmra.mxu0 %v747
        %v971 = vpop.f32.mrf.mxu0
        %v972 = vadd.f32 0.0, %v971
        %v973 = vpop.f32.mrf.mxu0
        %v974 = vadd.f32 0.0, %v973
        %975 = vmatmul.bf16.gmra.mxu0 %v748
        %v976 = vpop.f32.mrf.mxu0
        %v977 = vadd.f32 0.0, %v976
        %v978 = vpop.f32.mrf.mxu0
        %v979 = vadd.f32 0.0, %v978
        %980 = vmatmul.bf16.gmra.mxu0 %v749
        %v981 = vpop.f32.mrf.mxu0
        %v982 = vadd.f32 0.0, %v981
        %v983 = vpop.f32.mrf.mxu0
        %v984 = vadd.f32 0.0, %v983
        %985 = vmatmul.bf16.gmra.mxu0 %v750
        %v986 = vpop.f32.mrf.mxu0
        %v987 = vadd.f32 0.0, %v986
        %v988 = vpop.f32.mrf.mxu0
        %v989 = vadd.f32 0.0, %v988
        %990 = vmatmul.bf16.gmra.mxu0 %v751
        %v991 = vpop.f32.mrf.mxu0
        %v992 = vadd.f32 0.0, %v991
        %v993 = vpop.f32.mrf.mxu0
        %v994 = vadd.f32 0.0, %v993
        %995 = vmatmul.bf16.gmra.mxu0 %v752
        %v996 = vpop.f32.mrf.mxu0
        %v997 = vadd.f32 0.0, %v996
        %v998 = vpop.f32.mrf.mxu0
        %v999 = vadd.f32 0.0, %v998
        %1000 = vdwg.mxu0
        %v1017 = vunpack.c.l.b16 %v863
        %v1018 = vunpack.c.l.b16 %v864
        %v1019 = vunpack.c.l.b16 %v865
        %v1020 = vunpack.c.l.b16 %v866
        %v1021 = vunpack.c.l.b16 %v867
        %v1022 = vunpack.c.l.b16 %v868
        %v1023 = vunpack.c.l.b16 %v869
        %v1024 = vunpack.c.l.b16 %v870
        %v1025 = vunpack.c.l.b16 %v871
        %v1026 = vunpack.c.l.b16 %v872
        %v1027 = vunpack.c.l.b16 %v873
        %v1028 = vunpack.c.l.b16 %v874
        %v1029 = vunpack.c.l.b16 %v875
        %v1030 = vunpack.c.l.b16 %v876
        %v1031 = vunpack.c.l.b16 %v877
        %v1032 = vunpack.c.l.b16 %v878
        %v1033 = vpack.c.b16 %v1018, %v1017
        %v1034 = vpack.c.b16 %v1020, %v1019
        %v1035 = vpack.c.b16 %v1022, %v1021
        %v1036 = vpack.c.b16 %v1024, %v1023
        %v1037 = vpack.c.b16 %v1026, %v1025
        %v1038 = vpack.c.b16 %v1028, %v1027
        %v1039 = vpack.c.b16 %v1030, %v1029
        %v1040 = vpack.c.b16 %v1032, %v1031
        %1049 = vmatpush.bf16.msra.mxu0 %v1040
        %1050 = vmatpush.bf16.msra.mxu0 %v1039
        %1051 = vmatpush.bf16.msra.mxu0 %v1038
        %1052 = vmatpush.bf16.msra.mxu0 %v1037
        %1053 = vmatpush.bf16.msra.mxu0 %v1036
        %1054 = vmatpush.bf16.msra.mxu0 %v1035
        %1055 = vmatpush.bf16.msra.mxu0 %v1034
        %1056 = vmatpush.bf16.msra.mxu0 %v1033
        %1057 = vmatmul.bf16.gmra.mxu0 %v827
        %v1058 = vpop.f32.mrf.mxu0
        %v1059 = vadd.f32 %v962, %v1058
        %v1060 = vpop.f32.mrf.mxu0
        %v1061 = vadd.f32 %v964, %v1060
        %1062 = vmatmul.bf16.gmra.mxu0 %v768
        %v1063 = vpop.f32.mrf.mxu0
        %v1064 = vadd.f32 %v967, %v1063
        %v1065 = vpop.f32.mrf.mxu0
        %v1066 = vadd.f32 %v969, %v1065
        %1067 = vmatmul.bf16.gmra.mxu0 %v776
        %v1068 = vpop.f32.mrf.mxu0
        %v1069 = vadd.f32 %v972, %v1068
        %v1070 = vpop.f32.mrf.mxu0
        %v1071 = vadd.f32 %v974, %v1070
        %1072 = vmatmul.bf16.gmra.mxu0 %v784
        %v1073 = vpop.f32.mrf.mxu0
        %v1074 = vadd.f32 %v977, %v1073
        %v1075 = vpop.f32.mrf.mxu0
        %v1076 = vadd.f32 %v979, %v1075
        %1077 = vmatmul.bf16.gmra.mxu0 %v792
        %v1078 = vpop.f32.mrf.mxu0
        %v1079 = vadd.f32 %v982, %v1078
        %v1080 = vpop.f32.mrf.mxu0
        %v1081 = vadd.f32 %v984, %v1080
        %1082 = vmatmul.bf16.gmra.mxu0 %v800
        %v1083 = vpop.f32.mrf.mxu0
        %v1084 = vadd.f32 %v987, %v1083
        %v1085 = vpop.f32.mrf.mxu0
        %v1086 = vadd.f32 %v989, %v1085
        %1087 = vmatmul.bf16.gmra.mxu0 %v808
        %v1088 = vpop.f32.mrf.mxu0
        %v1089 = vadd.f32 %v992, %v1088
        %v1090 = vpop.f32.mrf.mxu0
        %v1091 = vadd.f32 %v994, %v1090
        %1092 = vmatmul.bf16.gmra.mxu0 %v816
        %v1093 = vpop.f32.mrf.mxu0
        %v1094 = vadd.f32 %v997, %v1093
        %v1095 = vpop.f32.mrf.mxu0
        %v1096 = vadd.f32 %v999, %v1095
        %1097 = vdwg.mxu0
        %s1098 = scalar_lea.vmem [#allocation2], 128
        %v1099 = vld [vmem:[%s1098] sm:$0xf]
        %v1100 = vld [vmem:[%s1098 + $0x4] sm:$0xf]
        %v1101 = vld [vmem:[%s1098 + $0x8] sm:$0xf]
        %v1102 = vld [vmem:[%s1098 + $0xc] sm:$0xf]
        %v1103 = vld [vmem:[%s1098 + $0x10] sm:$0xf]
        %v1104 = vld [vmem:[%s1098 + $0x14] sm:$0xf]
        %v1105 = vld [vmem:[%s1098 + $0x18] sm:$0xf]
        %v1106 = vld [vmem:[%s1098 + $0x1c] sm:$0xf]
        %v1107 = vld [vmem:[%s1098 + $0x20] sm:$0xf]
        %v1108 = vld [vmem:[%s1098 + $0x24] sm:$0xf]
        %v1109 = vld [vmem:[%s1098 + $0x28] sm:$0xf]
        %v1110 = vld [vmem:[%s1098 + $0x2c] sm:$0xf]
        %v1111 = vld [vmem:[%s1098 + $0x30] sm:$0xf]
        %v1112 = vld [vmem:[%s1098 + $0x34] sm:$0xf]
        %v1113 = vld [vmem:[%s1098 + $0x38] sm:$0xf]
        %v1114 = vld [vmem:[%s1098 + $0x3c] sm:$0xf]
        %v1131 = vunpack.c.l.b16 %v1099
        %v1132 = vunpack.c.l.b16 %v1100
        %v1133 = vunpack.c.l.b16 %v1101
        %v1134 = vunpack.c.l.b16 %v1102
        %v1135 = vunpack.c.l.b16 %v1103
        %v1136 = vunpack.c.l.b16 %v1104
        %v1137 = vunpack.c.l.b16 %v1105
        %v1138 = vunpack.c.l.b16 %v1106
        %v1139 = vunpack.c.l.b16 %v1107
        %v1140 = vunpack.c.l.b16 %v1108
        %v1141 = vunpack.c.l.b16 %v1109
        %v1142 = vunpack.c.l.b16 %v1110
        %v1143 = vunpack.c.l.b16 %v1111
        %v1144 = vunpack.c.l.b16 %v1112
        %v1145 = vunpack.c.l.b16 %v1113
        %v1146 = vunpack.c.l.b16 %v1114
        %v1147 = vpack.c.b16 %v1132, %v1131
        %v1148 = vpack.c.b16 %v1134, %v1133
        %v1149 = vpack.c.b16 %v1136, %v1135
        %v1150 = vpack.c.b16 %v1138, %v1137
        %v1151 = vpack.c.b16 %v1140, %v1139
        %v1152 = vpack.c.b16 %v1142, %v1141
        %v1153 = vpack.c.b16 %v1144, %v1143
        %v1154 = vpack.c.b16 %v1146, %v1145
        %1163 = vmatpush.bf16.msra.mxu0 %v1154
        %1164 = vmatpush.bf16.msra.mxu0 %v1153
        %1165 = vmatpush.bf16.msra.mxu0 %v1152
        %1166 = vmatpush.bf16.msra.mxu0 %v1151
        %1167 = vmatpush.bf16.msra.mxu0 %v1150
        %1168 = vmatpush.bf16.msra.mxu0 %v1149
        %1169 = vmatpush.bf16.msra.mxu0 %v1148
        %1170 = vmatpush.bf16.msra.mxu0 %v1147
        %1171 = vmatmul.bf16.gmra.mxu0 %v832
        %v1172 = vpop.f32.mrf.mxu0
        %v1173 = vadd.f32 0.0, %v1172
        %v1174 = vpop.f32.mrf.mxu0
        %v1175 = vadd.f32 0.0, %v1174
        %1176 = vmatmul.bf16.gmra.mxu0 %v835
        %v1177 = vpop.f32.mrf.mxu0
        %v1178 = vadd.f32 0.0, %v1177
        %v1179 = vpop.f32.mrf.mxu0
        %v1180 = vadd.f32 0.0, %v1179
        %1181 = vmatmul.bf16.gmra.mxu0 %v838
        %v1182 = vpop.f32.mrf.mxu0
        %v1183 = vadd.f32 0.0, %v1182
        %v1184 = vpop.f32.mrf.mxu0
        %v1185 = vadd.f32 0.0, %v1184
        %1186 = vmatmul.bf16.gmra.mxu0 %v841
        %v1187 = vpop.f32.mrf.mxu0
        %v1188 = vadd.f32 0.0, %v1187
        %v1189 = vpop.f32.mrf.mxu0
        %v1190 = vadd.f32 0.0, %v1189
        %1191 = vmatmul.bf16.gmra.mxu0 %v844
        %v1192 = vpop.f32.mrf.mxu0
        %v1193 = vadd.f32 0.0, %v1192
        %v1194 = vpop.f32.mrf.mxu0
        %v1195 = vadd.f32 0.0, %v1194
        %1196 = vmatmul.bf16.gmra.mxu0 %v847
        %v1197 = vpop.f32.mrf.mxu0
        %v1198 = vadd.f32 0.0, %v1197
        %v1199 = vpop.f32.mrf.mxu0
        %v1200 = vadd.f32 0.0, %v1199
        %1201 = vmatmul.bf16.gmra.mxu0 %v850
        %v1202 = vpop.f32.mrf.mxu0
        %v1203 = vadd.f32 0.0, %v1202
        %v1204 = vpop.f32.mrf.mxu0
        %v1205 = vadd.f32 0.0, %v1204
        %1206 = vmatmul.bf16.gmra.mxu0 %v862
        %v1207 = vpop.f32.mrf.mxu0
        %v1208 = vadd.f32 0.0, %v1207
        %v1209 = vpop.f32.mrf.mxu0
        %v1210 = vadd.f32 0.0, %v1209
        %1211 = vdwg.mxu0
        %v1212 = vadd.f32 %v1059, %v1173
        %v1213 = vadd.f32 %v1061, %v1175
        %v1214 = vadd.f32 %v1064, %v1178
        %v1215 = vadd.f32 %v1066, %v1180
        %v1216 = vadd.f32 %v1069, %v1183
        %v1217 = vadd.f32 %v1071, %v1185
        %v1218 = vadd.f32 %v1074, %v1188
        %v1219 = vadd.f32 %v1076, %v1190
        %v1220 = vadd.f32 %v1079, %v1193
        %v1221 = vadd.f32 %v1081, %v1195
        %v1222 = vadd.f32 %v1084, %v1198
        %v1223 = vadd.f32 %v1086, %v1200
        %v1224 = vadd.f32 %v1089, %v1203
        %v1225 = vadd.f32 %v1091, %v1205
        %v1226 = vadd.f32 %v1094, %v1208
        %v1227 = vadd.f32 %v1096, %v1210
        %v1228 = vld [vmem:[#allocation4] sm:$0x1]
        %v1230 = vperm.slane %v1228, 0
        %v1232 = vadd.f32 %v1212, %v1230
        %v1233 = vadd.f32 %v1213, %v1230
        %v1234 = vadd.f32 %v1214, %v1230
        %v1235 = vadd.f32 %v1215, %v1230
        %v1236 = vadd.f32 %v1216, %v1230
        %v1237 = vadd.f32 %v1217, %v1230
        %v1238 = vadd.f32 %v1218, %v1230
        %v1239 = vadd.f32 %v1219, %v1230
        %v1240 = vadd.f32 %v1220, %v1230
        %v1241 = vadd.f32 %v1221, %v1230
        %v1242 = vadd.f32 %v1222, %v1230
        %v1243 = vadd.f32 %v1223, %v1230
        %v1244 = vadd.f32 %v1224, %v1230
        %v1245 = vadd.f32 %v1225, %v1230
        %v1246 = vadd.f32 %v1226, %v1230
        %v1247 = vadd.f32 %v1227, %v1230
        %v1248 = vmax.f32 %v1232, 0.0
        %v1249 = vmax.f32 %v1233, 0.0
        %v1250 = vmax.f32 %v1234, 0.0
        %v1251 = vmax.f32 %v1235, 0.0
        %v1252 = vmax.f32 %v1236, 0.0
        %v1253 = vmax.f32 %v1237, 0.0
        %v1254 = vmax.f32 %v1238, 0.0
        %v1255 = vmax.f32 %v1239, 0.0
        %v1256 = vmax.f32 %v1240, 0.0
        %v1257 = vmax.f32 %v1241, 0.0
        %v1258 = vmax.f32 %v1242, 0.0
        %v1259 = vmax.f32 %v1243, 0.0
        %v1260 = vmax.f32 %v1244, 0.0
        %v1261 = vmax.f32 %v1245, 0.0
        %v1262 = vmax.f32 %v1246, 0.0
        %v1263 = vmax.f32 %v1247, 0.0
        %v1264 = vpack.c.bf16 %v1248, %v1248
        %v1265 = vpack.c.bf16 %v1249, %v1249
        %v1266 = vpack.c.bf16 %v1250, %v1250
        %v1267 = vpack.c.bf16 %v1251, %v1251
        %v1268 = vpack.c.bf16 %v1252, %v1252
        %v1269 = vpack.c.bf16 %v1253, %v1253
        %v1270 = vpack.c.bf16 %v1254, %v1254
        %v1271 = vpack.c.bf16 %v1255, %v1255
        %v1272 = vpack.c.bf16 %v1256, %v1256
        %v1273 = vpack.c.bf16 %v1257, %v1257
        %v1274 = vpack.c.bf16 %v1258, %v1258
        %v1275 = vpack.c.bf16 %v1259, %v1259
        %v1276 = vpack.c.bf16 %v1260, %v1260
        %v1277 = vpack.c.bf16 %v1261, %v1261
        %v1278 = vpack.c.bf16 %v1262, %v1262
        %v1279 = vpack.c.bf16 %v1263, %v1263
        %v1296 = vunpack.c.l.b16 %v1264
        %v1297 = vunpack.c.l.b16 %v1265
        %v1298 = vunpack.c.l.b16 %v1266
        %v1299 = vunpack.c.l.b16 %v1267
        %v1300 = vunpack.c.l.b16 %v1268
        %v1301 = vunpack.c.l.b16 %v1269
        %v1302 = vunpack.c.l.b16 %v1270
        %v1303 = vunpack.c.l.b16 %v1271
        %v1304 = vunpack.c.l.b16 %v1272
        %v1305 = vunpack.c.l.b16 %v1273
        %v1306 = vunpack.c.l.b16 %v1274
        %v1307 = vunpack.c.l.b16 %v1275
        %v1308 = vunpack.c.l.b16 %v1276
        %v1309 = vunpack.c.l.b16 %v1277
        %v1310 = vunpack.c.l.b16 %v1278
        %v1311 = vunpack.c.l.b16 %v1279
        %v1312 = vpack.c.b16 %v1297, %v1296
        %v1313 = vpack.c.b16 %v1299, %v1298
        %v1314 = vpack.c.b16 %v1301, %v1300
        %v1315 = vpack.c.b16 %v1303, %v1302
        %v1316 = vpack.c.b16 %v1305, %v1304
        %v1317 = vpack.c.b16 %v1307, %v1306
        %v1318 = vpack.c.b16 %v1309, %v1308
        %v1319 = vpack.c.b16 %v1311, %v1310
        %v1321 = vshrl.u32 %v1312, 16
        %v1323 = vrot.slane %v1321, 7
        %v1324 = vshll.u32 %v1312, 16
        %v1326 = vor.u32 %v1323, %v1324
        %v1328 = vshrl.u32 %v1313, 16
        %v1330 = vrot.slane %v1328, 7
        %v1331 = vshll.u32 %v1313, 16
        %v1333 = vor.u32 %v1330, %v1331
        %v1334 = vsel %vm753, %v1323, %v1333
        %v1336 = vshrl.u32 %v1314, 16
        %v1338 = vrot.slane %v1336, 7
        %v1339 = vshll.u32 %v1314, 16
        %v1341 = vor.u32 %v1338, %v1339
        %v1342 = vsel %vm753, %v1330, %v1341
        %v1344 = vshrl.u32 %v1315, 16
        %v1346 = vrot.slane %v1344, 7
        %v1347 = vshll.u32 %v1315, 16
        %v1349 = vor.u32 %v1346, %v1347
        %v1350 = vsel %vm753, %v1338, %v1349
        %v1352 = vshrl.u32 %v1316, 16
        %v1354 = vrot.slane %v1352, 7
        %v1355 = vshll.u32 %v1316, 16
        %v1357 = vor.u32 %v1354, %v1355
        %v1358 = vsel %vm753, %v1346, %v1357
        %v1360 = vshrl.u32 %v1317, 16
        %v1362 = vrot.slane %v1360, 7
        %v1363 = vshll.u32 %v1317, 16
        %v1365 = vor.u32 %v1362, %v1363
        %v1366 = vsel %vm753, %v1354, %v1365
        %v1368 = vshrl.u32 %v1318, 16
        %v1370 = vrot.slane %v1368, 7
        %v1371 = vshll.u32 %v1318, 16
        %v1373 = vor.u32 %v1370, %v1371
        %v1374 = vsel %vm753, %v1362, %v1373
        %v1376 = vshrl.u32 %v1319, 16
        %v1378 = vrot.slane %v1376, 7
        %v1379 = vshll.u32 %v1319, 16
        %v1381 = vor.u32 %v1378, %v1379
        %v1382 = vsel %vm753, %v1370, %v1381
        %v1391 = vsel %vm826, 0, %v1326
        %v1392 = vrot.slane %v1324, 1
        %v1393 = vor.u32 %v1321, %v1392
        %v1394 = vrot.slane %v1331, 1
        %v1395 = vsel %vm828, %v1393, %v1394
        %v1396 = vor.u32 %v1328, %v1394
        %v1397 = vrot.slane %v1339, 1
        %v1398 = vsel %vm828, %v1396, %v1397
        %v1399 = vor.u32 %v1336, %v1397
        %v1400 = vrot.slane %v1347, 1
        %v1401 = vsel %vm828, %v1399, %v1400
        %v1402 = vor.u32 %v1344, %v1400
        %v1403 = vrot.slane %v1355, 1
        %v1404 = vsel %vm828, %v1402, %v1403
        %v1405 = vor.u32 %v1352, %v1403
        %v1406 = vrot.slane %v1363, 1
        %v1407 = vsel %vm828, %v1405, %v1406
        %v1408 = vor.u32 %v1360, %v1406
        %v1409 = vrot.slane %v1371, 1
        %v1410 = vsel %vm828, %v1408, %v1409
        %v1411 = vor.u32 %v1368, %v1409
        %v1412 = vrot.slane %v1379, 1
        %v1413 = vsel %vm828, %v1411, %v1412
        %v1414 = vor.u32 %v1376, %v1412
        %v1423 = vsel %vm861, %v1414, 0
        %v1424 = vld [vmem:[#allocation6] sm:$0xf]
        %v1425 = vld [vmem:[#allocation6 + $0x4] sm:$0xf]
        %v1426 = vld [vmem:[#allocation6 + $0x8] sm:$0xf]
        %v1427 = vld [vmem:[#allocation6 + $0xc] sm:$0xf]
        %v1428 = vld [vmem:[#allocation6 + $0x10] sm:$0xf]
        %v1429 = vld [vmem:[#allocation6 + $0x14] sm:$0xf]
        %v1430 = vld [vmem:[#allocation6 + $0x18] sm:$0xf]
        %v1431 = vld [vmem:[#allocation6 + $0x1c] sm:$0xf]
        %v1432 = vld [vmem:[#allocation6 + $0x20] sm:$0xf]
        %v1433 = vld [vmem:[#allocation6 + $0x24] sm:$0xf]
        %v1434 = vld [vmem:[#allocation6 + $0x28] sm:$0xf]
        %v1435 = vld [vmem:[#allocation6 + $0x2c] sm:$0xf]
        %v1436 = vld [vmem:[#allocation6 + $0x30] sm:$0xf]
        %v1437 = vld [vmem:[#allocation6 + $0x34] sm:$0xf]
        %v1438 = vld [vmem:[#allocation6 + $0x38] sm:$0xf]
        %v1439 = vld [vmem:[#allocation6 + $0x3c] sm:$0xf]
        %s1440 = scalar_lea.vmem [#allocation6], 64
        %v1441 = vld [vmem:[%s1440] sm:$0xf]
        %v1442 = vld [vmem:[%s1440 + $0x4] sm:$0xf]
        %v1443 = vld [vmem:[%s1440 + $0x8] sm:$0xf]
        %v1444 = vld [vmem:[%s1440 + $0xc] sm:$0xf]
        %v1445 = vld [vmem:[%s1440 + $0x10] sm:$0xf]
        %v1446 = vld [vmem:[%s1440 + $0x14] sm:$0xf]
        %v1447 = vld [vmem:[%s1440 + $0x18] sm:$0xf]
        %v1448 = vld [vmem:[%s1440 + $0x1c] sm:$0xf]
        %v1449 = vld [vmem:[%s1440 + $0x20] sm:$0xf]
        %v1450 = vld [vmem:[%s1440 + $0x24] sm:$0xf]
        %v1451 = vld [vmem:[%s1440 + $0x28] sm:$0xf]
        %v1452 = vld [vmem:[%s1440 + $0x2c] sm:$0xf]
        %v1453 = vld [vmem:[%s1440 + $0x30] sm:$0xf]
        %v1454 = vld [vmem:[%s1440 + $0x34] sm:$0xf]
        %v1455 = vld [vmem:[%s1440 + $0x38] sm:$0xf]
        %v1456 = vld [vmem:[%s1440 + $0x3c] sm:$0xf]
        %v1481 = vunpack.c.l.b16 %v1441
        %v1482 = vunpack.c.l.b16 %v1442
        %v1483 = vunpack.c.l.b16 %v1443
        %v1484 = vunpack.c.l.b16 %v1444
        %v1485 = vunpack.c.l.b16 %v1445
        %v1486 = vunpack.c.l.b16 %v1446
        %v1487 = vunpack.c.l.b16 %v1447
        %v1488 = vunpack.c.l.b16 %v1448
        %v1489 = vunpack.c.l.b16 %v1449
        %v1490 = vunpack.c.l.b16 %v1450
        %v1491 = vunpack.c.l.b16 %v1451
        %v1492 = vunpack.c.l.b16 %v1452
        %v1493 = vunpack.c.l.b16 %v1453
        %v1494 = vunpack.c.l.b16 %v1454
        %v1495 = vunpack.c.l.b16 %v1455
        %v1496 = vunpack.c.l.b16 %v1456
        %v1497 = vpack.c.b16 %v1482, %v1481
        %v1498 = vpack.c.b16 %v1484, %v1483
        %v1499 = vpack.c.b16 %v1486, %v1485
        %v1500 = vpack.c.b16 %v1488, %v1487
        %v1501 = vpack.c.b16 %v1490, %v1489
        %v1502 = vpack.c.b16 %v1492, %v1491
        %v1503 = vpack.c.b16 %v1494, %v1493
        %v1504 = vpack.c.b16 %v1496, %v1495
        %1513 = vmatpush.bf16.msra.mxu0 %v1504
        %1514 = vmatpush.bf16.msra.mxu0 %v1503
        %1515 = vmatpush.bf16.msra.mxu0 %v1502
        %1516 = vmatpush.bf16.msra.mxu0 %v1501
        %1517 = vmatpush.bf16.msra.mxu0 %v1500
        %1518 = vmatpush.bf16.msra.mxu0 %v1499
        %1519 = vmatpush.bf16.msra.mxu0 %v1498
        %1520 = vmatpush.bf16.msra.mxu0 %v1497
        %1521 = vmatmul.bf16.gmra.mxu0 %v1312
        %v1522 = vpop.f32.mrf.mxu0
        %v1523 = vadd.f32 0.0, %v1522
        %v1524 = vpop.f32.mrf.mxu0
        %v1525 = vadd.f32 0.0, %v1524
        %1526 = vmatmul.bf16.gmra.mxu0 %v1313
        %v1527 = vpop.f32.mrf.mxu0
        %v1528 = vadd.f32 0.0, %v1527
        %v1529 = vpop.f32.mrf.mxu0
        %v1530 = vadd.f32 0.0, %v1529
        %1531 = vmatmul.bf16.gmra.mxu0 %v1314
        %v1532 = vpop.f32.mrf.mxu0
        %v1533 = vadd.f32 0.0, %v1532
        %v1534 = vpop.f32.mrf.mxu0
        %v1535 = vadd.f32 0.0, %v1534
        %1536 = vmatmul.bf16.gmra.mxu0 %v1315
        %v1537 = vpop.f32.mrf.mxu0
        %v1538 = vadd.f32 0.0, %v1537
        %v1539 = vpop.f32.mrf.mxu0
        %v1540 = vadd.f32 0.0, %v1539
        %1541 = vmatmul.bf16.gmra.mxu0 %v1316
        %v1542 = vpop.f32.mrf.mxu0
        %v1543 = vadd.f32 0.0, %v1542
        %v1544 = vpop.f32.mrf.mxu0
        %v1545 = vadd.f32 0.0, %v1544
        %1546 = vmatmul.bf16.gmra.mxu0 %v1317
        %v1547 = vpop.f32.mrf.mxu0
        %v1548 = vadd.f32 0.0, %v1547
        %v1549 = vpop.f32.mrf.mxu0
        %v1550 = vadd.f32 0.0, %v1549
        %1551 = vmatmul.bf16.gmra.mxu0 %v1318
        %v1552 = vpop.f32.mrf.mxu0
        %v1553 = vadd.f32 0.0, %v1552
        %v1554 = vpop.f32.mrf.mxu0
        %v1555 = vadd.f32 0.0, %v1554
        %1556 = vmatmul.bf16.gmra.mxu0 %v1319
        %v1557 = vpop.f32.mrf.mxu0
        %v1558 = vadd.f32 0.0, %v1557
        %v1559 = vpop.f32.mrf.mxu0
        %v1560 = vadd.f32 0.0, %v1559
        %1561 = vdwg.mxu0
        %v1578 = vunpack.c.l.b16 %v1424
        %v1579 = vunpack.c.l.b16 %v1425
        %v1580 = vunpack.c.l.b16 %v1426
        %v1581 = vunpack.c.l.b16 %v1427
        %v1582 = vunpack.c.l.b16 %v1428
        %v1583 = vunpack.c.l.b16 %v1429
        %v1584 = vunpack.c.l.b16 %v1430
        %v1585 = vunpack.c.l.b16 %v1431
        %v1586 = vunpack.c.l.b16 %v1432
        %v1587 = vunpack.c.l.b16 %v1433
        %v1588 = vunpack.c.l.b16 %v1434
        %v1589 = vunpack.c.l.b16 %v1435
        %v1590 = vunpack.c.l.b16 %v1436
        %v1591 = vunpack.c.l.b16 %v1437
        %v1592 = vunpack.c.l.b16 %v1438
        %v1593 = vunpack.c.l.b16 %v1439
        %v1594 = vpack.c.b16 %v1579, %v1578
        %v1595 = vpack.c.b16 %v1581, %v1580
        %v1596 = vpack.c.b16 %v1583, %v1582
        %v1597 = vpack.c.b16 %v1585, %v1584
        %v1598 = vpack.c.b16 %v1587, %v1586
        %v1599 = vpack.c.b16 %v1589, %v1588
        %v1600 = vpack.c.b16 %v1591, %v1590
        %v1601 = vpack.c.b16 %v1593, %v1592
        %1610 = vmatpush.bf16.msra.mxu0 %v1601
        %1611 = vmatpush.bf16.msra.mxu0 %v1600
        %1612 = vmatpush.bf16.msra.mxu0 %v1599
        %1613 = vmatpush.bf16.msra.mxu0 %v1598
        %1614 = vmatpush.bf16.msra.mxu0 %v1597
        %1615 = vmatpush.bf16.msra.mxu0 %v1596
        %1616 = vmatpush.bf16.msra.mxu0 %v1595
        %1617 = vmatpush.bf16.msra.mxu0 %v1594
        %1618 = vmatmul.bf16.gmra.mxu0 %v1391
        %v1619 = vpop.f32.mrf.mxu0
        %v1620 = vadd.f32 %v1523, %v1619
        %v1621 = vpop.f32.mrf.mxu0
        %v1622 = vadd.f32 %v1525, %v1621
        %1623 = vmatmul.bf16.gmra.mxu0 %v1334
        %v1624 = vpop.f32.mrf.mxu0
        %v1625 = vadd.f32 %v1528, %v1624
        %v1626 = vpop.f32.mrf.mxu0
        %v1627 = vadd.f32 %v1530, %v1626
        %1628 = vmatmul.bf16.gmra.mxu0 %v1342
        %v1629 = vpop.f32.mrf.mxu0
        %v1630 = vadd.f32 %v1533, %v1629
        %v1631 = vpop.f32.mrf.mxu0
        %v1632 = vadd.f32 %v1535, %v1631
        %1633 = vmatmul.bf16.gmra.mxu0 %v1350
        %v1634 = vpop.f32.mrf.mxu0
        %v1635 = vadd.f32 %v1538, %v1634
        %v1636 = vpop.f32.mrf.mxu0
        %v1637 = vadd.f32 %v1540, %v1636
        %1638 = vmatmul.bf16.gmra.mxu0 %v1358
        %v1639 = vpop.f32.mrf.mxu0
        %v1640 = vadd.f32 %v1543, %v1639
        %v1641 = vpop.f32.mrf.mxu0
        %v1642 = vadd.f32 %v1545, %v1641
        %1643 = vmatmul.bf16.gmra.mxu0 %v1366
        %v1644 = vpop.f32.mrf.mxu0
        %v1645 = vadd.f32 %v1548, %v1644
        %v1646 = vpop.f32.mrf.mxu0
        %v1647 = vadd.f32 %v1550, %v1646
        %1648 = vmatmul.bf16.gmra.mxu0 %v1374
        %v1649 = vpop.f32.mrf.mxu0
        %v1650 = vadd.f32 %v1553, %v1649
        %v1651 = vpop.f32.mrf.mxu0
        %v1652 = vadd.f32 %v1555, %v1651
        %1653 = vmatmul.bf16.gmra.mxu0 %v1382
        %v1654 = vpop.f32.mrf.mxu0
        %v1655 = vadd.f32 %v1558, %v1654
        %v1656 = vpop.f32.mrf.mxu0
        %v1657 = vadd.f32 %v1560, %v1656
        %1658 = vdwg.mxu0
        %s1659 = scalar_lea.vmem [#allocation6], 128
        %v1660 = vld [vmem:[%s1659] sm:$0xf]
        %v1661 = vld [vmem:[%s1659 + $0x4] sm:$0xf]
        %v1662 = vld [vmem:[%s1659 + $0x8] sm:$0xf]
        %v1663 = vld [vmem:[%s1659 + $0xc] sm:$0xf]
        %v1664 = vld [vmem:[%s1659 + $0x10] sm:$0xf]
        %v1665 = vld [vmem:[%s1659 + $0x14] sm:$0xf]
        %v1666 = vld [vmem:[%s1659 + $0x18] sm:$0xf]
        %v1667 = vld [vmem:[%s1659 + $0x1c] sm:$0xf]
        %v1668 = vld [vmem:[%s1659 + $0x20] sm:$0xf]
        %v1669 = vld [vmem:[%s1659 + $0x24] sm:$0xf]
        %v1670 = vld [vmem:[%s1659 + $0x28] sm:$0xf]
        %v1671 = vld [vmem:[%s1659 + $0x2c] sm:$0xf]
        %v1672 = vld [vmem:[%s1659 + $0x30] sm:$0xf]
        %v1673 = vld [vmem:[%s1659 + $0x34] sm:$0xf]
        %v1674 = vld [vmem:[%s1659 + $0x38] sm:$0xf]
        %v1675 = vld [vmem:[%s1659 + $0x3c] sm:$0xf]
        %v1692 = vunpack.c.l.b16 %v1660
        %v1693 = vunpack.c.l.b16 %v1661
        %v1694 = vunpack.c.l.b16 %v1662
        %v1695 = vunpack.c.l.b16 %v1663
        %v1696 = vunpack.c.l.b16 %v1664
        %v1697 = vunpack.c.l.b16 %v1665
        %v1698 = vunpack.c.l.b16 %v1666
        %v1699 = vunpack.c.l.b16 %v1667
        %v1700 = vunpack.c.l.b16 %v1668
        %v1701 = vunpack.c.l.b16 %v1669
        %v1702 = vunpack.c.l.b16 %v1670
        %v1703 = vunpack.c.l.b16 %v1671
        %v1704 = vunpack.c.l.b16 %v1672
        %v1705 = vunpack.c.l.b16 %v1673
        %v1706 = vunpack.c.l.b16 %v1674
        %v1707 = vunpack.c.l.b16 %v1675
        %v1708 = vpack.c.b16 %v1693, %v1692
        %v1709 = vpack.c.b16 %v1695, %v1694
        %v1710 = vpack.c.b16 %v1697, %v1696
        %v1711 = vpack.c.b16 %v1699, %v1698
        %v1712 = vpack.c.b16 %v1701, %v1700
        %v1713 = vpack.c.b16 %v1703, %v1702
        %v1714 = vpack.c.b16 %v1705, %v1704
        %v1715 = vpack.c.b16 %v1707, %v1706
        %1724 = vmatpush.bf16.msra.mxu0 %v1715
        %1725 = vmatpush.bf16.msra.mxu0 %v1714
        %1726 = vmatpush.bf16.msra.mxu0 %v1713
        %1727 = vmatpush.bf16.msra.mxu0 %v1712
        %1728 = vmatpush.bf16.msra.mxu0 %v1711
        %1729 = vmatpush.bf16.msra.mxu0 %v1710
        %1730 = vmatpush.bf16.msra.mxu0 %v1709
        %1731 = vmatpush.bf16.msra.mxu0 %v1708
        %1732 = vmatmul.bf16.gmra.mxu0 %v1395
        %v1733 = vpop.f32.mrf.mxu0
        %v1734 = vadd.f32 0.0, %v1733
        %v1735 = vpop.f32.mrf.mxu0
        %v1736 = vadd.f32 0.0, %v1735
        %1737 = vmatmul.bf16.gmra.mxu0 %v1398
        %v1738 = vpop.f32.mrf.mxu0
        %v1739 = vadd.f32 0.0, %v1738
        %v1740 = vpop.f32.mrf.mxu0
        %v1741 = vadd.f32 0.0, %v1740
        %1742 = vmatmul.bf16.gmra.mxu0 %v1401
        %v1743 = vpop.f32.mrf.mxu0
        %v1744 = vadd.f32 0.0, %v1743
        %v1745 = vpop.f32.mrf.mxu0
        %v1746 = vadd.f32 0.0, %v1745
        %1747 = vmatmul.bf16.gmra.mxu0 %v1404
        %v1748 = vpop.f32.mrf.mxu0
        %v1749 = vadd.f32 0.0, %v1748
        %v1750 = vpop.f32.mrf.mxu0
        %v1751 = vadd.f32 0.0, %v1750
        %1752 = vmatmul.bf16.gmra.mxu0 %v1407
        %v1753 = vpop.f32.mrf.mxu0
        %v1754 = vadd.f32 0.0, %v1753
        %v1755 = vpop.f32.mrf.mxu0
        %v1756 = vadd.f32 0.0, %v1755
        %1757 = vmatmul.bf16.gmra.mxu0 %v1410
        %v1758 = vpop.f32.mrf.mxu0
        %v1759 = vadd.f32 0.0, %v1758
        %v1760 = vpop.f32.mrf.mxu0
        %v1761 = vadd.f32 0.0, %v1760
        %1762 = vmatmul.bf16.gmra.mxu0 %v1413
        %v1763 = vpop.f32.mrf.mxu0
        %v1764 = vadd.f32 0.0, %v1763
        %v1765 = vpop.f32.mrf.mxu0
        %v1766 = vadd.f32 0.0, %v1765
        %1767 = vmatmul.bf16.gmra.mxu0 %v1423
        %v1768 = vpop.f32.mrf.mxu0
        %v1769 = vadd.f32 0.0, %v1768
        %v1770 = vpop.f32.mrf.mxu0
        %v1771 = vadd.f32 0.0, %v1770
        %1772 = vdwg.mxu0
        %v1773 = vadd.f32 %v1620, %v1734
        %v1774 = vadd.f32 %v1622, %v1736
        %v1775 = vadd.f32 %v1625, %v1739
        %v1776 = vadd.f32 %v1627, %v1741
        %v1777 = vadd.f32 %v1630, %v1744
        %v1778 = vadd.f32 %v1632, %v1746
        %v1779 = vadd.f32 %v1635, %v1749
        %v1780 = vadd.f32 %v1637, %v1751
        %v1781 = vadd.f32 %v1640, %v1754
        %v1782 = vadd.f32 %v1642, %v1756
        %v1783 = vadd.f32 %v1645, %v1759
        %v1784 = vadd.f32 %v1647, %v1761
        %v1785 = vadd.f32 %v1650, %v1764
        %v1786 = vadd.f32 %v1652, %v1766
        %v1787 = vadd.f32 %v1655, %v1769
        %v1788 = vadd.f32 %v1657, %v1771
        %v1789 = vld [vmem:[#allocation7] sm:$0x1]
        %v1791 = vperm.slane %v1789, 0
        %v1793 = vadd.f32 %v1773, %v1791
        %v1794 = vadd.f32 %v1774, %v1791
        %v1795 = vadd.f32 %v1775, %v1791
        %v1796 = vadd.f32 %v1776, %v1791
        %v1797 = vadd.f32 %v1777, %v1791
        %v1798 = vadd.f32 %v1778, %v1791
        %v1799 = vadd.f32 %v1779, %v1791
        %v1800 = vadd.f32 %v1780, %v1791
        %v1801 = vadd.f32 %v1781, %v1791
        %v1802 = vadd.f32 %v1782, %v1791
        %v1803 = vadd.f32 %v1783, %v1791
        %v1804 = vadd.f32 %v1784, %v1791
        %v1805 = vadd.f32 %v1785, %v1791
        %v1806 = vadd.f32 %v1786, %v1791
        %v1807 = vadd.f32 %v1787, %v1791
        %v1808 = vadd.f32 %v1788, %v1791
        %v1809 = vmax.f32 %v1793, 0.0
        %v1810 = vmax.f32 %v1794, 0.0
        %v1811 = vmax.f32 %v1795, 0.0
        %v1812 = vmax.f32 %v1796, 0.0
        %v1813 = vmax.f32 %v1797, 0.0
        %v1814 = vmax.f32 %v1798, 0.0
        %v1815 = vmax.f32 %v1799, 0.0
        %v1816 = vmax.f32 %v1800, 0.0
        %v1817 = vmax.f32 %v1801, 0.0
        %v1818 = vmax.f32 %v1802, 0.0
        %v1819 = vmax.f32 %v1803, 0.0
        %v1820 = vmax.f32 %v1804, 0.0
        %v1821 = vmax.f32 %v1805, 0.0
        %v1822 = vmax.f32 %v1806, 0.0
        %v1823 = vmax.f32 %v1807, 0.0
        %v1824 = vmax.f32 %v1808, 0.0
        %v1825 = vld [vmem:[%s5] sm:$0xf]
        %v1826 = vld [vmem:[%s5 + $0x4] sm:$0xf]
        %v1827 = vld [vmem:[%s5 + $0x8] sm:$0xf]
        %v1828 = vld [vmem:[%s5 + $0xc] sm:$0xf]
        %v1829 = vld [vmem:[%s5 + $0x10] sm:$0xf]
        %v1830 = vld [vmem:[%s5 + $0x14] sm:$0xf]
        %v1831 = vld [vmem:[%s5 + $0x18] sm:$0xf]
        %v1832 = vld [vmem:[%s5 + $0x1c] sm:$0xf]
        %v1833 = vpack.c.bf16 %v1810, %v1809
        %v1834 = vpack.c.bf16 %v1812, %v1811
        %v1835 = vpack.c.bf16 %v1814, %v1813
        %v1836 = vpack.c.bf16 %v1816, %v1815
        %v1837 = vpack.c.bf16 %v1818, %v1817
        %v1838 = vpack.c.bf16 %v1820, %v1819
        %v1839 = vpack.c.bf16 %v1822, %v1821
        %v1840 = vpack.c.bf16 %v1824, %v1823
        %v1849 = vunpack.c.l.b16 %v1825
        %v1850 = vunpack.c.l.b16 %v1826
        %v1851 = vunpack.c.l.b16 %v1827
        %v1852 = vunpack.c.l.b16 %v1828
        %v1853 = vunpack.c.l.b16 %v1829
        %v1854 = vunpack.c.l.b16 %v1830
        %v1855 = vunpack.c.l.b16 %v1831
        %v1856 = vunpack.c.l.b16 %v1832
        %v1857 = vpack.c.b16 %v1850, %v1849
        %v1858 = vpack.c.b16 %v1852, %v1851
        %v1859 = vpack.c.b16 %v1854, %v1853
        %v1860 = vpack.c.b16 %v1856, %v1855
        %1865 = vmatpush.bf16.msra.mxu0 %v1840
        %1866 = vmatpush.bf16.msra.mxu0 %v1839
        %1867 = vmatpush.bf16.msra.mxu0 %v1838
        %1868 = vmatpush.bf16.msra.mxu0 %v1837
        %1869 = vmatpush.bf16.msra.mxu0 %v1836
        %1870 = vmatpush.bf16.msra.mxu0 %v1835
        %1871 = vmatpush.bf16.msra.mxu0 %v1834
        %1872 = vmatpush.bf16.msra.mxu0 %v1833
        %1873 = vmatmul.bf16.gmra.mxu0 %v1857
        %v1874 = vpop.f32.mrf.mxu0
        %v1875 = vadd.f32 0.0, %v1874
        %v1876 = vpop.f32.mrf.mxu0
        %v1877 = vadd.f32 0.0, %v1876
        %1878 = vmatmul.bf16.gmra.mxu0 %v1858
        %v1879 = vpop.f32.mrf.mxu0
        %v1880 = vadd.f32 0.0, %v1879
        %v1881 = vpop.f32.mrf.mxu0
        %v1882 = vadd.f32 0.0, %v1881
        %1883 = vmatmul.bf16.gmra.mxu0 %v1859
        %v1884 = vpop.f32.mrf.mxu0
        %v1885 = vadd.f32 0.0, %v1884
        %v1886 = vpop.f32.mrf.mxu0
        %v1887 = vadd.f32 0.0, %v1886
        %1888 = vmatmul.bf16.gmra.mxu0 %v1860
        %v1889 = vpop.f32.mrf.mxu0
        %v1890 = vadd.f32 0.0, %v1889
        %v1891 = vpop.f32.mrf.mxu0
        %v1892 = vadd.f32 0.0, %v1891
        %1893 = vdwg.mxu0
        %v1894 = vpack.c.bf16 %v1875, %v1875
        %v1895 = vpack.c.bf16 %v1877, %v1877
        %v1896 = vpack.c.bf16 %v1880, %v1880
        %v1897 = vpack.c.bf16 %v1882, %v1882
        %v1898 = vpack.c.bf16 %v1885, %v1885
        %v1899 = vpack.c.bf16 %v1887, %v1887
        %v1900 = vpack.c.bf16 %v1890, %v1890
        %v1901 = vpack.c.bf16 %v1892, %v1892
        %v1910 = vunpack.c.l.b16 %v1894
        %v1911 = vunpack.c.l.b16 %v1895
        %v1912 = vunpack.c.l.b16 %v1896
        %v1913 = vunpack.c.l.b16 %v1897
        %v1914 = vunpack.c.l.b16 %v1898
        %v1915 = vunpack.c.l.b16 %v1899
        %v1916 = vunpack.c.l.b16 %v1900
        %v1917 = vunpack.c.l.b16 %v1901
        %v1918 = vpack.c.b16 %v1911, %v1910
        %v1919 = vpack.c.b16 %v1913, %v1912
        %v1920 = vpack.c.b16 %v1915, %v1914
        %v1921 = vpack.c.b16 %v1917, %v1916
        %v1923 = vshrl.u32 %v1918, 16
        %v1925 = vrot.slane %v1923, 7
        %v1926 = vshll.u32 %v1918, 16
        %v1928 = vor.u32 %v1925, %v1926
        %v1930 = vshrl.u32 %v1919, 16
        %v1932 = vrot.slane %v1930, 7
        %v1933 = vshll.u32 %v1919, 16
        %v1935 = vor.u32 %v1932, %v1933
        %v1936 = vsel %vm753, %v1925, %v1935
        %v1938 = vshrl.u32 %v1920, 16
        %v1940 = vrot.slane %v1938, 7
        %v1941 = vshll.u32 %v1920, 16
        %v1943 = vor.u32 %v1940, %v1941
        %v1944 = vsel %vm753, %v1932, %v1943
        %v1946 = vshrl.u32 %v1921, 16
        %v1948 = vrot.slane %v1946, 7
        %v1949 = vshll.u32 %v1921, 16
        %v1951 = vor.u32 %v1948, %v1949
        %v1952 = vsel %vm753, %v1940, %v1951
        %v1957 = vsel %vm826, 0, %v1928
        %v1958 = vrot.slane %v1926, 1
        %v1959 = vor.u32 %v1923, %v1958
        %v1960 = vrot.slane %v1933, 1
        %v1961 = vsel %vm828, %v1959, %v1960
        %v1962 = vor.u32 %v1930, %v1960
        %v1963 = vrot.slane %v1941, 1
        %v1964 = vsel %vm828, %v1962, %v1963
        %v1965 = vor.u32 %v1938, %v1963
        %v1966 = vrot.slane %v1949, 1
        %v1967 = vsel %vm828, %v1965, %v1966
        %v1968 = vor.u32 %v1946, %v1966
        %v1973 = vsel %vm861, %v1968, 0
        %v1974 = vld [vmem:[#allocation9] sm:$0xf]
        %v1975 = vld [vmem:[#allocation9 + $0x4] sm:$0xf]
        %v1976 = vld [vmem:[#allocation9 + $0x8] sm:$0xf]
        %v1977 = vld [vmem:[#allocation9 + $0xc] sm:$0xf]
        %v1978 = vld [vmem:[#allocation9 + $0x10] sm:$0xf]
        %v1979 = vld [vmem:[#allocation9 + $0x14] sm:$0xf]
        %v1980 = vld [vmem:[#allocation9 + $0x18] sm:$0xf]
        %v1981 = vld [vmem:[#allocation9 + $0x1c] sm:$0xf]
        %v1982 = vld [vmem:[#allocation9 + $0x20] sm:$0xf]
        %v1983 = vld [vmem:[#allocation9 + $0x24] sm:$0xf]
        %v1984 = vld [vmem:[#allocation9 + $0x28] sm:$0xf]
        %v1985 = vld [vmem:[#allocation9 + $0x2c] sm:$0xf]
        %v1986 = vld [vmem:[#allocation9 + $0x30] sm:$0xf]
        %v1987 = vld [vmem:[#allocation9 + $0x34] sm:$0xf]
        %v1988 = vld [vmem:[#allocation9 + $0x38] sm:$0xf]
        %v1989 = vld [vmem:[#allocation9 + $0x3c] sm:$0xf]
        %s1990 = scalar_lea.vmem [#allocation9], 64
        %v1991 = vld [vmem:[%s1990] sm:$0xf]
        %v1992 = vld [vmem:[%s1990 + $0x4] sm:$0xf]
        %v1993 = vld [vmem:[%s1990 + $0x8] sm:$0xf]
        %v1994 = vld [vmem:[%s1990 + $0xc] sm:$0xf]
        %v1995 = vld [vmem:[%s1990 + $0x10] sm:$0xf]
        %v1996 = vld [vmem:[%s1990 + $0x14] sm:$0xf]
        %v1997 = vld [vmem:[%s1990 + $0x18] sm:$0xf]
        %v1998 = vld [vmem:[%s1990 + $0x1c] sm:$0xf]
        %v1999 = vld [vmem:[%s1990 + $0x20] sm:$0xf]
        %v2000 = vld [vmem:[%s1990 + $0x24] sm:$0xf]
        %v2001 = vld [vmem:[%s1990 + $0x28] sm:$0xf]
        %v2002 = vld [vmem:[%s1990 + $0x2c] sm:$0xf]
        %v2003 = vld [vmem:[%s1990 + $0x30] sm:$0xf]
        %v2004 = vld [vmem:[%s1990 + $0x34] sm:$0xf]
        %v2005 = vld [vmem:[%s1990 + $0x38] sm:$0xf]
        %v2006 = vld [vmem:[%s1990 + $0x3c] sm:$0xf]
        %v2027 = vunpack.c.l.b16 %v1991
        %v2028 = vunpack.c.l.b16 %v1992
        %v2029 = vunpack.c.l.b16 %v1993
        %v2030 = vunpack.c.l.b16 %v1994
        %v2031 = vunpack.c.l.b16 %v1995
        %v2032 = vunpack.c.l.b16 %v1996
        %v2033 = vunpack.c.l.b16 %v1997
        %v2034 = vunpack.c.l.b16 %v1998
        %v2035 = vunpack.c.l.b16 %v1999
        %v2036 = vunpack.c.l.b16 %v2000
        %v2037 = vunpack.c.l.b16 %v2001
        %v2038 = vunpack.c.l.b16 %v2002
        %v2039 = vunpack.c.l.b16 %v2003
        %v2040 = vunpack.c.l.b16 %v2004
        %v2041 = vunpack.c.l.b16 %v2005
        %v2042 = vunpack.c.l.b16 %v2006
        %v2043 = vpack.c.b16 %v2028, %v2027
        %v2044 = vpack.c.b16 %v2030, %v2029
        %v2045 = vpack.c.b16 %v2032, %v2031
        %v2046 = vpack.c.b16 %v2034, %v2033
        %v2047 = vpack.c.b16 %v2036, %v2035
        %v2048 = vpack.c.b16 %v2038, %v2037
        %v2049 = vpack.c.b16 %v2040, %v2039
        %v2050 = vpack.c.b16 %v2042, %v2041
        %2059 = vmatpush.bf16.msra.mxu0 %v2050
        %2060 = vmatpush.bf16.msra.mxu0 %v2049
        %2061 = vmatpush.bf16.msra.mxu0 %v2048
        %2062 = vmatpush.bf16.msra.mxu0 %v2047
        %2063 = vmatpush.bf16.msra.mxu0 %v2046
        %2064 = vmatpush.bf16.msra.mxu0 %v2045
        %2065 = vmatpush.bf16.msra.mxu0 %v2044
        %2066 = vmatpush.bf16.msra.mxu0 %v2043
        %2067 = vmatmul.bf16.gmra.mxu0 %v1918
        %v2068 = vpop.f32.mrf.mxu0
        %v2069 = vadd.f32 0.0, %v2068
        %v2070 = vpop.f32.mrf.mxu0
        %v2071 = vadd.f32 0.0, %v2070
        %2072 = vmatmul.bf16.gmra.mxu0 %v1919
        %v2073 = vpop.f32.mrf.mxu0
        %v2074 = vadd.f32 0.0, %v2073
        %v2075 = vpop.f32.mrf.mxu0
        %v2076 = vadd.f32 0.0, %v2075
        %2077 = vmatmul.bf16.gmra.mxu0 %v1920
        %v2078 = vpop.f32.mrf.mxu0
        %v2079 = vadd.f32 0.0, %v2078
        %v2080 = vpop.f32.mrf.mxu0
        %v2081 = vadd.f32 0.0, %v2080
        %2082 = vmatmul.bf16.gmra.mxu0 %v1921
        %v2083 = vpop.f32.mrf.mxu0
        %v2084 = vadd.f32 0.0, %v2083
        %v2085 = vpop.f32.mrf.mxu0
        %v2086 = vadd.f32 0.0, %v2085
        %2087 = vdwg.mxu0
        %v2104 = vunpack.c.l.b16 %v1974
        %v2105 = vunpack.c.l.b16 %v1975
        %v2106 = vunpack.c.l.b16 %v1976
        %v2107 = vunpack.c.l.b16 %v1977
        %v2108 = vunpack.c.l.b16 %v1978
        %v2109 = vunpack.c.l.b16 %v1979
        %v2110 = vunpack.c.l.b16 %v1980
        %v2111 = vunpack.c.l.b16 %v1981
        %v2112 = vunpack.c.l.b16 %v1982
        %v2113 = vunpack.c.l.b16 %v1983
        %v2114 = vunpack.c.l.b16 %v1984
        %v2115 = vunpack.c.l.b16 %v1985
        %v2116 = vunpack.c.l.b16 %v1986
        %v2117 = vunpack.c.l.b16 %v1987
        %v2118 = vunpack.c.l.b16 %v1988
        %v2119 = vunpack.c.l.b16 %v1989
        %v2120 = vpack.c.b16 %v2105, %v2104
        %v2121 = vpack.c.b16 %v2107, %v2106
        %v2122 = vpack.c.b16 %v2109, %v2108
        %v2123 = vpack.c.b16 %v2111, %v2110
        %v2124 = vpack.c.b16 %v2113, %v2112
        %v2125 = vpack.c.b16 %v2115, %v2114
        %v2126 = vpack.c.b16 %v2117, %v2116
        %v2127 = vpack.c.b16 %v2119, %v2118
        %2136 = vmatpush.bf16.msra.mxu0 %v2127
        %2137 = vmatpush.bf16.msra.mxu0 %v2126
        %2138 = vmatpush.bf16.msra.mxu0 %v2125
        %2139 = vmatpush.bf16.msra.mxu0 %v2124
        %2140 = vmatpush.bf16.msra.mxu0 %v2123
        %2141 = vmatpush.bf16.msra.mxu0 %v2122
        %2142 = vmatpush.bf16.msra.mxu0 %v2121
        %2143 = vmatpush.bf16.msra.mxu0 %v2120
        %2144 = vmatmul.bf16.gmra.mxu0 %v1957
        %v2145 = vpop.f32.mrf.mxu0
        %v2146 = vadd.f32 %v2069, %v2145
        %v2147 = vpop.f32.mrf.mxu0
        %v2148 = vadd.f32 %v2071, %v2147
        %2149 = vmatmul.bf16.gmra.mxu0 %v1936
        %v2150 = vpop.f32.mrf.mxu0
        %v2151 = vadd.f32 %v2074, %v2150
        %v2152 = vpop.f32.mrf.mxu0
        %v2153 = vadd.f32 %v2076, %v2152
        %2154 = vmatmul.bf16.gmra.mxu0 %v1944
        %v2155 = vpop.f32.mrf.mxu0
        %v2156 = vadd.f32 %v2079, %v2155
        %v2157 = vpop.f32.mrf.mxu0
        %v2158 = vadd.f32 %v2081, %v2157
        %2159 = vmatmul.bf16.gmra.mxu0 %v1952
        %v2160 = vpop.f32.mrf.mxu0
        %v2161 = vadd.f32 %v2084, %v2160
        %v2162 = vpop.f32.mrf.mxu0
        %v2163 = vadd.f32 %v2086, %v2162
        %2164 = vdwg.mxu0
        %s2165 = scalar_lea.vmem [#allocation9], 128
        %v2166 = vld [vmem:[%s2165] sm:$0xf]
        %v2167 = vld [vmem:[%s2165 + $0x4] sm:$0xf]
        %v2168 = vld [vmem:[%s2165 + $0x8] sm:$0xf]
        %v2169 = vld [vmem:[%s2165 + $0xc] sm:$0xf]
        %v2170 = vld [vmem:[%s2165 + $0x10] sm:$0xf]
        %v2171 = vld [vmem:[%s2165 + $0x14] sm:$0xf]
        %v2172 = vld [vmem:[%s2165 + $0x18] sm:$0xf]
        %v2173 = vld [vmem:[%s2165 + $0x1c] sm:$0xf]
        %v2174 = vld [vmem:[%s2165 + $0x20] sm:$0xf]
        %v2175 = vld [vmem:[%s2165 + $0x24] sm:$0xf]
        %v2176 = vld [vmem:[%s2165 + $0x28] sm:$0xf]
        %v2177 = vld [vmem:[%s2165 + $0x2c] sm:$0xf]
        %v2178 = vld [vmem:[%s2165 + $0x30] sm:$0xf]
        %v2179 = vld [vmem:[%s2165 + $0x34] sm:$0xf]
        %v2180 = vld [vmem:[%s2165 + $0x38] sm:$0xf]
        %v2181 = vld [vmem:[%s2165 + $0x3c] sm:$0xf]
        %v2198 = vunpack.c.l.b16 %v2166
        %v2199 = vunpack.c.l.b16 %v2167
        %v2200 = vunpack.c.l.b16 %v2168
        %v2201 = vunpack.c.l.b16 %v2169
        %v2202 = vunpack.c.l.b16 %v2170
        %v2203 = vunpack.c.l.b16 %v2171
        %v2204 = vunpack.c.l.b16 %v2172
        %v2205 = vunpack.c.l.b16 %v2173
        %v2206 = vunpack.c.l.b16 %v2174
        %v2207 = vunpack.c.l.b16 %v2175
        %v2208 = vunpack.c.l.b16 %v2176
        %v2209 = vunpack.c.l.b16 %v2177
        %v2210 = vunpack.c.l.b16 %v2178
        %v2211 = vunpack.c.l.b16 %v2179
        %v2212 = vunpack.c.l.b16 %v2180
        %v2213 = vunpack.c.l.b16 %v2181
        %v2214 = vpack.c.b16 %v2199, %v2198
        %v2215 = vpack.c.b16 %v2201, %v2200
        %v2216 = vpack.c.b16 %v2203, %v2202
        %v2217 = vpack.c.b16 %v2205, %v2204
        %v2218 = vpack.c.b16 %v2207, %v2206
        %v2219 = vpack.c.b16 %v2209, %v2208
        %v2220 = vpack.c.b16 %v2211, %v2210
        %v2221 = vpack.c.b16 %v2213, %v2212
        %2230 = vmatpush.bf16.msra.mxu0 %v2221
        %2231 = vmatpush.bf16.msra.mxu0 %v2220
        %2232 = vmatpush.bf16.msra.mxu0 %v2219
        %2233 = vmatpush.bf16.msra.mxu0 %v2218
        %2234 = vmatpush.bf16.msra.mxu0 %v2217
        %2235 = vmatpush.bf16.msra.mxu0 %v2216
        %2236 = vmatpush.bf16.msra.mxu0 %v2215
        %2237 = vmatpush.bf16.msra.mxu0 %v2214
        %2238 = vmatmul.bf16.gmra.mxu0 %v1961
        %v2239 = vpop.f32.mrf.mxu0
        %v2240 = vadd.f32 0.0, %v2239
        %v2241 = vpop.f32.mrf.mxu0
        %v2242 = vadd.f32 0.0, %v2241
        %2243 = vmatmul.bf16.gmra.mxu0 %v1964
        %v2244 = vpop.f32.mrf.mxu0
        %v2245 = vadd.f32 0.0, %v2244
        %v2246 = vpop.f32.mrf.mxu0
        %v2247 = vadd.f32 0.0, %v2246
        %2248 = vmatmul.bf16.gmra.mxu0 %v1967
        %v2249 = vpop.f32.mrf.mxu0
        %v2250 = vadd.f32 0.0, %v2249
        %v2251 = vpop.f32.mrf.mxu0
        %v2252 = vadd.f32 0.0, %v2251
        %2253 = vmatmul.bf16.gmra.mxu0 %v1973
        %v2254 = vpop.f32.mrf.mxu0
        %v2255 = vadd.f32 0.0, %v2254
        %v2256 = vpop.f32.mrf.mxu0
        %v2257 = vadd.f32 0.0, %v2256
        %2258 = vdwg.mxu0
        %v2259 = vadd.f32 %v2146, %v2240
        %v2260 = vadd.f32 %v2148, %v2242
        %v2261 = vadd.f32 %v2151, %v2245
        %v2262 = vadd.f32 %v2153, %v2247
        %v2263 = vadd.f32 %v2156, %v2250
        %v2264 = vadd.f32 %v2158, %v2252
        %v2265 = vadd.f32 %v2161, %v2255
        %v2266 = vadd.f32 %v2163, %v2257
        %v2267 = vld [vmem:[#allocation10] sm:$0x1]
        %v2269 = vperm.slane %v2267, 0
        %v2271 = vadd.f32 %v2259, %v2269
        %v2272 = vadd.f32 %v2260, %v2269
        %v2273 = vadd.f32 %v2261, %v2269
        %v2274 = vadd.f32 %v2262, %v2269
        %v2275 = vadd.f32 %v2263, %v2269
        %v2276 = vadd.f32 %v2264, %v2269
        %v2277 = vadd.f32 %v2265, %v2269
        %v2278 = vadd.f32 %v2266, %v2269
        %v2279 = vmax.f32 %v2271, 0.0
        %v2280 = vmax.f32 %v2272, 0.0
        %v2281 = vmax.f32 %v2273, 0.0
        %v2282 = vmax.f32 %v2274, 0.0
        %v2283 = vmax.f32 %v2275, 0.0
        %v2284 = vmax.f32 %v2276, 0.0
        %v2285 = vmax.f32 %v2277, 0.0
        %v2286 = vmax.f32 %v2278, 0.0
        %v2287 = vpack.c.bf16 %v2280, %v2279
        %v2288 = vpack.c.bf16 %v2282, %v2281
        %v2289 = vpack.c.bf16 %v2284, %v2283
        %v2290 = vpack.c.bf16 %v2286, %v2285
        %v2291 = vld [vmem:[#allocation12] sm:$0xff]
        %v2292 = vld [vmem:[#allocation12 + $0x8] sm:$0xf]
        %v2293 = vld [vmem:[#allocation12 + $0xc] sm:$0xff]
        %v2294 = vld [vmem:[#allocation12 + $0x14] sm:$0xf]
        %v2295 = vld [vmem:[#allocation12 + $0x18] sm:$0xff]
        %v2296 = vld [vmem:[#allocation12 + $0x20] sm:$0xf]
        %v2297 = vld [vmem:[#allocation12 + $0x24] sm:$0xff]
        %v2298 = vld [vmem:[#allocation12 + $0x2c] sm:$0xf]
        %v2299 = vld [vmem:[#allocation12 + $0x30] sm:$0xff]
        %v2300 = vld [vmem:[#allocation12 + $0x38] sm:$0xf]
        %v2301 = vld [vmem:[#allocation12 + $0x3c] sm:$0xff]
        %v2302 = vld [vmem:[#allocation12 + $0x44] sm:$0xf]
        %v2303 = vld [vmem:[#allocation12 + $0x48] sm:$0xff]
        %v2304 = vld [vmem:[#allocation12 + $0x50] sm:$0xf]
        %v2305 = vld [vmem:[#allocation12 + $0x54] sm:$0xff]
        %v2306 = vld [vmem:[#allocation12 + $0x5c] sm:$0xf]
        %v2307 = vld [vmem:[#allocation12 + $0x60] sm:$0xff]
        %v2308 = vld [vmem:[#allocation12 + $0x68] sm:$0xf]
        %v2309 = vld [vmem:[#allocation12 + $0x6c] sm:$0xff]
        %v2310 = vld [vmem:[#allocation12 + $0x74] sm:$0xf]
        %v2311 = vld [vmem:[#allocation12 + $0x78] sm:$0xff]
        %v2312 = vld [vmem:[#allocation12 + $0x80] sm:$0xf]
        %v2313 = vld [vmem:[#allocation12 + $0x84] sm:$0xff]
        %v2314 = vld [vmem:[#allocation12 + $0x8c] sm:$0xf]
        %v2315 = vld [vmem:[#allocation12 + $0x90] sm:$0xff]
        %v2316 = vld [vmem:[#allocation12 + $0x98] sm:$0xf]
        %v2317 = vld [vmem:[#allocation12 + $0x9c] sm:$0xff]
        %v2318 = vld [vmem:[#allocation12 + $0xa4] sm:$0xf]
        %v2319 = vld [vmem:[#allocation12 + $0xa8] sm:$0xff]
        %v2320 = vld [vmem:[#allocation12 + $0xb0] sm:$0xf]
        %v2321 = vld [vmem:[#allocation12 + $0xb4] sm:$0xff]
        %v2322 = vld [vmem:[#allocation12 + $0xbc] sm:$0xf]
        %v2355 = vunpack.c.l.b16 %v2291
        %v2356 = vunpack.c.h.b16 %v2291
        %v2357 = vunpack.c.l.b16 %v2292
        %v2358 = vunpack.c.l.b16 %v2293
        %v2359 = vunpack.c.h.b16 %v2293
        %v2360 = vunpack.c.l.b16 %v2294
        %v2361 = vunpack.c.l.b16 %v2295
        %v2362 = vunpack.c.h.b16 %v2295
        %v2363 = vunpack.c.l.b16 %v2296
        %v2364 = vunpack.c.l.b16 %v2297
        %v2365 = vunpack.c.h.b16 %v2297
        %v2366 = vunpack.c.l.b16 %v2298
        %v2367 = vunpack.c.l.b16 %v2299
        %v2368 = vunpack.c.h.b16 %v2299
        %v2369 = vunpack.c.l.b16 %v2300
        %v2370 = vunpack.c.l.b16 %v2301
        %v2371 = vunpack.c.h.b16 %v2301
        %v2372 = vunpack.c.l.b16 %v2302
        %v2373 = vunpack.c.l.b16 %v2303
        %v2374 = vunpack.c.h.b16 %v2303
        %v2375 = vunpack.c.l.b16 %v2304
        %v2376 = vunpack.c.l.b16 %v2305
        %v2377 = vunpack.c.h.b16 %v2305
        %v2378 = vunpack.c.l.b16 %v2306
        %v2379 = vunpack.c.l.b16 %v2307
        %v2380 = vunpack.c.h.b16 %v2307
        %v2381 = vunpack.c.l.b16 %v2308
        %v2382 = vunpack.c.l.b16 %v2309
        %v2383 = vunpack.c.h.b16 %v2309
        %v2384 = vunpack.c.l.b16 %v2310
        %v2385 = vunpack.c.l.b16 %v2311
        %v2386 = vunpack.c.h.b16 %v2311
        %v2387 = vunpack.c.l.b16 %v2312
        %v2388 = vunpack.c.l.b16 %v2313
        %v2389 = vunpack.c.h.b16 %v2313
        %v2390 = vunpack.c.l.b16 %v2314
        %v2391 = vunpack.c.l.b16 %v2315
        %v2392 = vunpack.c.h.b16 %v2315
        %v2393 = vunpack.c.l.b16 %v2316
        %v2394 = vunpack.c.l.b16 %v2317
        %v2395 = vunpack.c.h.b16 %v2317
        %v2396 = vunpack.c.l.b16 %v2318
        %v2397 = vunpack.c.l.b16 %v2319
        %v2398 = vunpack.c.h.b16 %v2319
        %v2399 = vunpack.c.l.b16 %v2320
        %v2400 = vunpack.c.l.b16 %v2321
        %v2401 = vunpack.c.h.b16 %v2321
        %v2402 = vunpack.c.l.b16 %v2322
        %v2403 = vpack.c.b16 %v2358, %v2355
        %v2404 = vpack.c.b16 %v2359, %v2356
        %v2405 = vpack.c.b16 %v2360, %v2357
        %v2406 = vpack.c.b16 %v2364, %v2361
        %v2407 = vpack.c.b16 %v2365, %v2362
        %v2408 = vpack.c.b16 %v2366, %v2363
        %v2409 = vpack.c.b16 %v2370, %v2367
        %v2410 = vpack.c.b16 %v2371, %v2368
        %v2411 = vpack.c.b16 %v2372, %v2369
        %v2412 = vpack.c.b16 %v2376, %v2373
        %v2413 = vpack.c.b16 %v2377, %v2374
        %v2414 = vpack.c.b16 %v2378, %v2375
        %v2415 = vpack.c.b16 %v2382, %v2379
        %v2416 = vpack.c.b16 %v2383, %v2380
        %v2417 = vpack.c.b16 %v2384, %v2381
        %v2418 = vpack.c.b16 %v2388, %v2385
        %v2419 = vpack.c.b16 %v2389, %v2386
        %v2420 = vpack.c.b16 %v2390, %v2387
        %v2421 = vpack.c.b16 %v2394, %v2391
        %v2422 = vpack.c.b16 %v2395, %v2392
        %v2423 = vpack.c.b16 %v2396, %v2393
        %v2424 = vpack.c.b16 %v2400, %v2397
        %v2425 = vpack.c.b16 %v2401, %v2398
        %v2426 = vpack.c.b16 %v2402, %v2399
        %2451 = vmatpush.bf16.msra.mxu0 %v2424
        %2452 = vmatpush.bf16.msra.mxu0 %v2421
        %2453 = vmatpush.bf16.msra.mxu0 %v2418
        %2454 = vmatpush.bf16.msra.mxu0 %v2415
        %2455 = vmatpush.bf16.msra.mxu0 %v2412
        %2456 = vmatpush.bf16.msra.mxu0 %v2409
        %2457 = vmatpush.bf16.msra.mxu0 %v2406
        %2458 = vmatpush.bf16.msra.mxu0 %v2403
        %2459 = vmatmul.bf16.gmra.mxu0 %v2287
        %v2460 = vpop.f32.mrf.mxu0
        %v2461 = vadd.f32 0.0, %v2460
        %v2462 = vpop.f32.mrf.mxu0
        %v2463 = vadd.f32 0.0, %v2462
        %2464 = vmatmul.bf16.gmra.mxu0 %v2288
        %v2465 = vpop.f32.mrf.mxu0
        %v2466 = vadd.f32 0.0, %v2465
        %v2467 = vpop.f32.mrf.mxu0
        %v2468 = vadd.f32 0.0, %v2467
        %2469 = vmatmul.bf16.gmra.mxu0 %v2289
        %v2470 = vpop.f32.mrf.mxu0
        %v2471 = vadd.f32 0.0, %v2470
        %v2472 = vpop.f32.mrf.mxu0
        %v2473 = vadd.f32 0.0, %v2472
        %2474 = vmatmul.bf16.gmra.mxu0 %v2290
        %v2475 = vpop.f32.mrf.mxu0
        %v2476 = vadd.f32 0.0, %v2475
        %v2477 = vpop.f32.mrf.mxu0
        %v2478 = vadd.f32 0.0, %v2477
        %2479 = vdwg.mxu0
        %2480 = vmatpush.bf16.msra.mxu0 %v2425
        %2481 = vmatpush.bf16.msra.mxu0 %v2422
        %2482 = vmatpush.bf16.msra.mxu0 %v2419
        %2483 = vmatpush.bf16.msra.mxu0 %v2416
        %2484 = vmatpush.bf16.msra.mxu0 %v2413
        %2485 = vmatpush.bf16.msra.mxu0 %v2410
        %2486 = vmatpush.bf16.msra.mxu0 %v2407
        %2487 = vmatpush.bf16.msra.mxu0 %v2404
        %2488 = vmatmul.bf16.gmra.mxu0 %v2287
        %v2489 = vpop.f32.mrf.mxu0
        %v2490 = vadd.f32 0.0, %v2489
        %v2491 = vpop.f32.mrf.mxu0
        %v2492 = vadd.f32 0.0, %v2491
        %2493 = vmatmul.bf16.gmra.mxu0 %v2288
        %v2494 = vpop.f32.mrf.mxu0
        %v2495 = vadd.f32 0.0, %v2494
        %v2496 = vpop.f32.mrf.mxu0
        %v2497 = vadd.f32 0.0, %v2496
        %2498 = vmatmul.bf16.gmra.mxu0 %v2289
        %v2499 = vpop.f32.mrf.mxu0
        %v2500 = vadd.f32 0.0, %v2499
        %v2501 = vpop.f32.mrf.mxu0
        %v2502 = vadd.f32 0.0, %v2501
        %2503 = vmatmul.bf16.gmra.mxu0 %v2290
        %v2504 = vpop.f32.mrf.mxu0
        %v2505 = vadd.f32 0.0, %v2504
        %v2506 = vpop.f32.mrf.mxu0
        %v2507 = vadd.f32 0.0, %v2506
        %2508 = vdwg.mxu0
        %2509 = vmatpush.bf16.msra.mxu0 %v2426
        %2510 = vmatpush.bf16.msra.mxu0 %v2423
        %2511 = vmatpush.bf16.msra.mxu0 %v2420
        %2512 = vmatpush.bf16.msra.mxu0 %v2417
        %2513 = vmatpush.bf16.msra.mxu0 %v2414
        %2514 = vmatpush.bf16.msra.mxu0 %v2411
        %2515 = vmatpush.bf16.msra.mxu0 %v2408
        %2516 = vmatpush.bf16.msra.mxu0 %v2405
        %2517 = vmatmul.bf16.gmra.mxu0 %v2287
        %v2518 = vpop.f32.mrf.mxu0
        %v2519 = vadd.f32 0.0, %v2518
        %v2520 = vpop.f32.mrf.mxu0
        %v2521 = vadd.f32 0.0, %v2520
        %2522 = vmatmul.bf16.gmra.mxu0 %v2288
        %v2523 = vpop.f32.mrf.mxu0
        %v2524 = vadd.f32 0.0, %v2523
        %v2525 = vpop.f32.mrf.mxu0
        %v2526 = vadd.f32 0.0, %v2525
        %2527 = vmatmul.bf16.gmra.mxu0 %v2289
        %v2528 = vpop.f32.mrf.mxu0
        %v2529 = vadd.f32 0.0, %v2528
        %v2530 = vpop.f32.mrf.mxu0
        %v2531 = vadd.f32 0.0, %v2530
        %2532 = vmatmul.bf16.gmra.mxu0 %v2290
        %v2533 = vpop.f32.mrf.mxu0
        %v2534 = vadd.f32 0.0, %v2533
        %v2535 = vpop.f32.mrf.mxu0
        %v2536 = vadd.f32 0.0, %v2535
        %2537 = vdwg.mxu0
        %v2538 = vpack.c.bf16 %v2490, %v2461
        %v2539 = vpack.c.bf16 %v2519, %v2519
        %v2540 = vpack.c.bf16 %v2492, %v2463
        %v2541 = vpack.c.bf16 %v2521, %v2521
        %v2542 = vpack.c.bf16 %v2495, %v2466
        %v2543 = vpack.c.bf16 %v2524, %v2524
        %v2544 = vpack.c.bf16 %v2497, %v2468
        %v2545 = vpack.c.bf16 %v2526, %v2526
        %v2546 = vpack.c.bf16 %v2500, %v2471
        %v2547 = vpack.c.bf16 %v2529, %v2529
        %v2548 = vpack.c.bf16 %v2502, %v2473
        %v2549 = vpack.c.bf16 %v2531, %v2531
        %v2550 = vpack.c.bf16 %v2505, %v2476
        %v2551 = vpack.c.bf16 %v2534, %v2534
        %v2552 = vpack.c.bf16 %v2507, %v2478
        %v2553 = vpack.c.bf16 %v2536, %v2536
        %2562 = vrot.lane.b32.xlu0 %v2538, 96
        %v2563 = vpop.permute.xlu0 %2562
        %2564 = vrot.lane.b32.xlu0 %v2540, 96
        %v2565 = vpop.permute.xlu0 %2564
        %2566 = vrot.lane.b32.xlu0 %v2542, 96
        %v2567 = vpop.permute.xlu0 %2566
        %2568 = vrot.lane.b32.xlu0 %v2544, 96
        %v2569 = vpop.permute.xlu0 %2568
        %2570 = vrot.lane.b32.xlu0 %v2546, 96
        %v2571 = vpop.permute.xlu0 %2570
        %2572 = vrot.lane.b32.xlu0 %v2548, 96
        %v2573 = vpop.permute.xlu0 %2572
        %2574 = vrot.lane.b32.xlu0 %v2550, 96
        %v2575 = vpop.permute.xlu0 %2574
        %2576 = vrot.lane.b32.xlu0 %v2552, 96
        %v2577 = vpop.permute.xlu0 %2576
        %2578 = vrot.lane.b32.xlu0 %v2538, 64
        %v2579 = vpop.permute.xlu0 %2578
        %2580 = vrot.lane.b32.xlu0 %v2540, 64
        %v2581 = vpop.permute.xlu0 %2580
        %2582 = vrot.lane.b32.xlu0 %v2542, 64
        %v2583 = vpop.permute.xlu0 %2582
        %2584 = vrot.lane.b32.xlu0 %v2544, 64
        %v2585 = vpop.permute.xlu0 %2584
        %2586 = vrot.lane.b32.xlu0 %v2546, 64
        %v2587 = vpop.permute.xlu0 %2586
        %2588 = vrot.lane.b32.xlu0 %v2548, 64
        %v2589 = vpop.permute.xlu0 %2588
        %2590 = vrot.lane.b32.xlu0 %v2550, 64
        %v2591 = vpop.permute.xlu0 %2590
        %2592 = vrot.lane.b32.xlu0 %v2552, 64
        %v2593 = vpop.permute.xlu0 %2592
        %2594 = vrot.lane.b32.xlu0 %v2538, 32
        %v2595 = vpop.permute.xlu0 %2594
        %2596 = vrot.lane.b32.xlu0 %v2540, 32
        %v2597 = vpop.permute.xlu0 %2596
        %2598 = vrot.lane.b32.xlu0 %v2542, 32
        %v2599 = vpop.permute.xlu0 %2598
        %2600 = vrot.lane.b32.xlu0 %v2544, 32
        %v2601 = vpop.permute.xlu0 %2600
        %2602 = vrot.lane.b32.xlu0 %v2546, 32
        %v2603 = vpop.permute.xlu0 %2602
        %2604 = vrot.lane.b32.xlu0 %v2548, 32
        %v2605 = vpop.permute.xlu0 %2604
        %2606 = vrot.lane.b32.xlu0 %v2550, 32
        %v2607 = vpop.permute.xlu0 %2606
        %2608 = vrot.lane.b32.xlu0 %v2552, 32
        %v2609 = vpop.permute.xlu0 %2608
        %v2610 = vrot.slane %v2538, 4
        %v2611 = vrot.slane %v2540, 4
        %v2612 = vrot.slane %v2542, 4
        %v2613 = vrot.slane %v2544, 4
        %v2614 = vrot.slane %v2546, 4
        %v2615 = vrot.slane %v2548, 4
        %v2616 = vrot.slane %v2550, 4
        %v2617 = vrot.slane %v2552, 4
        %v2618 = vrot.slane %v2563, 4
        %v2619 = vrot.slane %v2565, 4
        %v2620 = vrot.slane %v2567, 4
        %v2621 = vrot.slane %v2569, 4
        %v2622 = vrot.slane %v2571, 4
        %v2623 = vrot.slane %v2573, 4
        %v2624 = vrot.slane %v2575, 4
        %v2625 = vrot.slane %v2577, 4
        %v2626 = vrot.slane %v2579, 4
        %v2627 = vrot.slane %v2581, 4
        %v2628 = vrot.slane %v2583, 4
        %v2629 = vrot.slane %v2585, 4
        %v2630 = vrot.slane %v2587, 4
        %v2631 = vrot.slane %v2589, 4
        %v2632 = vrot.slane %v2591, 4
        %v2633 = vrot.slane %v2593, 4
        %v2634 = vrot.slane %v2595, 4
        %v2635 = vrot.slane %v2597, 4
        %v2636 = vrot.slane %v2599, 4
        %v2637 = vrot.slane %v2601, 4
        %v2638 = vrot.slane %v2603, 4
        %v2639 = vrot.slane %v2605, 4
        %v2640 = vrot.slane %v2607, 4
        %v2641 = vrot.slane %v2609, 4
        %2650 = vrot.lane.b32.xlu0 %v2539, 96
        %v2651 = vpop.permute.xlu0 %2650
        %2652 = vrot.lane.b32.xlu0 %v2541, 96
        %v2653 = vpop.permute.xlu0 %2652
        %2654 = vrot.lane.b32.xlu0 %v2543, 96
        %v2655 = vpop.permute.xlu0 %2654
        %2656 = vrot.lane.b32.xlu0 %v2545, 96
        %v2657 = vpop.permute.xlu0 %2656
        %2658 = vrot.lane.b32.xlu0 %v2547, 96
        %v2659 = vpop.permute.xlu0 %2658
        %2660 = vrot.lane.b32.xlu0 %v2549, 96
        %v2661 = vpop.permute.xlu0 %2660
        %2662 = vrot.lane.b32.xlu0 %v2551, 96
        %v2663 = vpop.permute.xlu0 %2662
        %2664 = vrot.lane.b32.xlu0 %v2553, 96
        %v2665 = vpop.permute.xlu0 %2664
        %2666 = vrot.lane.b32.xlu0 %v2539, 64
        %v2667 = vpop.permute.xlu0 %2666
        %2668 = vrot.lane.b32.xlu0 %v2541, 64
        %v2669 = vpop.permute.xlu0 %2668
        %2670 = vrot.lane.b32.xlu0 %v2543, 64
        %v2671 = vpop.permute.xlu0 %2670
        %2672 = vrot.lane.b32.xlu0 %v2545, 64
        %v2673 = vpop.permute.xlu0 %2672
        %2674 = vrot.lane.b32.xlu0 %v2547, 64
        %v2675 = vpop.permute.xlu0 %2674
        %2676 = vrot.lane.b32.xlu0 %v2549, 64
        %v2677 = vpop.permute.xlu0 %2676
        %2678 = vrot.lane.b32.xlu0 %v2551, 64
        %v2679 = vpop.permute.xlu0 %2678
        %2680 = vrot.lane.b32.xlu0 %v2553, 64
        %v2681 = vpop.permute.xlu0 %2680
        %2682 = vrot.lane.b32.xlu0 %v2539, 32
        %v2683 = vpop.permute.xlu0 %2682
        %2684 = vrot.lane.b32.xlu0 %v2541, 32
        %v2685 = vpop.permute.xlu0 %2684
        %2686 = vrot.lane.b32.xlu0 %v2543, 32
        %v2687 = vpop.permute.xlu0 %2686
        %2688 = vrot.lane.b32.xlu0 %v2545, 32
        %v2689 = vpop.permute.xlu0 %2688
        %2690 = vrot.lane.b32.xlu0 %v2547, 32
        %v2691 = vpop.permute.xlu0 %2690
        %2692 = vrot.lane.b32.xlu0 %v2549, 32
        %v2693 = vpop.permute.xlu0 %2692
        %2694 = vrot.lane.b32.xlu0 %v2551, 32
        %v2695 = vpop.permute.xlu0 %2694
        %2696 = vrot.lane.b32.xlu0 %v2553, 32
        %v2697 = vpop.permute.xlu0 %2696
        %v2698 = vunpack.c.l.b16 %v2538
        %v2699 = vunpack.c.l.b16 %v2540
        %v2700 = vunpack.c.l.b16 %v2542
        %v2701 = vunpack.c.l.b16 %v2544
        %v2702 = vunpack.c.l.b16 %v2546
        %v2703 = vunpack.c.l.b16 %v2548
        %v2704 = vunpack.c.l.b16 %v2550
        %v2705 = vunpack.c.l.b16 %v2552
        %v2706 = vpack.c.b16 %v2699, %v2698
        %v2707 = vpack.c.b16 %v2701, %v2700
        %v2708 = vpack.c.b16 %v2703, %v2702
        %v2709 = vpack.c.b16 %v2705, %v2704
        %v2710 = vunpack.c.l.b16 %v2610
        %v2711 = vunpack.c.l.b16 %v2611
        %v2712 = vunpack.c.l.b16 %v2612
        %v2713 = vunpack.c.l.b16 %v2613
        %v2714 = vunpack.c.l.b16 %v2614
        %v2715 = vunpack.c.l.b16 %v2615
        %v2716 = vunpack.c.l.b16 %v2616
        %v2717 = vunpack.c.l.b16 %v2617
        %v2718 = vpack.c.b16 %v2711, %v2710
        %v2719 = vpack.c.b16 %v2713, %v2712
        %v2720 = vpack.c.b16 %v2715, %v2714
        %v2721 = vpack.c.b16 %v2717, %v2716
        %vm2722 = vcmask 261120
        %v2724 = vsel %vm2722, %v2706, 0
        %v2727 = vsel %vm2722, %v2707, 0
        %v2730 = vsel %vm2722, %v2708, 0
        %v2733 = vsel %vm2722, %v2709, 0
        %v2736 = vsel %vm2722, %v2718, 0
        %v2739 = vsel %vm2722, %v2719, 0
        %v2742 = vsel %vm2722, %v2720, 0
        %v2745 = vsel %vm2722, %v2721, 0
        %2747 = vmatpush.bf16.xpose.msra.mxu0 0
        %2748 = vmatpush.bf16.xpose.msra.mxu0 0
        %2749 = vmatpush.bf16.xpose.msra.mxu0 0
        %2750 = vmatpush.bf16.xpose.msra.mxu0 0
        %2751 = vmatpush.bf16.xpose.msra.mxu0 %v2745
        %2752 = vmatpush.bf16.xpose.msra.mxu0 %v2742
        %2753 = vmatpush.bf16.xpose.msra.mxu0 %v2739
        %2754 = vmatpush.bf16.xpose.msra.mxu0 %v2736
        %2755 = vmatmul.bf16.gmra.mxu0 %v2724
        %v2756 = vpop.f32.mrf.mxu0
        %v2757 = vadd.f32 0.0, %v2756
        %v2758 = vpop.f32.mrf.mxu0
        %v2759 = vadd.f32 0.0, %v2758
        %2760 = vmatmul.bf16.gmra.mxu0 %v2727
        %v2761 = vpop.f32.mrf.mxu0
        %v2762 = vadd.f32 0.0, %v2761
        %v2763 = vpop.f32.mrf.mxu0
        %v2764 = vadd.f32 0.0, %v2763
        %2765 = vmatmul.bf16.gmra.mxu0 %v2730
        %v2766 = vpop.f32.mrf.mxu0
        %v2767 = vadd.f32 0.0, %v2766
        %v2768 = vpop.f32.mrf.mxu0
        %v2769 = vadd.f32 0.0, %v2768
        %2770 = vmatmul.bf16.gmra.mxu0 %v2733
        %v2771 = vpop.f32.mrf.mxu0
        %v2772 = vadd.f32 0.0, %v2771
        %v2773 = vpop.f32.mrf.mxu0
        %v2774 = vadd.f32 0.0, %v2773
        %2775 = vdwg.mxu0
        %v2776 = vunpack.c.l.b16 %v2563
        %v2777 = vunpack.c.l.b16 %v2565
        %v2778 = vunpack.c.l.b16 %v2567
        %v2779 = vunpack.c.l.b16 %v2569
        %v2780 = vunpack.c.l.b16 %v2571
        %v2781 = vunpack.c.l.b16 %v2573
        %v2782 = vunpack.c.l.b16 %v2575
        %v2783 = vunpack.c.l.b16 %v2577
        %v2784 = vpack.c.b16 %v2777, %v2776
        %v2785 = vpack.c.b16 %v2779, %v2778
        %v2786 = vpack.c.b16 %v2781, %v2780
        %v2787 = vpack.c.b16 %v2783, %v2782
        %v2788 = vunpack.c.l.b16 %v2618
        %v2789 = vunpack.c.l.b16 %v2619
        %v2790 = vunpack.c.l.b16 %v2620
        %v2791 = vunpack.c.l.b16 %v2621
        %v2792 = vunpack.c.l.b16 %v2622
        %v2793 = vunpack.c.l.b16 %v2623
        %v2794 = vunpack.c.l.b16 %v2624
        %v2795 = vunpack.c.l.b16 %v2625
        %v2796 = vpack.c.b16 %v2789, %v2788
        %v2797 = vpack.c.b16 %v2791, %v2790
        %v2798 = vpack.c.b16 %v2793, %v2792
        %v2799 = vpack.c.b16 %v2795, %v2794
        %v2801 = vsel %vm2722, %v2784, 0
        %v2804 = vsel %vm2722, %v2785, 0
        %v2807 = vsel %vm2722, %v2786, 0
        %v2810 = vsel %vm2722, %v2787, 0
        %v2813 = vsel %vm2722, %v2796, 0
        %v2816 = vsel %vm2722, %v2797, 0
        %v2819 = vsel %vm2722, %v2798, 0
        %v2822 = vsel %vm2722, %v2799, 0
        %2824 = vmatpush.bf16.xpose.msra.mxu0 0
        %2825 = vmatpush.bf16.xpose.msra.mxu0 0
        %2826 = vmatpush.bf16.xpose.msra.mxu0 0
        %2827 = vmatpush.bf16.xpose.msra.mxu0 0
        %2828 = vmatpush.bf16.xpose.msra.mxu0 %v2822
        %2829 = vmatpush.bf16.xpose.msra.mxu0 %v2819
        %2830 = vmatpush.bf16.xpose.msra.mxu0 %v2816
        %2831 = vmatpush.bf16.xpose.msra.mxu0 %v2813
        %2832 = vmatmul.bf16.gmra.mxu0 %v2801
        %v2833 = vpop.f32.mrf.mxu0
        %v2834 = vadd.f32 0.0, %v2833
        %v2835 = vpop.f32.mrf.mxu0
        %v2836 = vadd.f32 0.0, %v2835
        %2837 = vmatmul.bf16.gmra.mxu0 %v2804
        %v2838 = vpop.f32.mrf.mxu0
        %v2839 = vadd.f32 0.0, %v2838
        %v2840 = vpop.f32.mrf.mxu0
        %v2841 = vadd.f32 0.0, %v2840
        %2842 = vmatmul.bf16.gmra.mxu0 %v2807
        %v2843 = vpop.f32.mrf.mxu0
        %v2844 = vadd.f32 0.0, %v2843
        %v2845 = vpop.f32.mrf.mxu0
        %v2846 = vadd.f32 0.0, %v2845
        %2847 = vmatmul.bf16.gmra.mxu0 %v2810
        %v2848 = vpop.f32.mrf.mxu0
        %v2849 = vadd.f32 0.0, %v2848
        %v2850 = vpop.f32.mrf.mxu0
        %v2851 = vadd.f32 0.0, %v2850
        %2852 = vdwg.mxu0
        %v2853 = vunpack.c.l.b16 %v2579
        %v2854 = vunpack.c.l.b16 %v2581
        %v2855 = vunpack.c.l.b16 %v2583
        %v2856 = vunpack.c.l.b16 %v2585
        %v2857 = vunpack.c.l.b16 %v2587
        %v2858 = vunpack.c.l.b16 %v2589
        %v2859 = vunpack.c.l.b16 %v2591
        %v2860 = vunpack.c.l.b16 %v2593
        %v2861 = vpack.c.b16 %v2854, %v2853
        %v2862 = vpack.c.b16 %v2856, %v2855
        %v2863 = vpack.c.b16 %v2858, %v2857
        %v2864 = vpack.c.b16 %v2860, %v2859
        %v2865 = vunpack.c.l.b16 %v2626
        %v2866 = vunpack.c.l.b16 %v2627
        %v2867 = vunpack.c.l.b16 %v2628
        %v2868 = vunpack.c.l.b16 %v2629
        %v2869 = vunpack.c.l.b16 %v2630
        %v2870 = vunpack.c.l.b16 %v2631
        %v2871 = vunpack.c.l.b16 %v2632
        %v2872 = vunpack.c.l.b16 %v2633
        %v2873 = vpack.c.b16 %v2866, %v2865
        %v2874 = vpack.c.b16 %v2868, %v2867
        %v2875 = vpack.c.b16 %v2870, %v2869
        %v2876 = vpack.c.b16 %v2872, %v2871
        %v2878 = vsel %vm2722, %v2861, 0
        %v2881 = vsel %vm2722, %v2862, 0
        %v2884 = vsel %vm2722, %v2863, 0
        %v2887 = vsel %vm2722, %v2864, 0
        %v2890 = vsel %vm2722, %v2873, 0
        %v2893 = vsel %vm2722, %v2874, 0
        %v2896 = vsel %vm2722, %v2875, 0
        %v2899 = vsel %vm2722, %v2876, 0
        %2901 = vmatpush.bf16.xpose.msra.mxu0 0
        %2902 = vmatpush.bf16.xpose.msra.mxu0 0
        %2903 = vmatpush.bf16.xpose.msra.mxu0 0
        %2904 = vmatpush.bf16.xpose.msra.mxu0 0
        %2905 = vmatpush.bf16.xpose.msra.mxu0 %v2899
        %2906 = vmatpush.bf16.xpose.msra.mxu0 %v2896
        %2907 = vmatpush.bf16.xpose.msra.mxu0 %v2893
        %2908 = vmatpush.bf16.xpose.msra.mxu0 %v2890
        %2909 = vmatmul.bf16.gmra.mxu0 %v2878
        %v2910 = vpop.f32.mrf.mxu0
        %v2911 = vadd.f32 0.0, %v2910
        %v2912 = vpop.f32.mrf.mxu0
        %v2913 = vadd.f32 0.0, %v2912
        %2914 = vmatmul.bf16.gmra.mxu0 %v2881
        %v2915 = vpop.f32.mrf.mxu0
        %v2916 = vadd.f32 0.0, %v2915
        %v2917 = vpop.f32.mrf.mxu0
        %v2918 = vadd.f32 0.0, %v2917
        %2919 = vmatmul.bf16.gmra.mxu0 %v2884
        %v2920 = vpop.f32.mrf.mxu0
        %v2921 = vadd.f32 0.0, %v2920
        %v2922 = vpop.f32.mrf.mxu0
        %v2923 = vadd.f32 0.0, %v2922
        %2924 = vmatmul.bf16.gmra.mxu0 %v2887
        %v2925 = vpop.f32.mrf.mxu0
        %v2926 = vadd.f32 0.0, %v2925
        %v2927 = vpop.f32.mrf.mxu0
        %v2928 = vadd.f32 0.0, %v2927
        %2929 = vdwg.mxu0
        %v2930 = vunpack.c.l.b16 %v2595
        %v2931 = vunpack.c.l.b16 %v2597
        %v2932 = vunpack.c.l.b16 %v2599
        %v2933 = vunpack.c.l.b16 %v2601
        %v2934 = vunpack.c.l.b16 %v2603
        %v2935 = vunpack.c.l.b16 %v2605
        %v2936 = vunpack.c.l.b16 %v2607
        %v2937 = vunpack.c.l.b16 %v2609
        %v2938 = vpack.c.b16 %v2931, %v2930
        %v2939 = vpack.c.b16 %v2933, %v2932
        %v2940 = vpack.c.b16 %v2935, %v2934
        %v2941 = vpack.c.b16 %v2937, %v2936
        %v2942 = vunpack.c.l.b16 %v2634
        %v2943 = vunpack.c.l.b16 %v2635
        %v2944 = vunpack.c.l.b16 %v2636
        %v2945 = vunpack.c.l.b16 %v2637
        %v2946 = vunpack.c.l.b16 %v2638
        %v2947 = vunpack.c.l.b16 %v2639
        %v2948 = vunpack.c.l.b16 %v2640
        %v2949 = vunpack.c.l.b16 %v2641
        %v2950 = vpack.c.b16 %v2943, %v2942
        %v2951 = vpack.c.b16 %v2945, %v2944
        %v2952 = vpack.c.b16 %v2947, %v2946
        %v2953 = vpack.c.b16 %v2949, %v2948
        %v2955 = vsel %vm2722, %v2938, 0
        %v2958 = vsel %vm2722, %v2939, 0
        %v2961 = vsel %vm2722, %v2940, 0
        %v2964 = vsel %vm2722, %v2941, 0
        %v2967 = vsel %vm2722, %v2950, 0
        %v2970 = vsel %vm2722, %v2951, 0
        %v2973 = vsel %vm2722, %v2952, 0
        %v2976 = vsel %vm2722, %v2953, 0
        %2978 = vmatpush.bf16.xpose.msra.mxu0 0
        %2979 = vmatpush.bf16.xpose.msra.mxu0 0
        %2980 = vmatpush.bf16.xpose.msra.mxu0 0
        %2981 = vmatpush.bf16.xpose.msra.mxu0 0
        %2982 = vmatpush.bf16.xpose.msra.mxu0 %v2976
        %2983 = vmatpush.bf16.xpose.msra.mxu0 %v2973
        %2984 = vmatpush.bf16.xpose.msra.mxu0 %v2970
        %2985 = vmatpush.bf16.xpose.msra.mxu0 %v2967
        %2986 = vmatmul.bf16.gmra.mxu0 %v2955
        %v2987 = vpop.f32.mrf.mxu0
        %v2988 = vadd.f32 0.0, %v2987
        %v2989 = vpop.f32.mrf.mxu0
        %v2990 = vadd.f32 0.0, %v2989
        %2991 = vmatmul.bf16.gmra.mxu0 %v2958
        %v2992 = vpop.f32.mrf.mxu0
        %v2993 = vadd.f32 0.0, %v2992
        %v2994 = vpop.f32.mrf.mxu0
        %v2995 = vadd.f32 0.0, %v2994
        %2996 = vmatmul.bf16.gmra.mxu0 %v2961
        %v2997 = vpop.f32.mrf.mxu0
        %v2998 = vadd.f32 0.0, %v2997
        %v2999 = vpop.f32.mrf.mxu0
        %v3000 = vadd.f32 0.0, %v2999
        %3001 = vmatmul.bf16.gmra.mxu0 %v2964
        %v3002 = vpop.f32.mrf.mxu0
        %v3003 = vadd.f32 0.0, %v3002
        %v3004 = vpop.f32.mrf.mxu0
        %v3005 = vadd.f32 0.0, %v3004
        %3006 = vdwg.mxu0
        %vm3007 = vcmask 523264
        %v3008 = vsel %vm3007, %v2757, -inf
        %3009 = vmax.xlane.f32.xlu0 %v3008
        %v3010 = vpop.xlane.xlu0 %3009
        %v3011 = vsel %vm3007, %v2759, -inf
        %3012 = vmax.xlane.f32.xlu0 %v3011
        %v3013 = vpop.xlane.xlu0 %3012
        %v3014 = vsel %vm3007, %v2762, -inf
        %3015 = vmax.xlane.f32.xlu0 %v3014
        %v3016 = vpop.xlane.xlu0 %3015
        %v3017 = vsel %vm3007, %v2764, -inf
        %3018 = vmax.xlane.f32.xlu0 %v3017
        %v3019 = vpop.xlane.xlu0 %3018
        %v3020 = vsel %vm3007, %v2767, -inf
        %3021 = vmax.xlane.f32.xlu0 %v3020
        %v3022 = vpop.xlane.xlu0 %3021
        %v3023 = vsel %vm3007, %v2769, -inf
        %3024 = vmax.xlane.f32.xlu0 %v3023
        %v3025 = vpop.xlane.xlu0 %3024
        %v3026 = vsel %vm3007, %v2772, -inf
        %3027 = vmax.xlane.f32.xlu0 %v3026
        %v3028 = vpop.xlane.xlu0 %3027
        %v3029 = vsel %vm3007, %v2774, -inf
        %3030 = vmax.xlane.f32.xlu0 %v3029
        %v3031 = vpop.xlane.xlu0 %3030
        %v3032 = vsel %vm3007, %v2834, -inf
        %3033 = vmax.xlane.f32.xlu0 %v3032
        %v3034 = vpop.xlane.xlu0 %3033
        %v3035 = vsel %vm3007, %v2836, -inf
        %3036 = vmax.xlane.f32.xlu0 %v3035
        %v3037 = vpop.xlane.xlu0 %3036
        %v3038 = vsel %vm3007, %v2839, -inf
        %3039 = vmax.xlane.f32.xlu0 %v3038
        %v3040 = vpop.xlane.xlu0 %3039
        %v3041 = vsel %vm3007, %v2841, -inf
        %3042 = vmax.xlane.f32.xlu0 %v3041
        %v3043 = vpop.xlane.xlu0 %3042
        %v3044 = vsel %vm3007, %v2844, -inf
        %3045 = vmax.xlane.f32.xlu0 %v3044
        %v3046 = vpop.xlane.xlu0 %3045
        %v3047 = vsel %vm3007, %v2846, -inf
        %3048 = vmax.xlane.f32.xlu0 %v3047
        %v3049 = vpop.xlane.xlu0 %3048
        %v3050 = vsel %vm3007, %v2849, -inf
        %3051 = vmax.xlane.f32.xlu0 %v3050
        %v3052 = vpop.xlane.xlu0 %3051
        %v3053 = vsel %vm3007, %v2851, -inf
        %3054 = vmax.xlane.f32.xlu0 %v3053
        %v3055 = vpop.xlane.xlu0 %3054
        %v3056 = vsel %vm3007, %v2911, -inf
        %3057 = vmax.xlane.f32.xlu0 %v3056
        %v3058 = vpop.xlane.xlu0 %3057
        %v3059 = vsel %vm3007, %v2913, -inf
        %3060 = vmax.xlane.f32.xlu0 %v3059
        %v3061 = vpop.xlane.xlu0 %3060
        %v3062 = vsel %vm3007, %v2916, -inf
        %3063 = vmax.xlane.f32.xlu0 %v3062
        %v3064 = vpop.xlane.xlu0 %3063
        %v3065 = vsel %vm3007, %v2918, -inf
        %3066 = vmax.xlane.f32.xlu0 %v3065
        %v3067 = vpop.xlane.xlu0 %3066
        %v3068 = vsel %vm3007, %v2921, -inf
        %3069 = vmax.xlane.f32.xlu0 %v3068
        %v3070 = vpop.xlane.xlu0 %3069
        %v3071 = vsel %vm3007, %v2923, -inf
        %3072 = vmax.xlane.f32.xlu0 %v3071
        %v3073 = vpop.xlane.xlu0 %3072
        %v3074 = vsel %vm3007, %v2926, -inf
        %3075 = vmax.xlane.f32.xlu0 %v3074
        %v3076 = vpop.xlane.xlu0 %3075
        %v3077 = vsel %vm3007, %v2928, -inf
        %3078 = vmax.xlane.f32.xlu0 %v3077
        %v3079 = vpop.xlane.xlu0 %3078
        %v3080 = vsel %vm3007, %v2988, -inf
        %3081 = vmax.xlane.f32.xlu0 %v3080
        %v3082 = vpop.xlane.xlu0 %3081
        %v3083 = vsel %vm3007, %v2990, -inf
        %3084 = vmax.xlane.f32.xlu0 %v3083
        %v3085 = vpop.xlane.xlu0 %3084
        %v3086 = vsel %vm3007, %v2993, -inf
        %3087 = vmax.xlane.f32.xlu0 %v3086
        %v3088 = vpop.xlane.xlu0 %3087
        %v3089 = vsel %vm3007, %v2995, -inf
        %3090 = vmax.xlane.f32.xlu0 %v3089
        %v3091 = vpop.xlane.xlu0 %3090
        %v3092 = vsel %vm3007, %v2998, -inf
        %3093 = vmax.xlane.f32.xlu0 %v3092
        %v3094 = vpop.xlane.xlu0 %3093
        %v3095 = vsel %vm3007, %v3000, -inf
        %3096 = vmax.xlane.f32.xlu0 %v3095
        %v3097 = vpop.xlane.xlu0 %3096
        %v3098 = vsel %vm3007, %v3003, -inf
        %3099 = vmax.xlane.f32.xlu0 %v3098
        %v3100 = vpop.xlane.xlu0 %3099
        %v3101 = vsel %vm3007, %v3005, -inf
        %3102 = vmax.xlane.f32.xlu0 %v3101
        %v3103 = vpop.xlane.xlu0 %3102
        %v3104 = vsub.f32 %v2757, %v3010
        %v3105 = vsub.f32 %v2759, %v3013
        %v3106 = vsub.f32 %v2762, %v3016
        %v3107 = vsub.f32 %v2764, %v3019
        %v3108 = vsub.f32 %v2767, %v3022
        %v3109 = vsub.f32 %v2769, %v3025
        %v3110 = vsub.f32 %v2772, %v3028
        %v3111 = vsub.f32 %v2774, %v3031
        %v3112 = vsub.f32 %v2834, %v3034
        %v3113 = vsub.f32 %v2836, %v3037
        %v3114 = vsub.f32 %v2839, %v3040
        %v3115 = vsub.f32 %v2841, %v3043
        %v3116 = vsub.f32 %v2844, %v3046
        %v3117 = vsub.f32 %v2846, %v3049
        %v3118 = vsub.f32 %v2849, %v3052
        %v3119 = vsub.f32 %v2851, %v3055
        %v3120 = vsub.f32 %v2911, %v3058
        %v3121 = vsub.f32 %v2913, %v3061
        %v3122 = vsub.f32 %v2916, %v3064
        %v3123 = vsub.f32 %v2918, %v3067
        %v3124 = vsub.f32 %v2921, %v3070
        %v3125 = vsub.f32 %v2923, %v3073
        %v3126 = vsub.f32 %v2926, %v3076
        %v3127 = vsub.f32 %v2928, %v3079
        %v3128 = vsub.f32 %v2988, %v3082
        %v3129 = vsub.f32 %v2990, %v3085
        %v3130 = vsub.f32 %v2993, %v3088
        %v3131 = vsub.f32 %v2995, %v3091
        %v3132 = vsub.f32 %v2998, %v3094
        %v3133 = vsub.f32 %v3000, %v3097
        %v3134 = vsub.f32 %v3003, %v3100
        %v3135 = vsub.f32 %v3005, %v3103
        %v3136 = vmul.f32 %v3104, 1.442695
        %v3137 = vpow.pop %v3136
        %v3138 = vmul.f32 %v3105, 1.442695
        %v3139 = vpow.pop %v3138
        %v3140 = vmul.f32 %v3106, 1.442695
        %v3141 = vpow.pop %v3140
        %v3142 = vmul.f32 %v3107, 1.442695
        %v3143 = vpow.pop %v3142
        %v3144 = vmul.f32 %v3108, 1.442695
        %v3145 = vpow.pop %v3144
        %v3146 = vmul.f32 %v3109, 1.442695
        %v3147 = vpow.pop %v3146
        %v3148 = vmul.f32 %v3110, 1.442695
        %v3149 = vpow.pop %v3148
        %v3150 = vmul.f32 %v3111, 1.442695
        %v3151 = vpow.pop %v3150
        %v3152 = vmul.f32 %v3112, 1.442695
        %v3153 = vpow.pop %v3152
        %v3154 = vmul.f32 %v3113, 1.442695
        %v3155 = vpow.pop %v3154
        %v3156 = vmul.f32 %v3114, 1.442695
        %v3157 = vpow.pop %v3156
        %v3158 = vmul.f32 %v3115, 1.442695
        %v3159 = vpow.pop %v3158
        %v3160 = vmul.f32 %v3116, 1.442695
        %v3161 = vpow.pop %v3160
        %v3162 = vmul.f32 %v3117, 1.442695
        %v3163 = vpow.pop %v3162
        %v3164 = vmul.f32 %v3118, 1.442695
        %v3165 = vpow.pop %v3164
        %v3166 = vmul.f32 %v3119, 1.442695
        %v3167 = vpow.pop %v3166
        %v3168 = vmul.f32 %v3120, 1.442695
        %v3169 = vpow.pop %v3168
        %v3170 = vmul.f32 %v3121, 1.442695
        %v3171 = vpow.pop %v3170
        %v3172 = vmul.f32 %v3122, 1.442695
        %v3173 = vpow.pop %v3172
        %v3174 = vmul.f32 %v3123, 1.442695
        %v3175 = vpow.pop %v3174
        %v3176 = vmul.f32 %v3124, 1.442695
        %v3177 = vpow.pop %v3176
        %v3178 = vmul.f32 %v3125, 1.442695
        %v3179 = vpow.pop %v3178
        %v3180 = vmul.f32 %v3126, 1.442695
        %v3181 = vpow.pop %v3180
        %v3182 = vmul.f32 %v3127, 1.442695
        %v3183 = vpow.pop %v3182
        %v3184 = vmul.f32 %v3128, 1.442695
        %v3185 = vpow.pop %v3184
        %v3186 = vmul.f32 %v3129, 1.442695
        %v3187 = vpow.pop %v3186
        %v3188 = vmul.f32 %v3130, 1.442695
        %v3189 = vpow.pop %v3188
        %v3190 = vmul.f32 %v3131, 1.442695
        %v3191 = vpow.pop %v3190
        %v3192 = vmul.f32 %v3132, 1.442695
        %v3193 = vpow.pop %v3192
        %v3194 = vmul.f32 %v3133, 1.442695
        %v3195 = vpow.pop %v3194
        %v3196 = vmul.f32 %v3134, 1.442695
        %v3197 = vpow.pop %v3196
        %v3198 = vmul.f32 %v3135, 1.442695
        %v3199 = vpow.pop %v3198
        %v3200 = vsel %vm3007, %v3137, 0.0
        %3201 = vadd.xlane.f32.xlu0 %v3200
        %v3202 = vpop.xlane.xlu0 %3201
        %v3203 = vsel %vm3007, %v3139, 0.0
        %3204 = vadd.xlane.f32.xlu0 %v3203
        %v3205 = vpop.xlane.xlu0 %3204
        %v3206 = vsel %vm3007, %v3141, 0.0
        %3207 = vadd.xlane.f32.xlu0 %v3206
        %v3208 = vpop.xlane.xlu0 %3207
        %v3209 = vsel %vm3007, %v3143, 0.0
        %3210 = vadd.xlane.f32.xlu0 %v3209
        %v3211 = vpop.xlane.xlu0 %3210
        %v3212 = vsel %vm3007, %v3145, 0.0
        %3213 = vadd.xlane.f32.xlu0 %v3212
        %v3214 = vpop.xlane.xlu0 %3213
        %v3215 = vsel %vm3007, %v3147, 0.0
        %3216 = vadd.xlane.f32.xlu0 %v3215
        %v3217 = vpop.xlane.xlu0 %3216
        %v3218 = vsel %vm3007, %v3149, 0.0
        %3219 = vadd.xlane.f32.xlu0 %v3218
        %v3220 = vpop.xlane.xlu0 %3219
        %v3221 = vsel %vm3007, %v3151, 0.0
        %3222 = vadd.xlane.f32.xlu0 %v3221
        %v3223 = vpop.xlane.xlu0 %3222
        %v3224 = vsel %vm3007, %v3153, 0.0
        %3225 = vadd.xlane.f32.xlu0 %v3224
        %v3226 = vpop.xlane.xlu0 %3225
        %v3227 = vsel %vm3007, %v3155, 0.0
        %3228 = vadd.xlane.f32.xlu0 %v3227
        %v3229 = vpop.xlane.xlu0 %3228
        %v3230 = vsel %vm3007, %v3157, 0.0
        %3231 = vadd.xlane.f32.xlu0 %v3230
        %v3232 = vpop.xlane.xlu0 %3231
        %v3233 = vsel %vm3007, %v3159, 0.0
        %3234 = vadd.xlane.f32.xlu0 %v3233
        %v3235 = vpop.xlane.xlu0 %3234
        %v3236 = vsel %vm3007, %v3161, 0.0
        %3237 = vadd.xlane.f32.xlu0 %v3236
        %v3238 = vpop.xlane.xlu0 %3237
        %v3239 = vsel %vm3007, %v3163, 0.0
        %3240 = vadd.xlane.f32.xlu0 %v3239
        %v3241 = vpop.xlane.xlu0 %3240
        %v3242 = vsel %vm3007, %v3165, 0.0
        %3243 = vadd.xlane.f32.xlu0 %v3242
        %v3244 = vpop.xlane.xlu0 %3243
        %v3245 = vsel %vm3007, %v3167, 0.0
        %3246 = vadd.xlane.f32.xlu0 %v3245
        %v3247 = vpop.xlane.xlu0 %3246
        %v3248 = vsel %vm3007, %v3169, 0.0
        %3249 = vadd.xlane.f32.xlu0 %v3248
        %v3250 = vpop.xlane.xlu0 %3249
        %v3251 = vsel %vm3007, %v3171, 0.0
        %3252 = vadd.xlane.f32.xlu0 %v3251
        %v3253 = vpop.xlane.xlu0 %3252
        %v3254 = vsel %vm3007, %v3173, 0.0
        %3255 = vadd.xlane.f32.xlu0 %v3254
        %v3256 = vpop.xlane.xlu0 %3255
        %v3257 = vsel %vm3007, %v3175, 0.0
        %3258 = vadd.xlane.f32.xlu0 %v3257
        %v3259 = vpop.xlane.xlu0 %3258
        %v3260 = vsel %vm3007, %v3177, 0.0
        %3261 = vadd.xlane.f32.xlu0 %v3260
        %v3262 = vpop.xlane.xlu0 %3261
        %v3263 = vsel %vm3007, %v3179, 0.0
        %3264 = vadd.xlane.f32.xlu0 %v3263
        %v3265 = vpop.xlane.xlu0 %3264
        %v3266 = vsel %vm3007, %v3181, 0.0
        %3267 = vadd.xlane.f32.xlu0 %v3266
        %v3268 = vpop.xlane.xlu0 %3267
        %v3269 = vsel %vm3007, %v3183, 0.0
        %3270 = vadd.xlane.f32.xlu0 %v3269
        %v3271 = vpop.xlane.xlu0 %3270
        %v3272 = vsel %vm3007, %v3185, 0.0
        %3273 = vadd.xlane.f32.xlu0 %v3272
        %v3274 = vpop.xlane.xlu0 %3273
        %v3275 = vsel %vm3007, %v3187, 0.0
        %3276 = vadd.xlane.f32.xlu0 %v3275
        %v3277 = vpop.xlane.xlu0 %3276
        %v3278 = vsel %vm3007, %v3189, 0.0
        %3279 = vadd.xlane.f32.xlu0 %v3278
        %v3280 = vpop.xlane.xlu0 %3279
        %v3281 = vsel %vm3007, %v3191, 0.0
        %3282 = vadd.xlane.f32.xlu0 %v3281
        %v3283 = vpop.xlane.xlu0 %3282
        %v3284 = vsel %vm3007, %v3193, 0.0
        %3285 = vadd.xlane.f32.xlu0 %v3284
        %v3286 = vpop.xlane.xlu0 %3285
        %v3287 = vsel %vm3007, %v3195, 0.0
        %3288 = vadd.xlane.f32.xlu0 %v3287
        %v3289 = vpop.xlane.xlu0 %3288
        %v3290 = vsel %vm3007, %v3197, 0.0
        %3291 = vadd.xlane.f32.xlu0 %v3290
        %v3292 = vpop.xlane.xlu0 %3291
        %v3293 = vsel %vm3007, %v3199, 0.0
        %3294 = vadd.xlane.f32.xlu0 %v3293
        %v3295 = vpop.xlane.xlu0 %3294
        %v3296 = vrcp.pop %v3202
        %v3297 = vrcp.pop %v3205
        %v3298 = vrcp.pop %v3208
        %v3299 = vrcp.pop %v3211
        %v3300 = vrcp.pop %v3214
        %v3301 = vrcp.pop %v3217
        %v3302 = vrcp.pop %v3220
        %v3303 = vrcp.pop %v3223
        %v3304 = vrcp.pop %v3226
        %v3305 = vrcp.pop %v3229
        %v3306 = vrcp.pop %v3232
        %v3307 = vrcp.pop %v3235
        %v3308 = vrcp.pop %v3238
        %v3309 = vrcp.pop %v3241
        %v3310 = vrcp.pop %v3244
        %v3311 = vrcp.pop %v3247
        %v3312 = vrcp.pop %v3250
        %v3313 = vrcp.pop %v3253
        %v3314 = vrcp.pop %v3256
        %v3315 = vrcp.pop %v3259
        %v3316 = vrcp.pop %v3262
        %v3317 = vrcp.pop %v3265
        %v3318 = vrcp.pop %v3268
        %v3319 = vrcp.pop %v3271
        %v3320 = vrcp.pop %v3274
        %v3321 = vrcp.pop %v3277
        %v3322 = vrcp.pop %v3280
        %v3323 = vrcp.pop %v3283
        %v3324 = vrcp.pop %v3286
        %v3325 = vrcp.pop %v3289
        %v3326 = vrcp.pop %v3292
        %v3327 = vrcp.pop %v3295
        %v3328 = vmul.f32 %v3137, %v3296
        %v3329 = vmul.f32 %v3139, %v3297
        %v3330 = vmul.f32 %v3141, %v3298
        %v3331 = vmul.f32 %v3143, %v3299
        %v3332 = vmul.f32 %v3145, %v3300
        %v3333 = vmul.f32 %v3147, %v3301
        %v3334 = vmul.f32 %v3149, %v3302
        %v3335 = vmul.f32 %v3151, %v3303
        %v3336 = vmul.f32 %v3153, %v3304
        %v3337 = vmul.f32 %v3155, %v3305
        %v3338 = vmul.f32 %v3157, %v3306
        %v3339 = vmul.f32 %v3159, %v3307
        %v3340 = vmul.f32 %v3161, %v3308
        %v3341 = vmul.f32 %v3163, %v3309
        %v3342 = vmul.f32 %v3165, %v3310
        %v3343 = vmul.f32 %v3167, %v3311
        %v3344 = vmul.f32 %v3169, %v3312
        %v3345 = vmul.f32 %v3171, %v3313
        %v3346 = vmul.f32 %v3173, %v3314
        %v3347 = vmul.f32 %v3175, %v3315
        %v3348 = vmul.f32 %v3177, %v3316
        %v3349 = vmul.f32 %v3179, %v3317
        %v3350 = vmul.f32 %v3181, %v3318
        %v3351 = vmul.f32 %v3183, %v3319
        %v3352 = vmul.f32 %v3185, %v3320
        %v3353 = vmul.f32 %v3187, %v3321
        %v3354 = vmul.f32 %v3189, %v3322
        %v3355 = vmul.f32 %v3191, %v3323
        %v3356 = vmul.f32 %v3193, %v3324
        %v3357 = vmul.f32 %v3195, %v3325
        %v3358 = vmul.f32 %v3197, %v3326
        %v3359 = vmul.f32 %v3199, %v3327
        %v3360 = vpack.c.bf16 %v3328, %v3328
        %v3361 = vpack.c.bf16 %v3329, %v3329
        %v3362 = vpack.c.bf16 %v3330, %v3330
        %v3363 = vpack.c.bf16 %v3331, %v3331
        %v3364 = vpack.c.bf16 %v3332, %v3332
        %v3365 = vpack.c.bf16 %v3333, %v3333
        %v3366 = vpack.c.bf16 %v3334, %v3334
        %v3367 = vpack.c.bf16 %v3335, %v3335
        %v3368 = vpack.c.bf16 %v3336, %v3336
        %v3369 = vpack.c.bf16 %v3337, %v3337
        %v3370 = vpack.c.bf16 %v3338, %v3338
        %v3371 = vpack.c.bf16 %v3339, %v3339
        %v3372 = vpack.c.bf16 %v3340, %v3340
        %v3373 = vpack.c.bf16 %v3341, %v3341
        %v3374 = vpack.c.bf16 %v3342, %v3342
        %v3375 = vpack.c.bf16 %v3343, %v3343
        %v3376 = vpack.c.bf16 %v3344, %v3344
        %v3377 = vpack.c.bf16 %v3345, %v3345
        %v3378 = vpack.c.bf16 %v3346, %v3346
        %v3379 = vpack.c.bf16 %v3347, %v3347
        %v3380 = vpack.c.bf16 %v3348, %v3348
        %v3381 = vpack.c.bf16 %v3349, %v3349
        %v3382 = vpack.c.bf16 %v3350, %v3350
        %v3383 = vpack.c.bf16 %v3351, %v3351
        %v3384 = vpack.c.bf16 %v3352, %v3352
        %v3385 = vpack.c.bf16 %v3353, %v3353
        %v3386 = vpack.c.bf16 %v3354, %v3354
        %v3387 = vpack.c.bf16 %v3355, %v3355
        %v3388 = vpack.c.bf16 %v3356, %v3356
        %v3389 = vpack.c.bf16 %v3357, %v3357
        %v3390 = vpack.c.bf16 %v3358, %v3358
        %v3391 = vpack.c.bf16 %v3359, %v3359
        %v3400 = vunpack.c.l.b16 %v3360
        %v3401 = vunpack.c.l.b16 %v3361
        %v3402 = vunpack.c.l.b16 %v3362
        %v3403 = vunpack.c.l.b16 %v3363
        %v3404 = vunpack.c.l.b16 %v3364
        %v3405 = vunpack.c.l.b16 %v3365
        %v3406 = vunpack.c.l.b16 %v3366
        %v3407 = vunpack.c.l.b16 %v3367
        %v3408 = vpack.c.b16 %v3401, %v3400
        %v3409 = vpack.c.b16 %v3403, %v3402
        %v3410 = vpack.c.b16 %v3405, %v3404
        %v3411 = vpack.c.b16 %v3407, %v3406
        %v3412 = vunpack.c.l.b16 %v2539
        %v3413 = vunpack.c.l.b16 %v2541
        %v3414 = vunpack.c.l.b16 %v2543
        %v3415 = vunpack.c.l.b16 %v2545
        %v3416 = vunpack.c.l.b16 %v2547
        %v3417 = vunpack.c.l.b16 %v2549
        %v3418 = vunpack.c.l.b16 %v2551
        %v3419 = vunpack.c.l.b16 %v2553
        %v3420 = vpack.c.b16 %v3413, %v3412
        %v3421 = vpack.c.b16 %v3415, %v3414
        %v3422 = vpack.c.b16 %v3417, %v3416
        %v3423 = vpack.c.b16 %v3419, %v3418
        %v3429 = vsel %vm3007, %v3408, 0
        %v3432 = vsel %vm3007, %v3409, 0
        %v3435 = vsel %vm3007, %v3410, 0
        %v3438 = vsel %vm3007, %v3411, 0
        %3440 = vmatpush.bf16.msra.mxu0 0
        %3441 = vmatpush.bf16.msra.mxu0 0
        %3442 = vmatpush.bf16.msra.mxu0 0
        %3443 = vmatpush.bf16.msra.mxu0 0
        %3444 = vmatpush.bf16.msra.mxu0 %v3423
        %3445 = vmatpush.bf16.msra.mxu0 %v3422
        %3446 = vmatpush.bf16.msra.mxu0 %v3421
        %3447 = vmatpush.bf16.msra.mxu0 %v3420
        %3448 = vmatmul.bf16.gmra.mxu0 %v3429
        %v3449 = vpop.f32.mrf.mxu0
        %v3450 = vadd.f32 0.0, %v3449
        %v3451 = vpop.f32.mrf.mxu0
        %v3452 = vadd.f32 0.0, %v3451
        %3453 = vmatmul.bf16.gmra.mxu0 %v3432
        %v3454 = vpop.f32.mrf.mxu0
        %v3455 = vadd.f32 0.0, %v3454
        %v3456 = vpop.f32.mrf.mxu0
        %v3457 = vadd.f32 0.0, %v3456
        %3458 = vmatmul.bf16.gmra.mxu0 %v3435
        %v3459 = vpop.f32.mrf.mxu0
        %v3460 = vadd.f32 0.0, %v3459
        %v3461 = vpop.f32.mrf.mxu0
        %v3462 = vadd.f32 0.0, %v3461
        %3463 = vmatmul.bf16.gmra.mxu0 %v3438
        %v3464 = vpop.f32.mrf.mxu0
        %v3465 = vadd.f32 0.0, %v3464
        %v3466 = vpop.f32.mrf.mxu0
        %v3467 = vadd.f32 0.0, %v3466
        %3468 = vdwg.mxu0
        %v3477 = vunpack.c.l.b16 %v3368
        %v3478 = vunpack.c.l.b16 %v3369
        %v3479 = vunpack.c.l.b16 %v3370
        %v3480 = vunpack.c.l.b16 %v3371
        %v3481 = vunpack.c.l.b16 %v3372
        %v3482 = vunpack.c.l.b16 %v3373
        %v3483 = vunpack.c.l.b16 %v3374
        %v3484 = vunpack.c.l.b16 %v3375
        %v3485 = vpack.c.b16 %v3478, %v3477
        %v3486 = vpack.c.b16 %v3480, %v3479
        %v3487 = vpack.c.b16 %v3482, %v3481
        %v3488 = vpack.c.b16 %v3484, %v3483
        %v3489 = vunpack.c.l.b16 %v2651
        %v3490 = vunpack.c.l.b16 %v2653
        %v3491 = vunpack.c.l.b16 %v2655
        %v3492 = vunpack.c.l.b16 %v2657
        %v3493 = vunpack.c.l.b16 %v2659
        %v3494 = vunpack.c.l.b16 %v2661
        %v3495 = vunpack.c.l.b16 %v2663
        %v3496 = vunpack.c.l.b16 %v2665
        %v3497 = vpack.c.b16 %v3490, %v3489
        %v3498 = vpack.c.b16 %v3492, %v3491
        %v3499 = vpack.c.b16 %v3494, %v3493
        %v3500 = vpack.c.b16 %v3496, %v3495
        %v3506 = vsel %vm3007, %v3485, 0
        %v3509 = vsel %vm3007, %v3486, 0
        %v3512 = vsel %vm3007, %v3487, 0
        %v3515 = vsel %vm3007, %v3488, 0
        %3517 = vmatpush.bf16.msra.mxu0 0
        %3518 = vmatpush.bf16.msra.mxu0 0
        %3519 = vmatpush.bf16.msra.mxu0 0
        %3520 = vmatpush.bf16.msra.mxu0 0
        %3521 = vmatpush.bf16.msra.mxu0 %v3500
        %3522 = vmatpush.bf16.msra.mxu0 %v3499
        %3523 = vmatpush.bf16.msra.mxu0 %v3498
        %3524 = vmatpush.bf16.msra.mxu0 %v3497
        %3525 = vmatmul.bf16.gmra.mxu0 %v3506
        %v3526 = vpop.f32.mrf.mxu0
        %v3527 = vadd.f32 0.0, %v3526
        %v3528 = vpop.f32.mrf.mxu0
        %v3529 = vadd.f32 0.0, %v3528
        %3530 = vmatmul.bf16.gmra.mxu0 %v3509
        %v3531 = vpop.f32.mrf.mxu0
        %v3532 = vadd.f32 0.0, %v3531
        %v3533 = vpop.f32.mrf.mxu0
        %v3534 = vadd.f32 0.0, %v3533
        %3535 = vmatmul.bf16.gmra.mxu0 %v3512
        %v3536 = vpop.f32.mrf.mxu0
        %v3537 = vadd.f32 0.0, %v3536
        %v3538 = vpop.f32.mrf.mxu0
        %v3539 = vadd.f32 0.0, %v3538
        %3540 = vmatmul.bf16.gmra.mxu0 %v3515
        %v3541 = vpop.f32.mrf.mxu0
        %v3542 = vadd.f32 0.0, %v3541
        %v3543 = vpop.f32.mrf.mxu0
        %v3544 = vadd.f32 0.0, %v3543
        %3545 = vdwg.mxu0
        %v3554 = vunpack.c.l.b16 %v3376
        %v3555 = vunpack.c.l.b16 %v3377
        %v3556 = vunpack.c.l.b16 %v3378
        %v3557 = vunpack.c.l.b16 %v3379
        %v3558 = vunpack.c.l.b16 %v3380
        %v3559 = vunpack.c.l.b16 %v3381
        %v3560 = vunpack.c.l.b16 %v3382
        %v3561 = vunpack.c.l.b16 %v3383
        %v3562 = vpack.c.b16 %v3555, %v3554
        %v3563 = vpack.c.b16 %v3557, %v3556
        %v3564 = vpack.c.b16 %v3559, %v3558
        %v3565 = vpack.c.b16 %v3561, %v3560
        %v3566 = vunpack.c.l.b16 %v2667
        %v3567 = vunpack.c.l.b16 %v2669
        %v3568 = vunpack.c.l.b16 %v2671
        %v3569 = vunpack.c.l.b16 %v2673
        %v3570 = vunpack.c.l.b16 %v2675
        %v3571 = vunpack.c.l.b16 %v2677
        %v3572 = vunpack.c.l.b16 %v2679
        %v3573 = vunpack.c.l.b16 %v2681
        %v3574 = vpack.c.b16 %v3567, %v3566
        %v3575 = vpack.c.b16 %v3569, %v3568
        %v3576 = vpack.c.b16 %v3571, %v3570
        %v3577 = vpack.c.b16 %v3573, %v3572
        %v3583 = vsel %vm3007, %v3562, 0
        %v3586 = vsel %vm3007, %v3563, 0
        %v3589 = vsel %vm3007, %v3564, 0
        %v3592 = vsel %vm3007, %v3565, 0
        %3594 = vmatpush.bf16.msra.mxu0 0
        %3595 = vmatpush.bf16.msra.mxu0 0
        %3596 = vmatpush.bf16.msra.mxu0 0
        %3597 = vmatpush.bf16.msra.mxu0 0
        %3598 = vmatpush.bf16.msra.mxu0 %v3577
        %3599 = vmatpush.bf16.msra.mxu0 %v3576
        %3600 = vmatpush.bf16.msra.mxu0 %v3575
        %3601 = vmatpush.bf16.msra.mxu0 %v3574
        %3602 = vmatmul.bf16.gmra.mxu0 %v3583
        %v3603 = vpop.f32.mrf.mxu0
        %v3604 = vadd.f32 0.0, %v3603
        %v3605 = vpop.f32.mrf.mxu0
        %v3606 = vadd.f32 0.0, %v3605
        %3607 = vmatmul.bf16.gmra.mxu0 %v3586
        %v3608 = vpop.f32.mrf.mxu0
        %v3609 = vadd.f32 0.0, %v3608
        %v3610 = vpop.f32.mrf.mxu0
        %v3611 = vadd.f32 0.0, %v3610
        %3612 = vmatmul.bf16.gmra.mxu0 %v3589
        %v3613 = vpop.f32.mrf.mxu0
        %v3614 = vadd.f32 0.0, %v3613
        %v3615 = vpop.f32.mrf.mxu0
        %v3616 = vadd.f32 0.0, %v3615
        %3617 = vmatmul.bf16.gmra.mxu0 %v3592
        %v3618 = vpop.f32.mrf.mxu0
        %v3619 = vadd.f32 0.0, %v3618
        %v3620 = vpop.f32.mrf.mxu0
        %v3621 = vadd.f32 0.0, %v3620
        %3622 = vdwg.mxu0
        %v3631 = vunpack.c.l.b16 %v3384
        %v3632 = vunpack.c.l.b16 %v3385
        %v3633 = vunpack.c.l.b16 %v3386
        %v3634 = vunpack.c.l.b16 %v3387
        %v3635 = vunpack.c.l.b16 %v3388
        %v3636 = vunpack.c.l.b16 %v3389
        %v3637 = vunpack.c.l.b16 %v3390
        %v3638 = vunpack.c.l.b16 %v3391
        %v3639 = vpack.c.b16 %v3632, %v3631
        %v3640 = vpack.c.b16 %v3634, %v3633
        %v3641 = vpack.c.b16 %v3636, %v3635
        %v3642 = vpack.c.b16 %v3638, %v3637
        %v3643 = vunpack.c.l.b16 %v2683
        %v3644 = vunpack.c.l.b16 %v2685
        %v3645 = vunpack.c.l.b16 %v2687
        %v3646 = vunpack.c.l.b16 %v2689
        %v3647 = vunpack.c.l.b16 %v2691
        %v3648 = vunpack.c.l.b16 %v2693
        %v3649 = vunpack.c.l.b16 %v2695
        %v3650 = vunpack.c.l.b16 %v2697
        %v3651 = vpack.c.b16 %v3644, %v3643
        %v3652 = vpack.c.b16 %v3646, %v3645
        %v3653 = vpack.c.b16 %v3648, %v3647
        %v3654 = vpack.c.b16 %v3650, %v3649
        %v3660 = vsel %vm3007, %v3639, 0
        %v3663 = vsel %vm3007, %v3640, 0
        %v3666 = vsel %vm3007, %v3641, 0
        %v3669 = vsel %vm3007, %v3642, 0
        %3671 = vmatpush.bf16.msra.mxu0 0
        %3672 = vmatpush.bf16.msra.mxu0 0
        %3673 = vmatpush.bf16.msra.mxu0 0
        %3674 = vmatpush.bf16.msra.mxu0 0
        %3675 = vmatpush.bf16.msra.mxu0 %v3654
        %3676 = vmatpush.bf16.msra.mxu0 %v3653
        %3677 = vmatpush.bf16.msra.mxu0 %v3652
        %3678 = vmatpush.bf16.msra.mxu0 %v3651
        %3679 = vmatmul.bf16.gmra.mxu0 %v3660
        %v3680 = vpop.f32.mrf.mxu0
        %v3681 = vadd.f32 0.0, %v3680
        %v3682 = vpop.f32.mrf.mxu0
        %v3683 = vadd.f32 0.0, %v3682
        %3684 = vmatmul.bf16.gmra.mxu0 %v3663
        %v3685 = vpop.f32.mrf.mxu0
        %v3686 = vadd.f32 0.0, %v3685
        %v3687 = vpop.f32.mrf.mxu0
        %v3688 = vadd.f32 0.0, %v3687
        %3689 = vmatmul.bf16.gmra.mxu0 %v3666
        %v3690 = vpop.f32.mrf.mxu0
        %v3691 = vadd.f32 0.0, %v3690
        %v3692 = vpop.f32.mrf.mxu0
        %v3693 = vadd.f32 0.0, %v3692
        %3694 = vmatmul.bf16.gmra.mxu0 %v3669
        %v3695 = vpop.f32.mrf.mxu0
        %v3696 = vadd.f32 0.0, %v3695
        %v3697 = vpop.f32.mrf.mxu0
        %v3698 = vadd.f32 0.0, %v3697
        %3699 = vdwg.mxu0
        %3708 = vrot.lane.b32.xlu0 %v3527, 32
        %v3709 = vpop.permute.xlu0 %3708
        %3710 = vrot.lane.b32.xlu0 %v3529, 32
        %v3711 = vpop.permute.xlu0 %3710
        %3712 = vrot.lane.b32.xlu0 %v3532, 32
        %v3713 = vpop.permute.xlu0 %3712
        %3714 = vrot.lane.b32.xlu0 %v3534, 32
        %v3715 = vpop.permute.xlu0 %3714
        %3716 = vrot.lane.b32.xlu0 %v3537, 32
        %v3717 = vpop.permute.xlu0 %3716
        %3718 = vrot.lane.b32.xlu0 %v3539, 32
        %v3719 = vpop.permute.xlu0 %3718
        %3720 = vrot.lane.b32.xlu0 %v3542, 32
        %v3721 = vpop.permute.xlu0 %3720
        %3722 = vrot.lane.b32.xlu0 %v3544, 32
        %v3723 = vpop.permute.xlu0 %3722
        %3740 = vrot.lane.b32.xlu0 %v3604, 64
        %v3741 = vpop.permute.xlu0 %3740
        %3742 = vrot.lane.b32.xlu0 %v3606, 64
        %v3743 = vpop.permute.xlu0 %3742
        %3744 = vrot.lane.b32.xlu0 %v3609, 64
        %v3745 = vpop.permute.xlu0 %3744
        %3746 = vrot.lane.b32.xlu0 %v3611, 64
        %v3747 = vpop.permute.xlu0 %3746
        %3748 = vrot.lane.b32.xlu0 %v3614, 64
        %v3749 = vpop.permute.xlu0 %3748
        %3750 = vrot.lane.b32.xlu0 %v3616, 64
        %v3751 = vpop.permute.xlu0 %3750
        %3752 = vrot.lane.b32.xlu0 %v3619, 64
        %v3753 = vpop.permute.xlu0 %3752
        %3754 = vrot.lane.b32.xlu0 %v3621, 64
        %v3755 = vpop.permute.xlu0 %3754
        %3772 = vrot.lane.b32.xlu0 %v3681, 96
        %v3773 = vpop.permute.xlu0 %3772
        %3774 = vrot.lane.b32.xlu0 %v3683, 96
        %v3775 = vpop.permute.xlu0 %3774
        %3776 = vrot.lane.b32.xlu0 %v3686, 96
        %v3777 = vpop.permute.xlu0 %3776
        %3778 = vrot.lane.b32.xlu0 %v3688, 96
        %v3779 = vpop.permute.xlu0 %3778
        %3780 = vrot.lane.b32.xlu0 %v3691, 96
        %v3781 = vpop.permute.xlu0 %3780
        %3782 = vrot.lane.b32.xlu0 %v3693, 96
        %v3783 = vpop.permute.xlu0 %3782
        %3784 = vrot.lane.b32.xlu0 %v3696, 96
        %v3785 = vpop.permute.xlu0 %3784
        %3786 = vrot.lane.b32.xlu0 %v3698, 96
        %v3787 = vpop.permute.xlu0 %3786
        %v3796 = vsel %vm2722, %v3450, %v3709
        %v3797 = vsel %vm2722, %v3452, %v3711
        %v3798 = vsel %vm2722, %v3455, %v3713
        %v3799 = vsel %vm2722, %v3457, %v3715
        %v3800 = vsel %vm2722, %v3460, %v3717
        %v3801 = vsel %vm2722, %v3462, %v3719
        %v3802 = vsel %vm2722, %v3465, %v3721
        %v3803 = vsel %vm2722, %v3467, %v3723
        %v3804 = vsel %vm3007, %v3796, %v3741
        %v3805 = vsel %vm3007, %v3797, %v3743
        %v3806 = vsel %vm3007, %v3798, %v3745
        %v3807 = vsel %vm3007, %v3799, %v3747
        %v3808 = vsel %vm3007, %v3800, %v3749
        %v3809 = vsel %vm3007, %v3801, %v3751
        %v3810 = vsel %vm3007, %v3802, %v3753
        %v3811 = vsel %vm3007, %v3803, %v3755
        %vm3812 = vcmask 785408
        %v3813 = vsel %vm3812, %v3804, %v3773
        %v3814 = vsel %vm3812, %v3805, %v3775
        %v3815 = vsel %vm3812, %v3806, %v3777
        %v3816 = vsel %vm3812, %v3807, %v3779
        %v3817 = vsel %vm3812, %v3808, %v3781
        %v3818 = vsel %vm3812, %v3809, %v3783
        %v3819 = vsel %vm3812, %v3810, %v3785
        %v3820 = vsel %vm3812, %v3811, %v3787
        %3821 = vadd.xlane.f32.xlu0 %v3813
        %v3822 = vpop.xlane.xlu0 %3821
        %3823 = vadd.xlane.f32.xlu0 %v3814
        %v3824 = vpop.xlane.xlu0 %3823
        %3825 = vadd.xlane.f32.xlu0 %v3815
        %v3826 = vpop.xlane.xlu0 %3825
        %3827 = vadd.xlane.f32.xlu0 %v3816
        %v3828 = vpop.xlane.xlu0 %3827
        %3829 = vadd.xlane.f32.xlu0 %v3817
        %v3830 = vpop.xlane.xlu0 %3829
        %3831 = vadd.xlane.f32.xlu0 %v3818
        %v3832 = vpop.xlane.xlu0 %3831
        %3833 = vadd.xlane.f32.xlu0 %v3819
        %v3834 = vpop.xlane.xlu0 %3833
        %3835 = vadd.xlane.f32.xlu0 %v3820
        %v3836 = vpop.xlane.xlu0 %3835
        %v3837 = vrcp.pop 128.0
        %v3838 = vmul.f32 128.0, %v3837
        %v3839 = vsub.f32 1.0, %v3838
        %v3840 = vmul.f32 %v3837, %v3839
        %v3841 = vadd.f32 %v3837, %v3840
        %vm3842 = vweird.f32 %v3837
        %v3843 = vsel %vm3842, %v3837, %v3841
        %v3844 = vmul.f32 %v3822, %v3843
        %v3845 = vmul.f32 %v3824, %v3843
        %v3846 = vmul.f32 %v3826, %v3843
        %v3847 = vmul.f32 %v3828, %v3843
        %v3848 = vmul.f32 %v3830, %v3843
        %v3849 = vmul.f32 %v3832, %v3843
        %v3850 = vmul.f32 %v3834, %v3843
        %v3851 = vmul.f32 %v3836, %v3843
        %v3852 = vsub.f32 %v3813, %v3844
        %v3853 = vsub.f32 %v3814, %v3845
        %v3854 = vsub.f32 %v3815, %v3846
        %v3855 = vsub.f32 %v3816, %v3847
        %v3856 = vsub.f32 %v3817, %v3848
        %v3857 = vsub.f32 %v3818, %v3849
        %v3858 = vsub.f32 %v3819, %v3850
        %v3859 = vsub.f32 %v3820, %v3851
        %v3860 = vmul.f32 %v3852, %v3852
        %v3861 = vmul.f32 %v3853, %v3853
        %v3862 = vmul.f32 %v3854, %v3854
        %v3863 = vmul.f32 %v3855, %v3855
        %v3864 = vmul.f32 %v3856, %v3856
        %v3865 = vmul.f32 %v3857, %v3857
        %v3866 = vmul.f32 %v3858, %v3858
        %v3867 = vmul.f32 %v3859, %v3859
        %3868 = vadd.xlane.f32.xlu0 %v3860
        %v3869 = vpop.xlane.xlu0 %3868
        %3870 = vadd.xlane.f32.xlu0 %v3861
        %v3871 = vpop.xlane.xlu0 %3870
        %3872 = vadd.xlane.f32.xlu0 %v3862
        %v3873 = vpop.xlane.xlu0 %3872
        %3874 = vadd.xlane.f32.xlu0 %v3863
        %v3875 = vpop.xlane.xlu0 %3874
        %3876 = vadd.xlane.f32.xlu0 %v3864
        %v3877 = vpop.xlane.xlu0 %3876
        %3878 = vadd.xlane.f32.xlu0 %v3865
        %v3879 = vpop.xlane.xlu0 %3878
        %3880 = vadd.xlane.f32.xlu0 %v3866
        %v3881 = vpop.xlane.xlu0 %3880
        %3882 = vadd.xlane.f32.xlu0 %v3867
        %v3883 = vpop.xlane.xlu0 %3882
        %v3884 = vmul.f32 %v3869, %v3843
        %v3885 = vmul.f32 %v3871, %v3843
        %v3886 = vmul.f32 %v3873, %v3843
        %v3887 = vmul.f32 %v3875, %v3843
        %v3888 = vmul.f32 %v3877, %v3843
        %v3889 = vmul.f32 %v3879, %v3843
        %v3890 = vmul.f32 %v3881, %v3843
        %v3891 = vmul.f32 %v3883, %v3843
        %v3892 = vadd.f32 %v3884, 1e-05
        %v3893 = vadd.f32 %v3885, 1e-05
        %v3894 = vadd.f32 %v3886, 1e-05
        %v3895 = vadd.f32 %v3887, 1e-05
        %v3896 = vadd.f32 %v3888, 1e-05
        %v3897 = vadd.f32 %v3889, 1e-05
        %v3898 = vadd.f32 %v3890, 1e-05
        %v3899 = vadd.f32 %v3891, 1e-05
        %v3900 = vrsqrt.pop %v3892
        %v3901 = vmul.f32 %v3900, %v3892
        %v3902 = vmul.f32 %v3901, %v3900
        %v3903 = vmul.f32 0.5, %v3902
        %v3904 = vsub.f32 1.5, %v3903
        %v3905 = vmul.f32 %v3900, %v3904
        %vm3906 = vweird.f32 %v3892
        %vm3907 = vweird.f32 %v3900
        %vm3908 = vmor %vm3906, %vm3907
        %v3909 = vsel %vm3908, %v3900, %v3905
        %v3910 = vrsqrt.pop %v3893
        %v3911 = vmul.f32 %v3910, %v3893
        %v3912 = vmul.f32 %v3911, %v3910
        %v3913 = vmul.f32 0.5, %v3912
        %v3914 = vsub.f32 1.5, %v3913
        %v3915 = vmul.f32 %v3910, %v3914
        %vm3916 = vweird.f32 %v3893
        %vm3917 = vweird.f32 %v3910
        %vm3918 = vmor %vm3916, %vm3917
        %v3919 = vsel %vm3918, %v3910, %v3915
        %v3920 = vrsqrt.pop %v3894
        %v3921 = vmul.f32 %v3920, %v3894
        %v3922 = vmul.f32 %v3921, %v3920
        %v3923 = vmul.f32 0.5, %v3922
        %v3924 = vsub.f32 1.5, %v3923
        %v3925 = vmul.f32 %v3920, %v3924
        %vm3926 = vweird.f32 %v3894
        %vm3927 = vweird.f32 %v3920
        %vm3928 = vmor %vm3926, %vm3927
        %v3929 = vsel %vm3928, %v3920, %v3925
        %v3930 = vrsqrt.pop %v3895
        %v3931 = vmul.f32 %v3930, %v3895
        %v3932 = vmul.f32 %v3931, %v3930
        %v3933 = vmul.f32 0.5, %v3932
        %v3934 = vsub.f32 1.5, %v3933
        %v3935 = vmul.f32 %v3930, %v3934
        %vm3936 = vweird.f32 %v3895
        %vm3937 = vweird.f32 %v3930
        %vm3938 = vmor %vm3936, %vm3937
        %v3939 = vsel %vm3938, %v3930, %v3935
        %v3940 = vrsqrt.pop %v3896
        %v3941 = vmul.f32 %v3940, %v3896
        %v3942 = vmul.f32 %v3941, %v3940
        %v3943 = vmul.f32 0.5, %v3942
        %v3944 = vsub.f32 1.5, %v3943
        %v3945 = vmul.f32 %v3940, %v3944
        %vm3946 = vweird.f32 %v3896
        %vm3947 = vweird.f32 %v3940
        %vm3948 = vmor %vm3946, %vm3947
        %v3949 = vsel %vm3948, %v3940, %v3945
        %v3950 = vrsqrt.pop %v3897
        %v3951 = vmul.f32 %v3950, %v3897
        %v3952 = vmul.f32 %v3951, %v3950
        %v3953 = vmul.f32 0.5, %v3952
        %v3954 = vsub.f32 1.5, %v3953
        %v3955 = vmul.f32 %v3950, %v3954
        %vm3956 = vweird.f32 %v3897
        %vm3957 = vweird.f32 %v3950
        %vm3958 = vmor %vm3956, %vm3957
        %v3959 = vsel %vm3958, %v3950, %v3955
        %v3960 = vrsqrt.pop %v3898
        %v3961 = vmul.f32 %v3960, %v3898
        %v3962 = vmul.f32 %v3961, %v3960
        %v3963 = vmul.f32 0.5, %v3962
        %v3964 = vsub.f32 1.5, %v3963
        %v3965 = vmul.f32 %v3960, %v3964
        %vm3966 = vweird.f32 %v3898
        %vm3967 = vweird.f32 %v3960
        %vm3968 = vmor %vm3966, %vm3967
        %v3969 = vsel %vm3968, %v3960, %v3965
        %v3970 = vrsqrt.pop %v3899
        %v3971 = vmul.f32 %v3970, %v3899
        %v3972 = vmul.f32 %v3971, %v3970
        %v3973 = vmul.f32 0.5, %v3972
        %v3974 = vsub.f32 1.5, %v3973
        %v3975 = vmul.f32 %v3970, %v3974
        %vm3976 = vweird.f32 %v3899
        %vm3977 = vweird.f32 %v3970
        %vm3978 = vmor %vm3976, %vm3977
        %v3979 = vsel %vm3978, %v3970, %v3975
        %v3980 = vmul.f32 %v3852, %v3909
        %v3981 = vmul.f32 %v3853, %v3919
        %v3982 = vmul.f32 %v3854, %v3929
        %v3983 = vmul.f32 %v3855, %v3939
        %v3984 = vmul.f32 %v3856, %v3949
        %v3985 = vmul.f32 %v3857, %v3959
        %v3986 = vmul.f32 %v3858, %v3969
        %v3987 = vmul.f32 %v3859, %v3979
        %v3988 = vld [vmem:[#allocation13] sm:$0x1]
        %v3990 = vperm.slane %v3988, 0
        %v3992 = vmul.f32 %v3980, %v3990
        %v3993 = vmul.f32 %v3981, %v3990
        %v3994 = vmul.f32 %v3982, %v3990
        %v3995 = vmul.f32 %v3983, %v3990
        %v3996 = vmul.f32 %v3984, %v3990
        %v3997 = vmul.f32 %v3985, %v3990
        %v3998 = vmul.f32 %v3986, %v3990
        %v3999 = vmul.f32 %v3987, %v3990
        %v4000 = vld [vmem:[#allocation15] sm:$0x1]
        %v4002 = vperm.slane %v4000, 0
        %v4004 = vadd.f32 %v3992, %v4002
        %v4005 = vadd.f32 %v3993, %v4002
        %v4006 = vadd.f32 %v3994, %v4002
        %v4007 = vadd.f32 %v3995, %v4002
        %v4008 = vadd.f32 %v3996, %v4002
        %v4009 = vadd.f32 %v3997, %v4002
        %v4010 = vadd.f32 %v3998, %v4002
        %v4011 = vadd.f32 %v3999, %v4002
        %v4012 = vpack.c.bf16 %v4005, %v4004
        %v4013 = vpack.c.bf16 %v4007, %v4006
        %v4014 = vpack.c.bf16 %v4009, %v4008
        %v4015 = vpack.c.bf16 %v4011, %v4010
        %v4016 = vld [vmem:[#allocation16] sm:$0xf]
        %v4017 = vld [vmem:[#allocation16 + $0x4] sm:$0xf]
        %v4018 = vld [vmem:[#allocation16 + $0x8] sm:$0xf]
        %v4019 = vld [vmem:[#allocation16 + $0xc] sm:$0xf]
        %v4020 = vld [vmem:[#allocation16 + $0x10] sm:$0xf]
        %v4021 = vld [vmem:[#allocation16 + $0x14] sm:$0xf]
        %v4022 = vld [vmem:[#allocation16 + $0x18] sm:$0xf]
        %v4023 = vld [vmem:[#allocation16 + $0x1c] sm:$0xf]
        %v4024 = vld [vmem:[#allocation16 + $0x20] sm:$0xf]
        %v4025 = vld [vmem:[#allocation16 + $0x24] sm:$0xf]
        %v4026 = vld [vmem:[#allocation16 + $0x28] sm:$0xf]
        %v4027 = vld [vmem:[#allocation16 + $0x2c] sm:$0xf]
        %v4028 = vld [vmem:[#allocation16 + $0x30] sm:$0xf]
        %v4029 = vld [vmem:[#allocation16 + $0x34] sm:$0xf]
        %v4030 = vld [vmem:[#allocation16 + $0x38] sm:$0xf]
        %v4031 = vld [vmem:[#allocation16 + $0x3c] sm:$0xf]
        %v4032 = vld [vmem:[#allocation18] sm:$0x1]
        %v4034 = vperm.slane %v4032, 0
        %v4052 = vunpack.c.l.b16 %v4016
        %v4053 = vunpack.c.l.b16 %v4017
        %v4054 = vunpack.c.l.b16 %v4018
        %v4055 = vunpack.c.l.b16 %v4019
        %v4056 = vunpack.c.l.b16 %v4020
        %v4057 = vunpack.c.l.b16 %v4021
        %v4058 = vunpack.c.l.b16 %v4022
        %v4059 = vunpack.c.l.b16 %v4023
        %v4060 = vunpack.c.l.b16 %v4024
        %v4061 = vunpack.c.l.b16 %v4025
        %v4062 = vunpack.c.l.b16 %v4026
        %v4063 = vunpack.c.l.b16 %v4027
        %v4064 = vunpack.c.l.b16 %v4028
        %v4065 = vunpack.c.l.b16 %v4029
        %v4066 = vunpack.c.l.b16 %v4030
        %v4067 = vunpack.c.l.b16 %v4031
        %v4068 = vpack.c.b16 %v4053, %v4052
        %v4069 = vpack.c.b16 %v4055, %v4054
        %v4070 = vpack.c.b16 %v4057, %v4056
        %v4071 = vpack.c.b16 %v4059, %v4058
        %v4072 = vpack.c.b16 %v4061, %v4060
        %v4073 = vpack.c.b16 %v4063, %v4062
        %v4074 = vpack.c.b16 %v4065, %v4064
        %v4075 = vpack.c.b16 %v4067, %v4066
        %4084 = vmatpush.bf16.msra.mxu0 %v4075
        %4085 = vmatpush.bf16.msra.mxu0 %v4074
        %4086 = vmatpush.bf16.msra.mxu0 %v4073
        %4087 = vmatpush.bf16.msra.mxu0 %v4072
        %4088 = vmatpush.bf16.msra.mxu0 %v4071
        %4089 = vmatpush.bf16.msra.mxu0 %v4070
        %4090 = vmatpush.bf16.msra.mxu0 %v4069
        %4091 = vmatpush.bf16.msra.mxu0 %v4068
        %4092 = vmatmul.bf16.gmra.mxu0 %v4012
        %v4093 = vpop.f32.mrf.mxu0
        %v4094 = vadd.f32 %v4034, %v4093
        %v4095 = vpop.f32.mrf.mxu0
        %v4096 = vadd.f32 %v4034, %v4095
        %4097 = vmatmul.bf16.gmra.mxu0 %v4013
        %v4098 = vpop.f32.mrf.mxu0
        %v4099 = vadd.f32 %v4034, %v4098
        %v4100 = vpop.f32.mrf.mxu0
        %v4101 = vadd.f32 %v4034, %v4100
        %4102 = vmatmul.bf16.gmra.mxu0 %v4014
        %v4103 = vpop.f32.mrf.mxu0
        %v4104 = vadd.f32 %v4034, %v4103
        %v4105 = vpop.f32.mrf.mxu0
        %v4106 = vadd.f32 %v4034, %v4105
        %4107 = vmatmul.bf16.gmra.mxu0 %v4015
        %v4108 = vpop.f32.mrf.mxu0
        %v4109 = vadd.f32 %v4034, %v4108
        %v4110 = vpop.f32.mrf.mxu0
        %v4111 = vadd.f32 %v4034, %v4110
        %4112 = vdwg.mxu0
        %v4113 = vmul.f32 %v4094, 0.5
        %v4114 = vmul.f32 %v4096, 0.5
        %v4115 = vmul.f32 %v4099, 0.5
        %v4116 = vmul.f32 %v4101, 0.5
        %v4117 = vmul.f32 %v4104, 0.5
        %v4118 = vmul.f32 %v4106, 0.5
        %v4119 = vmul.f32 %v4109, 0.5
        %v4120 = vmul.f32 %v4111, 0.5
        %v4121 = vmul.f32 %v4094, 0.044715
        %v4122 = vmul.f32 %v4096, 0.044715
        %v4123 = vmul.f32 %v4099, 0.044715
        %v4124 = vmul.f32 %v4101, 0.044715
        %v4125 = vmul.f32 %v4104, 0.044715
        %v4126 = vmul.f32 %v4106, 0.044715
        %v4127 = vmul.f32 %v4109, 0.044715
        %v4128 = vmul.f32 %v4111, 0.044715
        %v4129 = vmul.f32 %v4121, %v4094
        %v4130 = vmul.f32 %v4122, %v4096
        %v4131 = vmul.f32 %v4123, %v4099
        %v4132 = vmul.f32 %v4124, %v4101
        %v4133 = vmul.f32 %v4125, %v4104
        %v4134 = vmul.f32 %v4126, %v4106
        %v4135 = vmul.f32 %v4127, %v4109
        %v4136 = vmul.f32 %v4128, %v4111
        %v4137 = vmul.f32 %v4129, %v4094
        %v4138 = vmul.f32 %v4130, %v4096
        %v4139 = vmul.f32 %v4131, %v4099
        %v4140 = vmul.f32 %v4132, %v4101
        %v4141 = vmul.f32 %v4133, %v4104
        %v4142 = vmul.f32 %v4134, %v4106
        %v4143 = vmul.f32 %v4135, %v4109
        %v4144 = vmul.f32 %v4136, %v4111
        %v4145 = vadd.f32 %v4094, %v4137
        %v4146 = vadd.f32 %v4096, %v4138
        %v4147 = vadd.f32 %v4099, %v4139
        %v4148 = vadd.f32 %v4101, %v4140
        %v4149 = vadd.f32 %v4104, %v4141
        %v4150 = vadd.f32 %v4106, %v4142
        %v4151 = vadd.f32 %v4109, %v4143
        %v4152 = vadd.f32 %v4111, %v4144
        %v4153 = vmul.f32 %v4145, 0.7978846
        %v4154 = vmul.f32 %v4146, 0.7978846
        %v4155 = vmul.f32 %v4147, 0.7978846
        %v4156 = vmul.f32 %v4148, 0.7978846
        %v4157 = vmul.f32 %v4149, 0.7978846
        %v4158 = vmul.f32 %v4150, 0.7978846
        %v4159 = vmul.f32 %v4151, 0.7978846
        %v4160 = vmul.f32 %v4152, 0.7978846
        %v4161 = vtanh.pop %v4153
        %v4162 = vtanh.pop %v4154
        %v4163 = vtanh.pop %v4155
        %v4164 = vtanh.pop %v4156
        %v4165 = vtanh.pop %v4157
        %v4166 = vtanh.pop %v4158
        %v4167 = vtanh.pop %v4159
        %v4168 = vtanh.pop %v4160
        %v4169 = vadd.f32 %v4161, 1.0
        %v4170 = vadd.f32 %v4162, 1.0
        %v4171 = vadd.f32 %v4163, 1.0
        %v4172 = vadd.f32 %v4164, 1.0
        %v4173 = vadd.f32 %v4165, 1.0
        %v4174 = vadd.f32 %v4166, 1.0
        %v4175 = vadd.f32 %v4167, 1.0
        %v4176 = vadd.f32 %v4168, 1.0
        %v4177 = vmul.f32 %v4113, %v4169
        %v4178 = vmul.f32 %v4114, %v4170
        %v4179 = vmul.f32 %v4115, %v4171
        %v4180 = vmul.f32 %v4116, %v4172
        %v4181 = vmul.f32 %v4117, %v4173
        %v4182 = vmul.f32 %v4118, %v4174
        %v4183 = vmul.f32 %v4119, %v4175
        %v4184 = vmul.f32 %v4120, %v4176
        %v4185 = vadd.f32 %v2279, %v4177
        %v4186 = vadd.f32 %v2280, %v4178
        %v4187 = vadd.f32 %v2281, %v4179
        %v4188 = vadd.f32 %v2282, %v4180
        %v4189 = vadd.f32 %v2283, %v4181
        %v4190 = vadd.f32 %v2284, %v4182
        %v4191 = vadd.f32 %v2285, %v4183
        %v4192 = vadd.f32 %v2286, %v4184
        %v4193 = vpack.c.bf16 %v4186, %v4185
        %v4194 = vpack.c.bf16 %v4188, %v4187
        %v4195 = vpack.c.bf16 %v4190, %v4189
        %v4196 = vpack.c.bf16 %v4192, %v4191
        %v4197 = vld [vmem:[#allocation19] sm:$0xf]
        %v4198 = vld [vmem:[#allocation19 + $0x4] sm:$0xf]
        %v4199 = vld [vmem:[#allocation19 + $0x8] sm:$0xf]
        %v4200 = vld [vmem:[#allocation19 + $0xc] sm:$0xf]
        %v4201 = vld [vmem:[#allocation19 + $0x10] sm:$0xf]
        %v4202 = vld [vmem:[#allocation19 + $0x14] sm:$0xf]
        %v4203 = vld [vmem:[#allocation19 + $0x18] sm:$0xf]
        %v4204 = vld [vmem:[#allocation19 + $0x1c] sm:$0xf]
        %v4205 = vld [vmem:[#allocation19 + $0x20] sm:$0xf]
        %v4206 = vld [vmem:[#allocation19 + $0x24] sm:$0xf]
        %v4207 = vld [vmem:[#allocation19 + $0x28] sm:$0xf]
        %v4208 = vld [vmem:[#allocation19 + $0x2c] sm:$0xf]
        %v4209 = vld [vmem:[#allocation19 + $0x30] sm:$0xf]
        %v4210 = vld [vmem:[#allocation19 + $0x34] sm:$0xf]
        %v4211 = vld [vmem:[#allocation19 + $0x38] sm:$0xf]
        %v4212 = vld [vmem:[#allocation19 + $0x3c] sm:$0xf]
        %v4229 = vunpack.c.l.b16 %v4197
        %v4230 = vunpack.c.l.b16 %v4198
        %v4231 = vunpack.c.l.b16 %v4199
        %v4232 = vunpack.c.l.b16 %v4200
        %v4233 = vunpack.c.l.b16 %v4201
        %v4234 = vunpack.c.l.b16 %v4202
        %v4235 = vunpack.c.l.b16 %v4203
        %v4236 = vunpack.c.l.b16 %v4204
        %v4237 = vunpack.c.l.b16 %v4205
        %v4238 = vunpack.c.l.b16 %v4206
        %v4239 = vunpack.c.l.b16 %v4207
        %v4240 = vunpack.c.l.b16 %v4208
        %v4241 = vunpack.c.l.b16 %v4209
        %v4242 = vunpack.c.l.b16 %v4210
        %v4243 = vunpack.c.l.b16 %v4211
        %v4244 = vunpack.c.l.b16 %v4212
        %v4245 = vpack.c.b16 %v4230, %v4229
        %v4246 = vpack.c.b16 %v4232, %v4231
        %v4247 = vpack.c.b16 %v4234, %v4233
        %v4248 = vpack.c.b16 %v4236, %v4235
        %v4249 = vpack.c.b16 %v4238, %v4237
        %v4250 = vpack.c.b16 %v4240, %v4239
        %v4251 = vpack.c.b16 %v4242, %v4241
        %v4252 = vpack.c.b16 %v4244, %v4243
        %4261 = vmatpush.bf16.msra.mxu0 %v4252
        %4262 = vmatpush.bf16.msra.mxu0 %v4251
        %4263 = vmatpush.bf16.msra.mxu0 %v4250
        %4264 = vmatpush.bf16.msra.mxu0 %v4249
        %4265 = vmatpush.bf16.msra.mxu0 %v4248
        %4266 = vmatpush.bf16.msra.mxu0 %v4247
        %4267 = vmatpush.bf16.msra.mxu0 %v4246
        %4268 = vmatpush.bf16.msra.mxu0 %v4245
        %4269 = vmatmul.bf16.gmra.mxu0 %v4193
        %v4270 = vpop.f32.mrf.mxu0
        %v4271 = vadd.f32 0.0, %v4270
        %v4272 = vpop.f32.mrf.mxu0
        %v4273 = vadd.f32 0.0, %v4272
        %4274 = vmatmul.bf16.gmra.mxu0 %v4194
        %v4275 = vpop.f32.mrf.mxu0
        %v4276 = vadd.f32 0.0, %v4275
        %v4277 = vpop.f32.mrf.mxu0
        %v4278 = vadd.f32 0.0, %v4277
        %4279 = vmatmul.bf16.gmra.mxu0 %v4195
        %v4280 = vpop.f32.mrf.mxu0
        %v4281 = vadd.f32 0.0, %v4280
        %v4282 = vpop.f32.mrf.mxu0
        %v4283 = vadd.f32 0.0, %v4282
        %4284 = vmatmul.bf16.gmra.mxu0 %v4196
        %v4285 = vpop.f32.mrf.mxu0
        %v4286 = vadd.f32 0.0, %v4285
        %v4287 = vpop.f32.mrf.mxu0
        %v4288 = vadd.f32 0.0, %v4287
        %4289 = vdwg.mxu0
        %v4290 = vadd.f32 %v4185, %v4271
        %v4291 = vadd.f32 %v4186, %v4273
        %v4292 = vadd.f32 %v4187, %v4276
        %v4293 = vadd.f32 %v4188, %v4278
        %v4294 = vadd.f32 %v4189, %v4281
        %v4295 = vadd.f32 %v4190, %v4283
        %v4296 = vadd.f32 %v4191, %v4286
        %v4297 = vadd.f32 %v4192, %v4288
        %v4298 = vld [vmem:[#allocation21] sm:$0x1]
        %v4300 = vperm.slane %v4298, 0
        %v4302 = vadd.f32 %v4290, %v4300
        %v4303 = vadd.f32 %v4291, %v4300
        %v4304 = vadd.f32 %v4292, %v4300
        %v4305 = vadd.f32 %v4293, %v4300
        %v4306 = vadd.f32 %v4294, %v4300
        %v4307 = vadd.f32 %v4295, %v4300
        %v4308 = vadd.f32 %v4296, %v4300
        %v4309 = vadd.f32 %v4297, %v4300
        %v4310 = vpack.c.bf16 %v4302, %v4302
        %v4311 = vpack.c.bf16 %v4303, %v4303
        %v4312 = vpack.c.bf16 %v4304, %v4304
        %v4313 = vpack.c.bf16 %v4305, %v4305
        %v4314 = vpack.c.bf16 %v4306, %v4306
        %v4315 = vpack.c.bf16 %v4307, %v4307
        %v4316 = vpack.c.bf16 %v4308, %v4308
        %v4317 = vpack.c.bf16 %v4309, %v4309
        %4318 = vst [vmem:[%s695] sm:$0xf] %v4310
        %4319 = vst [vmem:[%s695 + $0x4] sm:$0xf] %v4311
        %4320 = vst [vmem:[%s695 + $0x8] sm:$0xf] %v4312
        %4321 = vst [vmem:[%s695 + $0xc] sm:$0xf] %v4313
        %4322 = vst [vmem:[%s695 + $0x10] sm:$0xf] %v4314
        %4323 = vst [vmem:[%s695 + $0x14] sm:$0xf] %v4315
        %4324 = vst [vmem:[%s695 + $0x18] sm:$0xf] %v4316
        %4325 = vst [vmem:[%s695 + $0x1c] sm:$0xf] %v4317
        %p4326 = scmp.lt.s32.totalorder %s33, 1
        %s4327 = scalar_select %p4326, %s33, 1
        %s4328 = smul.addr %s4327, 8
        %s4329 = smul.addr %s4328, 4
        %s4330 = scalar_lea.vmem %s15, %s4329
        // Predicated region
        $region133: #{decoder_forward.2} parent=79 // pred_check
          %p4331 = pneg %p371
        $region134: #{decoder_forward.2} parent=79 // pred_check_branch
          %4333 = sbr.rel (%p4331) target = $region136
        $region135: #{decoder_forward.2} parent=79 // pred_region
          _
        $region136: #{decoder_forward.2} parent=79 // pred_fallthru
          _
      $region80: #{decoder_forward.2} parent=5 // pred_fallthru
        _
      %p4334 = scmp.le.s32.totalorder 2, %s28
      // Predicated region
      $region137: #{decoder_forward.2} parent=5 // pred_check
        %p4335 = pneg %p4334
      $region138: #{decoder_forward.2} parent=5 // pred_check_branch
        %4337 = sbr.rel (%p4335) target = $region140
      $region139: #{decoder_forward.2} parent=5 // pred_region
        %s4338 = ssub.s32 %s28, 2
        // Predicated region
        $region141: #{decoder_forward.2} parent=139 // pred_check
          %p4339 = pneg %p377
        $region142: #{decoder_forward.2} parent=139 // pred_check_branch
          %4341 = sbr.rel (%p4339) target = $region144
        $region143: #{decoder_forward.2} parent=139 // pred_region
          %p4342 = scmp.lt.s32.totalorder %s34, 1
          %s4343 = scalar_select %p4342, %s34, 1
          %s4344 = smul.addr %s4343, 8
          %s4345 = smul.addr %s4344, 4
          %s4346 = scalar_lea.vmem %s15, %s4345
        $region144: #{decoder_forward.2} parent=139 // pred_fallthru
          _
      $region140: #{decoder_forward.2} parent=5 // pred_fallthru
        _
    $region6: #{decoder_forward.2} parent=1 // loop_footer
      %s32 = sadd.s32 1, %s28
    $region7: #{decoder_forward.2} parent=1 // loop_footer_branch
      %27 = sbr.rel target = $region3
    $region8: #{decoder_forward.2} parent=1 // loop_exit
      _
    %4347 = vsyncpa [#allocation3], 1
    %s4348 = scalar_lea.sflag [#allocation3], 1
    %4349 = vsyncpa %s4348, 1
    %4350 = vsyncpa [#allocation5], 1
    %4351 = vsyncpa [#allocation8], 1
    %4352 = vsyncpa [#allocation11], 1
    %4353 = vsyncpa [#allocation14], 1
    %4354 = vsyncpa [#allocation17], 1
    %4355 = vsyncpa [#allocation20], 1

// kernel: decoder_forward.3
$region0: #{decoder_forward.3}
  #allocation0 [shape = 'u32[]', space=smem, size = 0x4, offset = 0x4, fixed_abs, tag = 'smem constant byte address 0x4 - core index']
  #allocation1 [shape = 'u32[72,128]{1,0:T(1,128)}', space=vmem, size = 0x9000, scoped, tag = 'internal scratch']
  #allocation2 [shape = 'f32[2,512]{1,0:T(2,128)}', space=vmem, size = 0x1000, scoped, tag = 'scratch operand']
  %s0 = inlined_call_operand.vmem [shape: bf16[2,2,4096], index: 0, kind: input, shape index: {}]
  %s1 = inlined_call_operand.hbm [shape: bf16[8192,512], index: 1, kind: input, shape index: {}]
  %s2 = inlined_call_operand.hbm [shape: f32[1,512], index: 2, kind: input, shape index: {}]
  %s3 = inlined_call_operand.hbm [shape: f32[2,512], index: 3, kind: output, shape index: {}]
  %s4 = sld [smem:[#allocation0]]
  $region61: #{decoder_forward.3} parent=0
    _
  %s6 = ssub.s32 1, %s4
  %s7 = scalar_select 0, %s6, %s4
  $region1: #{decoder_forward.3} parent=0
    #allocation3 [shape = 'u8[8388608]{0}', space=vmem, size = 0x800000, scoped, tag = 'input window, operand 1']
    #allocation4 [shape = 's32[2]{0}', space=sflag, size = 0x8, scoped, tag = 'scoped memory for decoder_forward.3']
    #allocation5 [shape = 's32[2]{0}', space=sflag, size = 0x8, scoped, tag = 'scoped memory for decoder_forward.3']
    #allocation6 [shape = 'u8[2048]{0}', space=vmem, size = 0x800, scoped, tag = 'input window, operand 2, single buffered']
    #allocation7 [shape = 's32[1]{0}', space=sflag, size = 0x4, scoped, tag = 'scoped memory for decoder_forward.3']
    #allocation8 [shape = 'u8[4096]{0}', space=vmem, size = 0x1000, scoped, tag = 'output window, operand 0, single buffered']
    %8 = vsyncpa [#allocation4], 0
    %s9 = scalar_lea.sflag [#allocation4], 1
    %10 = vsyncpa %s9, 0
    %11 = vsyncpa [#allocation7], 0
    %12 = vsyncpa [#allocation5], 0
    loop: start=0, step=1, limit=4
    $region2: #{decoder_forward.3} parent=1 // loop_pre_header
      _
    $region3: #{decoder_forward.3} parent=1 // loop_header
      %s14 = sphi 0, %s18
      %p15 = scmp.ge.s32.totalorder %s14, 4
      %s21 = sphi 0, %s33
      %s22 = sphi 0, %s29
      %s23 = sphi 0, %s21
      %s24 = sphi 0, %s22
      %s25 = sphi 0, %s23
      %s26 = sphi 0, %s24
      %s34 = sphi 0, %s34
      %s36 = sphi 0, %s34
      %s37 = sphi 0, %s36
      %s51 = sphi 0, %s37
      %s59 = sphi 0, %s61
      %s62 = sphi 0, %s59
      %s63 = sphi 0, %s62
      %s79 = sphi 0, %s63
      %s85 = sphi 0, %s87
      %s88 = sphi 0, %s85
      %s89 = sphi 0, %s88
      %s105 = sphi 0, %s89
      %s111 = sphi 0, %s113
      %s114 = sphi 0, %s111
      %s115 = sphi 0, %s114
      %s131 = sphi 0, %s115
    $region4: #{decoder_forward.3} parent=1 // loop_header_branch
      %17 = sbr.rel (%p15) target = $region8
    $region5: #{decoder_forward.3} parent=1 // loop_body
      %s19 = ssub.s32 %s14, 1
      %s20 = ssub.s32 %s14, 2
      %s27 = sadd.s32 1, %s22
      %p28 = scmp.ge.s32.totalorder %s27, 2
      %s29 = scalar_select %p28, 0, %s27
      %s30 = sadd.s32 1, %s21
      %s31 = scalar_select %p28, %s30, %s21
      %p32 = scmp.ge.s32.totalorder %s31, 1
      %s33 = scalar_select %p32, 0, %s31
      %s35 = sadd.s32 %s34, 1
      %p38 = scmp.eq.s32.totalorder %s14, 1
      %p39 = scmp.ne.s32.totalorder %s34, %s36
      %p40 = scmp.eq.s32.totalorder %s14, 0
      %p41 = por %p39, %p40
      %p42 = scmp.ne.s32.totalorder %s34, %s36
      %p43 = scmp.eq.s32.totalorder %s19, 1
      %p44 = por %p42, %p43
      %p45 = scmp.ne.s32.totalorder %s36, %s37
      %p46 = scmp.eq.s32.totalorder %s19, 0
      %p47 = por %p45, %p46
      %p48 = scmp.ne.s32.totalorder %s36, %s37
      %p49 = scmp.eq.s32.totalorder %s20, 1
      %p50 = por %p48, %p49
      %p52 = scmp.ne.s32.totalorder %s37, %s51
      %p53 = scmp.eq.s32.totalorder %s20, 0
      %p54 = por %p52, %p53
      %s55 = ssub.s32 %s22, %s29
      %s56 = ssub.s32 %s21, %s33
      %s57 = sor.u32 %s55, %s56
      %p58 = scmp.eq.s32.totalorder %s57, 0
      %s60 = sadd.s32 %s59, 1
      %s61 = scalar_select %p58, %s59, %s60
      %p64 = pneg %p58
      %p65 = scmp.eq.s32.totalorder %s14, 1
      %p66 = por %p64, %p65
      %p67 = scmp.ne.s32.totalorder %s59, %s62
      %p68 = scmp.eq.s32.totalorder %s14, 0
      %p69 = por %p67, %p68
      %p70 = scmp.ne.s32.totalorder %s59, %s62
      %p71 = scmp.eq.s32.totalorder %s19, 1
      %p72 = por %p70, %p71
      %p73 = scmp.ne.s32.totalorder %s62, %s63
      %p74 = scmp.eq.s32.totalorder %s19, 0
      %p75 = por %p73, %p74
      %p76 = scmp.ne.s32.totalorder %s62, %s63
      %p77 = scmp.eq.s32.totalorder %s20, 1
      %p78 = por %p76, %p77
      %p80 = scmp.ne.s32.totalorder %s63, %s79
      %p81 = scmp.eq.s32.totalorder %s20, 0
      %p82 = por %p80, %p81
      %s83 = ssub.s32 %s21, %s33
      %p84 = scmp.eq.s32.totalorder %s83, 0
      %s86 = sadd.s32 %s85, 1
      %s87 = scalar_select %p84, %s85, %s86
      %p90 = pneg %p84
      %p91 = scmp.eq.s32.totalorder %s14, 1
      %p92 = por %p90, %p91
      %p93 = scmp.ne.s32.totalorder %s85, %s88
      %p94 = scmp.eq.s32.totalorder %s14, 0
      %p95 = por %p93, %p94
      %p96 = scmp.ne.s32.totalorder %s85, %s88
      %p97 = scmp.eq.s32.totalorder %s19, 1
      %p98 = por %p96, %p97
      %p99 = scmp.ne.s32.totalorder %s88, %s89
      %p100 = scmp.eq.s32.totalorder %s19, 0
      %p101 = por %p99, %p100
      %p102 = scmp.ne.s32.totalorder %s88, %s89
      %p103 = scmp.eq.s32.totalorder %s20, 1
      %p104 = por %p102, %p103
      %p106 = scmp.ne.s32.totalorder %s89, %s105
      %p107 = scmp.eq.s32.totalorder %s20, 0
      %p108 = por %p106, %p107
      %s109 = ssub.s32 %s21, %s33
      %p110 = scmp.eq.s32.totalorder %s109, 0
      %s112 = sadd.s32 %s111, 1
      %s113 = scalar_select %p110, %s111, %s112
      %p116 = pneg %p110
      %p117 = scmp.eq.s32.totalorder %s14, 1
      %p118 = por %p116, %p117
      %p119 = scmp.ne.s32.totalorder %s111, %s114
      %p120 = scmp.eq.s32.totalorder %s14, 0
      %p121 = por %p119, %p120
      %p122 = scmp.ne.s32.totalorder %s111, %s114
      %p123 = scmp.eq.s32.totalorder %s19, 1
      %p124 = por %p122, %p123
      %p125 = scmp.ne.s32.totalorder %s114, %s115
      %p126 = scmp.eq.s32.totalorder %s19, 0
      %p127 = por %p125, %p126
      %p128 = scmp.ne.s32.totalorder %s114, %s115
      %p129 = scmp.eq.s32.totalorder %s20, 1
      %p130 = por %p128, %p129
      %p132 = scmp.ne.s32.totalorder %s115, %s131
      %p133 = scmp.eq.s32.totalorder %s20, 0
      %p134 = por %p132, %p133
      %p135 = scmp.le.s32.totalorder 1, %s14
      %p136 = scmp.lt.s32.totalorder %s14, 3
      %p137 = pnand %p135, %p136
      %p138 = pneg %p137
      // Predicated region
      $region9: #{decoder_forward.3} parent=5 // pred_check
        _
      $region10: #{decoder_forward.3} parent=5 // pred_check_branch
        %140 = sbr.rel (%p137) target = $region12
      $region11: #{decoder_forward.3} parent=5 // pred_region
        %s141 = ssub.s32 %s14, 1
        // Predicated region
        $region13: #{decoder_forward.3} parent=11 // pred_check
          %p142 = pneg %p47
        $region14: #{decoder_forward.3} parent=11 // pred_check_branch
          %144 = sbr.rel (%p142) target = $region16
        $region15: #{decoder_forward.3} parent=11 // pred_region
          _
        $region16: #{decoder_forward.3} parent=11 // pred_fallthru
          _
        // Predicated region
        $region17: #{decoder_forward.3} parent=11 // pred_check
          %p145 = pneg %p101
        $region18: #{decoder_forward.3} parent=11 // pred_check_branch
          %147 = sbr.rel (%p145) target = $region20
        $region19: #{decoder_forward.3} parent=11 // pred_region
          %s148 = smul.u32 4, %s23
          %150 = vsyncadd [#allocation7], 0
          %s151 = scalar_lea.hbm %s2, %s148
          %s153 = sshll.u32 %s151, 4
          %s154 = int_to_ptr.hbm [resolvable:$true] %s153
          %s155 = sshll.u32 [#allocation6], 4
          %s156 = int_to_ptr.vmem [resolvable:$true] %s155
          %158 = dma.hbm_to_vmem [thread:$0]  %s154, 64, %s156, [#allocation7]
        $region20: #{decoder_forward.3} parent=11 // pred_fallthru
          _
      $region12: #{decoder_forward.3} parent=5 // pred_fallthru
        _
      %p159 = scmp.lt.s32.totalorder %s14, 2
      // Predicated region
      $region21: #{decoder_forward.3} parent=5 // pred_check
        %p160 = pneg %p159
      $region22: #{decoder_forward.3} parent=5 // pred_check_branch
        %162 = sbr.rel (%p160) target = $region24
      $region23: #{decoder_forward.3} parent=5 // pred_region
        // Predicated region
        $region25: #{decoder_forward.3} parent=23 // pred_check
          %p163 = pneg %p69
        $region26: #{decoder_forward.3} parent=23 // pred_check_branch
          %165 = sbr.rel (%p163) target = $region28
        $region27: #{decoder_forward.3} parent=23 // pred_region
          %s166 = sand.u32 %s59, 1
          %s167 = scalar_lea.sflag [#allocation4], %s166
          %s168 = sand.u32 %s59, 1
          %s169 = smul.addr %s168, 8192
          %s170 = scalar_lea.vmem [#allocation3], %s169
          %s171 = smul.u32 512, %s22
          %s172 = smul.u32 4, %s21
          %174 = vsyncadd %s167, 0
          %s175 = smul.addr %s171, 4
          %s176 = sadd.s32 %s172, %s175
          %s177 = smul.addr %s176, 4
          %s178 = scalar_lea.hbm %s1, %s177
          %s179 = sshll.u32 %s178, 4
          %s180 = int_to_ptr.hbm [resolvable:$true] %s179
          %s181 = sshll.u32 %s170, 4
          %s182 = int_to_ptr.vmem [resolvable:$true] %s181
          %187 = dma.hbm_to_vmem [thread:$0]  %s180, 131072, %s182, %s167, 256, 256, 16
        $region28: #{decoder_forward.3} parent=23 // pred_fallthru
          _
      $region24: #{decoder_forward.3} parent=5 // pred_fallthru
        _
      %p188 = scmp.le.s32.totalorder 1, %s14
      %p189 = scmp.lt.s32.totalorder %s14, 3
      %p190 = pnand %p188, %p189
      %p191 = pneg %p190
      // Predicated region
      $region29: #{decoder_forward.3} parent=5 // pred_check
        _
      $region30: #{decoder_forward.3} parent=5 // pred_check_branch
        %193 = sbr.rel (%p190) target = $region32
      $region31: #{decoder_forward.3} parent=5 // pred_region
        %s194 = ssub.s32 %s14, 1
        %s195 = sand.u32 %s62, 1
        %s196 = scalar_lea.sflag [#allocation4], %s195
        %s197 = sand.u32 %s62, 1
        %s198 = smul.addr %s197, 8192
        %s199 = scalar_lea.vmem [#allocation3], %s198
        // Predicated region
        $region33: #{decoder_forward.3} parent=31 // pred_check
          %p200 = pneg %p75
        $region34: #{decoder_forward.3} parent=31 // pred_check_branch
          %202 = sbr.rel (%p200) target = $region36
        $region35: #{decoder_forward.3} parent=31 // pred_region
          %204 = dma.done %s196, 131072
        $region36: #{decoder_forward.3} parent=31 // pred_fallthru
          _
        // Predicated region
        $region37: #{decoder_forward.3} parent=31 // pred_check
          %p205 = pneg %p101
        $region38: #{decoder_forward.3} parent=31 // pred_check_branch
          %207 = sbr.rel (%p205) target = $region40
        $region39: #{decoder_forward.3} parent=31 // pred_region
          %209 = dma.done [#allocation7], 64
        $region40: #{decoder_forward.3} parent=31 // pred_fallthru
          _
        %p210 = pneg %p47
        %p211 = pneg %p44
        %s212 = sand.u32 %s62, 1
        %s213 = scalar_lea.sflag [#allocation4], %s212
        %s214 = sand.u32 %s62, 1
        %s215 = smul.addr %s214, 8192
        %s216 = scalar_lea.vmem [#allocation3], %s215
        %p217 = pneg %p75
        %p218 = pneg %p72
        %p219 = pneg %p101
        %p220 = pneg %p98
        %p221 = pneg %p127
        %p222 = pneg %p124
        %s223 = smul.u32 512, %s24
        %s224 = smul.u32 4, %s23
        %s225 = smul.u32 4, %s23
        %s226 = smul.u32 4, %s23
        %p227 = scmp.eq.s32.totalorder %s24, 0
        // Predicated region
        $region41: #{decoder_forward.3} parent=31 // pred_check
          %p228 = pneg %p227
        $region42: #{decoder_forward.3} parent=31 // pred_check_branch
          %230 = sbr.rel (%p228) target = $region44
        $region43: #{decoder_forward.3} parent=31 // pred_region
          %231 = vst [vmem:[#allocation2] sm:$0xff] 0.0
        $region44: #{decoder_forward.3} parent=31 // pred_fallthru
          _
        %v232 = vld [vmem:[#allocation2] sm:$0xff]
        %s233 = smul.u32 %s24, 32
        %s234 = scalar_lea.vmem %s0, %s233
        %v235 = vld [vmem:[%s234] sm:$0xff]
        %v236 = vld [vmem:[%s234 + $0x8] sm:$0xff]
        %v237 = vld [vmem:[%s234 + $0x10] sm:$0xff]
        %v238 = vld [vmem:[%s234 + $0x18] sm:$0xff]
        %v239 = vld [vmem:[%s199] sm:$0xff]
        %v240 = vld [vmem:[%s199 + $0x8] sm:$0xff]
        %v241 = vld [vmem:[%s199 + $0x10] sm:$0xff]
        %v242 = vld [vmem:[%s199 + $0x18] sm:$0xff]
        %v243 = vld [vmem:[%s199 + $0x20] sm:$0xff]
        %v244 = vld [vmem:[%s199 + $0x28] sm:$0xff]
        %v245 = vld [vmem:[%s199 + $0x30] sm:$0xff]
        %v246 = vld [vmem:[%s199 + $0x38] sm:$0xff]
        %v247 = vld [vmem:[%s199 + $0x40] sm:$0xff]
        %v248 = vld [vmem:[%s199 + $0x48] sm:$0xff]
        %v249 = vld [vmem:[%s199 + $0x50] sm:$0xff]
        %v250 = vld [vmem:[%s199 + $0x58] sm:$0xff]
        %v251 = vld [vmem:[%s199 + $0x60] sm:$0xff]
        %v252 = vld [vmem:[%s199 + $0x68] sm:$0xff]
        %v253 = vld [vmem:[%s199 + $0x70] sm:$0xff]
        %v254 = vld [vmem:[%s199 + $0x78] sm:$0xff]
        %v255 = vld [vmem:[%s199 + $0x80] sm:$0xff]
        %v256 = vld [vmem:[%s199 + $0x88] sm:$0xff]
        %v257 = vld [vmem:[%s199 + $0x90] sm:$0xff]
        %v258 = vld [vmem:[%s199 + $0x98] sm:$0xff]
        %v259 = vld [vmem:[%s199 + $0xa0] sm:$0xff]
        %v260 = vld [vmem:[%s199 + $0xa8] sm:$0xff]
        %v261 = vld [vmem:[%s199 + $0xb0] sm:$0xff]
        %v262 = vld [vmem:[%s199 + $0xb8] sm:$0xff]
        %v263 = vld [vmem:[%s199 + $0xc0] sm:$0xff]
        %v264 = vld [vmem:[%s199 + $0xc8] sm:$0xff]
        %v265 = vld [vmem:[%s199 + $0xd0] sm:$0xff]
        %v266 = vld [vmem:[%s199 + $0xd8] sm:$0xff]
        %v267 = vld [vmem:[%s199 + $0xe0] sm:$0xff]
        %v268 = vld [vmem:[%s199 + $0xe8] sm:$0xff]
        %v269 = vld [vmem:[%s199 + $0xf0] sm:$0xff]
        %v270 = vld [vmem:[%s199 + $0xf8] sm:$0xff]
        %v271 = vld [vmem:[%s199 + $0x100] sm:$0xff]
        %v272 = vld [vmem:[%s199 + $0x108] sm:$0xff]
        %v273 = vld [vmem:[%s199 + $0x110] sm:$0xff]
        %v274 = vld [vmem:[%s199 + $0x118] sm:$0xff]
        %v275 = vld [vmem:[%s199 + $0x120] sm:$0xff]
        %v276 = vld [vmem:[%s199 + $0x128] sm:$0xff]
        %v277 = vld [vmem:[%s199 + $0x130] sm:$0xff]
        %v278 = vld [vmem:[%s199 + $0x138] sm:$0xff]
        %v279 = vld [vmem:[%s199 + $0x140] sm:$0xff]
        %v280 = vld [vmem:[%s199 + $0x148] sm:$0xff]
        %v281 = vld [vmem:[%s199 + $0x150] sm:$0xff]
        %v282 = vld [vmem:[%s199 + $0x158] sm:$0xff]
        %v283 = vld [vmem:[%s199 + $0x160] sm:$0xff]
        %v284 = vld [vmem:[%s199 + $0x168] sm:$0xff]
        %v285 = vld [vmem:[%s199 + $0x170] sm:$0xff]
        %v286 = vld [vmem:[%s199 + $0x178] sm:$0xff]
        %v287 = vld [vmem:[%s199 + $0x180] sm:$0xff]
        %v288 = vld [vmem:[%s199 + $0x188] sm:$0xff]
        %v289 = vld [vmem:[%s199 + $0x190] sm:$0xff]
        %v290 = vld [vmem:[%s199 + $0x198] sm:$0xff]
        %v291 = vld [vmem:[%s199 + $0x1a0] sm:$0xff]
        %v292 = vld [vmem:[%s199 + $0x1a8] sm:$0xff]
        %v293 = vld [vmem:[%s199 + $0x1b0] sm:$0xff]
        %v294 = vld [vmem:[%s199 + $0x1b8] sm:$0xff]
        %v295 = vld [vmem:[%s199 + $0x1c0] sm:$0xff]
        %v296 = vld [vmem:[%s199 + $0x1c8] sm:$0xff]
        %v297 = vld [vmem:[%s199 + $0x1d0] sm:$0xff]
        %v298 = vld [vmem:[%s199 + $0x1d8] sm:$0xff]
        %v299 = vld [vmem:[%s199 + $0x1e0] sm:$0xff]
        %v300 = vld [vmem:[%s199 + $0x1e8] sm:$0xff]
        %v301 = vld [vmem:[%s199 + $0x1f0] sm:$0xff]
        %v302 = vld [vmem:[%s199 + $0x1f8] sm:$0xff]
        %v303 = vld [vmem:[%s199 + $0x200] sm:$0xff]
        %v304 = vld [vmem:[%s199 + $0x208] sm:$0xff]
        %v305 = vld [vmem:[%s199 + $0x210] sm:$0xff]
        %v306 = vld [vmem:[%s199 + $0x218] sm:$0xff]
        %v307 = vld [vmem:[%s199 + $0x220] sm:$0xff]
        %v308 = vld [vmem:[%s199 + $0x228] sm:$0xff]
        %v309 = vld [vmem:[%s199 + $0x230] sm:$0xff]
        %v310 = vld [vmem:[%s199 + $0x238] sm:$0xff]
        %v311 = vld [vmem:[%s199 + $0x240] sm:$0xff]
        %v312 = vld [vmem:[%s199 + $0x248] sm:$0xff]
        %v313 = vld [vmem:[%s199 + $0x250] sm:$0xff]
        %v314 = vld [vmem:[%s199 + $0x258] sm:$0xff]
        %v315 = vld [vmem:[%s199 + $0x260] sm:$0xff]
        %v316 = vld [vmem:[%s199 + $0x268] sm:$0xff]
        %v317 = vld [vmem:[%s199 + $0x270] sm:$0xff]
        %v318 = vld [vmem:[%s199 + $0x278] sm:$0xff]
        %v319 = vld [vmem:[%s199 + $0x280] sm:$0xff]
        %v320 = vld [vmem:[%s199 + $0x288] sm:$0xff]
        %v321 = vld [vmem:[%s199 + $0x290] sm:$0xff]
        %v322 = vld [vmem:[%s199 + $0x298] sm:$0xff]
        %v323 = vld [vmem:[%s199 + $0x2a0] sm:$0xff]
        %v324 = vld [vmem:[%s199 + $0x2a8] sm:$0xff]
        %v325 = vld [vmem:[%s199 + $0x2b0] sm:$0xff]
        %v326 = vld [vmem:[%s199 + $0x2b8] sm:$0xff]
        %v327 = vld [vmem:[%s199 + $0x2c0] sm:$0xff]
        %v328 = vld [vmem:[%s199 + $0x2c8] sm:$0xff]
        %v329 = vld [vmem:[%s199 + $0x2d0] sm:$0xff]
        %v330 = vld [vmem:[%s199 + $0x2d8] sm:$0xff]
        %v331 = vld [vmem:[%s199 + $0x2e0] sm:$0xff]
        %v332 = vld [vmem:[%s199 + $0x2e8] sm:$0xff]
        %v333 = vld [vmem:[%s199 + $0x2f0] sm:$0xff]
        %v334 = vld [vmem:[%s199 + $0x2f8] sm:$0xff]
        %v335 = vld [vmem:[%s199 + $0x300] sm:$0xff]
        %v336 = vld [vmem:[%s199 + $0x308] sm:$0xff]
        %v337 = vld [vmem:[%s199 + $0x310] sm:$0xff]
        %v338 = vld [vmem:[%s199 + $0x318] sm:$0xff]
        %v339 = vld [vmem:[%s199 + $0x320] sm:$0xff]
        %v340 = vld [vmem:[%s199 + $0x328] sm:$0xff]
        %v341 = vld [vmem:[%s199 + $0x330] sm:$0xff]
        %v342 = vld [vmem:[%s199 + $0x338] sm:$0xff]
        %v343 = vld [vmem:[%s199 + $0x340] sm:$0xff]
        %v344 = vld [vmem:[%s199 + $0x348] sm:$0xff]
        %v345 = vld [vmem:[%s199 + $0x350] sm:$0xff]
        %v346 = vld [vmem:[%s199 + $0x358] sm:$0xff]
        %v347 = vld [vmem:[%s199 + $0x360] sm:$0xff]
        %v348 = vld [vmem:[%s199 + $0x368] sm:$0xff]
        %v349 = vld [vmem:[%s199 + $0x370] sm:$0xff]
        %v350 = vld [vmem:[%s199 + $0x378] sm:$0xff]
        %v351 = vld [vmem:[%s199 + $0x380] sm:$0xff]
        %v352 = vld [vmem:[%s199 + $0x388] sm:$0xff]
        %v353 = vld [vmem:[%s199 + $0x390] sm:$0xff]
        %v354 = vld [vmem:[%s199 + $0x398] sm:$0xff]
        %v355 = vld [vmem:[%s199 + $0x3a0] sm:$0xff]
        %v356 = vld [vmem:[%s199 + $0x3a8] sm:$0xff]
        %v357 = vld [vmem:[%s199 + $0x3b0] sm:$0xff]
        %v358 = vld [vmem:[%s199 + $0x3b8] sm:$0xff]
        %v359 = vld [vmem:[%s199 + $0x3c0] sm:$0xff]
        %v360 = vld [vmem:[%s199 + $0x3c8] sm:$0xff]
        %v361 = vld [vmem:[%s199 + $0x3d0] sm:$0xff]
        %v362 = vld [vmem:[%s199 + $0x3d8] sm:$0xff]
        %v363 = vld [vmem:[%s199 + $0x3e0] sm:$0xff]
        %v364 = vld [vmem:[%s199 + $0x3e8] sm:$0xff]
        %v365 = vld [vmem:[%s199 + $0x3f0] sm:$0xff]
        %v366 = vld [vmem:[%s199 + $0x3f8] sm:$0xff]
        %v367 = vld [vmem:[%s199 + $0x400] sm:$0xff]
        %v368 = vld [vmem:[%s199 + $0x408] sm:$0xff]
        %v369 = vld [vmem:[%s199 + $0x410] sm:$0xff]
        %v370 = vld [vmem:[%s199 + $0x418] sm:$0xff]
        %v371 = vld [vmem:[%s199 + $0x420] sm:$0xff]
        %v372 = vld [vmem:[%s199 + $0x428] sm:$0xff]
        %v373 = vld [vmem:[%s199 + $0x430] sm:$0xff]
        %v374 = vld [vmem:[%s199 + $0x438] sm:$0xff]
        %v375 = vld [vmem:[%s199 + $0x440] sm:$0xff]
        %v376 = vld [vmem:[%s199 + $0x448] sm:$0xff]
        %v377 = vld [vmem:[%s199 + $0x450] sm:$0xff]
        %v378 = vld [vmem:[%s199 + $0x458] sm:$0xff]
        %v379 = vld [vmem:[%s199 + $0x460] sm:$0xff]
        %v380 = vld [vmem:[%s199 + $0x468] sm:$0xff]
        %v381 = vld [vmem:[%s199 + $0x470] sm:$0xff]
        %v382 = vld [vmem:[%s199 + $0x478] sm:$0xff]
        %v383 = vld [vmem:[%s199 + $0x480] sm:$0xff]
        %v384 = vld [vmem:[%s199 + $0x488] sm:$0xff]
        %v385 = vld [vmem:[%s199 + $0x490] sm:$0xff]
        %v386 = vld [vmem:[%s199 + $0x498] sm:$0xff]
        %v387 = vld [vmem:[%s199 + $0x4a0] sm:$0xff]
        %v388 = vld [vmem:[%s199 + $0x4a8] sm:$0xff]
        %v389 = vld [vmem:[%s199 + $0x4b0] sm:$0xff]
        %v390 = vld [vmem:[%s199 + $0x4b8] sm:$0xff]
        %v391 = vld [vmem:[%s199 + $0x4c0] sm:$0xff]
        %v392 = vld [vmem:[%s199 + $0x4c8] sm:$0xff]
        %v393 = vld [vmem:[%s199 + $0x4d0] sm:$0xff]
        %v394 = vld [vmem:[%s199 + $0x4d8] sm:$0xff]
        %v395 = vld [vmem:[%s199 + $0x4e0] sm:$0xff]
        %v396 = vld [vmem:[%s199 + $0x4e8] sm:$0xff]
        %v397 = vld [vmem:[%s199 + $0x4f0] sm:$0xff]
        %v398 = vld [vmem:[%s199 + $0x4f8] sm:$0xff]
        %v399 = vld [vmem:[%s199 + $0x500] sm:$0xff]
        %v400 = vld [vmem:[%s199 + $0x508] sm:$0xff]
        %v401 = vld [vmem:[%s199 + $0x510] sm:$0xff]
        %v402 = vld [vmem:[%s199 + $0x518] sm:$0xff]
        %v403 = vld [vmem:[%s199 + $0x520] sm:$0xff]
        %v404 = vld [vmem:[%s199 + $0x528] sm:$0xff]
        %v405 = vld [vmem:[%s199 + $0x530] sm:$0xff]
        %v406 = vld [vmem:[%s199 + $0x538] sm:$0xff]
        %v407 = vld [vmem:[%s199 + $0x540] sm:$0xff]
        %v408 = vld [vmem:[%s199 + $0x548] sm:$0xff]
        %v409 = vld [vmem:[%s199 + $0x550] sm:$0xff]
        %v410 = vld [vmem:[%s199 + $0x558] sm:$0xff]
        %v411 = vld [vmem:[%s199 + $0x560] sm:$0xff]
        %v412 = vld [vmem:[%s199 + $0x568] sm:$0xff]
        %v413 = vld [vmem:[%s199 + $0x570] sm:$0xff]
        %v414 = vld [vmem:[%s199 + $0x578] sm:$0xff]
        %v415 = vld [vmem:[%s199 + $0x580] sm:$0xff]
        %v416 = vld [vmem:[%s199 + $0x588] sm:$0xff]
        %v417 = vld [vmem:[%s199 + $0x590] sm:$0xff]
        %v418 = vld [vmem:[%s199 + $0x598] sm:$0xff]
        %v419 = vld [vmem:[%s199 + $0x5a0] sm:$0xff]
        %v420 = vld [vmem:[%s199 + $0x5a8] sm:$0xff]
        %v421 = vld [vmem:[%s199 + $0x5b0] sm:$0xff]
        %v422 = vld [vmem:[%s199 + $0x5b8] sm:$0xff]
        %v423 = vld [vmem:[%s199 + $0x5c0] sm:$0xff]
        %v424 = vld [vmem:[%s199 + $0x5c8] sm:$0xff]
        %v425 = vld [vmem:[%s199 + $0x5d0] sm:$0xff]
        %v426 = vld [vmem:[%s199 + $0x5d8] sm:$0xff]
        %v427 = vld [vmem:[%s199 + $0x5e0] sm:$0xff]
        %v428 = vld [vmem:[%s199 + $0x5e8] sm:$0xff]
        %v429 = vld [vmem:[%s199 + $0x5f0] sm:$0xff]
        %v430 = vld [vmem:[%s199 + $0x5f8] sm:$0xff]
        %v431 = vld [vmem:[%s199 + $0x600] sm:$0xff]
        %v432 = vld [vmem:[%s199 + $0x608] sm:$0xff]
        %v433 = vld [vmem:[%s199 + $0x610] sm:$0xff]
        %v434 = vld [vmem:[%s199 + $0x618] sm:$0xff]
        %v435 = vld [vmem:[%s199 + $0x620] sm:$0xff]
        %v436 = vld [vmem:[%s199 + $0x628] sm:$0xff]
        %v437 = vld [vmem:[%s199 + $0x630] sm:$0xff]
        %v438 = vld [vmem:[%s199 + $0x638] sm:$0xff]
        %v439 = vld [vmem:[%s199 + $0x640] sm:$0xff]
        %v440 = vld [vmem:[%s199 + $0x648] sm:$0xff]
        %v441 = vld [vmem:[%s199 + $0x650] sm:$0xff]
        %v442 = vld [vmem:[%s199 + $0x658] sm:$0xff]
        %v443 = vld [vmem:[%s199 + $0x660] sm:$0xff]
        %v444 = vld [vmem:[%s199 + $0x668] sm:$0xff]
        %v445 = vld [vmem:[%s199 + $0x670] sm:$0xff]
        %v446 = vld [vmem:[%s199 + $0x678] sm:$0xff]
        %v447 = vld [vmem:[%s199 + $0x680] sm:$0xff]
        %v448 = vld [vmem:[%s199 + $0x688] sm:$0xff]
        %v449 = vld [vmem:[%s199 + $0x690] sm:$0xff]
        %v450 = vld [vmem:[%s199 + $0x698] sm:$0xff]
        %v451 = vld [vmem:[%s199 + $0x6a0] sm:$0xff]
        %v452 = vld [vmem:[%s199 + $0x6a8] sm:$0xff]
        %v453 = vld [vmem:[%s199 + $0x6b0] sm:$0xff]
        %v454 = vld [vmem:[%s199 + $0x6b8] sm:$0xff]
        %v455 = vld [vmem:[%s199 + $0x6c0] sm:$0xff]
        %v456 = vld [vmem:[%s199 + $0x6c8] sm:$0xff]
        %v457 = vld [vmem:[%s199 + $0x6d0] sm:$0xff]
        %v458 = vld [vmem:[%s199 + $0x6d8] sm:$0xff]
        %v459 = vld [vmem:[%s199 + $0x6e0] sm:$0xff]
        %v460 = vld [vmem:[%s199 + $0x6e8] sm:$0xff]
        %v461 = vld [vmem:[%s199 + $0x6f0] sm:$0xff]
        %v462 = vld [vmem:[%s199 + $0x6f8] sm:$0xff]
        %v463 = vld [vmem:[%s199 + $0x700] sm:$0xff]
        %v464 = vld [vmem:[%s199 + $0x708] sm:$0xff]
        %v465 = vld [vmem:[%s199 + $0x710] sm:$0xff]
        %v466 = vld [vmem:[%s199 + $0x718] sm:$0xff]
        %v467 = vld [vmem:[%s199 + $0x720] sm:$0xff]
        %v468 = vld [vmem:[%s199 + $0x728] sm:$0xff]
        %v469 = vld [vmem:[%s199 + $0x730] sm:$0xff]
        %v470 = vld [vmem:[%s199 + $0x738] sm:$0xff]
        %v471 = vld [vmem:[%s199 + $0x740] sm:$0xff]
        %v472 = vld [vmem:[%s199 + $0x748] sm:$0xff]
        %v473 = vld [vmem:[%s199 + $0x750] sm:$0xff]
        %v474 = vld [vmem:[%s199 + $0x758] sm:$0xff]
        %v475 = vld [vmem:[%s199 + $0x760] sm:$0xff]
        %v476 = vld [vmem:[%s199 + $0x768] sm:$0xff]
        %v477 = vld [vmem:[%s199 + $0x770] sm:$0xff]
        %v478 = vld [vmem:[%s199 + $0x778] sm:$0xff]
        %v479 = vld [vmem:[%s199 + $0x780] sm:$0xff]
        %v480 = vld [vmem:[%s199 + $0x788] sm:$0xff]
        %v481 = vld [vmem:[%s199 + $0x790] sm:$0xff]
        %v482 = vld [vmem:[%s199 + $0x798] sm:$0xff]
        %v483 = vld [vmem:[%s199 + $0x7a0] sm:$0xff]
        %v484 = vld [vmem:[%s199 + $0x7a8] sm:$0xff]
        %v485 = vld [vmem:[%s199 + $0x7b0] sm:$0xff]
        %v486 = vld [vmem:[%s199 + $0x7b8] sm:$0xff]
        %v487 = vld [vmem:[%s199 + $0x7c0] sm:$0xff]
        %v488 = vld [vmem:[%s199 + $0x7c8] sm:$0xff]
        %v489 = vld [vmem:[%s199 + $0x7d0] sm:$0xff]
        %v490 = vld [vmem:[%s199 + $0x7d8] sm:$0xff]
        %v491 = vld [vmem:[%s199 + $0x7e0] sm:$0xff]
        %v492 = vld [vmem:[%s199 + $0x7e8] sm:$0xff]
        %v493 = vld [vmem:[%s199 + $0x7f0] sm:$0xff]
        %v494 = vld [vmem:[%s199 + $0x7f8] sm:$0xff]
        %v495 = vld [vmem:[%s199 + $0x800] sm:$0xff]
        %v496 = vld [vmem:[%s199 + $0x808] sm:$0xff]
        %v497 = vld [vmem:[%s199 + $0x810] sm:$0xff]
        %v498 = vld [vmem:[%s199 + $0x818] sm:$0xff]
        %v499 = vld [vmem:[%s199 + $0x820] sm:$0xff]
        %v500 = vld [vmem:[%s199 + $0x828] sm:$0xff]
        %v501 = vld [vmem:[%s199 + $0x830] sm:$0xff]
        %v502 = vld [vmem:[%s199 + $0x838] sm:$0xff]
        %v503 = vld [vmem:[%s199 + $0x840] sm:$0xff]
        %v504 = vld [vmem:[%s199 + $0x848] sm:$0xff]
        %v505 = vld [vmem:[%s199 + $0x850] sm:$0xff]
        %v506 = vld [vmem:[%s199 + $0x858] sm:$0xff]
        %v507 = vld [vmem:[%s199 + $0x860] sm:$0xff]
        %v508 = vld [vmem:[%s199 + $0x868] sm:$0xff]
        %v509 = vld [vmem:[%s199 + $0x870] sm:$0xff]
        %v510 = vld [vmem:[%s199 + $0x878] sm:$0xff]
        %v511 = vld [vmem:[%s199 + $0x880] sm:$0xff]
        %v512 = vld [vmem:[%s199 + $0x888] sm:$0xff]
        %v513 = vld [vmem:[%s199 + $0x890] sm:$0xff]
        %v514 = vld [vmem:[%s199 + $0x898] sm:$0xff]
        %v515 = vld [vmem:[%s199 + $0x8a0] sm:$0xff]
        %v516 = vld [vmem:[%s199 + $0x8a8] sm:$0xff]
        %v517 = vld [vmem:[%s199 + $0x8b0] sm:$0xff]
        %v518 = vld [vmem:[%s199 + $0x8b8] sm:$0xff]
        %v519 = vld [vmem:[%s199 + $0x8c0] sm:$0xff]
        %v520 = vld [vmem:[%s199 + $0x8c8] sm:$0xff]
        %v521 = vld [vmem:[%s199 + $0x8d0] sm:$0xff]
        %v522 = vld [vmem:[%s199 + $0x8d8] sm:$0xff]
        %v523 = vld [vmem:[%s199 + $0x8e0] sm:$0xff]
        %v524 = vld [vmem:[%s199 + $0x8e8] sm:$0xff]
        %v525 = vld [vmem:[%s199 + $0x8f0] sm:$0xff]
        %v526 = vld [vmem:[%s199 + $0x8f8] sm:$0xff]
        %v527 = vld [vmem:[%s199 + $0x900] sm:$0xff]
        %v528 = vld [vmem:[%s199 + $0x908] sm:$0xff]
        %v529 = vld [vmem:[%s199 + $0x910] sm:$0xff]
        %v530 = vld [vmem:[%s199 + $0x918] sm:$0xff]
        %v531 = vld [vmem:[%s199 + $0x920] sm:$0xff]
        %v532 = vld [vmem:[%s199 + $0x928] sm:$0xff]
        %v533 = vld [vmem:[%s199 + $0x930] sm:$0xff]
        %v534 = vld [vmem:[%s199 + $0x938] sm:$0xff]
        %v535 = vld [vmem:[%s199 + $0x940] sm:$0xff]
        %v536 = vld [vmem:[%s199 + $0x948] sm:$0xff]
        %v537 = vld [vmem:[%s199 + $0x950] sm:$0xff]
        %v538 = vld [vmem:[%s199 + $0x958] sm:$0xff]
        %v539 = vld [vmem:[%s199 + $0x960] sm:$0xff]
        %v540 = vld [vmem:[%s199 + $0x968] sm:$0xff]
        %v541 = vld [vmem:[%s199 + $0x970] sm:$0xff]
        %v542 = vld [vmem:[%s199 + $0x978] sm:$0xff]
        %v543 = vld [vmem:[%s199 + $0x980] sm:$0xff]
        %v544 = vld [vmem:[%s199 + $0x988] sm:$0xff]
        %v545 = vld [vmem:[%s199 + $0x990] sm:$0xff]
        %v546 = vld [vmem:[%s199 + $0x998] sm:$0xff]
        %v547 = vld [vmem:[%s199 + $0x9a0] sm:$0xff]
        %v548 = vld [vmem:[%s199 + $0x9a8] sm:$0xff]
        %v549 = vld [vmem:[%s199 + $0x9b0] sm:$0xff]
        %v550 = vld [vmem:[%s199 + $0x9b8] sm:$0xff]
        %v551 = vld [vmem:[%s199 + $0x9c0] sm:$0xff]
        %v552 = vld [vmem:[%s199 + $0x9c8] sm:$0xff]
        %v553 = vld [vmem:[%s199 + $0x9d0] sm:$0xff]
        %v554 = vld [vmem:[%s199 + $0x9d8] sm:$0xff]
        %v555 = vld [vmem:[%s199 + $0x9e0] sm:$0xff]
        %v556 = vld [vmem:[%s199 + $0x9e8] sm:$0xff]
        %v557 = vld [vmem:[%s199 + $0x9f0] sm:$0xff]
        %v558 = vld [vmem:[%s199 + $0x9f8] sm:$0xff]
        %v559 = vld [vmem:[%s199 + $0xa00] sm:$0xff]
        %v560 = vld [vmem:[%s199 + $0xa08] sm:$0xff]
        %v561 = vld [vmem:[%s199 + $0xa10] sm:$0xff]
        %v562 = vld [vmem:[%s199 + $0xa18] sm:$0xff]
        %v563 = vld [vmem:[%s199 + $0xa20] sm:$0xff]
        %v564 = vld [vmem:[%s199 + $0xa28] sm:$0xff]
        %v565 = vld [vmem:[%s199 + $0xa30] sm:$0xff]
        %v566 = vld [vmem:[%s199 + $0xa38] sm:$0xff]
        %v567 = vld [vmem:[%s199 + $0xa40] sm:$0xff]
        %v568 = vld [vmem:[%s199 + $0xa48] sm:$0xff]
        %v569 = vld [vmem:[%s199 + $0xa50] sm:$0xff]
        %v570 = vld [vmem:[%s199 + $0xa58] sm:$0xff]
        %v571 = vld [vmem:[%s199 + $0xa60] sm:$0xff]
        %v572 = vld [vmem:[%s199 + $0xa68] sm:$0xff]
        %v573 = vld [vmem:[%s199 + $0xa70] sm:$0xff]
        %v574 = vld [vmem:[%s199 + $0xa78] sm:$0xff]
        %v575 = vld [vmem:[%s199 + $0xa80] sm:$0xff]
        %v576 = vld [vmem:[%s199 + $0xa88] sm:$0xff]
        %v577 = vld [vmem:[%s199 + $0xa90] sm:$0xff]
        %v578 = vld [vmem:[%s199 + $0xa98] sm:$0xff]
        %v579 = vld [vmem:[%s199 + $0xaa0] sm:$0xff]
        %v580 = vld [vmem:[%s199 + $0xaa8] sm:$0xff]
        %v581 = vld [vmem:[%s199 + $0xab0] sm:$0xff]
        %v582 = vld [vmem:[%s199 + $0xab8] sm:$0xff]
        %v583 = vld [vmem:[%s199 + $0xac0] sm:$0xff]
        %v584 = vld [vmem:[%s199 + $0xac8] sm:$0xff]
        %v585 = vld [vmem:[%s199 + $0xad0] sm:$0xff]
        %v586 = vld [vmem:[%s199 + $0xad8] sm:$0xff]
        %v587 = vld [vmem:[%s199 + $0xae0] sm:$0xff]
        %v588 = vld [vmem:[%s199 + $0xae8] sm:$0xff]
        %v589 = vld [vmem:[%s199 + $0xaf0] sm:$0xff]
        %v590 = vld [vmem:[%s199 + $0xaf8] sm:$0xff]
        %v591 = vld [vmem:[%s199 + $0xb00] sm:$0xff]
        %v592 = vld [vmem:[%s199 + $0xb08] sm:$0xff]
        %v593 = vld [vmem:[%s199 + $0xb10] sm:$0xff]
        %v594 = vld [vmem:[%s199 + $0xb18] sm:$0xff]
        %v595 = vld [vmem:[%s199 + $0xb20] sm:$0xff]
        %v596 = vld [vmem:[%s199 + $0xb28] sm:$0xff]
        %v597 = vld [vmem:[%s199 + $0xb30] sm:$0xff]
        %v598 = vld [vmem:[%s199 + $0xb38] sm:$0xff]
        %v599 = vld [vmem:[%s199 + $0xb40] sm:$0xff]
        %v600 = vld [vmem:[%s199 + $0xb48] sm:$0xff]
        %v601 = vld [vmem:[%s199 + $0xb50] sm:$0xff]
        %v602 = vld [vmem:[%s199 + $0xb58] sm:$0xff]
        %v603 = vld [vmem:[%s199 + $0xb60] sm:$0xff]
        %v604 = vld [vmem:[%s199 + $0xb68] sm:$0xff]
        %v605 = vld [vmem:[%s199 + $0xb70] sm:$0xff]
        %v606 = vld [vmem:[%s199 + $0xb78] sm:$0xff]
        %v607 = vld [vmem:[%s199 + $0xb80] sm:$0xff]
        %v608 = vld [vmem:[%s199 + $0xb88] sm:$0xff]
        %v609 = vld [vmem:[%s199 + $0xb90] sm:$0xff]
        %v610 = vld [vmem:[%s199 + $0xb98] sm:$0xff]
        %v611 = vld [vmem:[%s199 + $0xba0] sm:$0xff]
        %v612 = vld [vmem:[%s199 + $0xba8] sm:$0xff]
        %v613 = vld [vmem:[%s199 + $0xbb0] sm:$0xff]
        %v614 = vld [vmem:[%s199 + $0xbb8] sm:$0xff]
        %v615 = vld [vmem:[%s199 + $0xbc0] sm:$0xff]
        %v616 = vld [vmem:[%s199 + $0xbc8] sm:$0xff]
        %v617 = vld [vmem:[%s199 + $0xbd0] sm:$0xff]
        %v618 = vld [vmem:[%s199 + $0xbd8] sm:$0xff]
        %v619 = vld [vmem:[%s199 + $0xbe0] sm:$0xff]
        %v620 = vld [vmem:[%s199 + $0xbe8] sm:$0xff]
        %v621 = vld [vmem:[%s199 + $0xbf0] sm:$0xff]
        %v622 = vld [vmem:[%s199 + $0xbf8] sm:$0xff]
        %v623 = vld [vmem:[%s199 + $0xc00] sm:$0xff]
        %v624 = vld [vmem:[%s199 + $0xc08] sm:$0xff]
        %v625 = vld [vmem:[%s199 + $0xc10] sm:$0xff]
        %v626 = vld [vmem:[%s199 + $0xc18] sm:$0xff]
        %v627 = vld [vmem:[%s199 + $0xc20] sm:$0xff]
        %v628 = vld [vmem:[%s199 + $0xc28] sm:$0xff]
        %v629 = vld [vmem:[%s199 + $0xc30] sm:$0xff]
        %v630 = vld [vmem:[%s199 + $0xc38] sm:$0xff]
        %v631 = vld [vmem:[%s199 + $0xc40] sm:$0xff]
        %v632 = vld [vmem:[%s199 + $0xc48] sm:$0xff]
        %v633 = vld [vmem:[%s199 + $0xc50] sm:$0xff]
        %v634 = vld [vmem:[%s199 + $0xc58] sm:$0xff]
        %v635 = vld [vmem:[%s199 + $0xc60] sm:$0xff]
        %v636 = vld [vmem:[%s199 + $0xc68] sm:$0xff]
        %v637 = vld [vmem:[%s199 + $0xc70] sm:$0xff]
        %v638 = vld [vmem:[%s199 + $0xc78] sm:$0xff]
        %v639 = vld [vmem:[%s199 + $0xc80] sm:$0xff]
        %v640 = vld [vmem:[%s199 + $0xc88] sm:$0xff]
        %v641 = vld [vmem:[%s199 + $0xc90] sm:$0xff]
        %v642 = vld [vmem:[%s199 + $0xc98] sm:$0xff]
        %v643 = vld [vmem:[%s199 + $0xca0] sm:$0xff]
        %v644 = vld [vmem:[%s199 + $0xca8] sm:$0xff]
        %v645 = vld [vmem:[%s199 + $0xcb0] sm:$0xff]
        %v646 = vld [vmem:[%s199 + $0xcb8] sm:$0xff]
        %v647 = vld [vmem:[%s199 + $0xcc0] sm:$0xff]
        %v648 = vld [vmem:[%s199 + $0xcc8] sm:$0xff]
        %v649 = vld [vmem:[%s199 + $0xcd0] sm:$0xff]
        %v650 = vld [vmem:[%s199 + $0xcd8] sm:$0xff]
        %v651 = vld [vmem:[%s199 + $0xce0] sm:$0xff]
        %v652 = vld [vmem:[%s199 + $0xce8] sm:$0xff]
        %v653 = vld [vmem:[%s199 + $0xcf0] sm:$0xff]
        %v654 = vld [vmem:[%s199 + $0xcf8] sm:$0xff]
        %v655 = vld [vmem:[%s199 + $0xd00] sm:$0xff]
        %v656 = vld [vmem:[%s199 + $0xd08] sm:$0xff]
        %v657 = vld [vmem:[%s199 + $0xd10] sm:$0xff]
        %v658 = vld [vmem:[%s199 + $0xd18] sm:$0xff]
        %v659 = vld [vmem:[%s199 + $0xd20] sm:$0xff]
        %v660 = vld [vmem:[%s199 + $0xd28] sm:$0xff]
        %v661 = vld [vmem:[%s199 + $0xd30] sm:$0xff]
        %v662 = vld [vmem:[%s199 + $0xd38] sm:$0xff]
        %v663 = vld [vmem:[%s199 + $0xd40] sm:$0xff]
        %v664 = vld [vmem:[%s199 + $0xd48] sm:$0xff]
        %v665 = vld [vmem:[%s199 + $0xd50] sm:$0xff]
        %v666 = vld [vmem:[%s199 + $0xd58] sm:$0xff]
        %v667 = vld [vmem:[%s199 + $0xd60] sm:$0xff]
        %v668 = vld [vmem:[%s199 + $0xd68] sm:$0xff]
        %v669 = vld [vmem:[%s199 + $0xd70] sm:$0xff]
        %v670 = vld [vmem:[%s199 + $0xd78] sm:$0xff]
        %v671 = vld [vmem:[%s199 + $0xd80] sm:$0xff]
        %v672 = vld [vmem:[%s199 + $0xd88] sm:$0xff]
        %v673 = vld [vmem:[%s199 + $0xd90] sm:$0xff]
        %v674 = vld [vmem:[%s199 + $0xd98] sm:$0xff]
        %v675 = vld [vmem:[%s199 + $0xda0] sm:$0xff]
        %v676 = vld [vmem:[%s199 + $0xda8] sm:$0xff]
        %v677 = vld [vmem:[%s199 + $0xdb0] sm:$0xff]
        %v678 = vld [vmem:[%s199 + $0xdb8] sm:$0xff]
        %v679 = vld [vmem:[%s199 + $0xdc0] sm:$0xff]
        %v680 = vld [vmem:[%s199 + $0xdc8] sm:$0xff]
        %v681 = vld [vmem:[%s199 + $0xdd0] sm:$0xff]
        %v682 = vld [vmem:[%s199 + $0xdd8] sm:$0xff]
        %v683 = vld [vmem:[%s199 + $0xde0] sm:$0xff]
        %v684 = vld [vmem:[%s199 + $0xde8] sm:$0xff]
        %v685 = vld [vmem:[%s199 + $0xdf0] sm:$0xff]
        %v686 = vld [vmem:[%s199 + $0xdf8] sm:$0xff]
        %v687 = vld [vmem:[%s199 + $0xe00] sm:$0xff]
        %v688 = vld [vmem:[%s199 + $0xe08] sm:$0xff]
        %v689 = vld [vmem:[%s199 + $0xe10] sm:$0xff]
        %v690 = vld [vmem:[%s199 + $0xe18] sm:$0xff]
        %v691 = vld [vmem:[%s199 + $0xe20] sm:$0xff]
        %v692 = vld [vmem:[%s199 + $0xe28] sm:$0xff]
        %v693 = vld [vmem:[%s199 + $0xe30] sm:$0xff]
        %v694 = vld [vmem:[%s199 + $0xe38] sm:$0xff]
        %v695 = vld [vmem:[%s199 + $0xe40] sm:$0xff]
        %v696 = vld [vmem:[%s199 + $0xe48] sm:$0xff]
        %v697 = vld [vmem:[%s199 + $0xe50] sm:$0xff]
        %v698 = vld [vmem:[%s199 + $0xe58] sm:$0xff]
        %v699 = vld [vmem:[%s199 + $0xe60] sm:$0xff]
        %v700 = vld [vmem:[%s199 + $0xe68] sm:$0xff]
        %v701 = vld [vmem:[%s199 + $0xe70] sm:$0xff]
        %v702 = vld [vmem:[%s199 + $0xe78] sm:$0xff]
        %v703 = vld [vmem:[%s199 + $0xe80] sm:$0xff]
        %v704 = vld [vmem:[%s199 + $0xe88] sm:$0xff]
        %v705 = vld [vmem:[%s199 + $0xe90] sm:$0xff]
        %v706 = vld [vmem:[%s199 + $0xe98] sm:$0xff]
        %v707 = vld [vmem:[%s199 + $0xea0] sm:$0xff]
        %v708 = vld [vmem:[%s199 + $0xea8] sm:$0xff]
        %v709 = vld [vmem:[%s199 + $0xeb0] sm:$0xff]
        %v710 = vld [vmem:[%s199 + $0xeb8] sm:$0xff]
        %v711 = vld [vmem:[%s199 + $0xec0] sm:$0xff]
        %v712 = vld [vmem:[%s199 + $0xec8] sm:$0xff]
        %v713 = vld [vmem:[%s199 + $0xed0] sm:$0xff]
        %v714 = vld [vmem:[%s199 + $0xed8] sm:$0xff]
        %v715 = vld [vmem:[%s199 + $0xee0] sm:$0xff]
        %v716 = vld [vmem:[%s199 + $0xee8] sm:$0xff]
        %v717 = vld [vmem:[%s199 + $0xef0] sm:$0xff]
        %v718 = vld [vmem:[%s199 + $0xef8] sm:$0xff]
        %v719 = vld [vmem:[%s199 + $0xf00] sm:$0xff]
        %v720 = vld [vmem:[%s199 + $0xf08] sm:$0xff]
        %v721 = vld [vmem:[%s199 + $0xf10] sm:$0xff]
        %v722 = vld [vmem:[%s199 + $0xf18] sm:$0xff]
        %v723 = vld [vmem:[%s199 + $0xf20] sm:$0xff]
        %v724 = vld [vmem:[%s199 + $0xf28] sm:$0xff]
        %v725 = vld [vmem:[%s199 + $0xf30] sm:$0xff]
        %v726 = vld [vmem:[%s199 + $0xf38] sm:$0xff]
        %v727 = vld [vmem:[%s199 + $0xf40] sm:$0xff]
        %v728 = vld [vmem:[%s199 + $0xf48] sm:$0xff]
        %v729 = vld [vmem:[%s199 + $0xf50] sm:$0xff]
        %v730 = vld [vmem:[%s199 + $0xf58] sm:$0xff]
        %v731 = vld [vmem:[%s199 + $0xf60] sm:$0xff]
        %v732 = vld [vmem:[%s199 + $0xf68] sm:$0xff]
        %v733 = vld [vmem:[%s199 + $0xf70] sm:$0xff]
        %v734 = vld [vmem:[%s199 + $0xf78] sm:$0xff]
        %v735 = vld [vmem:[%s199 + $0xf80] sm:$0xff]
        %v736 = vld [vmem:[%s199 + $0xf88] sm:$0xff]
        %v737 = vld [vmem:[%s199 + $0xf90] sm:$0xff]
        %v738 = vld [vmem:[%s199 + $0xf98] sm:$0xff]
        %v739 = vld [vmem:[%s199 + $0xfa0] sm:$0xff]
        %v740 = vld [vmem:[%s199 + $0xfa8] sm:$0xff]
        %v741 = vld [vmem:[%s199 + $0xfb0] sm:$0xff]
        %v742 = vld [vmem:[%s199 + $0xfb8] sm:$0xff]
        %v743 = vld [vmem:[%s199 + $0xfc0] sm:$0xff]
        %v744 = vld [vmem:[%s199 + $0xfc8] sm:$0xff]
        %v745 = vld [vmem:[%s199 + $0xfd0] sm:$0xff]
        %v746 = vld [vmem:[%s199 + $0xfd8] sm:$0xff]
        %v747 = vld [vmem:[%s199 + $0xfe0] sm:$0xff]
        %v748 = vld [vmem:[%s199 + $0xfe8] sm:$0xff]
        %v749 = vld [vmem:[%s199 + $0xff0] sm:$0xff]
        %v750 = vld [vmem:[%s199 + $0xff8] sm:$0xff]
        %v751 = vld [vmem:[%s199 + $0x1000] sm:$0xff]
        %v752 = vld [vmem:[%s199 + $0x1008] sm:$0xff]
        %v753 = vld [vmem:[%s199 + $0x1010] sm:$0xff]
        %v754 = vld [vmem:[%s199 + $0x1018] sm:$0xff]
        %v755 = vld [vmem:[%s199 + $0x1020] sm:$0xff]
        %v756 = vld [vmem:[%s199 + $0x1028] sm:$0xff]
        %v757 = vld [vmem:[%s199 + $0x1030] sm:$0xff]
        %v758 = vld [vmem:[%s199 + $0x1038] sm:$0xff]
        %v759 = vld [vmem:[%s199 + $0x1040] sm:$0xff]
        %v760 = vld [vmem:[%s199 + $0x1048] sm:$0xff]
        %v761 = vld [vmem:[%s199 + $0x1050] sm:$0xff]
        %v762 = vld [vmem:[%s199 + $0x1058] sm:$0xff]
        %v763 = vld [vmem:[%s199 + $0x1060] sm:$0xff]
        %v764 = vld [vmem:[%s199 + $0x1068] sm:$0xff]
        %v765 = vld [vmem:[%s199 + $0x1070] sm:$0xff]
        %v766 = vld [vmem:[%s199 + $0x1078] sm:$0xff]
        %v767 = vld [vmem:[%s199 + $0x1080] sm:$0xff]
        %v768 = vld [vmem:[%s199 + $0x1088] sm:$0xff]
        %v769 = vld [vmem:[%s199 + $0x1090] sm:$0xff]
        %v770 = vld [vmem:[%s199 + $0x1098] sm:$0xff]
        %v771 = vld [vmem:[%s199 + $0x10a0] sm:$0xff]
        %v772 = vld [vmem:[%s199 + $0x10a8] sm:$0xff]
        %v773 = vld [vmem:[%s199 + $0x10b0] sm:$0xff]
        %v774 = vld [vmem:[%s199 + $0x10b8] sm:$0xff]
        %v775 = vld [vmem:[%s199 + $0x10c0] sm:$0xff]
        %v776 = vld [vmem:[%s199 + $0x10c8] sm:$0xff]
        %v777 = vld [vmem:[%s199 + $0x10d0] sm:$0xff]
        %v778 = vld [vmem:[%s199 + $0x10d8] sm:$0xff]
        %v779 = vld [vmem:[%s199 + $0x10e0] sm:$0xff]
        %v780 = vld [vmem:[%s199 + $0x10e8] sm:$0xff]
        %v781 = vld [vmem:[%s199 + $0x10f0] sm:$0xff]
        %v782 = vld [vmem:[%s199 + $0x10f8] sm:$0xff]
        %v783 = vld [vmem:[%s199 + $0x1100] sm:$0xff]
        %v784 = vld [vmem:[%s199 + $0x1108] sm:$0xff]
        %v785 = vld [vmem:[%s199 + $0x1110] sm:$0xff]
        %v786 = vld [vmem:[%s199 + $0x1118] sm:$0xff]
        %v787 = vld [vmem:[%s199 + $0x1120] sm:$0xff]
        %v788 = vld [vmem:[%s199 + $0x1128] sm:$0xff]
        %v789 = vld [vmem:[%s199 + $0x1130] sm:$0xff]
        %v790 = vld [vmem:[%s199 + $0x1138] sm:$0xff]
        %v791 = vld [vmem:[%s199 + $0x1140] sm:$0xff]
        %v792 = vld [vmem:[%s199 + $0x1148] sm:$0xff]
        %v793 = vld [vmem:[%s199 + $0x1150] sm:$0xff]
        %v794 = vld [vmem:[%s199 + $0x1158] sm:$0xff]
        %v795 = vld [vmem:[%s199 + $0x1160] sm:$0xff]
        %v796 = vld [vmem:[%s199 + $0x1168] sm:$0xff]
        %v797 = vld [vmem:[%s199 + $0x1170] sm:$0xff]
        %v798 = vld [vmem:[%s199 + $0x1178] sm:$0xff]
        %v799 = vld [vmem:[%s199 + $0x1180] sm:$0xff]
        %v800 = vld [vmem:[%s199 + $0x1188] sm:$0xff]
        %v801 = vld [vmem:[%s199 + $0x1190] sm:$0xff]
        %v802 = vld [vmem:[%s199 + $0x1198] sm:$0xff]
        %v803 = vld [vmem:[%s199 + $0x11a0] sm:$0xff]
        %v804 = vld [vmem:[%s199 + $0x11a8] sm:$0xff]
        %v805 = vld [vmem:[%s199 + $0x11b0] sm:$0xff]
        %v806 = vld [vmem:[%s199 + $0x11b8] sm:$0xff]
        %v807 = vld [vmem:[%s199 + $0x11c0] sm:$0xff]
        %v808 = vld [vmem:[%s199 + $0x11c8] sm:$0xff]
        %v809 = vld [vmem:[%s199 + $0x11d0] sm:$0xff]
        %v810 = vld [vmem:[%s199 + $0x11d8] sm:$0xff]
        %v811 = vld [vmem:[%s199 + $0x11e0] sm:$0xff]
        %v812 = vld [vmem:[%s199 + $0x11e8] sm:$0xff]
        %v813 = vld [vmem:[%s199 + $0x11f0] sm:$0xff]
        %v814 = vld [vmem:[%s199 + $0x11f8] sm:$0xff]
        %v815 = vld [vmem:[%s199 + $0x1200] sm:$0xff]
        %v816 = vld [vmem:[%s199 + $0x1208] sm:$0xff]
        %v817 = vld [vmem:[%s199 + $0x1210] sm:$0xff]
        %v818 = vld [vmem:[%s199 + $0x1218] sm:$0xff]
        %v819 = vld [vmem:[%s199 + $0x1220] sm:$0xff]
        %v820 = vld [vmem:[%s199 + $0x1228] sm:$0xff]
        %v821 = vld [vmem:[%s199 + $0x1230] sm:$0xff]
        %v822 = vld [vmem:[%s199 + $0x1238] sm:$0xff]
        %v823 = vld [vmem:[%s199 + $0x1240] sm:$0xff]
        %v824 = vld [vmem:[%s199 + $0x1248] sm:$0xff]
        %v825 = vld [vmem:[%s199 + $0x1250] sm:$0xff]
        %v826 = vld [vmem:[%s199 + $0x1258] sm:$0xff]
        %v827 = vld [vmem:[%s199 + $0x1260] sm:$0xff]
        %v828 = vld [vmem:[%s199 + $0x1268] sm:$0xff]
        %v829 = vld [vmem:[%s199 + $0x1270] sm:$0xff]
        %v830 = vld [vmem:[%s199 + $0x1278] sm:$0xff]
        %v831 = vld [vmem:[%s199 + $0x1280] sm:$0xff]
        %v832 = vld [vmem:[%s199 + $0x1288] sm:$0xff]
        %v833 = vld [vmem:[%s199 + $0x1290] sm:$0xff]
        %v834 = vld [vmem:[%s199 + $0x1298] sm:$0xff]
        %v835 = vld [vmem:[%s199 + $0x12a0] sm:$0xff]
        %v836 = vld [vmem:[%s199 + $0x12a8] sm:$0xff]
        %v837 = vld [vmem:[%s199 + $0x12b0] sm:$0xff]
        %v838 = vld [vmem:[%s199 + $0x12b8] sm:$0xff]
        %v839 = vld [vmem:[%s199 + $0x12c0] sm:$0xff]
        %v840 = vld [vmem:[%s199 + $0x12c8] sm:$0xff]
        %v841 = vld [vmem:[%s199 + $0x12d0] sm:$0xff]
        %v842 = vld [vmem:[%s199 + $0x12d8] sm:$0xff]
        %v843 = vld [vmem:[%s199 + $0x12e0] sm:$0xff]
        %v844 = vld [vmem:[%s199 + $0x12e8] sm:$0xff]
        %v845 = vld [vmem:[%s199 + $0x12f0] sm:$0xff]
        %v846 = vld [vmem:[%s199 + $0x12f8] sm:$0xff]
        %v847 = vld [vmem:[%s199 + $0x1300] sm:$0xff]
        %v848 = vld [vmem:[%s199 + $0x1308] sm:$0xff]
        %v849 = vld [vmem:[%s199 + $0x1310] sm:$0xff]
        %v850 = vld [vmem:[%s199 + $0x1318] sm:$0xff]
        %v851 = vld [vmem:[%s199 + $0x1320] sm:$0xff]
        %v852 = vld [vmem:[%s199 + $0x1328] sm:$0xff]
        %v853 = vld [vmem:[%s199 + $0x1330] sm:$0xff]
        %v854 = vld [vmem:[%s199 + $0x1338] sm:$0xff]
        %v855 = vld [vmem:[%s199 + $0x1340] sm:$0xff]
        %v856 = vld [vmem:[%s199 + $0x1348] sm:$0xff]
        %v857 = vld [vmem:[%s199 + $0x1350] sm:$0xff]
        %v858 = vld [vmem:[%s199 + $0x1358] sm:$0xff]
        %v859 = vld [vmem:[%s199 + $0x1360] sm:$0xff]
        %v860 = vld [vmem:[%s199 + $0x1368] sm:$0xff]
        %v861 = vld [vmem:[%s199 + $0x1370] sm:$0xff]
        %v862 = vld [vmem:[%s199 + $0x1378] sm:$0xff]
        %v863 = vld [vmem:[%s199 + $0x1380] sm:$0xff]
        %v864 = vld [vmem:[%s199 + $0x1388] sm:$0xff]
        %v865 = vld [vmem:[%s199 + $0x1390] sm:$0xff]
        %v866 = vld [vmem:[%s199 + $0x1398] sm:$0xff]
        %v867 = vld [vmem:[%s199 + $0x13a0] sm:$0xff]
        %v868 = vld [vmem:[%s199 + $0x13a8] sm:$0xff]
        %v869 = vld [vmem:[%s199 + $0x13b0] sm:$0xff]
        %v870 = vld [vmem:[%s199 + $0x13b8] sm:$0xff]
        %v871 = vld [vmem:[%s199 + $0x13c0] sm:$0xff]
        %v872 = vld [vmem:[%s199 + $0x13c8] sm:$0xff]
        %v873 = vld [vmem:[%s199 + $0x13d0] sm:$0xff]
        %v874 = vld [vmem:[%s199 + $0x13d8] sm:$0xff]
        %v875 = vld [vmem:[%s199 + $0x13e0] sm:$0xff]
        %v876 = vld [vmem:[%s199 + $0x13e8] sm:$0xff]
        %v877 = vld [vmem:[%s199 + $0x13f0] sm:$0xff]
        %v878 = vld [vmem:[%s199 + $0x13f8] sm:$0xff]
        %v879 = vld [vmem:[%s199 + $0x1400] sm:$0xff]
        %v880 = vld [vmem:[%s199 + $0x1408] sm:$0xff]
        %v881 = vld [vmem:[%s199 + $0x1410] sm:$0xff]
        %v882 = vld [vmem:[%s199 + $0x1418] sm:$0xff]
        %v883 = vld [vmem:[%s199 + $0x1420] sm:$0xff]
        %v884 = vld [vmem:[%s199 + $0x1428] sm:$0xff]
        %v885 = vld [vmem:[%s199 + $0x1430] sm:$0xff]
        %v886 = vld [vmem:[%s199 + $0x1438] sm:$0xff]
        %v887 = vld [vmem:[%s199 + $0x1440] sm:$0xff]
        %v888 = vld [vmem:[%s199 + $0x1448] sm:$0xff]
        %v889 = vld [vmem:[%s199 + $0x1450] sm:$0xff]
        %v890 = vld [vmem:[%s199 + $0x1458] sm:$0xff]
        %v891 = vld [vmem:[%s199 + $0x1460] sm:$0xff]
        %v892 = vld [vmem:[%s199 + $0x1468] sm:$0xff]
        %v893 = vld [vmem:[%s199 + $0x1470] sm:$0xff]
        %v894 = vld [vmem:[%s199 + $0x1478] sm:$0xff]
        %v895 = vld [vmem:[%s199 + $0x1480] sm:$0xff]
        %v896 = vld [vmem:[%s199 + $0x1488] sm:$0xff]
        %v897 = vld [vmem:[%s199 + $0x1490] sm:$0xff]
        %v898 = vld [vmem:[%s199 + $0x1498] sm:$0xff]
        %v899 = vld [vmem:[%s199 + $0x14a0] sm:$0xff]
        %v900 = vld [vmem:[%s199 + $0x14a8] sm:$0xff]
        %v901 = vld [vmem:[%s199 + $0x14b0] sm:$0xff]
        %v902 = vld [vmem:[%s199 + $0x14b8] sm:$0xff]
        %v903 = vld [vmem:[%s199 + $0x14c0] sm:$0xff]
        %v904 = vld [vmem:[%s199 + $0x14c8] sm:$0xff]
        %v905 = vld [vmem:[%s199 + $0x14d0] sm:$0xff]
        %v906 = vld [vmem:[%s199 + $0x14d8] sm:$0xff]
        %v907 = vld [vmem:[%s199 + $0x14e0] sm:$0xff]
        %v908 = vld [vmem:[%s199 + $0x14e8] sm:$0xff]
        %v909 = vld [vmem:[%s199 + $0x14f0] sm:$0xff]
        %v910 = vld [vmem:[%s199 + $0x14f8] sm:$0xff]
        %v911 = vld [vmem:[%s199 + $0x1500] sm:$0xff]
        %v912 = vld [vmem:[%s199 + $0x1508] sm:$0xff]
        %v913 = vld [vmem:[%s199 + $0x1510] sm:$0xff]
        %v914 = vld [vmem:[%s199 + $0x1518] sm:$0xff]
        %v915 = vld [vmem:[%s199 + $0x1520] sm:$0xff]
        %v916 = vld [vmem:[%s199 + $0x1528] sm:$0xff]
        %v917 = vld [vmem:[%s199 + $0x1530] sm:$0xff]
        %v918 = vld [vmem:[%s199 + $0x1538] sm:$0xff]
        %v919 = vld [vmem:[%s199 + $0x1540] sm:$0xff]
        %v920 = vld [vmem:[%s199 + $0x1548] sm:$0xff]
        %v921 = vld [vmem:[%s199 + $0x1550] sm:$0xff]
        %v922 = vld [vmem:[%s199 + $0x1558] sm:$0xff]
        %v923 = vld [vmem:[%s199 + $0x1560] sm:$0xff]
        %v924 = vld [vmem:[%s199 + $0x1568] sm:$0xff]
        %v925 = vld [vmem:[%s199 + $0x1570] sm:$0xff]
        %v926 = vld [vmem:[%s199 + $0x1578] sm:$0xff]
        %v927 = vld [vmem:[%s199 + $0x1580] sm:$0xff]
        %v928 = vld [vmem:[%s199 + $0x1588] sm:$0xff]
        %v929 = vld [vmem:[%s199 + $0x1590] sm:$0xff]
        %v930 = vld [vmem:[%s199 + $0x1598] sm:$0xff]
        %v931 = vld [vmem:[%s199 + $0x15a0] sm:$0xff]
        %v932 = vld [vmem:[%s199 + $0x15a8] sm:$0xff]
        %v933 = vld [vmem:[%s199 + $0x15b0] sm:$0xff]
        %v934 = vld [vmem:[%s199 + $0x15b8] sm:$0xff]
        %v935 = vld [vmem:[%s199 + $0x15c0] sm:$0xff]
        %v936 = vld [vmem:[%s199 + $0x15c8] sm:$0xff]
        %v937 = vld [vmem:[%s199 + $0x15d0] sm:$0xff]
        %v938 = vld [vmem:[%s199 + $0x15d8] sm:$0xff]
        %v939 = vld [vmem:[%s199 + $0x15e0] sm:$0xff]
        %v940 = vld [vmem:[%s199 + $0x15e8] sm:$0xff]
        %v941 = vld [vmem:[%s199 + $0x15f0] sm:$0xff]
        %v942 = vld [vmem:[%s199 + $0x15f8] sm:$0xff]
        %v943 = vld [vmem:[%s199 + $0x1600] sm:$0xff]
        %v944 = vld [vmem:[%s199 + $0x1608] sm:$0xff]
        %v945 = vld [vmem:[%s199 + $0x1610] sm:$0xff]
        %v946 = vld [vmem:[%s199 + $0x1618] sm:$0xff]
        %v947 = vld [vmem:[%s199 + $0x1620] sm:$0xff]
        %v948 = vld [vmem:[%s199 + $0x1628] sm:$0xff]
        %v949 = vld [vmem:[%s199 + $0x1630] sm:$0xff]
        %v950 = vld [vmem:[%s199 + $0x1638] sm:$0xff]
        %v951 = vld [vmem:[%s199 + $0x1640] sm:$0xff]
        %v952 = vld [vmem:[%s199 + $0x1648] sm:$0xff]
        %v953 = vld [vmem:[%s199 + $0x1650] sm:$0xff]
        %v954 = vld [vmem:[%s199 + $0x1658] sm:$0xff]
        %v955 = vld [vmem:[%s199 + $0x1660] sm:$0xff]
        %v956 = vld [vmem:[%s199 + $0x1668] sm:$0xff]
        %v957 = vld [vmem:[%s199 + $0x1670] sm:$0xff]
        %v958 = vld [vmem:[%s199 + $0x1678] sm:$0xff]
        %v959 = vld [vmem:[%s199 + $0x1680] sm:$0xff]
        %v960 = vld [vmem:[%s199 + $0x1688] sm:$0xff]
        %v961 = vld [vmem:[%s199 + $0x1690] sm:$0xff]
        %v962 = vld [vmem:[%s199 + $0x1698] sm:$0xff]
        %v963 = vld [vmem:[%s199 + $0x16a0] sm:$0xff]
        %v964 = vld [vmem:[%s199 + $0x16a8] sm:$0xff]
        %v965 = vld [vmem:[%s199 + $0x16b0] sm:$0xff]
        %v966 = vld [vmem:[%s199 + $0x16b8] sm:$0xff]
        %v967 = vld [vmem:[%s199 + $0x16c0] sm:$0xff]
        %v968 = vld [vmem:[%s199 + $0x16c8] sm:$0xff]
        %v969 = vld [vmem:[%s199 + $0x16d0] sm:$0xff]
        %v970 = vld [vmem:[%s199 + $0x16d8] sm:$0xff]
        %v971 = vld [vmem:[%s199 + $0x16e0] sm:$0xff]
        %v972 = vld [vmem:[%s199 + $0x16e8] sm:$0xff]
        %v973 = vld [vmem:[%s199 + $0x16f0] sm:$0xff]
        %v974 = vld [vmem:[%s199 + $0x16f8] sm:$0xff]
        %v975 = vld [vmem:[%s199 + $0x1700] sm:$0xff]
        %v976 = vld [vmem:[%s199 + $0x1708] sm:$0xff]
        %v977 = vld [vmem:[%s199 + $0x1710] sm:$0xff]
        %v978 = vld [vmem:[%s199 + $0x1718] sm:$0xff]
        %v979 = vld [vmem:[%s199 + $0x1720] sm:$0xff]
        %v980 = vld [vmem:[%s199 + $0x1728] sm:$0xff]
        %v981 = vld [vmem:[%s199 + $0x1730] sm:$0xff]
        %v982 = vld [vmem:[%s199 + $0x1738] sm:$0xff]
        %v983 = vld [vmem:[%s199 + $0x1740] sm:$0xff]
        %v984 = vld [vmem:[%s199 + $0x1748] sm:$0xff]
        %v985 = vld [vmem:[%s199 + $0x1750] sm:$0xff]
        %v986 = vld [vmem:[%s199 + $0x1758] sm:$0xff]
        %v987 = vld [vmem:[%s199 + $0x1760] sm:$0xff]
        %v988 = vld [vmem:[%s199 + $0x1768] sm:$0xff]
        %v989 = vld [vmem:[%s199 + $0x1770] sm:$0xff]
        %v990 = vld [vmem:[%s199 + $0x1778] sm:$0xff]
        %v991 = vld [vmem:[%s199 + $0x1780] sm:$0xff]
        %v992 = vld [vmem:[%s199 + $0x1788] sm:$0xff]
        %v993 = vld [vmem:[%s199 + $0x1790] sm:$0xff]
        %v994 = vld [vmem:[%s199 + $0x1798] sm:$0xff]
        %v995 = vld [vmem:[%s199 + $0x17a0] sm:$0xff]
        %v996 = vld [vmem:[%s199 + $0x17a8] sm:$0xff]
        %v997 = vld [vmem:[%s199 + $0x17b0] sm:$0xff]
        %v998 = vld [vmem:[%s199 + $0x17b8] sm:$0xff]
        %v999 = vld [vmem:[%s199 + $0x17c0] sm:$0xff]
        %v1000 = vld [vmem:[%s199 + $0x17c8] sm:$0xff]
        %v1001 = vld [vmem:[%s199 + $0x17d0] sm:$0xff]
        %v1002 = vld [vmem:[%s199 + $0x17d8] sm:$0xff]
        %v1003 = vld [vmem:[%s199 + $0x17e0] sm:$0xff]
        %v1004 = vld [vmem:[%s199 + $0x17e8] sm:$0xff]
        %v1005 = vld [vmem:[%s199 + $0x17f0] sm:$0xff]
        %v1006 = vld [vmem:[%s199 + $0x17f8] sm:$0xff]
        %v1007 = vld [vmem:[%s199 + $0x1800] sm:$0xff]
        %v1008 = vld [vmem:[%s199 + $0x1808] sm:$0xff]
        %v1009 = vld [vmem:[%s199 + $0x1810] sm:$0xff]
        %v1010 = vld [vmem:[%s199 + $0x1818] sm:$0xff]
        %v1011 = vld [vmem:[%s199 + $0x1820] sm:$0xff]
        %v1012 = vld [vmem:[%s199 + $0x1828] sm:$0xff]
        %v1013 = vld [vmem:[%s199 + $0x1830] sm:$0xff]
        %v1014 = vld [vmem:[%s199 + $0x1838] sm:$0xff]
        %v1015 = vld [vmem:[%s199 + $0x1840] sm:$0xff]
        %v1016 = vld [vmem:[%s199 + $0x1848] sm:$0xff]
        %v1017 = vld [vmem:[%s199 + $0x1850] sm:$0xff]
        %v1018 = vld [vmem:[%s199 + $0x1858] sm:$0xff]
        %v1019 = vld [vmem:[%s199 + $0x1860] sm:$0xff]
        %v1020 = vld [vmem:[%s199 + $0x1868] sm:$0xff]
        %v1021 = vld [vmem:[%s199 + $0x1870] sm:$0xff]
        %v1022 = vld [vmem:[%s199 + $0x1878] sm:$0xff]
        %v1023 = vld [vmem:[%s199 + $0x1880] sm:$0xff]
        %v1024 = vld [vmem:[%s199 + $0x1888] sm:$0xff]
        %v1025 = vld [vmem:[%s199 + $0x1890] sm:$0xff]
        %v1026 = vld [vmem:[%s199 + $0x1898] sm:$0xff]
        %v1027 = vld [vmem:[%s199 + $0x18a0] sm:$0xff]
        %v1028 = vld [vmem:[%s199 + $0x18a8] sm:$0xff]
        %v1029 = vld [vmem:[%s199 + $0x18b0] sm:$0xff]
        %v1030 = vld [vmem:[%s199 + $0x18b8] sm:$0xff]
        %v1031 = vld [vmem:[%s199 + $0x18c0] sm:$0xff]
        %v1032 = vld [vmem:[%s199 + $0x18c8] sm:$0xff]
        %v1033 = vld [vmem:[%s199 + $0x18d0] sm:$0xff]
        %v1034 = vld [vmem:[%s199 + $0x18d8] sm:$0xff]
        %v1035 = vld [vmem:[%s199 + $0x18e0] sm:$0xff]
        %v1036 = vld [vmem:[%s199 + $0x18e8] sm:$0xff]
        %v1037 = vld [vmem:[%s199 + $0x18f0] sm:$0xff]
        %v1038 = vld [vmem:[%s199 + $0x18f8] sm:$0xff]
        %v1039 = vld [vmem:[%s199 + $0x1900] sm:$0xff]
        %v1040 = vld [vmem:[%s199 + $0x1908] sm:$0xff]
        %v1041 = vld [vmem:[%s199 + $0x1910] sm:$0xff]
        %v1042 = vld [vmem:[%s199 + $0x1918] sm:$0xff]
        %v1043 = vld [vmem:[%s199 + $0x1920] sm:$0xff]
        %v1044 = vld [vmem:[%s199 + $0x1928] sm:$0xff]
        %v1045 = vld [vmem:[%s199 + $0x1930] sm:$0xff]
        %v1046 = vld [vmem:[%s199 + $0x1938] sm:$0xff]
        %v1047 = vld [vmem:[%s199 + $0x1940] sm:$0xff]
        %v1048 = vld [vmem:[%s199 + $0x1948] sm:$0xff]
        %v1049 = vld [vmem:[%s199 + $0x1950] sm:$0xff]
        %v1050 = vld [vmem:[%s199 + $0x1958] sm:$0xff]
        %v1051 = vld [vmem:[%s199 + $0x1960] sm:$0xff]
        %v1052 = vld [vmem:[%s199 + $0x1968] sm:$0xff]
        %v1053 = vld [vmem:[%s199 + $0x1970] sm:$0xff]
        %v1054 = vld [vmem:[%s199 + $0x1978] sm:$0xff]
        %v1055 = vld [vmem:[%s199 + $0x1980] sm:$0xff]
        %v1056 = vld [vmem:[%s199 + $0x1988] sm:$0xff]
        %v1057 = vld [vmem:[%s199 + $0x1990] sm:$0xff]
        %v1058 = vld [vmem:[%s199 + $0x1998] sm:$0xff]
        %v1059 = vld [vmem:[%s199 + $0x19a0] sm:$0xff]
        %v1060 = vld [vmem:[%s199 + $0x19a8] sm:$0xff]
        %v1061 = vld [vmem:[%s199 + $0x19b0] sm:$0xff]
        %v1062 = vld [vmem:[%s199 + $0x19b8] sm:$0xff]
        %v1063 = vld [vmem:[%s199 + $0x19c0] sm:$0xff]
        %v1064 = vld [vmem:[%s199 + $0x19c8] sm:$0xff]
        %v1065 = vld [vmem:[%s199 + $0x19d0] sm:$0xff]
        %v1066 = vld [vmem:[%s199 + $0x19d8] sm:$0xff]
        %v1067 = vld [vmem:[%s199 + $0x19e0] sm:$0xff]
        %v1068 = vld [vmem:[%s199 + $0x19e8] sm:$0xff]
        %v1069 = vld [vmem:[%s199 + $0x19f0] sm:$0xff]
        %v1070 = vld [vmem:[%s199 + $0x19f8] sm:$0xff]
        %v1071 = vld [vmem:[%s199 + $0x1a00] sm:$0xff]
        %v1072 = vld [vmem:[%s199 + $0x1a08] sm:$0xff]
        %v1073 = vld [vmem:[%s199 + $0x1a10] sm:$0xff]
        %v1074 = vld [vmem:[%s199 + $0x1a18] sm:$0xff]
        %v1075 = vld [vmem:[%s199 + $0x1a20] sm:$0xff]
        %v1076 = vld [vmem:[%s199 + $0x1a28] sm:$0xff]
        %v1077 = vld [vmem:[%s199 + $0x1a30] sm:$0xff]
        %v1078 = vld [vmem:[%s199 + $0x1a38] sm:$0xff]
        %v1079 = vld [vmem:[%s199 + $0x1a40] sm:$0xff]
        %v1080 = vld [vmem:[%s199 + $0x1a48] sm:$0xff]
        %v1081 = vld [vmem:[%s199 + $0x1a50] sm:$0xff]
        %v1082 = vld [vmem:[%s199 + $0x1a58] sm:$0xff]
        %v1083 = vld [vmem:[%s199 + $0x1a60] sm:$0xff]
        %v1084 = vld [vmem:[%s199 + $0x1a68] sm:$0xff]
        %v1085 = vld [vmem:[%s199 + $0x1a70] sm:$0xff]
        %v1086 = vld [vmem:[%s199 + $0x1a78] sm:$0xff]
        %v1087 = vld [vmem:[%s199 + $0x1a80] sm:$0xff]
        %v1088 = vld [vmem:[%s199 + $0x1a88] sm:$0xff]
        %v1089 = vld [vmem:[%s199 + $0x1a90] sm:$0xff]
        %v1090 = vld [vmem:[%s199 + $0x1a98] sm:$0xff]
        %v1091 = vld [vmem:[%s199 + $0x1aa0] sm:$0xff]
        %v1092 = vld [vmem:[%s199 + $0x1aa8] sm:$0xff]
        %v1093 = vld [vmem:[%s199 + $0x1ab0] sm:$0xff]
        %v1094 = vld [vmem:[%s199 + $0x1ab8] sm:$0xff]
        %v1095 = vld [vmem:[%s199 + $0x1ac0] sm:$0xff]
        %v1096 = vld [vmem:[%s199 + $0x1ac8] sm:$0xff]
        %v1097 = vld [vmem:[%s199 + $0x1ad0] sm:$0xff]
        %v1098 = vld [vmem:[%s199 + $0x1ad8] sm:$0xff]
        %v1099 = vld [vmem:[%s199 + $0x1ae0] sm:$0xff]
        %v1100 = vld [vmem:[%s199 + $0x1ae8] sm:$0xff]
        %v1101 = vld [vmem:[%s199 + $0x1af0] sm:$0xff]
        %v1102 = vld [vmem:[%s199 + $0x1af8] sm:$0xff]
        %v1103 = vld [vmem:[%s199 + $0x1b00] sm:$0xff]
        %v1104 = vld [vmem:[%s199 + $0x1b08] sm:$0xff]
        %v1105 = vld [vmem:[%s199 + $0x1b10] sm:$0xff]
        %v1106 = vld [vmem:[%s199 + $0x1b18] sm:$0xff]
        %v1107 = vld [vmem:[%s199 + $0x1b20] sm:$0xff]
        %v1108 = vld [vmem:[%s199 + $0x1b28] sm:$0xff]
        %v1109 = vld [vmem:[%s199 + $0x1b30] sm:$0xff]
        %v1110 = vld [vmem:[%s199 + $0x1b38] sm:$0xff]
        %v1111 = vld [vmem:[%s199 + $0x1b40] sm:$0xff]
        %v1112 = vld [vmem:[%s199 + $0x1b48] sm:$0xff]
        %v1113 = vld [vmem:[%s199 + $0x1b50] sm:$0xff]
        %v1114 = vld [vmem:[%s199 + $0x1b58] sm:$0xff]
        %v1115 = vld [vmem:[%s199 + $0x1b60] sm:$0xff]
        %v1116 = vld [vmem:[%s199 + $0x1b68] sm:$0xff]
        %v1117 = vld [vmem:[%s199 + $0x1b70] sm:$0xff]
        %v1118 = vld [vmem:[%s199 + $0x1b78] sm:$0xff]
        %v1119 = vld [vmem:[%s199 + $0x1b80] sm:$0xff]
        %v1120 = vld [vmem:[%s199 + $0x1b88] sm:$0xff]
        %v1121 = vld [vmem:[%s199 + $0x1b90] sm:$0xff]
        %v1122 = vld [vmem:[%s199 + $0x1b98] sm:$0xff]
        %v1123 = vld [vmem:[%s199 + $0x1ba0] sm:$0xff]
        %v1124 = vld [vmem:[%s199 + $0x1ba8] sm:$0xff]
        %v1125 = vld [vmem:[%s199 + $0x1bb0] sm:$0xff]
        %v1126 = vld [vmem:[%s199 + $0x1bb8] sm:$0xff]
        %v1127 = vld [vmem:[%s199 + $0x1bc0] sm:$0xff]
        %v1128 = vld [vmem:[%s199 + $0x1bc8] sm:$0xff]
        %v1129 = vld [vmem:[%s199 + $0x1bd0] sm:$0xff]
        %v1130 = vld [vmem:[%s199 + $0x1bd8] sm:$0xff]
        %v1131 = vld [vmem:[%s199 + $0x1be0] sm:$0xff]
        %v1132 = vld [vmem:[%s199 + $0x1be8] sm:$0xff]
        %v1133 = vld [vmem:[%s199 + $0x1bf0] sm:$0xff]
        %v1134 = vld [vmem:[%s199 + $0x1bf8] sm:$0xff]
        %v1135 = vld [vmem:[%s199 + $0x1c00] sm:$0xff]
        %v1136 = vld [vmem:[%s199 + $0x1c08] sm:$0xff]
        %v1137 = vld [vmem:[%s199 + $0x1c10] sm:$0xff]
        %v1138 = vld [vmem:[%s199 + $0x1c18] sm:$0xff]
        %v1139 = vld [vmem:[%s199 + $0x1c20] sm:$0xff]
        %v1140 = vld [vmem:[%s199 + $0x1c28] sm:$0xff]
        %v1141 = vld [vmem:[%s199 + $0x1c30] sm:$0xff]
        %v1142 = vld [vmem:[%s199 + $0x1c38] sm:$0xff]
        %v1143 = vld [vmem:[%s199 + $0x1c40] sm:$0xff]
        %v1144 = vld [vmem:[%s199 + $0x1c48] sm:$0xff]
        %v1145 = vld [vmem:[%s199 + $0x1c50] sm:$0xff]
        %v1146 = vld [vmem:[%s199 + $0x1c58] sm:$0xff]
        %v1147 = vld [vmem:[%s199 + $0x1c60] sm:$0xff]
        %v1148 = vld [vmem:[%s199 + $0x1c68] sm:$0xff]
        %v1149 = vld [vmem:[%s199 + $0x1c70] sm:$0xff]
        %v1150 = vld [vmem:[%s199 + $0x1c78] sm:$0xff]
        %v1151 = vld [vmem:[%s199 + $0x1c80] sm:$0xff]
        %v1152 = vld [vmem:[%s199 + $0x1c88] sm:$0xff]
        %v1153 = vld [vmem:[%s199 + $0x1c90] sm:$0xff]
        %v1154 = vld [vmem:[%s199 + $0x1c98] sm:$0xff]
        %v1155 = vld [vmem:[%s199 + $0x1ca0] sm:$0xff]
        %v1156 = vld [vmem:[%s199 + $0x1ca8] sm:$0xff]
        %v1157 = vld [vmem:[%s199 + $0x1cb0] sm:$0xff]
        %v1158 = vld [vmem:[%s199 + $0x1cb8] sm:$0xff]
        %v1159 = vld [vmem:[%s199 + $0x1cc0] sm:$0xff]
        %v1160 = vld [vmem:[%s199 + $0x1cc8] sm:$0xff]
        %v1161 = vld [vmem:[%s199 + $0x1cd0] sm:$0xff]
        %v1162 = vld [vmem:[%s199 + $0x1cd8] sm:$0xff]
        %v1163 = vld [vmem:[%s199 + $0x1ce0] sm:$0xff]
        %v1164 = vld [vmem:[%s199 + $0x1ce8] sm:$0xff]
        %v1165 = vld [vmem:[%s199 + $0x1cf0] sm:$0xff]
        %v1166 = vld [vmem:[%s199 + $0x1cf8] sm:$0xff]
        %v1167 = vld [vmem:[%s199 + $0x1d00] sm:$0xff]
        %v1168 = vld [vmem:[%s199 + $0x1d08] sm:$0xff]
        %v1169 = vld [vmem:[%s199 + $0x1d10] sm:$0xff]
        %v1170 = vld [vmem:[%s199 + $0x1d18] sm:$0xff]
        %v1171 = vld [vmem:[%s199 + $0x1d20] sm:$0xff]
        %v1172 = vld [vmem:[%s199 + $0x1d28] sm:$0xff]
        %v1173 = vld [vmem:[%s199 + $0x1d30] sm:$0xff]
        %v1174 = vld [vmem:[%s199 + $0x1d38] sm:$0xff]
        %v1175 = vld [vmem:[%s199 + $0x1d40] sm:$0xff]
        %v1176 = vld [vmem:[%s199 + $0x1d48] sm:$0xff]
        %v1177 = vld [vmem:[%s199 + $0x1d50] sm:$0xff]
        %v1178 = vld [vmem:[%s199 + $0x1d58] sm:$0xff]
        %v1179 = vld [vmem:[%s199 + $0x1d60] sm:$0xff]
        %v1180 = vld [vmem:[%s199 + $0x1d68] sm:$0xff]
        %v1181 = vld [vmem:[%s199 + $0x1d70] sm:$0xff]
        %v1182 = vld [vmem:[%s199 + $0x1d78] sm:$0xff]
        %v1183 = vld [vmem:[%s199 + $0x1d80] sm:$0xff]
        %v1184 = vld [vmem:[%s199 + $0x1d88] sm:$0xff]
        %v1185 = vld [vmem:[%s199 + $0x1d90] sm:$0xff]
        %v1186 = vld [vmem:[%s199 + $0x1d98] sm:$0xff]
        %v1187 = vld [vmem:[%s199 + $0x1da0] sm:$0xff]
        %v1188 = vld [vmem:[%s199 + $0x1da8] sm:$0xff]
        %v1189 = vld [vmem:[%s199 + $0x1db0] sm:$0xff]
        %v1190 = vld [vmem:[%s199 + $0x1db8] sm:$0xff]
        %v1191 = vld [vmem:[%s199 + $0x1dc0] sm:$0xff]
        %v1192 = vld [vmem:[%s199 + $0x1dc8] sm:$0xff]
        %v1193 = vld [vmem:[%s199 + $0x1dd0] sm:$0xff]
        %v1194 = vld [vmem:[%s199 + $0x1dd8] sm:$0xff]
        %v1195 = vld [vmem:[%s199 + $0x1de0] sm:$0xff]
        %v1196 = vld [vmem:[%s199 + $0x1de8] sm:$0xff]
        %v1197 = vld [vmem:[%s199 + $0x1df0] sm:$0xff]
        %v1198 = vld [vmem:[%s199 + $0x1df8] sm:$0xff]
        %v1199 = vld [vmem:[%s199 + $0x1e00] sm:$0xff]
        %v1200 = vld [vmem:[%s199 + $0x1e08] sm:$0xff]
        %v1201 = vld [vmem:[%s199 + $0x1e10] sm:$0xff]
        %v1202 = vld [vmem:[%s199 + $0x1e18] sm:$0xff]
        %v1203 = vld [vmem:[%s199 + $0x1e20] sm:$0xff]
        %v1204 = vld [vmem:[%s199 + $0x1e28] sm:$0xff]
        %v1205 = vld [vmem:[%s199 + $0x1e30] sm:$0xff]
        %v1206 = vld [vmem:[%s199 + $0x1e38] sm:$0xff]
        %v1207 = vld [vmem:[%s199 + $0x1e40] sm:$0xff]
        %v1208 = vld [vmem:[%s199 + $0x1e48] sm:$0xff]
        %v1209 = vld [vmem:[%s199 + $0x1e50] sm:$0xff]
        %v1210 = vld [vmem:[%s199 + $0x1e58] sm:$0xff]
        %v1211 = vld [vmem:[%s199 + $0x1e60] sm:$0xff]
        %v1212 = vld [vmem:[%s199 + $0x1e68] sm:$0xff]
        %v1213 = vld [vmem:[%s199 + $0x1e70] sm:$0xff]
        %v1214 = vld [vmem:[%s199 + $0x1e78] sm:$0xff]
        %v1215 = vld [vmem:[%s199 + $0x1e80] sm:$0xff]
        %v1216 = vld [vmem:[%s199 + $0x1e88] sm:$0xff]
        %v1217 = vld [vmem:[%s199 + $0x1e90] sm:$0xff]
        %v1218 = vld [vmem:[%s199 + $0x1e98] sm:$0xff]
        %v1219 = vld [vmem:[%s199 + $0x1ea0] sm:$0xff]
        %v1220 = vld [vmem:[%s199 + $0x1ea8] sm:$0xff]
        %v1221 = vld [vmem:[%s199 + $0x1eb0] sm:$0xff]
        %v1222 = vld [vmem:[%s199 + $0x1eb8] sm:$0xff]
        %v1223 = vld [vmem:[%s199 + $0x1ec0] sm:$0xff]
        %v1224 = vld [vmem:[%s199 + $0x1ec8] sm:$0xff]
        %v1225 = vld [vmem:[%s199 + $0x1ed0] sm:$0xff]
        %v1226 = vld [vmem:[%s199 + $0x1ed8] sm:$0xff]
        %v1227 = vld [vmem:[%s199 + $0x1ee0] sm:$0xff]
        %v1228 = vld [vmem:[%s199 + $0x1ee8] sm:$0xff]
        %v1229 = vld [vmem:[%s199 + $0x1ef0] sm:$0xff]
        %v1230 = vld [vmem:[%s199 + $0x1ef8] sm:$0xff]
        %v1231 = vld [vmem:[%s199 + $0x1f00] sm:$0xff]
        %v1232 = vld [vmem:[%s199 + $0x1f08] sm:$0xff]
        %v1233 = vld [vmem:[%s199 + $0x1f10] sm:$0xff]
        %v1234 = vld [vmem:[%s199 + $0x1f18] sm:$0xff]
        %v1235 = vld [vmem:[%s199 + $0x1f20] sm:$0xff]
        %v1236 = vld [vmem:[%s199 + $0x1f28] sm:$0xff]
        %v1237 = vld [vmem:[%s199 + $0x1f30] sm:$0xff]
        %v1238 = vld [vmem:[%s199 + $0x1f38] sm:$0xff]
        %v1239 = vld [vmem:[%s199 + $0x1f40] sm:$0xff]
        %v1240 = vld [vmem:[%s199 + $0x1f48] sm:$0xff]
        %v1241 = vld [vmem:[%s199 + $0x1f50] sm:$0xff]
        %v1242 = vld [vmem:[%s199 + $0x1f58] sm:$0xff]
        %v1243 = vld [vmem:[%s199 + $0x1f60] sm:$0xff]
        %v1244 = vld [vmem:[%s199 + $0x1f68] sm:$0xff]
        %v1245 = vld [vmem:[%s199 + $0x1f70] sm:$0xff]
        %v1246 = vld [vmem:[%s199 + $0x1f78] sm:$0xff]
        %v1247 = vld [vmem:[%s199 + $0x1f80] sm:$0xff]
        %v1248 = vld [vmem:[%s199 + $0x1f88] sm:$0xff]
        %v1249 = vld [vmem:[%s199 + $0x1f90] sm:$0xff]
        %v1250 = vld [vmem:[%s199 + $0x1f98] sm:$0xff]
        %v1251 = vld [vmem:[%s199 + $0x1fa0] sm:$0xff]
        %v1252 = vld [vmem:[%s199 + $0x1fa8] sm:$0xff]
        %v1253 = vld [vmem:[%s199 + $0x1fb0] sm:$0xff]
        %v1254 = vld [vmem:[%s199 + $0x1fb8] sm:$0xff]
        %v1255 = vld [vmem:[%s199 + $0x1fc0] sm:$0xff]
        %v1256 = vld [vmem:[%s199 + $0x1fc8] sm:$0xff]
        %v1257 = vld [vmem:[%s199 + $0x1fd0] sm:$0xff]
        %v1258 = vld [vmem:[%s199 + $0x1fd8] sm:$0xff]
        %v1259 = vld [vmem:[%s199 + $0x1fe0] sm:$0xff]
        %v1260 = vld [vmem:[%s199 + $0x1fe8] sm:$0xff]
        %v1261 = vld [vmem:[%s199 + $0x1ff0] sm:$0xff]
        %v1262 = vld [vmem:[%s199 + $0x1ff8] sm:$0xff]
        %1264 = vst [vmem:[#allocation1] ss:$9 sm:$0xff] %v235
        %v1265 = vld [vmem:[#allocation1] sm:$0xff]
        %v1266 = vld [vmem:[#allocation1 + $0x9] sm:$0xff]
        %v1267 = vld [vmem:[#allocation1 + $0x12] sm:$0xff]
        %v1268 = vld [vmem:[#allocation1 + $0x1b] sm:$0xff]
        %v1269 = vld [vmem:[#allocation1 + $0x24] sm:$0xff]
        %v1270 = vld [vmem:[#allocation1 + $0x2d] sm:$0xff]
        %v1271 = vld [vmem:[#allocation1 + $0x36] sm:$0xff]
        %v1272 = vld [vmem:[#allocation1 + $0x3f] sm:$0xff]
        %1274 = vst [vmem:[#allocation1] ss:$9 sm:$0xff] %v236
        %v1275 = vld [vmem:[#allocation1] sm:$0xff]
        %v1276 = vld [vmem:[#allocation1 + $0x9] sm:$0xff]
        %v1277 = vld [vmem:[#allocation1 + $0x12] sm:$0xff]
        %v1278 = vld [vmem:[#allocation1 + $0x1b] sm:$0xff]
        %v1279 = vld [vmem:[#allocation1 + $0x24] sm:$0xff]
        %v1280 = vld [vmem:[#allocation1 + $0x2d] sm:$0xff]
        %v1281 = vld [vmem:[#allocation1 + $0x36] sm:$0xff]
        %v1282 = vld [vmem:[#allocation1 + $0x3f] sm:$0xff]
        %1284 = vst [vmem:[#allocation1] ss:$9 sm:$0xff] %v237
        %v1285 = vld [vmem:[#allocation1] sm:$0xff]
        %v1286 = vld [vmem:[#allocation1 + $0x9] sm:$0xff]
        %v1287 = vld [vmem:[#allocation1 + $0x12] sm:$0xff]
        %v1288 = vld [vmem:[#allocation1 + $0x1b] sm:$0xff]
        %v1289 = vld [vmem:[#allocation1 + $0x24] sm:$0xff]
        %v1290 = vld [vmem:[#allocation1 + $0x2d] sm:$0xff]
        %v1291 = vld [vmem:[#allocation1 + $0x36] sm:$0xff]
        %v1292 = vld [vmem:[#allocation1 + $0x3f] sm:$0xff]
        %1294 = vst [vmem:[#allocation1] ss:$9 sm:$0xff] %v238
        %v1295 = vld [vmem:[#allocation1] sm:$0xff]
        %v1296 = vld [vmem:[#allocation1 + $0x9] sm:$0xff]
        %v1297 = vld [vmem:[#allocation1 + $0x12] sm:$0xff]
        %v1298 = vld [vmem:[#allocation1 + $0x1b] sm:$0xff]
        %v1299 = vld [vmem:[#allocation1 + $0x24] sm:$0xff]
        %v1300 = vld [vmem:[#allocation1 + $0x2d] sm:$0xff]
        %v1301 = vld [vmem:[#allocation1 + $0x36] sm:$0xff]
        %v1302 = vld [vmem:[#allocation1 + $0x3f] sm:$0xff]
        %v2359 = vunpack.c.l.b16 %v239
        %v2360 = vunpack.c.h.b16 %v239
        %v2361 = vunpack.c.l.b16 %v240
        %v2362 = vunpack.c.h.b16 %v240
        %v2363 = vunpack.c.l.b16 %v241
        %v2364 = vunpack.c.h.b16 %v241
        %v2365 = vunpack.c.l.b16 %v242
        %v2366 = vunpack.c.h.b16 %v242
        %v2367 = vunpack.c.l.b16 %v243
        %v2368 = vunpack.c.h.b16 %v243
        %v2369 = vunpack.c.l.b16 %v244
        %v2370 = vunpack.c.h.b16 %v244
        %v2371 = vunpack.c.l.b16 %v245
        %v2372 = vunpack.c.h.b16 %v245
        %v2373 = vunpack.c.l.b16 %v246
        %v2374 = vunpack.c.h.b16 %v246
        %v2375 = vunpack.c.l.b16 %v247
        %v2376 = vunpack.c.h.b16 %v247
        %v2377 = vunpack.c.l.b16 %v248
        %v2378 = vunpack.c.h.b16 %v248
        %v2379 = vunpack.c.l.b16 %v249
        %v2380 = vunpack.c.h.b16 %v249
        %v2381 = vunpack.c.l.b16 %v250
        %v2382 = vunpack.c.h.b16 %v250
        %v2383 = vunpack.c.l.b16 %v251
        %v2384 = vunpack.c.h.b16 %v251
        %v2385 = vunpack.c.l.b16 %v252
        %v2386 = vunpack.c.h.b16 %v252
        %v2387 = vunpack.c.l.b16 %v253
        %v2388 = vunpack.c.h.b16 %v253
        %v2389 = vunpack.c.l.b16 %v254
        %v2390 = vunpack.c.h.b16 %v254
        %v2391 = vunpack.c.l.b16 %v255
        %v2392 = vunpack.c.h.b16 %v255
        %v2393 = vunpack.c.l.b16 %v256
        %v2394 = vunpack.c.h.b16 %v256
        %v2395 = vunpack.c.l.b16 %v257
        %v2396 = vunpack.c.h.b16 %v257
        %v2397 = vunpack.c.l.b16 %v258
        %v2398 = vunpack.c.h.b16 %v258
        %v2399 = vunpack.c.l.b16 %v259
        %v2400 = vunpack.c.h.b16 %v259
        %v2401 = vunpack.c.l.b16 %v260
        %v2402 = vunpack.c.h.b16 %v260
        %v2403 = vunpack.c.l.b16 %v261
        %v2404 = vunpack.c.h.b16 %v261
        %v2405 = vunpack.c.l.b16 %v262
        %v2406 = vunpack.c.h.b16 %v262
        %v2407 = vunpack.c.l.b16 %v263
        %v2408 = vunpack.c.h.b16 %v263
        %v2409 = vunpack.c.l.b16 %v264
        %v2410 = vunpack.c.h.b16 %v264
        %v2411 = vunpack.c.l.b16 %v265
        %v2412 = vunpack.c.h.b16 %v265
        %v2413 = vunpack.c.l.b16 %v266
        %v2414 = vunpack.c.h.b16 %v266
        %v2415 = vunpack.c.l.b16 %v267
        %v2416 = vunpack.c.h.b16 %v267
        %v2417 = vunpack.c.l.b16 %v268
        %v2418 = vunpack.c.h.b16 %v268
        %v2419 = vunpack.c.l.b16 %v269
        %v2420 = vunpack.c.h.b16 %v269
        %v2421 = vunpack.c.l.b16 %v270
        %v2422 = vunpack.c.h.b16 %v270
        %v2423 = vunpack.c.l.b16 %v271
        %v2424 = vunpack.c.h.b16 %v271
        %v2425 = vunpack.c.l.b16 %v272
        %v2426 = vunpack.c.h.b16 %v272
        %v2427 = vunpack.c.l.b16 %v273
        %v2428 = vunpack.c.h.b16 %v273
        %v2429 = vunpack.c.l.b16 %v274
        %v2430 = vunpack.c.h.b16 %v274
        %v2431 = vunpack.c.l.b16 %v275
        %v2432 = vunpack.c.h.b16 %v275
        %v2433 = vunpack.c.l.b16 %v276
        %v2434 = vunpack.c.h.b16 %v276
        %v2435 = vunpack.c.l.b16 %v277
        %v2436 = vunpack.c.h.b16 %v277
        %v2437 = vunpack.c.l.b16 %v278
        %v2438 = vunpack.c.h.b16 %v278
        %v2439 = vunpack.c.l.b16 %v279
        %v2440 = vunpack.c.h.b16 %v279
        %v2441 = vunpack.c.l.b16 %v280
        %v2442 = vunpack.c.h.b16 %v280
        %v2443 = vunpack.c.l.b16 %v281
        %v2444 = vunpack.c.h.b16 %v281
        %v2445 = vunpack.c.l.b16 %v282
        %v2446 = vunpack.c.h.b16 %v282
        %v2447 = vunpack.c.l.b16 %v283
        %v2448 = vunpack.c.h.b16 %v283
        %v2449 = vunpack.c.l.b16 %v284
        %v2450 = vunpack.c.h.b16 %v284
        %v2451 = vunpack.c.l.b16 %v285
        %v2452 = vunpack.c.h.b16 %v285
        %v2453 = vunpack.c.l.b16 %v286
        %v2454 = vunpack.c.h.b16 %v286
        %v2455 = vunpack.c.l.b16 %v287
        %v2456 = vunpack.c.h.b16 %v287
        %v2457 = vunpack.c.l.b16 %v288
        %v2458 = vunpack.c.h.b16 %v288
        %v2459 = vunpack.c.l.b16 %v289
        %v2460 = vunpack.c.h.b16 %v289
        %v2461 = vunpack.c.l.b16 %v290
        %v2462 = vunpack.c.h.b16 %v290
        %v2463 = vunpack.c.l.b16 %v291
        %v2464 = vunpack.c.h.b16 %v291
        %v2465 = vunpack.c.l.b16 %v292
        %v2466 = vunpack.c.h.b16 %v292
        %v2467 = vunpack.c.l.b16 %v293
        %v2468 = vunpack.c.h.b16 %v293
        %v2469 = vunpack.c.l.b16 %v294
        %v2470 = vunpack.c.h.b16 %v294
        %v2471 = vunpack.c.l.b16 %v295
        %v2472 = vunpack.c.h.b16 %v295
        %v2473 = vunpack.c.l.b16 %v296
        %v2474 = vunpack.c.h.b16 %v296
        %v2475 = vunpack.c.l.b16 %v297
        %v2476 = vunpack.c.h.b16 %v297
        %v2477 = vunpack.c.l.b16 %v298
        %v2478 = vunpack.c.h.b16 %v298
        %v2479 = vunpack.c.l.b16 %v299
        %v2480 = vunpack.c.h.b16 %v299
        %v2481 = vunpack.c.l.b16 %v300
        %v2482 = vunpack.c.h.b16 %v300
        %v2483 = vunpack.c.l.b16 %v301
        %v2484 = vunpack.c.h.b16 %v301
        %v2485 = vunpack.c.l.b16 %v302
        %v2486 = vunpack.c.h.b16 %v302
        %v2487 = vunpack.c.l.b16 %v303
        %v2488 = vunpack.c.h.b16 %v303
        %v2489 = vunpack.c.l.b16 %v304
        %v2490 = vunpack.c.h.b16 %v304
        %v2491 = vunpack.c.l.b16 %v305
        %v2492 = vunpack.c.h.b16 %v305
        %v2493 = vunpack.c.l.b16 %v306
        %v2494 = vunpack.c.h.b16 %v306
        %v2495 = vunpack.c.l.b16 %v307
        %v2496 = vunpack.c.h.b16 %v307
        %v2497 = vunpack.c.l.b16 %v308
        %v2498 = vunpack.c.h.b16 %v308
        %v2499 = vunpack.c.l.b16 %v309
        %v2500 = vunpack.c.h.b16 %v309
        %v2501 = vunpack.c.l.b16 %v310
        %v2502 = vunpack.c.h.b16 %v310
        %v2503 = vunpack.c.l.b16 %v311
        %v2504 = vunpack.c.h.b16 %v311
        %v2505 = vunpack.c.l.b16 %v312
        %v2506 = vunpack.c.h.b16 %v312
        %v2507 = vunpack.c.l.b16 %v313
        %v2508 = vunpack.c.h.b16 %v313
        %v2509 = vunpack.c.l.b16 %v314
        %v2510 = vunpack.c.h.b16 %v314
        %v2511 = vunpack.c.l.b16 %v315
        %v2512 = vunpack.c.h.b16 %v315
        %v2513 = vunpack.c.l.b16 %v316
        %v2514 = vunpack.c.h.b16 %v316
        %v2515 = vunpack.c.l.b16 %v317
        %v2516 = vunpack.c.h.b16 %v317
        %v2517 = vunpack.c.l.b16 %v318
        %v2518 = vunpack.c.h.b16 %v318
        %v2519 = vunpack.c.l.b16 %v319
        %v2520 = vunpack.c.h.b16 %v319
        %v2521 = vunpack.c.l.b16 %v320
        %v2522 = vunpack.c.h.b16 %v320
        %v2523 = vunpack.c.l.b16 %v321
        %v2524 = vunpack.c.h.b16 %v321
        %v2525 = vunpack.c.l.b16 %v322
        %v2526 = vunpack.c.h.b16 %v322
        %v2527 = vunpack.c.l.b16 %v323
        %v2528 = vunpack.c.h.b16 %v323
        %v2529 = vunpack.c.l.b16 %v324
        %v2530 = vunpack.c.h.b16 %v324
        %v2531 = vunpack.c.l.b16 %v325
        %v2532 = vunpack.c.h.b16 %v325
        %v2533 = vunpack.c.l.b16 %v326
        %v2534 = vunpack.c.h.b16 %v326
        %v2535 = vunpack.c.l.b16 %v327
        %v2536 = vunpack.c.h.b16 %v327
        %v2537 = vunpack.c.l.b16 %v328
        %v2538 = vunpack.c.h.b16 %v328
        %v2539 = vunpack.c.l.b16 %v329
        %v2540 = vunpack.c.h.b16 %v329
        %v2541 = vunpack.c.l.b16 %v330
        %v2542 = vunpack.c.h.b16 %v330
        %v2543 = vunpack.c.l.b16 %v331
        %v2544 = vunpack.c.h.b16 %v331
        %v2545 = vunpack.c.l.b16 %v332
        %v2546 = vunpack.c.h.b16 %v332
        %v2547 = vunpack.c.l.b16 %v333
        %v2548 = vunpack.c.h.b16 %v333
        %v2549 = vunpack.c.l.b16 %v334
        %v2550 = vunpack.c.h.b16 %v334
        %v2551 = vunpack.c.l.b16 %v335
        %v2552 = vunpack.c.h.b16 %v335
        %v2553 = vunpack.c.l.b16 %v336
        %v2554 = vunpack.c.h.b16 %v336
        %v2555 = vunpack.c.l.b16 %v337
        %v2556 = vunpack.c.h.b16 %v337
        %v2557 = vunpack.c.l.b16 %v338
        %v2558 = vunpack.c.h.b16 %v338
        %v2559 = vunpack.c.l.b16 %v339
        %v2560 = vunpack.c.h.b16 %v339
        %v2561 = vunpack.c.l.b16 %v340
        %v2562 = vunpack.c.h.b16 %v340
        %v2563 = vunpack.c.l.b16 %v341
        %v2564 = vunpack.c.h.b16 %v341
        %v2565 = vunpack.c.l.b16 %v342
        %v2566 = vunpack.c.h.b16 %v342
        %v2567 = vunpack.c.l.b16 %v343
        %v2568 = vunpack.c.h.b16 %v343
        %v2569 = vunpack.c.l.b16 %v344
        %v2570 = vunpack.c.h.b16 %v344
        %v2571 = vunpack.c.l.b16 %v345
        %v2572 = vunpack.c.h.b16 %v345
        %v2573 = vunpack.c.l.b16 %v346
        %v2574 = vunpack.c.h.b16 %v346
        %v2575 = vunpack.c.l.b16 %v347
        %v2576 = vunpack.c.h.b16 %v347
        %v2577 = vunpack.c.l.b16 %v348
        %v2578 = vunpack.c.h.b16 %v348
        %v2579 = vunpack.c.l.b16 %v349
        %v2580 = vunpack.c.h.b16 %v349
        %v2581 = vunpack.c.l.b16 %v350
        %v2582 = vunpack.c.h.b16 %v350
        %v2583 = vunpack.c.l.b16 %v351
        %v2584 = vunpack.c.h.b16 %v351
        %v2585 = vunpack.c.l.b16 %v352
        %v2586 = vunpack.c.h.b16 %v352
        %v2587 = vunpack.c.l.b16 %v353
        %v2588 = vunpack.c.h.b16 %v353
        %v2589 = vunpack.c.l.b16 %v354
        %v2590 = vunpack.c.h.b16 %v354
        %v2591 = vunpack.c.l.b16 %v355
        %v2592 = vunpack.c.h.b16 %v355
        %v2593 = vunpack.c.l.b16 %v356
        %v2594 = vunpack.c.h.b16 %v356
        %v2595 = vunpack.c.l.b16 %v357
        %v2596 = vunpack.c.h.b16 %v357
        %v2597 = vunpack.c.l.b16 %v358
        %v2598 = vunpack.c.h.b16 %v358
        %v2599 = vunpack.c.l.b16 %v359
        %v2600 = vunpack.c.h.b16 %v359
        %v2601 = vunpack.c.l.b16 %v360
        %v2602 = vunpack.c.h.b16 %v360
        %v2603 = vunpack.c.l.b16 %v361
        %v2604 = vunpack.c.h.b16 %v361
        %v2605 = vunpack.c.l.b16 %v362
        %v2606 = vunpack.c.h.b16 %v362
        %v2607 = vunpack.c.l.b16 %v363
        %v2608 = vunpack.c.h.b16 %v363
        %v2609 = vunpack.c.l.b16 %v364
        %v2610 = vunpack.c.h.b16 %v364
        %v2611 = vunpack.c.l.b16 %v365
        %v2612 = vunpack.c.h.b16 %v365
        %v2613 = vunpack.c.l.b16 %v366
        %v2614 = vunpack.c.h.b16 %v366
        %v2615 = vunpack.c.l.b16 %v367
        %v2616 = vunpack.c.h.b16 %v367
        %v2617 = vunpack.c.l.b16 %v368
        %v2618 = vunpack.c.h.b16 %v368
        %v2619 = vunpack.c.l.b16 %v369
        %v2620 = vunpack.c.h.b16 %v369
        %v2621 = vunpack.c.l.b16 %v370
        %v2622 = vunpack.c.h.b16 %v370
        %v2623 = vunpack.c.l.b16 %v371
        %v2624 = vunpack.c.h.b16 %v371
        %v2625 = vunpack.c.l.b16 %v372
        %v2626 = vunpack.c.h.b16 %v372
        %v2627 = vunpack.c.l.b16 %v373
        %v2628 = vunpack.c.h.b16 %v373
        %v2629 = vunpack.c.l.b16 %v374
        %v2630 = vunpack.c.h.b16 %v374
        %v2631 = vunpack.c.l.b16 %v375
        %v2632 = vunpack.c.h.b16 %v375
        %v2633 = vunpack.c.l.b16 %v376
        %v2634 = vunpack.c.h.b16 %v376
        %v2635 = vunpack.c.l.b16 %v377
        %v2636 = vunpack.c.h.b16 %v377
        %v2637 = vunpack.c.l.b16 %v378
        %v2638 = vunpack.c.h.b16 %v378
        %v2639 = vunpack.c.l.b16 %v379
        %v2640 = vunpack.c.h.b16 %v379
        %v2641 = vunpack.c.l.b16 %v380
        %v2642 = vunpack.c.h.b16 %v380
        %v2643 = vunpack.c.l.b16 %v381
        %v2644 = vunpack.c.h.b16 %v381
        %v2645 = vunpack.c.l.b16 %v382
        %v2646 = vunpack.c.h.b16 %v382
        %v2647 = vunpack.c.l.b16 %v383
        %v2648 = vunpack.c.h.b16 %v383
        %v2649 = vunpack.c.l.b16 %v384
        %v2650 = vunpack.c.h.b16 %v384
        %v2651 = vunpack.c.l.b16 %v385
        %v2652 = vunpack.c.h.b16 %v385
        %v2653 = vunpack.c.l.b16 %v386
        %v2654 = vunpack.c.h.b16 %v386
        %v2655 = vunpack.c.l.b16 %v387
        %v2656 = vunpack.c.h.b16 %v387
        %v2657 = vunpack.c.l.b16 %v388
        %v2658 = vunpack.c.h.b16 %v388
        %v2659 = vunpack.c.l.b16 %v389
        %v2660 = vunpack.c.h.b16 %v389
        %v2661 = vunpack.c.l.b16 %v390
        %v2662 = vunpack.c.h.b16 %v390
        %v2663 = vunpack.c.l.b16 %v391
        %v2664 = vunpack.c.h.b16 %v391
        %v2665 = vunpack.c.l.b16 %v392
        %v2666 = vunpack.c.h.b16 %v392
        %v2667 = vunpack.c.l.b16 %v393
        %v2668 = vunpack.c.h.b16 %v393
        %v2669 = vunpack.c.l.b16 %v394
        %v2670 = vunpack.c.h.b16 %v394
        %v2671 = vunpack.c.l.b16 %v395
        %v2672 = vunpack.c.h.b16 %v395
        %v2673 = vunpack.c.l.b16 %v396
        %v2674 = vunpack.c.h.b16 %v396
        %v2675 = vunpack.c.l.b16 %v397
        %v2676 = vunpack.c.h.b16 %v397
        %v2677 = vunpack.c.l.b16 %v398
        %v2678 = vunpack.c.h.b16 %v398
        %v2679 = vunpack.c.l.b16 %v399
        %v2680 = vunpack.c.h.b16 %v399
        %v2681 = vunpack.c.l.b16 %v400
        %v2682 = vunpack.c.h.b16 %v400
        %v2683 = vunpack.c.l.b16 %v401
        %v2684 = vunpack.c.h.b16 %v401
        %v2685 = vunpack.c.l.b16 %v402
        %v2686 = vunpack.c.h.b16 %v402
        %v2687 = vunpack.c.l.b16 %v403
        %v2688 = vunpack.c.h.b16 %v403
        %v2689 = vunpack.c.l.b16 %v404
        %v2690 = vunpack.c.h.b16 %v404
        %v2691 = vunpack.c.l.b16 %v405
        %v2692 = vunpack.c.h.b16 %v405
        %v2693 = vunpack.c.l.b16 %v406
        %v2694 = vunpack.c.h.b16 %v406
        %v2695 = vunpack.c.l.b16 %v407
        %v2696 = vunpack.c.h.b16 %v407
        %v2697 = vunpack.c.l.b16 %v408
        %v2698 = vunpack.c.h.b16 %v408
        %v2699 = vunpack.c.l.b16 %v409
        %v2700 = vunpack.c.h.b16 %v409
        %v2701 = vunpack.c.l.b16 %v410
        %v2702 = vunpack.c.h.b16 %v410
        %v2703 = vunpack.c.l.b16 %v411
        %v2704 = vunpack.c.h.b16 %v411
        %v2705 = vunpack.c.l.b16 %v412
        %v2706 = vunpack.c.h.b16 %v412
        %v2707 = vunpack.c.l.b16 %v413
        %v2708 = vunpack.c.h.b16 %v413
        %v2709 = vunpack.c.l.b16 %v414
        %v2710 = vunpack.c.h.b16 %v414
        %v2711 = vunpack.c.l.b16 %v415
        %v2712 = vunpack.c.h.b16 %v415
        %v2713 = vunpack.c.l.b16 %v416
        %v2714 = vunpack.c.h.b16 %v416
        %v2715 = vunpack.c.l.b16 %v417
        %v2716 = vunpack.c.h.b16 %v417
        %v2717 = vunpack.c.l.b16 %v418
        %v2718 = vunpack.c.h.b16 %v418
        %v2719 = vunpack.c.l.b16 %v419
        %v2720 = vunpack.c.h.b16 %v419
        %v2721 = vunpack.c.l.b16 %v420
        %v2722 = vunpack.c.h.b16 %v420
        %v2723 = vunpack.c.l.b16 %v421
        %v2724 = vunpack.c.h.b16 %v421
        %v2725 = vunpack.c.l.b16 %v422
        %v2726 = vunpack.c.h.b16 %v422
        %v2727 = vunpack.c.l.b16 %v423
        %v2728 = vunpack.c.h.b16 %v423
        %v2729 = vunpack.c.l.b16 %v424
        %v2730 = vunpack.c.h.b16 %v424
        %v2731 = vunpack.c.l.b16 %v425
        %v2732 = vunpack.c.h.b16 %v425
        %v2733 = vunpack.c.l.b16 %v426
        %v2734 = vunpack.c.h.b16 %v426
        %v2735 = vunpack.c.l.b16 %v427
        %v2736 = vunpack.c.h.b16 %v427
        %v2737 = vunpack.c.l.b16 %v428
        %v2738 = vunpack.c.h.b16 %v428
        %v2739 = vunpack.c.l.b16 %v429
        %v2740 = vunpack.c.h.b16 %v429
        %v2741 = vunpack.c.l.b16 %v430
        %v2742 = vunpack.c.h.b16 %v430
        %v2743 = vunpack.c.l.b16 %v431
        %v2744 = vunpack.c.h.b16 %v431
        %v2745 = vunpack.c.l.b16 %v432
        %v2746 = vunpack.c.h.b16 %v432
        %v2747 = vunpack.c.l.b16 %v433
        %v2748 = vunpack.c.h.b16 %v433
        %v2749 = vunpack.c.l.b16 %v434
        %v2750 = vunpack.c.h.b16 %v434
        %v2751 = vunpack.c.l.b16 %v435
        %v2752 = vunpack.c.h.b16 %v435
        %v2753 = vunpack.c.l.b16 %v436
        %v2754 = vunpack.c.h.b16 %v436
        %v2755 = vunpack.c.l.b16 %v437
        %v2756 = vunpack.c.h.b16 %v437
        %v2757 = vunpack.c.l.b16 %v438
        %v2758 = vunpack.c.h.b16 %v438
        %v2759 = vunpack.c.l.b16 %v439
        %v2760 = vunpack.c.h.b16 %v439
        %v2761 = vunpack.c.l.b16 %v440
        %v2762 = vunpack.c.h.b16 %v440
        %v2763 = vunpack.c.l.b16 %v441
        %v2764 = vunpack.c.h.b16 %v441
        %v2765 = vunpack.c.l.b16 %v442
        %v2766 = vunpack.c.h.b16 %v442
        %v2767 = vunpack.c.l.b16 %v443
        %v2768 = vunpack.c.h.b16 %v443
        %v2769 = vunpack.c.l.b16 %v444
        %v2770 = vunpack.c.h.b16 %v444
        %v2771 = vunpack.c.l.b16 %v445
        %v2772 = vunpack.c.h.b16 %v445
        %v2773 = vunpack.c.l.b16 %v446
        %v2774 = vunpack.c.h.b16 %v446
        %v2775 = vunpack.c.l.b16 %v447
        %v2776 = vunpack.c.h.b16 %v447
        %v2777 = vunpack.c.l.b16 %v448
        %v2778 = vunpack.c.h.b16 %v448
        %v2779 = vunpack.c.l.b16 %v449
        %v2780 = vunpack.c.h.b16 %v449
        %v2781 = vunpack.c.l.b16 %v450
        %v2782 = vunpack.c.h.b16 %v450
        %v2783 = vunpack.c.l.b16 %v451
        %v2784 = vunpack.c.h.b16 %v451
        %v2785 = vunpack.c.l.b16 %v452
        %v2786 = vunpack.c.h.b16 %v452
        %v2787 = vunpack.c.l.b16 %v453
        %v2788 = vunpack.c.h.b16 %v453
        %v2789 = vunpack.c.l.b16 %v454
        %v2790 = vunpack.c.h.b16 %v454
        %v2791 = vunpack.c.l.b16 %v455
        %v2792 = vunpack.c.h.b16 %v455
        %v2793 = vunpack.c.l.b16 %v456
        %v2794 = vunpack.c.h.b16 %v456
        %v2795 = vunpack.c.l.b16 %v457
        %v2796 = vunpack.c.h.b16 %v457
        %v2797 = vunpack.c.l.b16 %v458
        %v2798 = vunpack.c.h.b16 %v458
        %v2799 = vunpack.c.l.b16 %v459
        %v2800 = vunpack.c.h.b16 %v459
        %v2801 = vunpack.c.l.b16 %v460
        %v2802 = vunpack.c.h.b16 %v460
        %v2803 = vunpack.c.l.b16 %v461
        %v2804 = vunpack.c.h.b16 %v461
        %v2805 = vunpack.c.l.b16 %v462
        %v2806 = vunpack.c.h.b16 %v462
        %v2807 = vunpack.c.l.b16 %v463
        %v2808 = vunpack.c.h.b16 %v463
        %v2809 = vunpack.c.l.b16 %v464
        %v2810 = vunpack.c.h.b16 %v464
        %v2811 = vunpack.c.l.b16 %v465
        %v2812 = vunpack.c.h.b16 %v465
        %v2813 = vunpack.c.l.b16 %v466
        %v2814 = vunpack.c.h.b16 %v466
        %v2815 = vunpack.c.l.b16 %v467
        %v2816 = vunpack.c.h.b16 %v467
        %v2817 = vunpack.c.l.b16 %v468
        %v2818 = vunpack.c.h.b16 %v468
        %v2819 = vunpack.c.l.b16 %v469
        %v2820 = vunpack.c.h.b16 %v469
        %v2821 = vunpack.c.l.b16 %v470
        %v2822 = vunpack.c.h.b16 %v470
        %v2823 = vunpack.c.l.b16 %v471
        %v2824 = vunpack.c.h.b16 %v471
        %v2825 = vunpack.c.l.b16 %v472
        %v2826 = vunpack.c.h.b16 %v472
        %v2827 = vunpack.c.l.b16 %v473
        %v2828 = vunpack.c.h.b16 %v473
        %v2829 = vunpack.c.l.b16 %v474
        %v2830 = vunpack.c.h.b16 %v474
        %v2831 = vunpack.c.l.b16 %v475
        %v2832 = vunpack.c.h.b16 %v475
        %v2833 = vunpack.c.l.b16 %v476
        %v2834 = vunpack.c.h.b16 %v476
        %v2835 = vunpack.c.l.b16 %v477
        %v2836 = vunpack.c.h.b16 %v477
        %v2837 = vunpack.c.l.b16 %v478
        %v2838 = vunpack.c.h.b16 %v478
        %v2839 = vunpack.c.l.b16 %v479
        %v2840 = vunpack.c.h.b16 %v479
        %v2841 = vunpack.c.l.b16 %v480
        %v2842 = vunpack.c.h.b16 %v480
        %v2843 = vunpack.c.l.b16 %v481
        %v2844 = vunpack.c.h.b16 %v481
        %v2845 = vunpack.c.l.b16 %v482
        %v2846 = vunpack.c.h.b16 %v482
        %v2847 = vunpack.c.l.b16 %v483
        %v2848 = vunpack.c.h.b16 %v483
        %v2849 = vunpack.c.l.b16 %v484
        %v2850 = vunpack.c.h.b16 %v484
        %v2851 = vunpack.c.l.b16 %v485
        %v2852 = vunpack.c.h.b16 %v485
        %v2853 = vunpack.c.l.b16 %v486
        %v2854 = vunpack.c.h.b16 %v486
        %v2855 = vunpack.c.l.b16 %v487
        %v2856 = vunpack.c.h.b16 %v487
        %v2857 = vunpack.c.l.b16 %v488
        %v2858 = vunpack.c.h.b16 %v488
        %v2859 = vunpack.c.l.b16 %v489
        %v2860 = vunpack.c.h.b16 %v489
        %v2861 = vunpack.c.l.b16 %v490
        %v2862 = vunpack.c.h.b16 %v490
        %v2863 = vunpack.c.l.b16 %v491
        %v2864 = vunpack.c.h.b16 %v491
        %v2865 = vunpack.c.l.b16 %v492
        %v2866 = vunpack.c.h.b16 %v492
        %v2867 = vunpack.c.l.b16 %v493
        %v2868 = vunpack.c.h.b16 %v493
        %v2869 = vunpack.c.l.b16 %v494
        %v2870 = vunpack.c.h.b16 %v494
        %v2871 = vunpack.c.l.b16 %v495
        %v2872 = vunpack.c.h.b16 %v495
        %v2873 = vunpack.c.l.b16 %v496
        %v2874 = vunpack.c.h.b16 %v496
        %v2875 = vunpack.c.l.b16 %v497
        %v2876 = vunpack.c.h.b16 %v497
        %v2877 = vunpack.c.l.b16 %v498
        %v2878 = vunpack.c.h.b16 %v498
        %v2879 = vunpack.c.l.b16 %v499
        %v2880 = vunpack.c.h.b16 %v499
        %v2881 = vunpack.c.l.b16 %v500
        %v2882 = vunpack.c.h.b16 %v500
        %v2883 = vunpack.c.l.b16 %v501
        %v2884 = vunpack.c.h.b16 %v501
        %v2885 = vunpack.c.l.b16 %v502
        %v2886 = vunpack.c.h.b16 %v502
        %v2887 = vunpack.c.l.b16 %v503
        %v2888 = vunpack.c.h.b16 %v503
        %v2889 = vunpack.c.l.b16 %v504
        %v2890 = vunpack.c.h.b16 %v504
        %v2891 = vunpack.c.l.b16 %v505
        %v2892 = vunpack.c.h.b16 %v505
        %v2893 = vunpack.c.l.b16 %v506
        %v2894 = vunpack.c.h.b16 %v506
        %v2895 = vunpack.c.l.b16 %v507
        %v2896 = vunpack.c.h.b16 %v507
        %v2897 = vunpack.c.l.b16 %v508
        %v2898 = vunpack.c.h.b16 %v508
        %v2899 = vunpack.c.l.b16 %v509
        %v2900 = vunpack.c.h.b16 %v509
        %v2901 = vunpack.c.l.b16 %v510
        %v2902 = vunpack.c.h.b16 %v510
        %v2903 = vunpack.c.l.b16 %v511
        %v2904 = vunpack.c.h.b16 %v511
        %v2905 = vunpack.c.l.b16 %v512
        %v2906 = vunpack.c.h.b16 %v512
        %v2907 = vunpack.c.l.b16 %v513
        %v2908 = vunpack.c.h.b16 %v513
        %v2909 = vunpack.c.l.b16 %v514
        %v2910 = vunpack.c.h.b16 %v514
        %v2911 = vunpack.c.l.b16 %v515
        %v2912 = vunpack.c.h.b16 %v515
        %v2913 = vunpack.c.l.b16 %v516
        %v2914 = vunpack.c.h.b16 %v516
        %v2915 = vunpack.c.l.b16 %v517
        %v2916 = vunpack.c.h.b16 %v517
        %v2917 = vunpack.c.l.b16 %v518
        %v2918 = vunpack.c.h.b16 %v518
        %v2919 = vunpack.c.l.b16 %v519
        %v2920 = vunpack.c.h.b16 %v519
        %v2921 = vunpack.c.l.b16 %v520
        %v2922 = vunpack.c.h.b16 %v520
        %v2923 = vunpack.c.l.b16 %v521
        %v2924 = vunpack.c.h.b16 %v521
        %v2925 = vunpack.c.l.b16 %v522
        %v2926 = vunpack.c.h.b16 %v522
        %v2927 = vunpack.c.l.b16 %v523
        %v2928 = vunpack.c.h.b16 %v523
        %v2929 = vunpack.c.l.b16 %v524
        %v2930 = vunpack.c.h.b16 %v524
        %v2931 = vunpack.c.l.b16 %v525
        %v2932 = vunpack.c.h.b16 %v525
        %v2933 = vunpack.c.l.b16 %v526
        %v2934 = vunpack.c.h.b16 %v526
        %v2935 = vunpack.c.l.b16 %v527
        %v2936 = vunpack.c.h.b16 %v527
        %v2937 = vunpack.c.l.b16 %v528
        %v2938 = vunpack.c.h.b16 %v528
        %v2939 = vunpack.c.l.b16 %v529
        %v2940 = vunpack.c.h.b16 %v529
        %v2941 = vunpack.c.l.b16 %v530
        %v2942 = vunpack.c.h.b16 %v530
        %v2943 = vunpack.c.l.b16 %v531
        %v2944 = vunpack.c.h.b16 %v531
        %v2945 = vunpack.c.l.b16 %v532
        %v2946 = vunpack.c.h.b16 %v532
        %v2947 = vunpack.c.l.b16 %v533
        %v2948 = vunpack.c.h.b16 %v533
        %v2949 = vunpack.c.l.b16 %v534
        %v2950 = vunpack.c.h.b16 %v534
        %v2951 = vunpack.c.l.b16 %v535
        %v2952 = vunpack.c.h.b16 %v535
        %v2953 = vunpack.c.l.b16 %v536
        %v2954 = vunpack.c.h.b16 %v536
        %v2955 = vunpack.c.l.b16 %v537
        %v2956 = vunpack.c.h.b16 %v537
        %v2957 = vunpack.c.l.b16 %v538
        %v2958 = vunpack.c.h.b16 %v538
        %v2959 = vunpack.c.l.b16 %v539
        %v2960 = vunpack.c.h.b16 %v539
        %v2961 = vunpack.c.l.b16 %v540
        %v2962 = vunpack.c.h.b16 %v540
        %v2963 = vunpack.c.l.b16 %v541
        %v2964 = vunpack.c.h.b16 %v541
        %v2965 = vunpack.c.l.b16 %v542
        %v2966 = vunpack.c.h.b16 %v542
        %v2967 = vunpack.c.l.b16 %v543
        %v2968 = vunpack.c.h.b16 %v543
        %v2969 = vunpack.c.l.b16 %v544
        %v2970 = vunpack.c.h.b16 %v544
        %v2971 = vunpack.c.l.b16 %v545
        %v2972 = vunpack.c.h.b16 %v545
        %v2973 = vunpack.c.l.b16 %v546
        %v2974 = vunpack.c.h.b16 %v546
        %v2975 = vunpack.c.l.b16 %v547
        %v2976 = vunpack.c.h.b16 %v547
        %v2977 = vunpack.c.l.b16 %v548
        %v2978 = vunpack.c.h.b16 %v548
        %v2979 = vunpack.c.l.b16 %v549
        %v2980 = vunpack.c.h.b16 %v549
        %v2981 = vunpack.c.l.b16 %v550
        %v2982 = vunpack.c.h.b16 %v550
        %v2983 = vunpack.c.l.b16 %v551
        %v2984 = vunpack.c.h.b16 %v551
        %v2985 = vunpack.c.l.b16 %v552
        %v2986 = vunpack.c.h.b16 %v552
        %v2987 = vunpack.c.l.b16 %v553
        %v2988 = vunpack.c.h.b16 %v553
        %v2989 = vunpack.c.l.b16 %v554
        %v2990 = vunpack.c.h.b16 %v554
        %v2991 = vunpack.c.l.b16 %v555
        %v2992 = vunpack.c.h.b16 %v555
        %v2993 = vunpack.c.l.b16 %v556
        %v2994 = vunpack.c.h.b16 %v556
        %v2995 = vunpack.c.l.b16 %v557
        %v2996 = vunpack.c.h.b16 %v557
        %v2997 = vunpack.c.l.b16 %v558
        %v2998 = vunpack.c.h.b16 %v558
        %v2999 = vunpack.c.l.b16 %v559
        %v3000 = vunpack.c.h.b16 %v559
        %v3001 = vunpack.c.l.b16 %v560
        %v3002 = vunpack.c.h.b16 %v560
        %v3003 = vunpack.c.l.b16 %v561
        %v3004 = vunpack.c.h.b16 %v561
        %v3005 = vunpack.c.l.b16 %v562
        %v3006 = vunpack.c.h.b16 %v562
        %v3007 = vunpack.c.l.b16 %v563
        %v3008 = vunpack.c.h.b16 %v563
        %v3009 = vunpack.c.l.b16 %v564
        %v3010 = vunpack.c.h.b16 %v564
        %v3011 = vunpack.c.l.b16 %v565
        %v3012 = vunpack.c.h.b16 %v565
        %v3013 = vunpack.c.l.b16 %v566
        %v3014 = vunpack.c.h.b16 %v566
        %v3015 = vunpack.c.l.b16 %v567
        %v3016 = vunpack.c.h.b16 %v567
        %v3017 = vunpack.c.l.b16 %v568
        %v3018 = vunpack.c.h.b16 %v568
        %v3019 = vunpack.c.l.b16 %v569
        %v3020 = vunpack.c.h.b16 %v569
        %v3021 = vunpack.c.l.b16 %v570
        %v3022 = vunpack.c.h.b16 %v570
        %v3023 = vunpack.c.l.b16 %v571
        %v3024 = vunpack.c.h.b16 %v571
        %v3025 = vunpack.c.l.b16 %v572
        %v3026 = vunpack.c.h.b16 %v572
        %v3027 = vunpack.c.l.b16 %v573
        %v3028 = vunpack.c.h.b16 %v573
        %v3029 = vunpack.c.l.b16 %v574
        %v3030 = vunpack.c.h.b16 %v574
        %v3031 = vunpack.c.l.b16 %v575
        %v3032 = vunpack.c.h.b16 %v575
        %v3033 = vunpack.c.l.b16 %v576
        %v3034 = vunpack.c.h.b16 %v576
        %v3035 = vunpack.c.l.b16 %v577
        %v3036 = vunpack.c.h.b16 %v577
        %v3037 = vunpack.c.l.b16 %v578
        %v3038 = vunpack.c.h.b16 %v578
        %v3039 = vunpack.c.l.b16 %v579
        %v3040 = vunpack.c.h.b16 %v579
        %v3041 = vunpack.c.l.b16 %v580
        %v3042 = vunpack.c.h.b16 %v580
        %v3043 = vunpack.c.l.b16 %v581
        %v3044 = vunpack.c.h.b16 %v581
        %v3045 = vunpack.c.l.b16 %v582
        %v3046 = vunpack.c.h.b16 %v582
        %v3047 = vunpack.c.l.b16 %v583
        %v3048 = vunpack.c.h.b16 %v583
        %v3049 = vunpack.c.l.b16 %v584
        %v3050 = vunpack.c.h.b16 %v584
        %v3051 = vunpack.c.l.b16 %v585
        %v3052 = vunpack.c.h.b16 %v585
        %v3053 = vunpack.c.l.b16 %v586
        %v3054 = vunpack.c.h.b16 %v586
        %v3055 = vunpack.c.l.b16 %v587
        %v3056 = vunpack.c.h.b16 %v587
        %v3057 = vunpack.c.l.b16 %v588
        %v3058 = vunpack.c.h.b16 %v588
        %v3059 = vunpack.c.l.b16 %v589
        %v3060 = vunpack.c.h.b16 %v589
        %v3061 = vunpack.c.l.b16 %v590
        %v3062 = vunpack.c.h.b16 %v590
        %v3063 = vunpack.c.l.b16 %v591
        %v3064 = vunpack.c.h.b16 %v591
        %v3065 = vunpack.c.l.b16 %v592
        %v3066 = vunpack.c.h.b16 %v592
        %v3067 = vunpack.c.l.b16 %v593
        %v3068 = vunpack.c.h.b16 %v593
        %v3069 = vunpack.c.l.b16 %v594
        %v3070 = vunpack.c.h.b16 %v594
        %v3071 = vunpack.c.l.b16 %v595
        %v3072 = vunpack.c.h.b16 %v595
        %v3073 = vunpack.c.l.b16 %v596
        %v3074 = vunpack.c.h.b16 %v596
        %v3075 = vunpack.c.l.b16 %v597
        %v3076 = vunpack.c.h.b16 %v597
        %v3077 = vunpack.c.l.b16 %v598
        %v3078 = vunpack.c.h.b16 %v598
        %v3079 = vunpack.c.l.b16 %v599
        %v3080 = vunpack.c.h.b16 %v599
        %v3081 = vunpack.c.l.b16 %v600
        %v3082 = vunpack.c.h.b16 %v600
        %v3083 = vunpack.c.l.b16 %v601
        %v3084 = vunpack.c.h.b16 %v601
        %v3085 = vunpack.c.l.b16 %v602
        %v3086 = vunpack.c.h.b16 %v602
        %v3087 = vunpack.c.l.b16 %v603
        %v3088 = vunpack.c.h.b16 %v603
        %v3089 = vunpack.c.l.b16 %v604
        %v3090 = vunpack.c.h.b16 %v604
        %v3091 = vunpack.c.l.b16 %v605
        %v3092 = vunpack.c.h.b16 %v605
        %v3093 = vunpack.c.l.b16 %v606
        %v3094 = vunpack.c.h.b16 %v606
        %v3095 = vunpack.c.l.b16 %v607
        %v3096 = vunpack.c.h.b16 %v607
        %v3097 = vunpack.c.l.b16 %v608
        %v3098 = vunpack.c.h.b16 %v608
        %v3099 = vunpack.c.l.b16 %v609
        %v3100 = vunpack.c.h.b16 %v609
        %v3101 = vunpack.c.l.b16 %v610
        %v3102 = vunpack.c.h.b16 %v610
        %v3103 = vunpack.c.l.b16 %v611
        %v3104 = vunpack.c.h.b16 %v611
        %v3105 = vunpack.c.l.b16 %v612
        %v3106 = vunpack.c.h.b16 %v612
        %v3107 = vunpack.c.l.b16 %v613
        %v3108 = vunpack.c.h.b16 %v613
        %v3109 = vunpack.c.l.b16 %v614
        %v3110 = vunpack.c.h.b16 %v614
        %v3111 = vunpack.c.l.b16 %v615
        %v3112 = vunpack.c.h.b16 %v615
        %v3113 = vunpack.c.l.b16 %v616
        %v3114 = vunpack.c.h.b16 %v616
        %v3115 = vunpack.c.l.b16 %v617
        %v3116 = vunpack.c.h.b16 %v617
        %v3117 = vunpack.c.l.b16 %v618
        %v3118 = vunpack.c.h.b16 %v618
        %v3119 = vunpack.c.l.b16 %v619
        %v3120 = vunpack.c.h.b16 %v619
        %v3121 = vunpack.c.l.b16 %v620
        %v3122 = vunpack.c.h.b16 %v620
        %v3123 = vunpack.c.l.b16 %v621
        %v3124 = vunpack.c.h.b16 %v621
        %v3125 = vunpack.c.l.b16 %v622
        %v3126 = vunpack.c.h.b16 %v622
        %v3127 = vunpack.c.l.b16 %v623
        %v3128 = vunpack.c.h.b16 %v623
        %v3129 = vunpack.c.l.b16 %v624
        %v3130 = vunpack.c.h.b16 %v624
        %v3131 = vunpack.c.l.b16 %v625
        %v3132 = vunpack.c.h.b16 %v625
        %v3133 = vunpack.c.l.b16 %v626
        %v3134 = vunpack.c.h.b16 %v626
        %v3135 = vunpack.c.l.b16 %v627
        %v3136 = vunpack.c.h.b16 %v627
        %v3137 = vunpack.c.l.b16 %v628
        %v3138 = vunpack.c.h.b16 %v628
        %v3139 = vunpack.c.l.b16 %v629
        %v3140 = vunpack.c.h.b16 %v629
        %v3141 = vunpack.c.l.b16 %v630
        %v3142 = vunpack.c.h.b16 %v630
        %v3143 = vunpack.c.l.b16 %v631
        %v3144 = vunpack.c.h.b16 %v631
        %v3145 = vunpack.c.l.b16 %v632
        %v3146 = vunpack.c.h.b16 %v632
        %v3147 = vunpack.c.l.b16 %v633
        %v3148 = vunpack.c.h.b16 %v633
        %v3149 = vunpack.c.l.b16 %v634
        %v3150 = vunpack.c.h.b16 %v634
        %v3151 = vunpack.c.l.b16 %v635
        %v3152 = vunpack.c.h.b16 %v635
        %v3153 = vunpack.c.l.b16 %v636
        %v3154 = vunpack.c.h.b16 %v636
        %v3155 = vunpack.c.l.b16 %v637
        %v3156 = vunpack.c.h.b16 %v637
        %v3157 = vunpack.c.l.b16 %v638
        %v3158 = vunpack.c.h.b16 %v638
        %v3159 = vunpack.c.l.b16 %v639
        %v3160 = vunpack.c.h.b16 %v639
        %v3161 = vunpack.c.l.b16 %v640
        %v3162 = vunpack.c.h.b16 %v640
        %v3163 = vunpack.c.l.b16 %v641
        %v3164 = vunpack.c.h.b16 %v641
        %v3165 = vunpack.c.l.b16 %v642
        %v3166 = vunpack.c.h.b16 %v642
        %v3167 = vunpack.c.l.b16 %v643
        %v3168 = vunpack.c.h.b16 %v643
        %v3169 = vunpack.c.l.b16 %v644
        %v3170 = vunpack.c.h.b16 %v644
        %v3171 = vunpack.c.l.b16 %v645
        %v3172 = vunpack.c.h.b16 %v645
        %v3173 = vunpack.c.l.b16 %v646
        %v3174 = vunpack.c.h.b16 %v646
        %v3175 = vunpack.c.l.b16 %v647
        %v3176 = vunpack.c.h.b16 %v647
        %v3177 = vunpack.c.l.b16 %v648
        %v3178 = vunpack.c.h.b16 %v648
        %v3179 = vunpack.c.l.b16 %v649
        %v3180 = vunpack.c.h.b16 %v649
        %v3181 = vunpack.c.l.b16 %v650
        %v3182 = vunpack.c.h.b16 %v650
        %v3183 = vunpack.c.l.b16 %v651
        %v3184 = vunpack.c.h.b16 %v651
        %v3185 = vunpack.c.l.b16 %v652
        %v3186 = vunpack.c.h.b16 %v652
        %v3187 = vunpack.c.l.b16 %v653
        %v3188 = vunpack.c.h.b16 %v653
        %v3189 = vunpack.c.l.b16 %v654
        %v3190 = vunpack.c.h.b16 %v654
        %v3191 = vunpack.c.l.b16 %v655
        %v3192 = vunpack.c.h.b16 %v655
        %v3193 = vunpack.c.l.b16 %v656
        %v3194 = vunpack.c.h.b16 %v656
        %v3195 = vunpack.c.l.b16 %v657
        %v3196 = vunpack.c.h.b16 %v657
        %v3197 = vunpack.c.l.b16 %v658
        %v3198 = vunpack.c.h.b16 %v658
        %v3199 = vunpack.c.l.b16 %v659
        %v3200 = vunpack.c.h.b16 %v659
        %v3201 = vunpack.c.l.b16 %v660
        %v3202 = vunpack.c.h.b16 %v660
        %v3203 = vunpack.c.l.b16 %v661
        %v3204 = vunpack.c.h.b16 %v661
        %v3205 = vunpack.c.l.b16 %v662
        %v3206 = vunpack.c.h.b16 %v662
        %v3207 = vunpack.c.l.b16 %v663
        %v3208 = vunpack.c.h.b16 %v663
        %v3209 = vunpack.c.l.b16 %v664
        %v3210 = vunpack.c.h.b16 %v664
        %v3211 = vunpack.c.l.b16 %v665
        %v3212 = vunpack.c.h.b16 %v665
        %v3213 = vunpack.c.l.b16 %v666
        %v3214 = vunpack.c.h.b16 %v666
        %v3215 = vunpack.c.l.b16 %v667
        %v3216 = vunpack.c.h.b16 %v667
        %v3217 = vunpack.c.l.b16 %v668
        %v3218 = vunpack.c.h.b16 %v668
        %v3219 = vunpack.c.l.b16 %v669
        %v3220 = vunpack.c.h.b16 %v669
        %v3221 = vunpack.c.l.b16 %v670
        %v3222 = vunpack.c.h.b16 %v670
        %v3223 = vunpack.c.l.b16 %v671
        %v3224 = vunpack.c.h.b16 %v671
        %v3225 = vunpack.c.l.b16 %v672
        %v3226 = vunpack.c.h.b16 %v672
        %v3227 = vunpack.c.l.b16 %v673
        %v3228 = vunpack.c.h.b16 %v673
        %v3229 = vunpack.c.l.b16 %v674
        %v3230 = vunpack.c.h.b16 %v674
        %v3231 = vunpack.c.l.b16 %v675
        %v3232 = vunpack.c.h.b16 %v675
        %v3233 = vunpack.c.l.b16 %v676
        %v3234 = vunpack.c.h.b16 %v676
        %v3235 = vunpack.c.l.b16 %v677
        %v3236 = vunpack.c.h.b16 %v677
        %v3237 = vunpack.c.l.b16 %v678
        %v3238 = vunpack.c.h.b16 %v678
        %v3239 = vunpack.c.l.b16 %v679
        %v3240 = vunpack.c.h.b16 %v679
        %v3241 = vunpack.c.l.b16 %v680
        %v3242 = vunpack.c.h.b16 %v680
        %v3243 = vunpack.c.l.b16 %v681
        %v3244 = vunpack.c.h.b16 %v681
        %v3245 = vunpack.c.l.b16 %v682
        %v3246 = vunpack.c.h.b16 %v682
        %v3247 = vunpack.c.l.b16 %v683
        %v3248 = vunpack.c.h.b16 %v683
        %v3249 = vunpack.c.l.b16 %v684
        %v3250 = vunpack.c.h.b16 %v684
        %v3251 = vunpack.c.l.b16 %v685
        %v3252 = vunpack.c.h.b16 %v685
        %v3253 = vunpack.c.l.b16 %v686
        %v3254 = vunpack.c.h.b16 %v686
        %v3255 = vunpack.c.l.b16 %v687
        %v3256 = vunpack.c.h.b16 %v687
        %v3257 = vunpack.c.l.b16 %v688
        %v3258 = vunpack.c.h.b16 %v688
        %v3259 = vunpack.c.l.b16 %v689
        %v3260 = vunpack.c.h.b16 %v689
        %v3261 = vunpack.c.l.b16 %v690
        %v3262 = vunpack.c.h.b16 %v690
        %v3263 = vunpack.c.l.b16 %v691
        %v3264 = vunpack.c.h.b16 %v691
        %v3265 = vunpack.c.l.b16 %v692
        %v3266 = vunpack.c.h.b16 %v692
        %v3267 = vunpack.c.l.b16 %v693
        %v3268 = vunpack.c.h.b16 %v693
        %v3269 = vunpack.c.l.b16 %v694
        %v3270 = vunpack.c.h.b16 %v694
        %v3271 = vunpack.c.l.b16 %v695
        %v3272 = vunpack.c.h.b16 %v695
        %v3273 = vunpack.c.l.b16 %v696
        %v3274 = vunpack.c.h.b16 %v696
        %v3275 = vunpack.c.l.b16 %v697
        %v3276 = vunpack.c.h.b16 %v697
        %v3277 = vunpack.c.l.b16 %v698
        %v3278 = vunpack.c.h.b16 %v698
        %v3279 = vunpack.c.l.b16 %v699
        %v3280 = vunpack.c.h.b16 %v699
        %v3281 = vunpack.c.l.b16 %v700
        %v3282 = vunpack.c.h.b16 %v700
        %v3283 = vunpack.c.l.b16 %v701
        %v3284 = vunpack.c.h.b16 %v701
        %v3285 = vunpack.c.l.b16 %v702
        %v3286 = vunpack.c.h.b16 %v702
        %v3287 = vunpack.c.l.b16 %v703
        %v3288 = vunpack.c.h.b16 %v703
        %v3289 = vunpack.c.l.b16 %v704
        %v3290 = vunpack.c.h.b16 %v704
        %v3291 = vunpack.c.l.b16 %v705
        %v3292 = vunpack.c.h.b16 %v705
        %v3293 = vunpack.c.l.b16 %v706
        %v3294 = vunpack.c.h.b16 %v706
        %v3295 = vunpack.c.l.b16 %v707
        %v3296 = vunpack.c.h.b16 %v707
        %v3297 = vunpack.c.l.b16 %v708
        %v3298 = vunpack.c.h.b16 %v708
        %v3299 = vunpack.c.l.b16 %v709
        %v3300 = vunpack.c.h.b16 %v709
        %v3301 = vunpack.c.l.b16 %v710
        %v3302 = vunpack.c.h.b16 %v710
        %v3303 = vunpack.c.l.b16 %v711
        %v3304 = vunpack.c.h.b16 %v711
        %v3305 = vunpack.c.l.b16 %v712
        %v3306 = vunpack.c.h.b16 %v712
        %v3307 = vunpack.c.l.b16 %v713
        %v3308 = vunpack.c.h.b16 %v713
        %v3309 = vunpack.c.l.b16 %v714
        %v3310 = vunpack.c.h.b16 %v714
        %v3311 = vunpack.c.l.b16 %v715
        %v3312 = vunpack.c.h.b16 %v715
        %v3313 = vunpack.c.l.b16 %v716
        %v3314 = vunpack.c.h.b16 %v716
        %v3315 = vunpack.c.l.b16 %v717
        %v3316 = vunpack.c.h.b16 %v717
        %v3317 = vunpack.c.l.b16 %v718
        %v3318 = vunpack.c.h.b16 %v718
        %v3319 = vunpack.c.l.b16 %v719
        %v3320 = vunpack.c.h.b16 %v719
        %v3321 = vunpack.c.l.b16 %v720
        %v3322 = vunpack.c.h.b16 %v720
        %v3323 = vunpack.c.l.b16 %v721
        %v3324 = vunpack.c.h.b16 %v721
        %v3325 = vunpack.c.l.b16 %v722
        %v3326 = vunpack.c.h.b16 %v722
        %v3327 = vunpack.c.l.b16 %v723
        %v3328 = vunpack.c.h.b16 %v723
        %v3329 = vunpack.c.l.b16 %v724
        %v3330 = vunpack.c.h.b16 %v724
        %v3331 = vunpack.c.l.b16 %v725
        %v3332 = vunpack.c.h.b16 %v725
        %v3333 = vunpack.c.l.b16 %v726
        %v3334 = vunpack.c.h.b16 %v726
        %v3335 = vunpack.c.l.b16 %v727
        %v3336 = vunpack.c.h.b16 %v727
        %v3337 = vunpack.c.l.b16 %v728
        %v3338 = vunpack.c.h.b16 %v728
        %v3339 = vunpack.c.l.b16 %v729
        %v3340 = vunpack.c.h.b16 %v729
        %v3341 = vunpack.c.l.b16 %v730
        %v3342 = vunpack.c.h.b16 %v730
        %v3343 = vunpack.c.l.b16 %v731
        %v3344 = vunpack.c.h.b16 %v731
        %v3345 = vunpack.c.l.b16 %v732
        %v3346 = vunpack.c.h.b16 %v732
        %v3347 = vunpack.c.l.b16 %v733
        %v3348 = vunpack.c.h.b16 %v733
        %v3349 = vunpack.c.l.b16 %v734
        %v3350 = vunpack.c.h.b16 %v734
        %v3351 = vunpack.c.l.b16 %v735
        %v3352 = vunpack.c.h.b16 %v735
        %v3353 = vunpack.c.l.b16 %v736
        %v3354 = vunpack.c.h.b16 %v736
        %v3355 = vunpack.c.l.b16 %v737
        %v3356 = vunpack.c.h.b16 %v737
        %v3357 = vunpack.c.l.b16 %v738
        %v3358 = vunpack.c.h.b16 %v738
        %v3359 = vunpack.c.l.b16 %v739
        %v3360 = vunpack.c.h.b16 %v739
        %v3361 = vunpack.c.l.b16 %v740
        %v3362 = vunpack.c.h.b16 %v740
        %v3363 = vunpack.c.l.b16 %v741
        %v3364 = vunpack.c.h.b16 %v741
        %v3365 = vunpack.c.l.b16 %v742
        %v3366 = vunpack.c.h.b16 %v742
        %v3367 = vunpack.c.l.b16 %v743
        %v3368 = vunpack.c.h.b16 %v743
        %v3369 = vunpack.c.l.b16 %v744
        %v3370 = vunpack.c.h.b16 %v744
        %v3371 = vunpack.c.l.b16 %v745
        %v3372 = vunpack.c.h.b16 %v745
        %v3373 = vunpack.c.l.b16 %v746
        %v3374 = vunpack.c.h.b16 %v746
        %v3375 = vunpack.c.l.b16 %v747
        %v3376 = vunpack.c.h.b16 %v747
        %v3377 = vunpack.c.l.b16 %v748
        %v3378 = vunpack.c.h.b16 %v748
        %v3379 = vunpack.c.l.b16 %v749
        %v3380 = vunpack.c.h.b16 %v749
        %v3381 = vunpack.c.l.b16 %v750
        %v3382 = vunpack.c.h.b16 %v750
        %v3383 = vunpack.c.l.b16 %v751
        %v3384 = vunpack.c.h.b16 %v751
        %v3385 = vunpack.c.l.b16 %v752
        %v3386 = vunpack.c.h.b16 %v752
        %v3387 = vunpack.c.l.b16 %v753
        %v3388 = vunpack.c.h.b16 %v753
        %v3389 = vunpack.c.l.b16 %v754
        %v3390 = vunpack.c.h.b16 %v754
        %v3391 = vunpack.c.l.b16 %v755
        %v3392 = vunpack.c.h.b16 %v755
        %v3393 = vunpack.c.l.b16 %v756
        %v3394 = vunpack.c.h.b16 %v756
        %v3395 = vunpack.c.l.b16 %v757
        %v3396 = vunpack.c.h.b16 %v757
        %v3397 = vunpack.c.l.b16 %v758
        %v3398 = vunpack.c.h.b16 %v758
        %v3399 = vunpack.c.l.b16 %v759
        %v3400 = vunpack.c.h.b16 %v759
        %v3401 = vunpack.c.l.b16 %v760
        %v3402 = vunpack.c.h.b16 %v760
        %v3403 = vunpack.c.l.b16 %v761
        %v3404 = vunpack.c.h.b16 %v761
        %v3405 = vunpack.c.l.b16 %v762
        %v3406 = vunpack.c.h.b16 %v762
        %v3407 = vunpack.c.l.b16 %v763
        %v3408 = vunpack.c.h.b16 %v763
        %v3409 = vunpack.c.l.b16 %v764
        %v3410 = vunpack.c.h.b16 %v764
        %v3411 = vunpack.c.l.b16 %v765
        %v3412 = vunpack.c.h.b16 %v765
        %v3413 = vunpack.c.l.b16 %v766
        %v3414 = vunpack.c.h.b16 %v766
        %v3415 = vunpack.c.l.b16 %v767
        %v3416 = vunpack.c.h.b16 %v767
        %v3417 = vunpack.c.l.b16 %v768
        %v3418 = vunpack.c.h.b16 %v768
        %v3419 = vunpack.c.l.b16 %v769
        %v3420 = vunpack.c.h.b16 %v769
        %v3421 = vunpack.c.l.b16 %v770
        %v3422 = vunpack.c.h.b16 %v770
        %v3423 = vunpack.c.l.b16 %v771
        %v3424 = vunpack.c.h.b16 %v771
        %v3425 = vunpack.c.l.b16 %v772
        %v3426 = vunpack.c.h.b16 %v772
        %v3427 = vunpack.c.l.b16 %v773
        %v3428 = vunpack.c.h.b16 %v773
        %v3429 = vunpack.c.l.b16 %v774
        %v3430 = vunpack.c.h.b16 %v774
        %v3431 = vunpack.c.l.b16 %v775
        %v3432 = vunpack.c.h.b16 %v775
        %v3433 = vunpack.c.l.b16 %v776
        %v3434 = vunpack.c.h.b16 %v776
        %v3435 = vunpack.c.l.b16 %v777
        %v3436 = vunpack.c.h.b16 %v777
        %v3437 = vunpack.c.l.b16 %v778
        %v3438 = vunpack.c.h.b16 %v778
        %v3439 = vunpack.c.l.b16 %v779
        %v3440 = vunpack.c.h.b16 %v779
        %v3441 = vunpack.c.l.b16 %v780
        %v3442 = vunpack.c.h.b16 %v780
        %v3443 = vunpack.c.l.b16 %v781
        %v3444 = vunpack.c.h.b16 %v781
        %v3445 = vunpack.c.l.b16 %v782
        %v3446 = vunpack.c.h.b16 %v782
        %v3447 = vunpack.c.l.b16 %v783
        %v3448 = vunpack.c.h.b16 %v783
        %v3449 = vunpack.c.l.b16 %v784
        %v3450 = vunpack.c.h.b16 %v784
        %v3451 = vunpack.c.l.b16 %v785
        %v3452 = vunpack.c.h.b16 %v785
        %v3453 = vunpack.c.l.b16 %v786
        %v3454 = vunpack.c.h.b16 %v786
        %v3455 = vunpack.c.l.b16 %v787
        %v3456 = vunpack.c.h.b16 %v787
        %v3457 = vunpack.c.l.b16 %v788
        %v3458 = vunpack.c.h.b16 %v788
        %v3459 = vunpack.c.l.b16 %v789
        %v3460 = vunpack.c.h.b16 %v789
        %v3461 = vunpack.c.l.b16 %v790
        %v3462 = vunpack.c.h.b16 %v790
        %v3463 = vunpack.c.l.b16 %v791
        %v3464 = vunpack.c.h.b16 %v791
        %v3465 = vunpack.c.l.b16 %v792
        %v3466 = vunpack.c.h.b16 %v792
        %v3467 = vunpack.c.l.b16 %v793
        %v3468 = vunpack.c.h.b16 %v793
        %v3469 = vunpack.c.l.b16 %v794
        %v3470 = vunpack.c.h.b16 %v794
        %v3471 = vunpack.c.l.b16 %v795
        %v3472 = vunpack.c.h.b16 %v795
        %v3473 = vunpack.c.l.b16 %v796
        %v3474 = vunpack.c.h.b16 %v796
        %v3475 = vunpack.c.l.b16 %v797
        %v3476 = vunpack.c.h.b16 %v797
        %v3477 = vunpack.c.l.b16 %v798
        %v3478 = vunpack.c.h.b16 %v798
        %v3479 = vunpack.c.l.b16 %v799
        %v3480 = vunpack.c.h.b16 %v799
        %v3481 = vunpack.c.l.b16 %v800
        %v3482 = vunpack.c.h.b16 %v800
        %v3483 = vunpack.c.l.b16 %v801
        %v3484 = vunpack.c.h.b16 %v801
        %v3485 = vunpack.c.l.b16 %v802
        %v3486 = vunpack.c.h.b16 %v802
        %v3487 = vunpack.c.l.b16 %v803
        %v3488 = vunpack.c.h.b16 %v803
        %v3489 = vunpack.c.l.b16 %v804
        %v3490 = vunpack.c.h.b16 %v804
        %v3491 = vunpack.c.l.b16 %v805
        %v3492 = vunpack.c.h.b16 %v805
        %v3493 = vunpack.c.l.b16 %v806
        %v3494 = vunpack.c.h.b16 %v806
        %v3495 = vunpack.c.l.b16 %v807
        %v3496 = vunpack.c.h.b16 %v807
        %v3497 = vunpack.c.l.b16 %v808
        %v3498 = vunpack.c.h.b16 %v808
        %v3499 = vunpack.c.l.b16 %v809
        %v3500 = vunpack.c.h.b16 %v809
        %v3501 = vunpack.c.l.b16 %v810
        %v3502 = vunpack.c.h.b16 %v810
        %v3503 = vunpack.c.l.b16 %v811
        %v3504 = vunpack.c.h.b16 %v811
        %v3505 = vunpack.c.l.b16 %v812
        %v3506 = vunpack.c.h.b16 %v812
        %v3507 = vunpack.c.l.b16 %v813
        %v3508 = vunpack.c.h.b16 %v813
        %v3509 = vunpack.c.l.b16 %v814
        %v3510 = vunpack.c.h.b16 %v814
        %v3511 = vunpack.c.l.b16 %v815
        %v3512 = vunpack.c.h.b16 %v815
        %v3513 = vunpack.c.l.b16 %v816
        %v3514 = vunpack.c.h.b16 %v816
        %v3515 = vunpack.c.l.b16 %v817
        %v3516 = vunpack.c.h.b16 %v817
        %v3517 = vunpack.c.l.b16 %v818
        %v3518 = vunpack.c.h.b16 %v818
        %v3519 = vunpack.c.l.b16 %v819
        %v3520 = vunpack.c.h.b16 %v819
        %v3521 = vunpack.c.l.b16 %v820
        %v3522 = vunpack.c.h.b16 %v820
        %v3523 = vunpack.c.l.b16 %v821
        %v3524 = vunpack.c.h.b16 %v821
        %v3525 = vunpack.c.l.b16 %v822
        %v3526 = vunpack.c.h.b16 %v822
        %v3527 = vunpack.c.l.b16 %v823
        %v3528 = vunpack.c.h.b16 %v823
        %v3529 = vunpack.c.l.b16 %v824
        %v3530 = vunpack.c.h.b16 %v824
        %v3531 = vunpack.c.l.b16 %v825
        %v3532 = vunpack.c.h.b16 %v825
        %v3533 = vunpack.c.l.b16 %v826
        %v3534 = vunpack.c.h.b16 %v826
        %v3535 = vunpack.c.l.b16 %v827
        %v3536 = vunpack.c.h.b16 %v827
        %v3537 = vunpack.c.l.b16 %v828
        %v3538 = vunpack.c.h.b16 %v828
        %v3539 = vunpack.c.l.b16 %v829
        %v3540 = vunpack.c.h.b16 %v829
        %v3541 = vunpack.c.l.b16 %v830
        %v3542 = vunpack.c.h.b16 %v830
        %v3543 = vunpack.c.l.b16 %v831
        %v3544 = vunpack.c.h.b16 %v831
        %v3545 = vunpack.c.l.b16 %v832
        %v3546 = vunpack.c.h.b16 %v832
        %v3547 = vunpack.c.l.b16 %v833
        %v3548 = vunpack.c.h.b16 %v833
        %v3549 = vunpack.c.l.b16 %v834
        %v3550 = vunpack.c.h.b16 %v834
        %v3551 = vunpack.c.l.b16 %v835
        %v3552 = vunpack.c.h.b16 %v835
        %v3553 = vunpack.c.l.b16 %v836
        %v3554 = vunpack.c.h.b16 %v836
        %v3555 = vunpack.c.l.b16 %v837
        %v3556 = vunpack.c.h.b16 %v837
        %v3557 = vunpack.c.l.b16 %v838
        %v3558 = vunpack.c.h.b16 %v838
        %v3559 = vunpack.c.l.b16 %v839
        %v3560 = vunpack.c.h.b16 %v839
        %v3561 = vunpack.c.l.b16 %v840
        %v3562 = vunpack.c.h.b16 %v840
        %v3563 = vunpack.c.l.b16 %v841
        %v3564 = vunpack.c.h.b16 %v841
        %v3565 = vunpack.c.l.b16 %v842
        %v3566 = vunpack.c.h.b16 %v842
        %v3567 = vunpack.c.l.b16 %v843
        %v3568 = vunpack.c.h.b16 %v843
        %v3569 = vunpack.c.l.b16 %v844
        %v3570 = vunpack.c.h.b16 %v844
        %v3571 = vunpack.c.l.b16 %v845
        %v3572 = vunpack.c.h.b16 %v845
        %v3573 = vunpack.c.l.b16 %v846
        %v3574 = vunpack.c.h.b16 %v846
        %v3575 = vunpack.c.l.b16 %v847
        %v3576 = vunpack.c.h.b16 %v847
        %v3577 = vunpack.c.l.b16 %v848
        %v3578 = vunpack.c.h.b16 %v848
        %v3579 = vunpack.c.l.b16 %v849
        %v3580 = vunpack.c.h.b16 %v849
        %v3581 = vunpack.c.l.b16 %v850
        %v3582 = vunpack.c.h.b16 %v850
        %v3583 = vunpack.c.l.b16 %v851
        %v3584 = vunpack.c.h.b16 %v851
        %v3585 = vunpack.c.l.b16 %v852
        %v3586 = vunpack.c.h.b16 %v852
        %v3587 = vunpack.c.l.b16 %v853
        %v3588 = vunpack.c.h.b16 %v853
        %v3589 = vunpack.c.l.b16 %v854
        %v3590 = vunpack.c.h.b16 %v854
        %v3591 = vunpack.c.l.b16 %v855
        %v3592 = vunpack.c.h.b16 %v855
        %v3593 = vunpack.c.l.b16 %v856
        %v3594 = vunpack.c.h.b16 %v856
        %v3595 = vunpack.c.l.b16 %v857
        %v3596 = vunpack.c.h.b16 %v857
        %v3597 = vunpack.c.l.b16 %v858
        %v3598 = vunpack.c.h.b16 %v858
        %v3599 = vunpack.c.l.b16 %v859
        %v3600 = vunpack.c.h.b16 %v859
        %v3601 = vunpack.c.l.b16 %v860
        %v3602 = vunpack.c.h.b16 %v860
        %v3603 = vunpack.c.l.b16 %v861
        %v3604 = vunpack.c.h.b16 %v861
        %v3605 = vunpack.c.l.b16 %v862
        %v3606 = vunpack.c.h.b16 %v862
        %v3607 = vunpack.c.l.b16 %v863
        %v3608 = vunpack.c.h.b16 %v863
        %v3609 = vunpack.c.l.b16 %v864
        %v3610 = vunpack.c.h.b16 %v864
        %v3611 = vunpack.c.l.b16 %v865
        %v3612 = vunpack.c.h.b16 %v865
        %v3613 = vunpack.c.l.b16 %v866
        %v3614 = vunpack.c.h.b16 %v866
        %v3615 = vunpack.c.l.b16 %v867
        %v3616 = vunpack.c.h.b16 %v867
        %v3617 = vunpack.c.l.b16 %v868
        %v3618 = vunpack.c.h.b16 %v868
        %v3619 = vunpack.c.l.b16 %v869
        %v3620 = vunpack.c.h.b16 %v869
        %v3621 = vunpack.c.l.b16 %v870
        %v3622 = vunpack.c.h.b16 %v870
        %v3623 = vunpack.c.l.b16 %v871
        %v3624 = vunpack.c.h.b16 %v871
        %v3625 = vunpack.c.l.b16 %v872
        %v3626 = vunpack.c.h.b16 %v872
        %v3627 = vunpack.c.l.b16 %v873
        %v3628 = vunpack.c.h.b16 %v873
        %v3629 = vunpack.c.l.b16 %v874
        %v3630 = vunpack.c.h.b16 %v874
        %v3631 = vunpack.c.l.b16 %v875
        %v3632 = vunpack.c.h.b16 %v875
        %v3633 = vunpack.c.l.b16 %v876
        %v3634 = vunpack.c.h.b16 %v876
        %v3635 = vunpack.c.l.b16 %v877
        %v3636 = vunpack.c.h.b16 %v877
        %v3637 = vunpack.c.l.b16 %v878
        %v3638 = vunpack.c.h.b16 %v878
        %v3639 = vunpack.c.l.b16 %v879
        %v3640 = vunpack.c.h.b16 %v879
        %v3641 = vunpack.c.l.b16 %v880
        %v3642 = vunpack.c.h.b16 %v880
        %v3643 = vunpack.c.l.b16 %v881
        %v3644 = vunpack.c.h.b16 %v881
        %v3645 = vunpack.c.l.b16 %v882
        %v3646 = vunpack.c.h.b16 %v882
        %v3647 = vunpack.c.l.b16 %v883
        %v3648 = vunpack.c.h.b16 %v883
        %v3649 = vunpack.c.l.b16 %v884
        %v3650 = vunpack.c.h.b16 %v884
        %v3651 = vunpack.c.l.b16 %v885
        %v3652 = vunpack.c.h.b16 %v885
        %v3653 = vunpack.c.l.b16 %v886
        %v3654 = vunpack.c.h.b16 %v886
        %v3655 = vunpack.c.l.b16 %v887
        %v3656 = vunpack.c.h.b16 %v887
        %v3657 = vunpack.c.l.b16 %v888
        %v3658 = vunpack.c.h.b16 %v888
        %v3659 = vunpack.c.l.b16 %v889
        %v3660 = vunpack.c.h.b16 %v889
        %v3661 = vunpack.c.l.b16 %v890
        %v3662 = vunpack.c.h.b16 %v890
        %v3663 = vunpack.c.l.b16 %v891
        %v3664 = vunpack.c.h.b16 %v891
        %v3665 = vunpack.c.l.b16 %v892
        %v3666 = vunpack.c.h.b16 %v892
        %v3667 = vunpack.c.l.b16 %v893
        %v3668 = vunpack.c.h.b16 %v893
        %v3669 = vunpack.c.l.b16 %v894
        %v3670 = vunpack.c.h.b16 %v894
        %v3671 = vunpack.c.l.b16 %v895
        %v3672 = vunpack.c.h.b16 %v895
        %v3673 = vunpack.c.l.b16 %v896
        %v3674 = vunpack.c.h.b16 %v896
        %v3675 = vunpack.c.l.b16 %v897
        %v3676 = vunpack.c.h.b16 %v897
        %v3677 = vunpack.c.l.b16 %v898
        %v3678 = vunpack.c.h.b16 %v898
        %v3679 = vunpack.c.l.b16 %v899
        %v3680 = vunpack.c.h.b16 %v899
        %v3681 = vunpack.c.l.b16 %v900
        %v3682 = vunpack.c.h.b16 %v900
        %v3683 = vunpack.c.l.b16 %v901
        %v3684 = vunpack.c.h.b16 %v901
        %v3685 = vunpack.c.l.b16 %v902
        %v3686 = vunpack.c.h.b16 %v902
        %v3687 = vunpack.c.l.b16 %v903
        %v3688 = vunpack.c.h.b16 %v903
        %v3689 = vunpack.c.l.b16 %v904
        %v3690 = vunpack.c.h.b16 %v904
        %v3691 = vunpack.c.l.b16 %v905
        %v3692 = vunpack.c.h.b16 %v905
        %v3693 = vunpack.c.l.b16 %v906
        %v3694 = vunpack.c.h.b16 %v906
        %v3695 = vunpack.c.l.b16 %v907
        %v3696 = vunpack.c.h.b16 %v907
        %v3697 = vunpack.c.l.b16 %v908
        %v3698 = vunpack.c.h.b16 %v908
        %v3699 = vunpack.c.l.b16 %v909
        %v3700 = vunpack.c.h.b16 %v909
        %v3701 = vunpack.c.l.b16 %v910
        %v3702 = vunpack.c.h.b16 %v910
        %v3703 = vunpack.c.l.b16 %v911
        %v3704 = vunpack.c.h.b16 %v911
        %v3705 = vunpack.c.l.b16 %v912
        %v3706 = vunpack.c.h.b16 %v912
        %v3707 = vunpack.c.l.b16 %v913
        %v3708 = vunpack.c.h.b16 %v913
        %v3709 = vunpack.c.l.b16 %v914
        %v3710 = vunpack.c.h.b16 %v914
        %v3711 = vunpack.c.l.b16 %v915
        %v3712 = vunpack.c.h.b16 %v915
        %v3713 = vunpack.c.l.b16 %v916
        %v3714 = vunpack.c.h.b16 %v916
        %v3715 = vunpack.c.l.b16 %v917
        %v3716 = vunpack.c.h.b16 %v917
        %v3717 = vunpack.c.l.b16 %v918
        %v3718 = vunpack.c.h.b16 %v918
        %v3719 = vunpack.c.l.b16 %v919
        %v3720 = vunpack.c.h.b16 %v919
        %v3721 = vunpack.c.l.b16 %v920
        %v3722 = vunpack.c.h.b16 %v920
        %v3723 = vunpack.c.l.b16 %v921
        %v3724 = vunpack.c.h.b16 %v921
        %v3725 = vunpack.c.l.b16 %v922
        %v3726 = vunpack.c.h.b16 %v922
        %v3727 = vunpack.c.l.b16 %v923
        %v3728 = vunpack.c.h.b16 %v923
        %v3729 = vunpack.c.l.b16 %v924
        %v3730 = vunpack.c.h.b16 %v924
        %v3731 = vunpack.c.l.b16 %v925
        %v3732 = vunpack.c.h.b16 %v925
        %v3733 = vunpack.c.l.b16 %v926
        %v3734 = vunpack.c.h.b16 %v926
        %v3735 = vunpack.c.l.b16 %v927
        %v3736 = vunpack.c.h.b16 %v927
        %v3737 = vunpack.c.l.b16 %v928
        %v3738 = vunpack.c.h.b16 %v928
        %v3739 = vunpack.c.l.b16 %v929
        %v3740 = vunpack.c.h.b16 %v929
        %v3741 = vunpack.c.l.b16 %v930
        %v3742 = vunpack.c.h.b16 %v930
        %v3743 = vunpack.c.l.b16 %v931
        %v3744 = vunpack.c.h.b16 %v931
        %v3745 = vunpack.c.l.b16 %v932
        %v3746 = vunpack.c.h.b16 %v932
        %v3747 = vunpack.c.l.b16 %v933
        %v3748 = vunpack.c.h.b16 %v933
        %v3749 = vunpack.c.l.b16 %v934
        %v3750 = vunpack.c.h.b16 %v934
        %v3751 = vunpack.c.l.b16 %v935
        %v3752 = vunpack.c.h.b16 %v935
        %v3753 = vunpack.c.l.b16 %v936
        %v3754 = vunpack.c.h.b16 %v936
        %v3755 = vunpack.c.l.b16 %v937
        %v3756 = vunpack.c.h.b16 %v937
        %v3757 = vunpack.c.l.b16 %v938
        %v3758 = vunpack.c.h.b16 %v938
        %v3759 = vunpack.c.l.b16 %v939
        %v3760 = vunpack.c.h.b16 %v939
        %v3761 = vunpack.c.l.b16 %v940
        %v3762 = vunpack.c.h.b16 %v940
        %v3763 = vunpack.c.l.b16 %v941
        %v3764 = vunpack.c.h.b16 %v941
        %v3765 = vunpack.c.l.b16 %v942
        %v3766 = vunpack.c.h.b16 %v942
        %v3767 = vunpack.c.l.b16 %v943
        %v3768 = vunpack.c.h.b16 %v943
        %v3769 = vunpack.c.l.b16 %v944
        %v3770 = vunpack.c.h.b16 %v944
        %v3771 = vunpack.c.l.b16 %v945
        %v3772 = vunpack.c.h.b16 %v945
        %v3773 = vunpack.c.l.b16 %v946
        %v3774 = vunpack.c.h.b16 %v946
        %v3775 = vunpack.c.l.b16 %v947
        %v3776 = vunpack.c.h.b16 %v947
        %v3777 = vunpack.c.l.b16 %v948
        %v3778 = vunpack.c.h.b16 %v948
        %v3779 = vunpack.c.l.b16 %v949
        %v3780 = vunpack.c.h.b16 %v949
        %v3781 = vunpack.c.l.b16 %v950
        %v3782 = vunpack.c.h.b16 %v950
        %v3783 = vunpack.c.l.b16 %v951
        %v3784 = vunpack.c.h.b16 %v951
        %v3785 = vunpack.c.l.b16 %v952
        %v3786 = vunpack.c.h.b16 %v952
        %v3787 = vunpack.c.l.b16 %v953
        %v3788 = vunpack.c.h.b16 %v953
        %v3789 = vunpack.c.l.b16 %v954
        %v3790 = vunpack.c.h.b16 %v954
        %v3791 = vunpack.c.l.b16 %v955
        %v3792 = vunpack.c.h.b16 %v955
        %v3793 = vunpack.c.l.b16 %v956
        %v3794 = vunpack.c.h.b16 %v956
        %v3795 = vunpack.c.l.b16 %v957
        %v3796 = vunpack.c.h.b16 %v957
        %v3797 = vunpack.c.l.b16 %v958
        %v3798 = vunpack.c.h.b16 %v958
        %v3799 = vunpack.c.l.b16 %v959
        %v3800 = vunpack.c.h.b16 %v959
        %v3801 = vunpack.c.l.b16 %v960
        %v3802 = vunpack.c.h.b16 %v960
        %v3803 = vunpack.c.l.b16 %v961
        %v3804 = vunpack.c.h.b16 %v961
        %v3805 = vunpack.c.l.b16 %v962
        %v3806 = vunpack.c.h.b16 %v962
        %v3807 = vunpack.c.l.b16 %v963
        %v3808 = vunpack.c.h.b16 %v963
        %v3809 = vunpack.c.l.b16 %v964
        %v3810 = vunpack.c.h.b16 %v964
        %v3811 = vunpack.c.l.b16 %v965
        %v3812 = vunpack.c.h.b16 %v965
        %v3813 = vunpack.c.l.b16 %v966
        %v3814 = vunpack.c.h.b16 %v966
        %v3815 = vunpack.c.l.b16 %v967
        %v3816 = vunpack.c.h.b16 %v967
        %v3817 = vunpack.c.l.b16 %v968
        %v3818 = vunpack.c.h.b16 %v968
        %v3819 = vunpack.c.l.b16 %v969
        %v3820 = vunpack.c.h.b16 %v969
        %v3821 = vunpack.c.l.b16 %v970
        %v3822 = vunpack.c.h.b16 %v970
        %v3823 = vunpack.c.l.b16 %v971
        %v3824 = vunpack.c.h.b16 %v971
        %v3825 = vunpack.c.l.b16 %v972
        %v3826 = vunpack.c.h.b16 %v972
        %v3827 = vunpack.c.l.b16 %v973
        %v3828 = vunpack.c.h.b16 %v973
        %v3829 = vunpack.c.l.b16 %v974
        %v3830 = vunpack.c.h.b16 %v974
        %v3831 = vunpack.c.l.b16 %v975
        %v3832 = vunpack.c.h.b16 %v975
        %v3833 = vunpack.c.l.b16 %v976
        %v3834 = vunpack.c.h.b16 %v976
        %v3835 = vunpack.c.l.b16 %v977
        %v3836 = vunpack.c.h.b16 %v977
        %v3837 = vunpack.c.l.b16 %v978
        %v3838 = vunpack.c.h.b16 %v978
        %v3839 = vunpack.c.l.b16 %v979
        %v3840 = vunpack.c.h.b16 %v979
        %v3841 = vunpack.c.l.b16 %v980
        %v3842 = vunpack.c.h.b16 %v980
        %v3843 = vunpack.c.l.b16 %v981
        %v3844 = vunpack.c.h.b16 %v981
        %v3845 = vunpack.c.l.b16 %v982
        %v3846 = vunpack.c.h.b16 %v982
        %v3847 = vunpack.c.l.b16 %v983
        %v3848 = vunpack.c.h.b16 %v983
        %v3849 = vunpack.c.l.b16 %v984
        %v3850 = vunpack.c.h.b16 %v984
        %v3851 = vunpack.c.l.b16 %v985
        %v3852 = vunpack.c.h.b16 %v985
        %v3853 = vunpack.c.l.b16 %v986
        %v3854 = vunpack.c.h.b16 %v986
        %v3855 = vunpack.c.l.b16 %v987
        %v3856 = vunpack.c.h.b16 %v987
        %v3857 = vunpack.c.l.b16 %v988
        %v3858 = vunpack.c.h.b16 %v988
        %v3859 = vunpack.c.l.b16 %v989
        %v3860 = vunpack.c.h.b16 %v989
        %v3861 = vunpack.c.l.b16 %v990
        %v3862 = vunpack.c.h.b16 %v990
        %v3863 = vunpack.c.l.b16 %v991
        %v3864 = vunpack.c.h.b16 %v991
        %v3865 = vunpack.c.l.b16 %v992
        %v3866 = vunpack.c.h.b16 %v992
        %v3867 = vunpack.c.l.b16 %v993
        %v3868 = vunpack.c.h.b16 %v993
        %v3869 = vunpack.c.l.b16 %v994
        %v3870 = vunpack.c.h.b16 %v994
        %v3871 = vunpack.c.l.b16 %v995
        %v3872 = vunpack.c.h.b16 %v995
        %v3873 = vunpack.c.l.b16 %v996
        %v3874 = vunpack.c.h.b16 %v996
        %v3875 = vunpack.c.l.b16 %v997
        %v3876 = vunpack.c.h.b16 %v997
        %v3877 = vunpack.c.l.b16 %v998
        %v3878 = vunpack.c.h.b16 %v998
        %v3879 = vunpack.c.l.b16 %v999
        %v3880 = vunpack.c.h.b16 %v999
        %v3881 = vunpack.c.l.b16 %v1000
        %v3882 = vunpack.c.h.b16 %v1000
        %v3883 = vunpack.c.l.b16 %v1001
        %v3884 = vunpack.c.h.b16 %v1001
        %v3885 = vunpack.c.l.b16 %v1002
        %v3886 = vunpack.c.h.b16 %v1002
        %v3887 = vunpack.c.l.b16 %v1003
        %v3888 = vunpack.c.h.b16 %v1003
        %v3889 = vunpack.c.l.b16 %v1004
        %v3890 = vunpack.c.h.b16 %v1004
        %v3891 = vunpack.c.l.b16 %v1005
        %v3892 = vunpack.c.h.b16 %v1005
        %v3893 = vunpack.c.l.b16 %v1006
        %v3894 = vunpack.c.h.b16 %v1006
        %v3895 = vunpack.c.l.b16 %v1007
        %v3896 = vunpack.c.h.b16 %v1007
        %v3897 = vunpack.c.l.b16 %v1008
        %v3898 = vunpack.c.h.b16 %v1008
        %v3899 = vunpack.c.l.b16 %v1009
        %v3900 = vunpack.c.h.b16 %v1009
        %v3901 = vunpack.c.l.b16 %v1010
        %v3902 = vunpack.c.h.b16 %v1010
        %v3903 = vunpack.c.l.b16 %v1011
        %v3904 = vunpack.c.h.b16 %v1011
        %v3905 = vunpack.c.l.b16 %v1012
        %v3906 = vunpack.c.h.b16 %v1012
        %v3907 = vunpack.c.l.b16 %v1013
        %v3908 = vunpack.c.h.b16 %v1013
        %v3909 = vunpack.c.l.b16 %v1014
        %v3910 = vunpack.c.h.b16 %v1014
        %v3911 = vunpack.c.l.b16 %v1015
        %v3912 = vunpack.c.h.b16 %v1015
        %v3913 = vunpack.c.l.b16 %v1016
        %v3914 = vunpack.c.h.b16 %v1016
        %v3915 = vunpack.c.l.b16 %v1017
        %v3916 = vunpack.c.h.b16 %v1017
        %v3917 = vunpack.c.l.b16 %v1018
        %v3918 = vunpack.c.h.b16 %v1018
        %v3919 = vunpack.c.l.b16 %v1019
        %v3920 = vunpack.c.h.b16 %v1019
        %v3921 = vunpack.c.l.b16 %v1020
        %v3922 = vunpack.c.h.b16 %v1020
        %v3923 = vunpack.c.l.b16 %v1021
        %v3924 = vunpack.c.h.b16 %v1021
        %v3925 = vunpack.c.l.b16 %v1022
        %v3926 = vunpack.c.h.b16 %v1022
        %v3927 = vunpack.c.l.b16 %v1023
        %v3928 = vunpack.c.h.b16 %v1023
        %v3929 = vunpack.c.l.b16 %v1024
        %v3930 = vunpack.c.h.b16 %v1024
        %v3931 = vunpack.c.l.b16 %v1025
        %v3932 = vunpack.c.h.b16 %v1025
        %v3933 = vunpack.c.l.b16 %v1026
        %v3934 = vunpack.c.h.b16 %v1026
        %v3935 = vunpack.c.l.b16 %v1027
        %v3936 = vunpack.c.h.b16 %v1027
        %v3937 = vunpack.c.l.b16 %v1028
        %v3938 = vunpack.c.h.b16 %v1028
        %v3939 = vunpack.c.l.b16 %v1029
        %v3940 = vunpack.c.h.b16 %v1029
        %v3941 = vunpack.c.l.b16 %v1030
        %v3942 = vunpack.c.h.b16 %v1030
        %v3943 = vunpack.c.l.b16 %v1031
        %v3944 = vunpack.c.h.b16 %v1031
        %v3945 = vunpack.c.l.b16 %v1032
        %v3946 = vunpack.c.h.b16 %v1032
        %v3947 = vunpack.c.l.b16 %v1033
        %v3948 = vunpack.c.h.b16 %v1033
        %v3949 = vunpack.c.l.b16 %v1034
        %v3950 = vunpack.c.h.b16 %v1034
        %v3951 = vunpack.c.l.b16 %v1035
        %v3952 = vunpack.c.h.b16 %v1035
        %v3953 = vunpack.c.l.b16 %v1036
        %v3954 = vunpack.c.h.b16 %v1036
        %v3955 = vunpack.c.l.b16 %v1037
        %v3956 = vunpack.c.h.b16 %v1037
        %v3957 = vunpack.c.l.b16 %v1038
        %v3958 = vunpack.c.h.b16 %v1038
        %v3959 = vunpack.c.l.b16 %v1039
        %v3960 = vunpack.c.h.b16 %v1039
        %v3961 = vunpack.c.l.b16 %v1040
        %v3962 = vunpack.c.h.b16 %v1040
        %v3963 = vunpack.c.l.b16 %v1041
        %v3964 = vunpack.c.h.b16 %v1041
        %v3965 = vunpack.c.l.b16 %v1042
        %v3966 = vunpack.c.h.b16 %v1042
        %v3967 = vunpack.c.l.b16 %v1043
        %v3968 = vunpack.c.h.b16 %v1043
        %v3969 = vunpack.c.l.b16 %v1044
        %v3970 = vunpack.c.h.b16 %v1044
        %v3971 = vunpack.c.l.b16 %v1045
        %v3972 = vunpack.c.h.b16 %v1045
        %v3973 = vunpack.c.l.b16 %v1046
        %v3974 = vunpack.c.h.b16 %v1046
        %v3975 = vunpack.c.l.b16 %v1047
        %v3976 = vunpack.c.h.b16 %v1047
        %v3977 = vunpack.c.l.b16 %v1048
        %v3978 = vunpack.c.h.b16 %v1048
        %v3979 = vunpack.c.l.b16 %v1049
        %v3980 = vunpack.c.h.b16 %v1049
        %v3981 = vunpack.c.l.b16 %v1050
        %v3982 = vunpack.c.h.b16 %v1050
        %v3983 = vunpack.c.l.b16 %v1051
        %v3984 = vunpack.c.h.b16 %v1051
        %v3985 = vunpack.c.l.b16 %v1052
        %v3986 = vunpack.c.h.b16 %v1052
        %v3987 = vunpack.c.l.b16 %v1053
        %v3988 = vunpack.c.h.b16 %v1053
        %v3989 = vunpack.c.l.b16 %v1054
        %v3990 = vunpack.c.h.b16 %v1054
        %v3991 = vunpack.c.l.b16 %v1055
        %v3992 = vunpack.c.h.b16 %v1055
        %v3993 = vunpack.c.l.b16 %v1056
        %v3994 = vunpack.c.h.b16 %v1056
        %v3995 = vunpack.c.l.b16 %v1057
        %v3996 = vunpack.c.h.b16 %v1057
        %v3997 = vunpack.c.l.b16 %v1058
        %v3998 = vunpack.c.h.b16 %v1058
        %v3999 = vunpack.c.l.b16 %v1059
        %v4000 = vunpack.c.h.b16 %v1059
        %v4001 = vunpack.c.l.b16 %v1060
        %v4002 = vunpack.c.h.b16 %v1060
        %v4003 = vunpack.c.l.b16 %v1061
        %v4004 = vunpack.c.h.b16 %v1061
        %v4005 = vunpack.c.l.b16 %v1062
        %v4006 = vunpack.c.h.b16 %v1062
        %v4007 = vunpack.c.l.b16 %v1063
        %v4008 = vunpack.c.h.b16 %v1063
        %v4009 = vunpack.c.l.b16 %v1064
        %v4010 = vunpack.c.h.b16 %v1064
        %v4011 = vunpack.c.l.b16 %v1065
        %v4012 = vunpack.c.h.b16 %v1065
        %v4013 = vunpack.c.l.b16 %v1066
        %v4014 = vunpack.c.h.b16 %v1066
        %v4015 = vunpack.c.l.b16 %v1067
        %v4016 = vunpack.c.h.b16 %v1067
        %v4017 = vunpack.c.l.b16 %v1068
        %v4018 = vunpack.c.h.b16 %v1068
        %v4019 = vunpack.c.l.b16 %v1069
        %v4020 = vunpack.c.h.b16 %v1069
        %v4021 = vunpack.c.l.b16 %v1070
        %v4022 = vunpack.c.h.b16 %v1070
        %v4023 = vunpack.c.l.b16 %v1071
        %v4024 = vunpack.c.h.b16 %v1071
        %v4025 = vunpack.c.l.b16 %v1072
        %v4026 = vunpack.c.h.b16 %v1072
        %v4027 = vunpack.c.l.b16 %v1073
        %v4028 = vunpack.c.h.b16 %v1073
        %v4029 = vunpack.c.l.b16 %v1074
        %v4030 = vunpack.c.h.b16 %v1074
        %v4031 = vunpack.c.l.b16 %v1075
        %v4032 = vunpack.c.h.b16 %v1075
        %v4033 = vunpack.c.l.b16 %v1076
        %v4034 = vunpack.c.h.b16 %v1076
        %v4035 = vunpack.c.l.b16 %v1077
        %v4036 = vunpack.c.h.b16 %v1077
        %v4037 = vunpack.c.l.b16 %v1078
        %v4038 = vunpack.c.h.b16 %v1078
        %v4039 = vunpack.c.l.b16 %v1079
        %v4040 = vunpack.c.h.b16 %v1079
        %v4041 = vunpack.c.l.b16 %v1080
        %v4042 = vunpack.c.h.b16 %v1080
        %v4043 = vunpack.c.l.b16 %v1081
        %v4044 = vunpack.c.h.b16 %v1081
        %v4045 = vunpack.c.l.b16 %v1082
        %v4046 = vunpack.c.h.b16 %v1082
        %v4047 = vunpack.c.l.b16 %v1083
        %v4048 = vunpack.c.h.b16 %v1083
        %v4049 = vunpack.c.l.b16 %v1084
        %v4050 = vunpack.c.h.b16 %v1084
        %v4051 = vunpack.c.l.b16 %v1085
        %v4052 = vunpack.c.h.b16 %v1085
        %v4053 = vunpack.c.l.b16 %v1086
        %v4054 = vunpack.c.h.b16 %v1086
        %v4055 = vunpack.c.l.b16 %v1087
        %v4056 = vunpack.c.h.b16 %v1087
        %v4057 = vunpack.c.l.b16 %v1088
        %v4058 = vunpack.c.h.b16 %v1088
        %v4059 = vunpack.c.l.b16 %v1089
        %v4060 = vunpack.c.h.b16 %v1089
        %v4061 = vunpack.c.l.b16 %v1090
        %v4062 = vunpack.c.h.b16 %v1090
        %v4063 = vunpack.c.l.b16 %v1091
        %v4064 = vunpack.c.h.b16 %v1091
        %v4065 = vunpack.c.l.b16 %v1092
        %v4066 = vunpack.c.h.b16 %v1092
        %v4067 = vunpack.c.l.b16 %v1093
        %v4068 = vunpack.c.h.b16 %v1093
        %v4069 = vunpack.c.l.b16 %v1094
        %v4070 = vunpack.c.h.b16 %v1094
        %v4071 = vunpack.c.l.b16 %v1095
        %v4072 = vunpack.c.h.b16 %v1095
        %v4073 = vunpack.c.l.b16 %v1096
        %v4074 = vunpack.c.h.b16 %v1096
        %v4075 = vunpack.c.l.b16 %v1097
        %v4076 = vunpack.c.h.b16 %v1097
        %v4077 = vunpack.c.l.b16 %v1098
        %v4078 = vunpack.c.h.b16 %v1098
        %v4079 = vunpack.c.l.b16 %v1099
        %v4080 = vunpack.c.h.b16 %v1099
        %v4081 = vunpack.c.l.b16 %v1100
        %v4082 = vunpack.c.h.b16 %v1100
        %v4083 = vunpack.c.l.b16 %v1101
        %v4084 = vunpack.c.h.b16 %v1101
        %v4085 = vunpack.c.l.b16 %v1102
        %v4086 = vunpack.c.h.b16 %v1102
        %v4087 = vunpack.c.l.b16 %v1103
        %v4088 = vunpack.c.h.b16 %v1103
        %v4089 = vunpack.c.l.b16 %v1104
        %v4090 = vunpack.c.h.b16 %v1104
        %v4091 = vunpack.c.l.b16 %v1105
        %v4092 = vunpack.c.h.b16 %v1105
        %v4093 = vunpack.c.l.b16 %v1106
        %v4094 = vunpack.c.h.b16 %v1106
        %v4095 = vunpack.c.l.b16 %v1107
        %v4096 = vunpack.c.h.b16 %v1107
        %v4097 = vunpack.c.l.b16 %v1108
        %v4098 = vunpack.c.h.b16 %v1108
        %v4099 = vunpack.c.l.b16 %v1109
        %v4100 = vunpack.c.h.b16 %v1109
        %v4101 = vunpack.c.l.b16 %v1110
        %v4102 = vunpack.c.h.b16 %v1110
        %v4103 = vunpack.c.l.b16 %v1111
        %v4104 = vunpack.c.h.b16 %v1111
        %v4105 = vunpack.c.l.b16 %v1112
        %v4106 = vunpack.c.h.b16 %v1112
        %v4107 = vunpack.c.l.b16 %v1113
        %v4108 = vunpack.c.h.b16 %v1113
        %v4109 = vunpack.c.l.b16 %v1114
        %v4110 = vunpack.c.h.b16 %v1114
        %v4111 = vunpack.c.l.b16 %v1115
        %v4112 = vunpack.c.h.b16 %v1115
        %v4113 = vunpack.c.l.b16 %v1116
        %v4114 = vunpack.c.h.b16 %v1116
        %v4115 = vunpack.c.l.b16 %v1117
        %v4116 = vunpack.c.h.b16 %v1117
        %v4117 = vunpack.c.l.b16 %v1118
        %v4118 = vunpack.c.h.b16 %v1118
        %v4119 = vunpack.c.l.b16 %v1119
        %v4120 = vunpack.c.h.b16 %v1119
        %v4121 = vunpack.c.l.b16 %v1120
        %v4122 = vunpack.c.h.b16 %v1120
        %v4123 = vunpack.c.l.b16 %v1121
        %v4124 = vunpack.c.h.b16 %v1121
        %v4125 = vunpack.c.l.b16 %v1122
        %v4126 = vunpack.c.h.b16 %v1122
        %v4127 = vunpack.c.l.b16 %v1123
        %v4128 = vunpack.c.h.b16 %v1123
        %v4129 = vunpack.c.l.b16 %v1124
        %v4130 = vunpack.c.h.b16 %v1124
        %v4131 = vunpack.c.l.b16 %v1125
        %v4132 = vunpack.c.h.b16 %v1125
        %v4133 = vunpack.c.l.b16 %v1126
        %v4134 = vunpack.c.h.b16 %v1126
        %v4135 = vunpack.c.l.b16 %v1127
        %v4136 = vunpack.c.h.b16 %v1127
        %v4137 = vunpack.c.l.b16 %v1128
        %v4138 = vunpack.c.h.b16 %v1128
        %v4139 = vunpack.c.l.b16 %v1129
        %v4140 = vunpack.c.h.b16 %v1129
        %v4141 = vunpack.c.l.b16 %v1130
        %v4142 = vunpack.c.h.b16 %v1130
        %v4143 = vunpack.c.l.b16 %v1131
        %v4144 = vunpack.c.h.b16 %v1131
        %v4145 = vunpack.c.l.b16 %v1132
        %v4146 = vunpack.c.h.b16 %v1132
        %v4147 = vunpack.c.l.b16 %v1133
        %v4148 = vunpack.c.h.b16 %v1133
        %v4149 = vunpack.c.l.b16 %v1134
        %v4150 = vunpack.c.h.b16 %v1134
        %v4151 = vunpack.c.l.b16 %v1135
        %v4152 = vunpack.c.h.b16 %v1135
        %v4153 = vunpack.c.l.b16 %v1136
        %v4154 = vunpack.c.h.b16 %v1136
        %v4155 = vunpack.c.l.b16 %v1137
        %v4156 = vunpack.c.h.b16 %v1137
        %v4157 = vunpack.c.l.b16 %v1138
        %v4158 = vunpack.c.h.b16 %v1138
        %v4159 = vunpack.c.l.b16 %v1139
        %v4160 = vunpack.c.h.b16 %v1139
        %v4161 = vunpack.c.l.b16 %v1140
        %v4162 = vunpack.c.h.b16 %v1140
        %v4163 = vunpack.c.l.b16 %v1141
        %v4164 = vunpack.c.h.b16 %v1141
        %v4165 = vunpack.c.l.b16 %v1142
        %v4166 = vunpack.c.h.b16 %v1142
        %v4167 = vunpack.c.l.b16 %v1143
        %v4168 = vunpack.c.h.b16 %v1143
        %v4169 = vunpack.c.l.b16 %v1144
        %v4170 = vunpack.c.h.b16 %v1144
        %v4171 = vunpack.c.l.b16 %v1145
        %v4172 = vunpack.c.h.b16 %v1145
        %v4173 = vunpack.c.l.b16 %v1146
        %v4174 = vunpack.c.h.b16 %v1146
        %v4175 = vunpack.c.l.b16 %v1147
        %v4176 = vunpack.c.h.b16 %v1147
        %v4177 = vunpack.c.l.b16 %v1148
        %v4178 = vunpack.c.h.b16 %v1148
        %v4179 = vunpack.c.l.b16 %v1149
        %v4180 = vunpack.c.h.b16 %v1149
        %v4181 = vunpack.c.l.b16 %v1150
        %v4182 = vunpack.c.h.b16 %v1150
        %v4183 = vunpack.c.l.b16 %v1151
        %v4184 = vunpack.c.h.b16 %v1151
        %v4185 = vunpack.c.l.b16 %v1152
        %v4186 = vunpack.c.h.b16 %v1152
        %v4187 = vunpack.c.l.b16 %v1153
        %v4188 = vunpack.c.h.b16 %v1153
        %v4189 = vunpack.c.l.b16 %v1154
        %v4190 = vunpack.c.h.b16 %v1154
        %v4191 = vunpack.c.l.b16 %v1155
        %v4192 = vunpack.c.h.b16 %v1155
        %v4193 = vunpack.c.l.b16 %v1156
        %v4194 = vunpack.c.h.b16 %v1156
        %v4195 = vunpack.c.l.b16 %v1157
        %v4196 = vunpack.c.h.b16 %v1157
        %v4197 = vunpack.c.l.b16 %v1158
        %v4198 = vunpack.c.h.b16 %v1158
        %v4199 = vunpack.c.l.b16 %v1159
        %v4200 = vunpack.c.h.b16 %v1159
        %v4201 = vunpack.c.l.b16 %v1160
        %v4202 = vunpack.c.h.b16 %v1160
        %v4203 = vunpack.c.l.b16 %v1161
        %v4204 = vunpack.c.h.b16 %v1161
        %v4205 = vunpack.c.l.b16 %v1162
        %v4206 = vunpack.c.h.b16 %v1162
        %v4207 = vunpack.c.l.b16 %v1163
        %v4208 = vunpack.c.h.b16 %v1163
        %v4209 = vunpack.c.l.b16 %v1164
        %v4210 = vunpack.c.h.b16 %v1164
        %v4211 = vunpack.c.l.b16 %v1165
        %v4212 = vunpack.c.h.b16 %v1165
        %v4213 = vunpack.c.l.b16 %v1166
        %v4214 = vunpack.c.h.b16 %v1166
        %v4215 = vunpack.c.l.b16 %v1167
        %v4216 = vunpack.c.h.b16 %v1167
        %v4217 = vunpack.c.l.b16 %v1168
        %v4218 = vunpack.c.h.b16 %v1168
        %v4219 = vunpack.c.l.b16 %v1169
        %v4220 = vunpack.c.h.b16 %v1169
        %v4221 = vunpack.c.l.b16 %v1170
        %v4222 = vunpack.c.h.b16 %v1170
        %v4223 = vunpack.c.l.b16 %v1171
        %v4224 = vunpack.c.h.b16 %v1171
        %v4225 = vunpack.c.l.b16 %v1172
        %v4226 = vunpack.c.h.b16 %v1172
        %v4227 = vunpack.c.l.b16 %v1173
        %v4228 = vunpack.c.h.b16 %v1173
        %v4229 = vunpack.c.l.b16 %v1174
        %v4230 = vunpack.c.h.b16 %v1174
        %v4231 = vunpack.c.l.b16 %v1175
        %v4232 = vunpack.c.h.b16 %v1175
        %v4233 = vunpack.c.l.b16 %v1176
        %v4234 = vunpack.c.h.b16 %v1176
        %v4235 = vunpack.c.l.b16 %v1177
        %v4236 = vunpack.c.h.b16 %v1177
        %v4237 = vunpack.c.l.b16 %v1178
        %v4238 = vunpack.c.h.b16 %v1178
        %v4239 = vunpack.c.l.b16 %v1179
        %v4240 = vunpack.c.h.b16 %v1179
        %v4241 = vunpack.c.l.b16 %v1180
        %v4242 = vunpack.c.h.b16 %v1180
        %v4243 = vunpack.c.l.b16 %v1181
        %v4244 = vunpack.c.h.b16 %v1181
        %v4245 = vunpack.c.l.b16 %v1182
        %v4246 = vunpack.c.h.b16 %v1182
        %v4247 = vunpack.c.l.b16 %v1183
        %v4248 = vunpack.c.h.b16 %v1183
        %v4249 = vunpack.c.l.b16 %v1184
        %v4250 = vunpack.c.h.b16 %v1184
        %v4251 = vunpack.c.l.b16 %v1185
        %v4252 = vunpack.c.h.b16 %v1185
        %v4253 = vunpack.c.l.b16 %v1186
        %v4254 = vunpack.c.h.b16 %v1186
        %v4255 = vunpack.c.l.b16 %v1187
        %v4256 = vunpack.c.h.b16 %v1187
        %v4257 = vunpack.c.l.b16 %v1188
        %v4258 = vunpack.c.h.b16 %v1188
        %v4259 = vunpack.c.l.b16 %v1189
        %v4260 = vunpack.c.h.b16 %v1189
        %v4261 = vunpack.c.l.b16 %v1190
        %v4262 = vunpack.c.h.b16 %v1190
        %v4263 = vunpack.c.l.b16 %v1191
        %v4264 = vunpack.c.h.b16 %v1191
        %v4265 = vunpack.c.l.b16 %v1192
        %v4266 = vunpack.c.h.b16 %v1192
        %v4267 = vunpack.c.l.b16 %v1193
        %v4268 = vunpack.c.h.b16 %v1193
        %v4269 = vunpack.c.l.b16 %v1194
        %v4270 = vunpack.c.h.b16 %v1194
        %v4271 = vunpack.c.l.b16 %v1195
        %v4272 = vunpack.c.h.b16 %v1195
        %v4273 = vunpack.c.l.b16 %v1196
        %v4274 = vunpack.c.h.b16 %v1196
        %v4275 = vunpack.c.l.b16 %v1197
        %v4276 = vunpack.c.h.b16 %v1197
        %v4277 = vunpack.c.l.b16 %v1198
        %v4278 = vunpack.c.h.b16 %v1198
        %v4279 = vunpack.c.l.b16 %v1199
        %v4280 = vunpack.c.h.b16 %v1199
        %v4281 = vunpack.c.l.b16 %v1200
        %v4282 = vunpack.c.h.b16 %v1200
        %v4283 = vunpack.c.l.b16 %v1201
        %v4284 = vunpack.c.h.b16 %v1201
        %v4285 = vunpack.c.l.b16 %v1202
        %v4286 = vunpack.c.h.b16 %v1202
        %v4287 = vunpack.c.l.b16 %v1203
        %v4288 = vunpack.c.h.b16 %v1203
        %v4289 = vunpack.c.l.b16 %v1204
        %v4290 = vunpack.c.h.b16 %v1204
        %v4291 = vunpack.c.l.b16 %v1205
        %v4292 = vunpack.c.h.b16 %v1205
        %v4293 = vunpack.c.l.b16 %v1206
        %v4294 = vunpack.c.h.b16 %v1206
        %v4295 = vunpack.c.l.b16 %v1207
        %v4296 = vunpack.c.h.b16 %v1207
        %v4297 = vunpack.c.l.b16 %v1208
        %v4298 = vunpack.c.h.b16 %v1208
        %v4299 = vunpack.c.l.b16 %v1209
        %v4300 = vunpack.c.h.b16 %v1209
        %v4301 = vunpack.c.l.b16 %v1210
        %v4302 = vunpack.c.h.b16 %v1210
        %v4303 = vunpack.c.l.b16 %v1211
        %v4304 = vunpack.c.h.b16 %v1211
        %v4305 = vunpack.c.l.b16 %v1212
        %v4306 = vunpack.c.h.b16 %v1212
        %v4307 = vunpack.c.l.b16 %v1213
        %v4308 = vunpack.c.h.b16 %v1213
        %v4309 = vunpack.c.l.b16 %v1214
        %v4310 = vunpack.c.h.b16 %v1214
        %v4311 = vunpack.c.l.b16 %v1215
        %v4312 = vunpack.c.h.b16 %v1215
        %v4313 = vunpack.c.l.b16 %v1216
        %v4314 = vunpack.c.h.b16 %v1216
        %v4315 = vunpack.c.l.b16 %v1217
        %v4316 = vunpack.c.h.b16 %v1217
        %v4317 = vunpack.c.l.b16 %v1218
        %v4318 = vunpack.c.h.b16 %v1218
        %v4319 = vunpack.c.l.b16 %v1219
        %v4320 = vunpack.c.h.b16 %v1219
        %v4321 = vunpack.c.l.b16 %v1220
        %v4322 = vunpack.c.h.b16 %v1220
        %v4323 = vunpack.c.l.b16 %v1221
        %v4324 = vunpack.c.h.b16 %v1221
        %v4325 = vunpack.c.l.b16 %v1222
        %v4326 = vunpack.c.h.b16 %v1222
        %v4327 = vunpack.c.l.b16 %v1223
        %v4328 = vunpack.c.h.b16 %v1223
        %v4329 = vunpack.c.l.b16 %v1224
        %v4330 = vunpack.c.h.b16 %v1224
        %v4331 = vunpack.c.l.b16 %v1225
        %v4332 = vunpack.c.h.b16 %v1225
        %v4333 = vunpack.c.l.b16 %v1226
        %v4334 = vunpack.c.h.b16 %v1226
        %v4335 = vunpack.c.l.b16 %v1227
        %v4336 = vunpack.c.h.b16 %v1227
        %v4337 = vunpack.c.l.b16 %v1228
        %v4338 = vunpack.c.h.b16 %v1228
        %v4339 = vunpack.c.l.b16 %v1229
        %v4340 = vunpack.c.h.b16 %v1229
        %v4341 = vunpack.c.l.b16 %v1230
        %v4342 = vunpack.c.h.b16 %v1230
        %v4343 = vunpack.c.l.b16 %v1231
        %v4344 = vunpack.c.h.b16 %v1231
        %v4345 = vunpack.c.l.b16 %v1232
        %v4346 = vunpack.c.h.b16 %v1232
        %v4347 = vunpack.c.l.b16 %v1233
        %v4348 = vunpack.c.h.b16 %v1233
        %v4349 = vunpack.c.l.b16 %v1234
        %v4350 = vunpack.c.h.b16 %v1234
        %v4351 = vunpack.c.l.b16 %v1235
        %v4352 = vunpack.c.h.b16 %v1235
        %v4353 = vunpack.c.l.b16 %v1236
        %v4354 = vunpack.c.h.b16 %v1236
        %v4355 = vunpack.c.l.b16 %v1237
        %v4356 = vunpack.c.h.b16 %v1237
        %v4357 = vunpack.c.l.b16 %v1238
        %v4358 = vunpack.c.h.b16 %v1238
        %v4359 = vunpack.c.l.b16 %v1239
        %v4360 = vunpack.c.h.b16 %v1239
        %v4361 = vunpack.c.l.b16 %v1240
        %v4362 = vunpack.c.h.b16 %v1240
        %v4363 = vunpack.c.l.b16 %v1241
        %v4364 = vunpack.c.h.b16 %v1241
        %v4365 = vunpack.c.l.b16 %v1242
        %v4366 = vunpack.c.h.b16 %v1242
        %v4367 = vunpack.c.l.b16 %v1243
        %v4368 = vunpack.c.h.b16 %v1243
        %v4369 = vunpack.c.l.b16 %v1244
        %v4370 = vunpack.c.h.b16 %v1244
        %v4371 = vunpack.c.l.b16 %v1245
        %v4372 = vunpack.c.h.b16 %v1245
        %v4373 = vunpack.c.l.b16 %v1246
        %v4374 = vunpack.c.h.b16 %v1246
        %v4375 = vunpack.c.l.b16 %v1247
        %v4376 = vunpack.c.h.b16 %v1247
        %v4377 = vunpack.c.l.b16 %v1248
        %v4378 = vunpack.c.h.b16 %v1248
        %v4379 = vunpack.c.l.b16 %v1249
        %v4380 = vunpack.c.h.b16 %v1249
        %v4381 = vunpack.c.l.b16 %v1250
        %v4382 = vunpack.c.h.b16 %v1250
        %v4383 = vunpack.c.l.b16 %v1251
        %v4384 = vunpack.c.h.b16 %v1251
        %v4385 = vunpack.c.l.b16 %v1252
        %v4386 = vunpack.c.h.b16 %v1252
        %v4387 = vunpack.c.l.b16 %v1253
        %v4388 = vunpack.c.h.b16 %v1253
        %v4389 = vunpack.c.l.b16 %v1254
        %v4390 = vunpack.c.h.b16 %v1254
        %v4391 = vunpack.c.l.b16 %v1255
        %v4392 = vunpack.c.h.b16 %v1255
        %v4393 = vunpack.c.l.b16 %v1256
        %v4394 = vunpack.c.h.b16 %v1256
        %v4395 = vunpack.c.l.b16 %v1257
        %v4396 = vunpack.c.h.b16 %v1257
        %v4397 = vunpack.c.l.b16 %v1258
        %v4398 = vunpack.c.h.b16 %v1258
        %v4399 = vunpack.c.l.b16 %v1259
        %v4400 = vunpack.c.h.b16 %v1259
        %v4401 = vunpack.c.l.b16 %v1260
        %v4402 = vunpack.c.h.b16 %v1260
        %v4403 = vunpack.c.l.b16 %v1261
        %v4404 = vunpack.c.h.b16 %v1261
        %v4405 = vunpack.c.l.b16 %v1262
        %v4406 = vunpack.c.h.b16 %v1262
        %v4407 = vpack.c.b16 %v2363, %v2359
        %v4408 = vpack.c.b16 %v2364, %v2360
        %v4409 = vpack.c.b16 %v2365, %v2361
        %v4410 = vpack.c.b16 %v2366, %v2362
        %v4411 = vpack.c.b16 %v2371, %v2367
        %v4412 = vpack.c.b16 %v2372, %v2368
        %v4413 = vpack.c.b16 %v2373, %v2369
        %v4414 = vpack.c.b16 %v2374, %v2370
        %v4415 = vpack.c.b16 %v2379, %v2375
        %v4416 = vpack.c.b16 %v2380, %v2376
        %v4417 = vpack.c.b16 %v2381, %v2377
        %v4418 = vpack.c.b16 %v2382, %v2378
        %v4419 = vpack.c.b16 %v2387, %v2383
        %v4420 = vpack.c.b16 %v2388, %v2384
        %v4421 = vpack.c.b16 %v2389, %v2385
        %v4422 = vpack.c.b16 %v2390, %v2386
        %v4423 = vpack.c.b16 %v2395, %v2391
        %v4424 = vpack.c.b16 %v2396, %v2392
        %v4425 = vpack.c.b16 %v2397, %v2393
        %v4426 = vpack.c.b16 %v2398, %v2394
        %v4427 = vpack.c.b16 %v2403, %v2399
        %v4428 = vpack.c.b16 %v2404, %v2400
        %v4429 = vpack.c.b16 %v2405, %v2401
        %v4430 = vpack.c.b16 %v2406, %v2402
        %v4431 = vpack.c.b16 %v2411, %v2407
        %v4432 = vpack.c.b16 %v2412, %v2408
        %v4433 = vpack.c.b16 %v2413, %v2409
        %v4434 = vpack.c.b16 %v2414, %v2410
        %v4435 = vpack.c.b16 %v2419, %v2415
        %v4436 = vpack.c.b16 %v2420, %v2416
        %v4437 = vpack.c.b16 %v2421, %v2417
        %v4438 = vpack.c.b16 %v2422, %v2418
        %v4439 = vpack.c.b16 %v2427, %v2423
        %v4440 = vpack.c.b16 %v2428, %v2424
        %v4441 = vpack.c.b16 %v2429, %v2425
        %v4442 = vpack.c.b16 %v2430, %v2426
        %v4443 = vpack.c.b16 %v2435, %v2431
        %v4444 = vpack.c.b16 %v2436, %v2432
        %v4445 = vpack.c.b16 %v2437, %v2433
        %v4446 = vpack.c.b16 %v2438, %v2434
        %v4447 = vpack.c.b16 %v2443, %v2439
        %v4448 = vpack.c.b16 %v2444, %v2440
        %v4449 = vpack.c.b16 %v2445, %v2441
        %v4450 = vpack.c.b16 %v2446, %v2442
        %v4451 = vpack.c.b16 %v2451, %v2447
        %v4452 = vpack.c.b16 %v2452, %v2448
        %v4453 = vpack.c.b16 %v2453, %v2449
        %v4454 = vpack.c.b16 %v2454, %v2450
        %v4455 = vpack.c.b16 %v2459, %v2455
        %v4456 = vpack.c.b16 %v2460, %v2456
        %v4457 = vpack.c.b16 %v2461, %v2457
        %v4458 = vpack.c.b16 %v2462, %v2458
        %v4459 = vpack.c.b16 %v2467, %v2463
        %v4460 = vpack.c.b16 %v2468, %v2464
        %v4461 = vpack.c.b16 %v2469, %v2465
        %v4462 = vpack.c.b16 %v2470, %v2466
        %v4463 = vpack.c.b16 %v2475, %v2471
        %v4464 = vpack.c.b16 %v2476, %v2472
        %v4465 = vpack.c.b16 %v2477, %v2473
        %v4466 = vpack.c.b16 %v2478, %v2474
        %v4467 = vpack.c.b16 %v2483, %v2479
        %v4468 = vpack.c.b16 %v2484, %v2480
        %v4469 = vpack.c.b16 %v2485, %v2481
        %v4470 = vpack.c.b16 %v2486, %v2482
        %v4471 = vpack.c.b16 %v2491, %v2487
        %v4472 = vpack.c.b16 %v2492, %v2488
        %v4473 = vpack.c.b16 %v2493, %v2489
        %v4474 = vpack.c.b16 %v2494, %v2490
        %v4475 = vpack.c.b16 %v2499, %v2495
        %v4476 = vpack.c.b16 %v2500, %v2496
        %v4477 = vpack.c.b16 %v2501, %v2497
        %v4478 = vpack.c.b16 %v2502, %v2498
        %v4479 = vpack.c.b16 %v2507, %v2503
        %v4480 = vpack.c.b16 %v2508, %v2504
        %v4481 = vpack.c.b16 %v2509, %v2505
        %v4482 = vpack.c.b16 %v2510, %v2506
        %v4483 = vpack.c.b16 %v2515, %v2511
        %v4484 = vpack.c.b16 %v2516, %v2512
        %v4485 = vpack.c.b16 %v2517, %v2513
        %v4486 = vpack.c.b16 %v2518, %v2514
        %v4487 = vpack.c.b16 %v2523, %v2519
        %v4488 = vpack.c.b16 %v2524, %v2520
        %v4489 = vpack.c.b16 %v2525, %v2521
        %v4490 = vpack.c.b16 %v2526, %v2522
        %v4491 = vpack.c.b16 %v2531, %v2527
        %v4492 = vpack.c.b16 %v2532, %v2528
        %v4493 = vpack.c.b16 %v2533, %v2529
        %v4494 = vpack.c.b16 %v2534, %v2530
        %v4495 = vpack.c.b16 %v2539, %v2535
        %v4496 = vpack.c.b16 %v2540, %v2536
        %v4497 = vpack.c.b16 %v2541, %v2537
        %v4498 = vpack.c.b16 %v2542, %v2538
        %v4499 = vpack.c.b16 %v2547, %v2543
        %v4500 = vpack.c.b16 %v2548, %v2544
        %v4501 = vpack.c.b16 %v2549, %v2545
        %v4502 = vpack.c.b16 %v2550, %v2546
        %v4503 = vpack.c.b16 %v2555, %v2551
        %v4504 = vpack.c.b16 %v2556, %v2552
        %v4505 = vpack.c.b16 %v2557, %v2553
        %v4506 = vpack.c.b16 %v2558, %v2554
        %v4507 = vpack.c.b16 %v2563, %v2559
        %v4508 = vpack.c.b16 %v2564, %v2560
        %v4509 = vpack.c.b16 %v2565, %v2561
        %v4510 = vpack.c.b16 %v2566, %v2562
        %v4511 = vpack.c.b16 %v2571, %v2567
        %v4512 = vpack.c.b16 %v2572, %v2568
        %v4513 = vpack.c.b16 %v2573, %v2569
        %v4514 = vpack.c.b16 %v2574, %v2570
        %v4515 = vpack.c.b16 %v2579, %v2575
        %v4516 = vpack.c.b16 %v2580, %v2576
        %v4517 = vpack.c.b16 %v2581, %v2577
        %v4518 = vpack.c.b16 %v2582, %v2578
        %v4519 = vpack.c.b16 %v2587, %v2583
        %v4520 = vpack.c.b16 %v2588, %v2584
        %v4521 = vpack.c.b16 %v2589, %v2585
        %v4522 = vpack.c.b16 %v2590, %v2586
        %v4523 = vpack.c.b16 %v2595, %v2591
        %v4524 = vpack.c.b16 %v2596, %v2592
        %v4525 = vpack.c.b16 %v2597, %v2593
        %v4526 = vpack.c.b16 %v2598, %v2594
        %v4527 = vpack.c.b16 %v2603, %v2599
        %v4528 = vpack.c.b16 %v2604, %v2600
        %v4529 = vpack.c.b16 %v2605, %v2601
        %v4530 = vpack.c.b16 %v2606, %v2602
        %v4531 = vpack.c.b16 %v2611, %v2607
        %v4532 = vpack.c.b16 %v2612, %v2608
        %v4533 = vpack.c.b16 %v2613, %v2609
        %v4534 = vpack.c.b16 %v2614, %v2610
        %v4535 = vpack.c.b16 %v2619, %v2615
        %v4536 = vpack.c.b16 %v2620, %v2616
        %v4537 = vpack.c.b16 %v2621, %v2617
        %v4538 = vpack.c.b16 %v2622, %v2618
        %v4539 = vpack.c.b16 %v2627, %v2623
        %v4540 = vpack.c.b16 %v2628, %v2624
        %v4541 = vpack.c.b16 %v2629, %v2625
        %v4542 = vpack.c.b16 %v2630, %v2626
        %v4543 = vpack.c.b16 %v2635, %v2631
        %v4544 = vpack.c.b16 %v2636, %v2632
        %v4545 = vpack.c.b16 %v2637, %v2633
        %v4546 = vpack.c.b16 %v2638, %v2634
        %v4547 = vpack.c.b16 %v2643, %v2639
        %v4548 = vpack.c.b16 %v2644, %v2640
        %v4549 = vpack.c.b16 %v2645, %v2641
        %v4550 = vpack.c.b16 %v2646, %v2642
        %v4551 = vpack.c.b16 %v2651, %v2647
        %v4552 = vpack.c.b16 %v2652, %v2648
        %v4553 = vpack.c.b16 %v2653, %v2649
        %v4554 = vpack.c.b16 %v2654, %v2650
        %v4555 = vpack.c.b16 %v2659, %v2655
        %v4556 = vpack.c.b16 %v2660, %v2656
        %v4557 = vpack.c.b16 %v2661, %v2657
        %v4558 = vpack.c.b16 %v2662, %v2658
        %v4559 = vpack.c.b16 %v2667, %v2663
        %v4560 = vpack.c.b16 %v2668, %v2664
        %v4561 = vpack.c.b16 %v2669, %v2665
        %v4562 = vpack.c.b16 %v2670, %v2666
        %v4563 = vpack.c.b16 %v2675, %v2671
        %v4564 = vpack.c.b16 %v2676, %v2672
        %v4565 = vpack.c.b16 %v2677, %v2673
        %v4566 = vpack.c.b16 %v2678, %v2674
        %v4567 = vpack.c.b16 %v2683, %v2679
        %v4568 = vpack.c.b16 %v2684, %v2680
        %v4569 = vpack.c.b16 %v2685, %v2681
        %v4570 = vpack.c.b16 %v2686, %v2682
        %v4571 = vpack.c.b16 %v2691, %v2687
        %v4572 = vpack.c.b16 %v2692, %v2688
        %v4573 = vpack.c.b16 %v2693, %v2689
        %v4574 = vpack.c.b16 %v2694, %v2690
        %v4575 = vpack.c.b16 %v2699, %v2695
        %v4576 = vpack.c.b16 %v2700, %v2696
        %v4577 = vpack.c.b16 %v2701, %v2697
        %v4578 = vpack.c.b16 %v2702, %v2698
        %v4579 = vpack.c.b16 %v2707, %v2703
        %v4580 = vpack.c.b16 %v2708, %v2704
        %v4581 = vpack.c.b16 %v2709, %v2705
        %v4582 = vpack.c.b16 %v2710, %v2706
        %v4583 = vpack.c.b16 %v2715, %v2711
        %v4584 = vpack.c.b16 %v2716, %v2712
        %v4585 = vpack.c.b16 %v2717, %v2713
        %v4586 = vpack.c.b16 %v2718, %v2714
        %v4587 = vpack.c.b16 %v2723, %v2719
        %v4588 = vpack.c.b16 %v2724, %v2720
        %v4589 = vpack.c.b16 %v2725, %v2721
        %v4590 = vpack.c.b16 %v2726, %v2722
        %v4591 = vpack.c.b16 %v2731, %v2727
        %v4592 = vpack.c.b16 %v2732, %v2728
        %v4593 = vpack.c.b16 %v2733, %v2729
        %v4594 = vpack.c.b16 %v2734, %v2730
        %v4595 = vpack.c.b16 %v2739, %v2735
        %v4596 = vpack.c.b16 %v2740, %v2736
        %v4597 = vpack.c.b16 %v2741, %v2737
        %v4598 = vpack.c.b16 %v2742, %v2738
        %v4599 = vpack.c.b16 %v2747, %v2743
        %v4600 = vpack.c.b16 %v2748, %v2744
        %v4601 = vpack.c.b16 %v2749, %v2745
        %v4602 = vpack.c.b16 %v2750, %v2746
        %v4603 = vpack.c.b16 %v2755, %v2751
        %v4604 = vpack.c.b16 %v2756, %v2752
        %v4605 = vpack.c.b16 %v2757, %v2753
        %v4606 = vpack.c.b16 %v2758, %v2754
        %v4607 = vpack.c.b16 %v2763, %v2759
        %v4608 = vpack.c.b16 %v2764, %v2760
        %v4609 = vpack.c.b16 %v2765, %v2761
        %v4610 = vpack.c.b16 %v2766, %v2762
        %v4611 = vpack.c.b16 %v2771, %v2767
        %v4612 = vpack.c.b16 %v2772, %v2768
        %v4613 = vpack.c.b16 %v2773, %v2769
        %v4614 = vpack.c.b16 %v2774, %v2770
        %v4615 = vpack.c.b16 %v2779, %v2775
        %v4616 = vpack.c.b16 %v2780, %v2776
        %v4617 = vpack.c.b16 %v2781, %v2777
        %v4618 = vpack.c.b16 %v2782, %v2778
        %v4619 = vpack.c.b16 %v2787, %v2783
        %v4620 = vpack.c.b16 %v2788, %v2784
        %v4621 = vpack.c.b16 %v2789, %v2785
        %v4622 = vpack.c.b16 %v2790, %v2786
        %v4623 = vpack.c.b16 %v2795, %v2791
        %v4624 = vpack.c.b16 %v2796, %v2792
        %v4625 = vpack.c.b16 %v2797, %v2793
        %v4626 = vpack.c.b16 %v2798, %v2794
        %v4627 = vpack.c.b16 %v2803, %v2799
        %v4628 = vpack.c.b16 %v2804, %v2800
        %v4629 = vpack.c.b16 %v2805, %v2801
        %v4630 = vpack.c.b16 %v2806, %v2802
        %v4631 = vpack.c.b16 %v2811, %v2807
        %v4632 = vpack.c.b16 %v2812, %v2808
        %v4633 = vpack.c.b16 %v2813, %v2809
        %v4634 = vpack.c.b16 %v2814, %v2810
        %v4635 = vpack.c.b16 %v2819, %v2815
        %v4636 = vpack.c.b16 %v2820, %v2816
        %v4637 = vpack.c.b16 %v2821, %v2817
        %v4638 = vpack.c.b16 %v2822, %v2818
        %v4639 = vpack.c.b16 %v2827, %v2823
        %v4640 = vpack.c.b16 %v2828, %v2824
        %v4641 = vpack.c.b16 %v2829, %v2825
        %v4642 = vpack.c.b16 %v2830, %v2826
        %v4643 = vpack.c.b16 %v2835, %v2831
        %v4644 = vpack.c.b16 %v2836, %v2832
        %v4645 = vpack.c.b16 %v2837, %v2833
        %v4646 = vpack.c.b16 %v2838, %v2834
        %v4647 = vpack.c.b16 %v2843, %v2839
        %v4648 = vpack.c.b16 %v2844, %v2840
        %v4649 = vpack.c.b16 %v2845, %v2841
        %v4650 = vpack.c.b16 %v2846, %v2842
        %v4651 = vpack.c.b16 %v2851, %v2847
        %v4652 = vpack.c.b16 %v2852, %v2848
        %v4653 = vpack.c.b16 %v2853, %v2849
        %v4654 = vpack.c.b16 %v2854, %v2850
        %v4655 = vpack.c.b16 %v2859, %v2855
        %v4656 = vpack.c.b16 %v2860, %v2856
        %v4657 = vpack.c.b16 %v2861, %v2857
        %v4658 = vpack.c.b16 %v2862, %v2858
        %v4659 = vpack.c.b16 %v2867, %v2863
        %v4660 = vpack.c.b16 %v2868, %v2864
        %v4661 = vpack.c.b16 %v2869, %v2865
        %v4662 = vpack.c.b16 %v2870, %v2866
        %v4663 = vpack.c.b16 %v2875, %v2871
        %v4664 = vpack.c.b16 %v2876, %v2872
        %v4665 = vpack.c.b16 %v2877, %v2873
        %v4666 = vpack.c.b16 %v2878, %v2874
        %v4667 = vpack.c.b16 %v2883, %v2879
        %v4668 = vpack.c.b16 %v2884, %v2880
        %v4669 = vpack.c.b16 %v2885, %v2881
        %v4670 = vpack.c.b16 %v2886, %v2882
        %v4671 = vpack.c.b16 %v2891, %v2887
        %v4672 = vpack.c.b16 %v2892, %v2888
        %v4673 = vpack.c.b16 %v2893, %v2889
        %v4674 = vpack.c.b16 %v2894, %v2890
        %v4675 = vpack.c.b16 %v2899, %v2895
        %v4676 = vpack.c.b16 %v2900, %v2896
        %v4677 = vpack.c.b16 %v2901, %v2897
        %v4678 = vpack.c.b16 %v2902, %v2898
        %v4679 = vpack.c.b16 %v2907, %v2903
        %v4680 = vpack.c.b16 %v2908, %v2904
        %v4681 = vpack.c.b16 %v2909, %v2905
        %v4682 = vpack.c.b16 %v2910, %v2906
        %v4683 = vpack.c.b16 %v2915, %v2911
        %v4684 = vpack.c.b16 %v2916, %v2912
        %v4685 = vpack.c.b16 %v2917, %v2913
        %v4686 = vpack.c.b16 %v2918, %v2914
        %v4687 = vpack.c.b16 %v2923, %v2919
        %v4688 = vpack.c.b16 %v2924, %v2920
        %v4689 = vpack.c.b16 %v2925, %v2921
        %v4690 = vpack.c.b16 %v2926, %v2922
        %v4691 = vpack.c.b16 %v2931, %v2927
        %v4692 = vpack.c.b16 %v2932, %v2928
        %v4693 = vpack.c.b16 %v2933, %v2929
        %v4694 = vpack.c.b16 %v2934, %v2930
        %v4695 = vpack.c.b16 %v2939, %v2935
        %v4696 = vpack.c.b16 %v2940, %v2936
        %v4697 = vpack.c.b16 %v2941, %v2937
        %v4698 = vpack.c.b16 %v2942, %v2938
        %v4699 = vpack.c.b16 %v2947, %v2943
        %v4700 = vpack.c.b16 %v2948, %v2944
        %v4701 = vpack.c.b16 %v2949, %v2945
        %v4702 = vpack.c.b16 %v2950, %v2946
        %v4703 = vpack.c.b16 %v2955, %v2951
        %v4704 = vpack.c.b16 %v2956, %v2952
        %v4705 = vpack.c.b16 %v2957, %v2953
        %v4706 = vpack.c.b16 %v2958, %v2954
        %v4707 = vpack.c.b16 %v2963, %v2959
        %v4708 = vpack.c.b16 %v2964, %v2960
        %v4709 = vpack.c.b16 %v2965, %v2961
        %v4710 = vpack.c.b16 %v2966, %v2962
        %v4711 = vpack.c.b16 %v2971, %v2967
        %v4712 = vpack.c.b16 %v2972, %v2968
        %v4713 = vpack.c.b16 %v2973, %v2969
        %v4714 = vpack.c.b16 %v2974, %v2970
        %v4715 = vpack.c.b16 %v2979, %v2975
        %v4716 = vpack.c.b16 %v2980, %v2976
        %v4717 = vpack.c.b16 %v2981, %v2977
        %v4718 = vpack.c.b16 %v2982, %v2978
        %v4719 = vpack.c.b16 %v2987, %v2983
        %v4720 = vpack.c.b16 %v2988, %v2984
        %v4721 = vpack.c.b16 %v2989, %v2985
        %v4722 = vpack.c.b16 %v2990, %v2986
        %v4723 = vpack.c.b16 %v2995, %v2991
        %v4724 = vpack.c.b16 %v2996, %v2992
        %v4725 = vpack.c.b16 %v2997, %v2993
        %v4726 = vpack.c.b16 %v2998, %v2994
        %v4727 = vpack.c.b16 %v3003, %v2999
        %v4728 = vpack.c.b16 %v3004, %v3000
        %v4729 = vpack.c.b16 %v3005, %v3001
        %v4730 = vpack.c.b16 %v3006, %v3002
        %v4731 = vpack.c.b16 %v3011, %v3007
        %v4732 = vpack.c.b16 %v3012, %v3008
        %v4733 = vpack.c.b16 %v3013, %v3009
        %v4734 = vpack.c.b16 %v3014, %v3010
        %v4735 = vpack.c.b16 %v3019, %v3015
        %v4736 = vpack.c.b16 %v3020, %v3016
        %v4737 = vpack.c.b16 %v3021, %v3017
        %v4738 = vpack.c.b16 %v3022, %v3018
        %v4739 = vpack.c.b16 %v3027, %v3023
        %v4740 = vpack.c.b16 %v3028, %v3024
        %v4741 = vpack.c.b16 %v3029, %v3025
        %v4742 = vpack.c.b16 %v3030, %v3026
        %v4743 = vpack.c.b16 %v3035, %v3031
        %v4744 = vpack.c.b16 %v3036, %v3032
        %v4745 = vpack.c.b16 %v3037, %v3033
        %v4746 = vpack.c.b16 %v3038, %v3034
        %v4747 = vpack.c.b16 %v3043, %v3039
        %v4748 = vpack.c.b16 %v3044, %v3040
        %v4749 = vpack.c.b16 %v3045, %v3041
        %v4750 = vpack.c.b16 %v3046, %v3042
        %v4751 = vpack.c.b16 %v3051, %v3047
        %v4752 = vpack.c.b16 %v3052, %v3048
        %v4753 = vpack.c.b16 %v3053, %v3049
        %v4754 = vpack.c.b16 %v3054, %v3050
        %v4755 = vpack.c.b16 %v3059, %v3055
        %v4756 = vpack.c.b16 %v3060, %v3056
        %v4757 = vpack.c.b16 %v3061, %v3057
        %v4758 = vpack.c.b16 %v3062, %v3058
        %v4759 = vpack.c.b16 %v3067, %v3063
        %v4760 = vpack.c.b16 %v3068, %v3064
        %v4761 = vpack.c.b16 %v3069, %v3065
        %v4762 = vpack.c.b16 %v3070, %v3066
        %v4763 = vpack.c.b16 %v3075, %v3071
        %v4764 = vpack.c.b16 %v3076, %v3072
        %v4765 = vpack.c.b16 %v3077, %v3073
        %v4766 = vpack.c.b16 %v3078, %v3074
        %v4767 = vpack.c.b16 %v3083, %v3079
        %v4768 = vpack.c.b16 %v3084, %v3080
        %v4769 = vpack.c.b16 %v3085, %v3081
        %v4770 = vpack.c.b16 %v3086, %v3082
        %v4771 = vpack.c.b16 %v3091, %v3087
        %v4772 = vpack.c.b16 %v3092, %v3088
        %v4773 = vpack.c.b16 %v3093, %v3089
        %v4774 = vpack.c.b16 %v3094, %v3090
        %v4775 = vpack.c.b16 %v3099, %v3095
        %v4776 = vpack.c.b16 %v3100, %v3096
        %v4777 = vpack.c.b16 %v3101, %v3097
        %v4778 = vpack.c.b16 %v3102, %v3098
        %v4779 = vpack.c.b16 %v3107, %v3103
        %v4780 = vpack.c.b16 %v3108, %v3104
        %v4781 = vpack.c.b16 %v3109, %v3105
        %v4782 = vpack.c.b16 %v3110, %v3106
        %v4783 = vpack.c.b16 %v3115, %v3111
        %v4784 = vpack.c.b16 %v3116, %v3112
        %v4785 = vpack.c.b16 %v3117, %v3113
        %v4786 = vpack.c.b16 %v3118, %v3114
        %v4787 = vpack.c.b16 %v3123, %v3119
        %v4788 = vpack.c.b16 %v3124, %v3120
        %v4789 = vpack.c.b16 %v3125, %v3121
        %v4790 = vpack.c.b16 %v3126, %v3122
        %v4791 = vpack.c.b16 %v3131, %v3127
        %v4792 = vpack.c.b16 %v3132, %v3128
        %v4793 = vpack.c.b16 %v3133, %v3129
        %v4794 = vpack.c.b16 %v3134, %v3130
        %v4795 = vpack.c.b16 %v3139, %v3135
        %v4796 = vpack.c.b16 %v3140, %v3136
        %v4797 = vpack.c.b16 %v3141, %v3137
        %v4798 = vpack.c.b16 %v3142, %v3138
        %v4799 = vpack.c.b16 %v3147, %v3143
        %v4800 = vpack.c.b16 %v3148, %v3144
        %v4801 = vpack.c.b16 %v3149, %v3145
        %v4802 = vpack.c.b16 %v3150, %v3146
        %v4803 = vpack.c.b16 %v3155, %v3151
        %v4804 = vpack.c.b16 %v3156, %v3152
        %v4805 = vpack.c.b16 %v3157, %v3153
        %v4806 = vpack.c.b16 %v3158, %v3154
        %v4807 = vpack.c.b16 %v3163, %v3159
        %v4808 = vpack.c.b16 %v3164, %v3160
        %v4809 = vpack.c.b16 %v3165, %v3161
        %v4810 = vpack.c.b16 %v3166, %v3162
        %v4811 = vpack.c.b16 %v3171, %v3167
        %v4812 = vpack.c.b16 %v3172, %v3168
        %v4813 = vpack.c.b16 %v3173, %v3169
        %v4814 = vpack.c.b16 %v3174, %v3170
        %v4815 = vpack.c.b16 %v3179, %v3175
        %v4816 = vpack.c.b16 %v3180, %v3176
        %v4817 = vpack.c.b16 %v3181, %v3177
        %v4818 = vpack.c.b16 %v3182, %v3178
        %v4819 = vpack.c.b16 %v3187, %v3183
        %v4820 = vpack.c.b16 %v3188, %v3184
        %v4821 = vpack.c.b16 %v3189, %v3185
        %v4822 = vpack.c.b16 %v3190, %v3186
        %v4823 = vpack.c.b16 %v3195, %v3191
        %v4824 = vpack.c.b16 %v3196, %v3192
        %v4825 = vpack.c.b16 %v3197, %v3193
        %v4826 = vpack.c.b16 %v3198, %v3194
        %v4827 = vpack.c.b16 %v3203, %v3199
        %v4828 = vpack.c.b16 %v3204, %v3200
        %v4829 = vpack.c.b16 %v3205, %v3201
        %v4830 = vpack.c.b16 %v3206, %v3202
        %v4831 = vpack.c.b16 %v3211, %v3207
        %v4832 = vpack.c.b16 %v3212, %v3208
        %v4833 = vpack.c.b16 %v3213, %v3209
        %v4834 = vpack.c.b16 %v3214, %v3210
        %v4835 = vpack.c.b16 %v3219, %v3215
        %v4836 = vpack.c.b16 %v3220, %v3216
        %v4837 = vpack.c.b16 %v3221, %v3217
        %v4838 = vpack.c.b16 %v3222, %v3218
        %v4839 = vpack.c.b16 %v3227, %v3223
        %v4840 = vpack.c.b16 %v3228, %v3224
        %v4841 = vpack.c.b16 %v3229, %v3225
        %v4842 = vpack.c.b16 %v3230, %v3226
        %v4843 = vpack.c.b16 %v3235, %v3231
        %v4844 = vpack.c.b16 %v3236, %v3232
        %v4845 = vpack.c.b16 %v3237, %v3233
        %v4846 = vpack.c.b16 %v3238, %v3234
        %v4847 = vpack.c.b16 %v3243, %v3239
        %v4848 = vpack.c.b16 %v3244, %v3240
        %v4849 = vpack.c.b16 %v3245, %v3241
        %v4850 = vpack.c.b16 %v3246, %v3242
        %v4851 = vpack.c.b16 %v3251, %v3247
        %v4852 = vpack.c.b16 %v3252, %v3248
        %v4853 = vpack.c.b16 %v3253, %v3249
        %v4854 = vpack.c.b16 %v3254, %v3250
        %v4855 = vpack.c.b16 %v3259, %v3255
        %v4856 = vpack.c.b16 %v3260, %v3256
        %v4857 = vpack.c.b16 %v3261, %v3257
        %v4858 = vpack.c.b16 %v3262, %v3258
        %v4859 = vpack.c.b16 %v3267, %v3263
        %v4860 = vpack.c.b16 %v3268, %v3264
        %v4861 = vpack.c.b16 %v3269, %v3265
        %v4862 = vpack.c.b16 %v3270, %v3266
        %v4863 = vpack.c.b16 %v3275, %v3271
        %v4864 = vpack.c.b16 %v3276, %v3272
        %v4865 = vpack.c.b16 %v3277, %v3273
        %v4866 = vpack.c.b16 %v3278, %v3274
        %v4867 = vpack.c.b16 %v3283, %v3279
        %v4868 = vpack.c.b16 %v3284, %v3280
        %v4869 = vpack.c.b16 %v3285, %v3281
        %v4870 = vpack.c.b16 %v3286, %v3282
        %v4871 = vpack.c.b16 %v3291, %v3287
        %v4872 = vpack.c.b16 %v3292, %v3288
        %v4873 = vpack.c.b16 %v3293, %v3289
        %v4874 = vpack.c.b16 %v3294, %v3290
        %v4875 = vpack.c.b16 %v3299, %v3295
        %v4876 = vpack.c.b16 %v3300, %v3296
        %v4877 = vpack.c.b16 %v3301, %v3297
        %v4878 = vpack.c.b16 %v3302, %v3298
        %v4879 = vpack.c.b16 %v3307, %v3303
        %v4880 = vpack.c.b16 %v3308, %v3304
        %v4881 = vpack.c.b16 %v3309, %v3305
        %v4882 = vpack.c.b16 %v3310, %v3306
        %v4883 = vpack.c.b16 %v3315, %v3311
        %v4884 = vpack.c.b16 %v3316, %v3312
        %v4885 = vpack.c.b16 %v3317, %v3313
        %v4886 = vpack.c.b16 %v3318, %v3314
        %v4887 = vpack.c.b16 %v3323, %v3319
        %v4888 = vpack.c.b16 %v3324, %v3320
        %v4889 = vpack.c.b16 %v3325, %v3321
        %v4890 = vpack.c.b16 %v3326, %v3322
        %v4891 = vpack.c.b16 %v3331, %v3327
        %v4892 = vpack.c.b16 %v3332, %v3328
        %v4893 = vpack.c.b16 %v3333, %v3329
        %v4894 = vpack.c.b16 %v3334, %v3330
        %v4895 = vpack.c.b16 %v3339, %v3335
        %v4896 = vpack.c.b16 %v3340, %v3336
        %v4897 = vpack.c.b16 %v3341, %v3337
        %v4898 = vpack.c.b16 %v3342, %v3338
        %v4899 = vpack.c.b16 %v3347, %v3343
        %v4900 = vpack.c.b16 %v3348, %v3344
        %v4901 = vpack.c.b16 %v3349, %v3345
        %v4902 = vpack.c.b16 %v3350, %v3346
        %v4903 = vpack.c.b16 %v3355, %v3351
        %v4904 = vpack.c.b16 %v3356, %v3352
        %v4905 = vpack.c.b16 %v3357, %v3353
        %v4906 = vpack.c.b16 %v3358, %v3354
        %v4907 = vpack.c.b16 %v3363, %v3359
        %v4908 = vpack.c.b16 %v3364, %v3360
        %v4909 = vpack.c.b16 %v3365, %v3361
        %v4910 = vpack.c.b16 %v3366, %v3362
        %v4911 = vpack.c.b16 %v3371, %v3367
        %v4912 = vpack.c.b16 %v3372, %v3368
        %v4913 = vpack.c.b16 %v3373, %v3369
        %v4914 = vpack.c.b16 %v3374, %v3370
        %v4915 = vpack.c.b16 %v3379, %v3375
        %v4916 = vpack.c.b16 %v3380, %v3376
        %v4917 = vpack.c.b16 %v3381, %v3377
        %v4918 = vpack.c.b16 %v3382, %v3378
        %v4919 = vpack.c.b16 %v3387, %v3383
        %v4920 = vpack.c.b16 %v3388, %v3384
        %v4921 = vpack.c.b16 %v3389, %v3385
        %v4922 = vpack.c.b16 %v3390, %v3386
        %v4923 = vpack.c.b16 %v3395, %v3391
        %v4924 = vpack.c.b16 %v3396, %v3392
        %v4925 = vpack.c.b16 %v3397, %v3393
        %v4926 = vpack.c.b16 %v3398, %v3394
        %v4927 = vpack.c.b16 %v3403, %v3399
        %v4928 = vpack.c.b16 %v3404, %v3400
        %v4929 = vpack.c.b16 %v3405, %v3401
        %v4930 = vpack.c.b16 %v3406, %v3402
        %v4931 = vpack.c.b16 %v3411, %v3407
        %v4932 = vpack.c.b16 %v3412, %v3408
        %v4933 = vpack.c.b16 %v3413, %v3409
        %v4934 = vpack.c.b16 %v3414, %v3410
        %v4935 = vpack.c.b16 %v3419, %v3415
        %v4936 = vpack.c.b16 %v3420, %v3416
        %v4937 = vpack.c.b16 %v3421, %v3417
        %v4938 = vpack.c.b16 %v3422, %v3418
        %v4939 = vpack.c.b16 %v3427, %v3423
        %v4940 = vpack.c.b16 %v3428, %v3424
        %v4941 = vpack.c.b16 %v3429, %v3425
        %v4942 = vpack.c.b16 %v3430, %v3426
        %v4943 = vpack.c.b16 %v3435, %v3431
        %v4944 = vpack.c.b16 %v3436, %v3432
        %v4945 = vpack.c.b16 %v3437, %v3433
        %v4946 = vpack.c.b16 %v3438, %v3434
        %v4947 = vpack.c.b16 %v3443, %v3439
        %v4948 = vpack.c.b16 %v3444, %v3440
        %v4949 = vpack.c.b16 %v3445, %v3441
        %v4950 = vpack.c.b16 %v3446, %v3442
        %v4951 = vpack.c.b16 %v3451, %v3447
        %v4952 = vpack.c.b16 %v3452, %v3448
        %v4953 = vpack.c.b16 %v3453, %v3449
        %v4954 = vpack.c.b16 %v3454, %v3450
        %v4955 = vpack.c.b16 %v3459, %v3455
        %v4956 = vpack.c.b16 %v3460, %v3456
        %v4957 = vpack.c.b16 %v3461, %v3457
        %v4958 = vpack.c.b16 %v3462, %v3458
        %v4959 = vpack.c.b16 %v3467, %v3463
        %v4960 = vpack.c.b16 %v3468, %v3464
        %v4961 = vpack.c.b16 %v3469, %v3465
        %v4962 = vpack.c.b16 %v3470, %v3466
        %v4963 = vpack.c.b16 %v3475, %v3471
        %v4964 = vpack.c.b16 %v3476, %v3472
        %v4965 = vpack.c.b16 %v3477, %v3473
        %v4966 = vpack.c.b16 %v3478, %v3474
        %v4967 = vpack.c.b16 %v3483, %v3479
        %v4968 = vpack.c.b16 %v3484, %v3480
        %v4969 = vpack.c.b16 %v3485, %v3481
        %v4970 = vpack.c.b16 %v3486, %v3482
        %v4971 = vpack.c.b16 %v3491, %v3487
        %v4972 = vpack.c.b16 %v3492, %v3488
        %v4973 = vpack.c.b16 %v3493, %v3489
        %v4974 = vpack.c.b16 %v3494, %v3490
        %v4975 = vpack.c.b16 %v3499, %v3495
        %v4976 = vpack.c.b16 %v3500, %v3496
        %v4977 = vpack.c.b16 %v3501, %v3497
        %v4978 = vpack.c.b16 %v3502, %v3498
        %v4979 = vpack.c.b16 %v3507, %v3503
        %v4980 = vpack.c.b16 %v3508, %v3504
        %v4981 = vpack.c.b16 %v3509, %v3505
        %v4982 = vpack.c.b16 %v3510, %v3506
        %v4983 = vpack.c.b16 %v3515, %v3511
        %v4984 = vpack.c.b16 %v3516, %v3512
        %v4985 = vpack.c.b16 %v3517, %v3513
        %v4986 = vpack.c.b16 %v3518, %v3514
        %v4987 = vpack.c.b16 %v3523, %v3519
        %v4988 = vpack.c.b16 %v3524, %v3520
        %v4989 = vpack.c.b16 %v3525, %v3521
        %v4990 = vpack.c.b16 %v3526, %v3522
        %v4991 = vpack.c.b16 %v3531, %v3527
        %v4992 = vpack.c.b16 %v3532, %v3528
        %v4993 = vpack.c.b16 %v3533, %v3529
        %v4994 = vpack.c.b16 %v3534, %v3530
        %v4995 = vpack.c.b16 %v3539, %v3535
        %v4996 = vpack.c.b16 %v3540, %v3536
        %v4997 = vpack.c.b16 %v3541, %v3537
        %v4998 = vpack.c.b16 %v3542, %v3538
        %v4999 = vpack.c.b16 %v3547, %v3543
        %v5000 = vpack.c.b16 %v3548, %v3544
        %v5001 = vpack.c.b16 %v3549, %v3545
        %v5002 = vpack.c.b16 %v3550, %v3546
        %v5003 = vpack.c.b16 %v3555, %v3551
        %v5004 = vpack.c.b16 %v3556, %v3552
        %v5005 = vpack.c.b16 %v3557, %v3553
        %v5006 = vpack.c.b16 %v3558, %v3554
        %v5007 = vpack.c.b16 %v3563, %v3559
        %v5008 = vpack.c.b16 %v3564, %v3560
        %v5009 = vpack.c.b16 %v3565, %v3561
        %v5010 = vpack.c.b16 %v3566, %v3562
        %v5011 = vpack.c.b16 %v3571, %v3567
        %v5012 = vpack.c.b16 %v3572, %v3568
        %v5013 = vpack.c.b16 %v3573, %v3569
        %v5014 = vpack.c.b16 %v3574, %v3570
        %v5015 = vpack.c.b16 %v3579, %v3575
        %v5016 = vpack.c.b16 %v3580, %v3576
        %v5017 = vpack.c.b16 %v3581, %v3577
        %v5018 = vpack.c.b16 %v3582, %v3578
        %v5019 = vpack.c.b16 %v3587, %v3583
        %v5020 = vpack.c.b16 %v3588, %v3584
        %v5021 = vpack.c.b16 %v3589, %v3585
        %v5022 = vpack.c.b16 %v3590, %v3586
        %v5023 = vpack.c.b16 %v3595, %v3591
        %v5024 = vpack.c.b16 %v3596, %v3592
        %v5025 = vpack.c.b16 %v3597, %v3593
        %v5026 = vpack.c.b16 %v3598, %v3594
        %v5027 = vpack.c.b16 %v3603, %v3599
        %v5028 = vpack.c.b16 %v3604, %v3600
        %v5029 = vpack.c.b16 %v3605, %v3601
        %v5030 = vpack.c.b16 %v3606, %v3602
        %v5031 = vpack.c.b16 %v3611, %v3607
        %v5032 = vpack.c.b16 %v3612, %v3608
        %v5033 = vpack.c.b16 %v3613, %v3609
        %v5034 = vpack.c.b16 %v3614, %v3610
        %v5035 = vpack.c.b16 %v3619, %v3615
        %v5036 = vpack.c.b16 %v3620, %v3616
        %v5037 = vpack.c.b16 %v3621, %v3617
        %v5038 = vpack.c.b16 %v3622, %v3618
        %v5039 = vpack.c.b16 %v3627, %v3623
        %v5040 = vpack.c.b16 %v3628, %v3624
        %v5041 = vpack.c.b16 %v3629, %v3625
        %v5042 = vpack.c.b16 %v3630, %v3626
        %v5043 = vpack.c.b16 %v3635, %v3631
        %v5044 = vpack.c.b16 %v3636, %v3632
        %v5045 = vpack.c.b16 %v3637, %v3633
        %v5046 = vpack.c.b16 %v3638, %v3634
        %v5047 = vpack.c.b16 %v3643, %v3639
        %v5048 = vpack.c.b16 %v3644, %v3640
        %v5049 = vpack.c.b16 %v3645, %v3641
        %v5050 = vpack.c.b16 %v3646, %v3642
        %v5051 = vpack.c.b16 %v3651, %v3647
        %v5052 = vpack.c.b16 %v3652, %v3648
        %v5053 = vpack.c.b16 %v3653, %v3649
        %v5054 = vpack.c.b16 %v3654, %v3650
        %v5055 = vpack.c.b16 %v3659, %v3655
        %v5056 = vpack.c.b16 %v3660, %v3656
        %v5057 = vpack.c.b16 %v3661, %v3657
        %v5058 = vpack.c.b16 %v3662, %v3658
        %v5059 = vpack.c.b16 %v3667, %v3663
        %v5060 = vpack.c.b16 %v3668, %v3664
        %v5061 = vpack.c.b16 %v3669, %v3665
        %v5062 = vpack.c.b16 %v3670, %v3666
        %v5063 = vpack.c.b16 %v3675, %v3671
        %v5064 = vpack.c.b16 %v3676, %v3672
        %v5065 = vpack.c.b16 %v3677, %v3673
        %v5066 = vpack.c.b16 %v3678, %v3674
        %v5067 = vpack.c.b16 %v3683, %v3679
        %v5068 = vpack.c.b16 %v3684, %v3680
        %v5069 = vpack.c.b16 %v3685, %v3681
        %v5070 = vpack.c.b16 %v3686, %v3682
        %v5071 = vpack.c.b16 %v3691, %v3687
        %v5072 = vpack.c.b16 %v3692, %v3688
        %v5073 = vpack.c.b16 %v3693, %v3689
        %v5074 = vpack.c.b16 %v3694, %v3690
        %v5075 = vpack.c.b16 %v3699, %v3695
        %v5076 = vpack.c.b16 %v3700, %v3696
        %v5077 = vpack.c.b16 %v3701, %v3697
        %v5078 = vpack.c.b16 %v3702, %v3698
        %v5079 = vpack.c.b16 %v3707, %v3703
        %v5080 = vpack.c.b16 %v3708, %v3704
        %v5081 = vpack.c.b16 %v3709, %v3705
        %v5082 = vpack.c.b16 %v3710, %v3706
        %v5083 = vpack.c.b16 %v3715, %v3711
        %v5084 = vpack.c.b16 %v3716, %v3712
        %v5085 = vpack.c.b16 %v3717, %v3713
        %v5086 = vpack.c.b16 %v3718, %v3714
        %v5087 = vpack.c.b16 %v3723, %v3719
        %v5088 = vpack.c.b16 %v3724, %v3720
        %v5089 = vpack.c.b16 %v3725, %v3721
        %v5090 = vpack.c.b16 %v3726, %v3722
        %v5091 = vpack.c.b16 %v3731, %v3727
        %v5092 = vpack.c.b16 %v3732, %v3728
        %v5093 = vpack.c.b16 %v3733, %v3729
        %v5094 = vpack.c.b16 %v3734, %v3730
        %v5095 = vpack.c.b16 %v3739, %v3735
        %v5096 = vpack.c.b16 %v3740, %v3736
        %v5097 = vpack.c.b16 %v3741, %v3737
        %v5098 = vpack.c.b16 %v3742, %v3738
        %v5099 = vpack.c.b16 %v3747, %v3743
        %v5100 = vpack.c.b16 %v3748, %v3744
        %v5101 = vpack.c.b16 %v3749, %v3745
        %v5102 = vpack.c.b16 %v3750, %v3746
        %v5103 = vpack.c.b16 %v3755, %v3751
        %v5104 = vpack.c.b16 %v3756, %v3752
        %v5105 = vpack.c.b16 %v3757, %v3753
        %v5106 = vpack.c.b16 %v3758, %v3754
        %v5107 = vpack.c.b16 %v3763, %v3759
        %v5108 = vpack.c.b16 %v3764, %v3760
        %v5109 = vpack.c.b16 %v3765, %v3761
        %v5110 = vpack.c.b16 %v3766, %v3762
        %v5111 = vpack.c.b16 %v3771, %v3767
        %v5112 = vpack.c.b16 %v3772, %v3768
        %v5113 = vpack.c.b16 %v3773, %v3769
        %v5114 = vpack.c.b16 %v3774, %v3770
        %v5115 = vpack.c.b16 %v3779, %v3775
        %v5116 = vpack.c.b16 %v3780, %v3776
        %v5117 = vpack.c.b16 %v3781, %v3777
        %v5118 = vpack.c.b16 %v3782, %v3778
        %v5119 = vpack.c.b16 %v3787, %v3783
        %v5120 = vpack.c.b16 %v3788, %v3784
        %v5121 = vpack.c.b16 %v3789, %v3785
        %v5122 = vpack.c.b16 %v3790, %v3786
        %v5123 = vpack.c.b16 %v3795, %v3791
        %v5124 = vpack.c.b16 %v3796, %v3792
        %v5125 = vpack.c.b16 %v3797, %v3793
        %v5126 = vpack.c.b16 %v3798, %v3794
        %v5127 = vpack.c.b16 %v3803, %v3799
        %v5128 = vpack.c.b16 %v3804, %v3800
        %v5129 = vpack.c.b16 %v3805, %v3801
        %v5130 = vpack.c.b16 %v3806, %v3802
        %v5131 = vpack.c.b16 %v3811, %v3807
        %v5132 = vpack.c.b16 %v3812, %v3808
        %v5133 = vpack.c.b16 %v3813, %v3809
        %v5134 = vpack.c.b16 %v3814, %v3810
        %v5135 = vpack.c.b16 %v3819, %v3815
        %v5136 = vpack.c.b16 %v3820, %v3816
        %v5137 = vpack.c.b16 %v3821, %v3817
        %v5138 = vpack.c.b16 %v3822, %v3818
        %v5139 = vpack.c.b16 %v3827, %v3823
        %v5140 = vpack.c.b16 %v3828, %v3824
        %v5141 = vpack.c.b16 %v3829, %v3825
        %v5142 = vpack.c.b16 %v3830, %v3826
        %v5143 = vpack.c.b16 %v3835, %v3831
        %v5144 = vpack.c.b16 %v3836, %v3832
        %v5145 = vpack.c.b16 %v3837, %v3833
        %v5146 = vpack.c.b16 %v3838, %v3834
        %v5147 = vpack.c.b16 %v3843, %v3839
        %v5148 = vpack.c.b16 %v3844, %v3840
        %v5149 = vpack.c.b16 %v3845, %v3841
        %v5150 = vpack.c.b16 %v3846, %v3842
        %v5151 = vpack.c.b16 %v3851, %v3847
        %v5152 = vpack.c.b16 %v3852, %v3848
        %v5153 = vpack.c.b16 %v3853, %v3849
        %v5154 = vpack.c.b16 %v3854, %v3850
        %v5155 = vpack.c.b16 %v3859, %v3855
        %v5156 = vpack.c.b16 %v3860, %v3856
        %v5157 = vpack.c.b16 %v3861, %v3857
        %v5158 = vpack.c.b16 %v3862, %v3858
        %v5159 = vpack.c.b16 %v3867, %v3863
        %v5160 = vpack.c.b16 %v3868, %v3864
        %v5161 = vpack.c.b16 %v3869, %v3865
        %v5162 = vpack.c.b16 %v3870, %v3866
        %v5163 = vpack.c.b16 %v3875, %v3871
        %v5164 = vpack.c.b16 %v3876, %v3872
        %v5165 = vpack.c.b16 %v3877, %v3873
        %v5166 = vpack.c.b16 %v3878, %v3874
        %v5167 = vpack.c.b16 %v3883, %v3879
        %v5168 = vpack.c.b16 %v3884, %v3880
        %v5169 = vpack.c.b16 %v3885, %v3881
        %v5170 = vpack.c.b16 %v3886, %v3882
        %v5171 = vpack.c.b16 %v3891, %v3887
        %v5172 = vpack.c.b16 %v3892, %v3888
        %v5173 = vpack.c.b16 %v3893, %v3889
        %v5174 = vpack.c.b16 %v3894, %v3890
        %v5175 = vpack.c.b16 %v3899, %v3895
        %v5176 = vpack.c.b16 %v3900, %v3896
        %v5177 = vpack.c.b16 %v3901, %v3897
        %v5178 = vpack.c.b16 %v3902, %v3898
        %v5179 = vpack.c.b16 %v3907, %v3903
        %v5180 = vpack.c.b16 %v3908, %v3904
        %v5181 = vpack.c.b16 %v3909, %v3905
        %v5182 = vpack.c.b16 %v3910, %v3906
        %v5183 = vpack.c.b16 %v3915, %v3911
        %v5184 = vpack.c.b16 %v3916, %v3912
        %v5185 = vpack.c.b16 %v3917, %v3913
        %v5186 = vpack.c.b16 %v3918, %v3914
        %v5187 = vpack.c.b16 %v3923, %v3919
        %v5188 = vpack.c.b16 %v3924, %v3920
        %v5189 = vpack.c.b16 %v3925, %v3921
        %v5190 = vpack.c.b16 %v3926, %v3922
        %v5191 = vpack.c.b16 %v3931, %v3927
        %v5192 = vpack.c.b16 %v3932, %v3928
        %v5193 = vpack.c.b16 %v3933, %v3929
        %v5194 = vpack.c.b16 %v3934, %v3930
        %v5195 = vpack.c.b16 %v3939, %v3935
        %v5196 = vpack.c.b16 %v3940, %v3936
        %v5197 = vpack.c.b16 %v3941, %v3937
        %v5198 = vpack.c.b16 %v3942, %v3938
        %v5199 = vpack.c.b16 %v3947, %v3943
        %v5200 = vpack.c.b16 %v3948, %v3944
        %v5201 = vpack.c.b16 %v3949, %v3945
        %v5202 = vpack.c.b16 %v3950, %v3946
        %v5203 = vpack.c.b16 %v3955, %v3951
        %v5204 = vpack.c.b16 %v3956, %v3952
        %v5205 = vpack.c.b16 %v3957, %v3953
        %v5206 = vpack.c.b16 %v3958, %v3954
        %v5207 = vpack.c.b16 %v3963, %v3959
        %v5208 = vpack.c.b16 %v3964, %v3960
        %v5209 = vpack.c.b16 %v3965, %v3961
        %v5210 = vpack.c.b16 %v3966, %v3962
        %v5211 = vpack.c.b16 %v3971, %v3967
        %v5212 = vpack.c.b16 %v3972, %v3968
        %v5213 = vpack.c.b16 %v3973, %v3969
        %v5214 = vpack.c.b16 %v3974, %v3970
        %v5215 = vpack.c.b16 %v3979, %v3975
        %v5216 = vpack.c.b16 %v3980, %v3976
        %v5217 = vpack.c.b16 %v3981, %v3977
        %v5218 = vpack.c.b16 %v3982, %v3978
        %v5219 = vpack.c.b16 %v3987, %v3983
        %v5220 = vpack.c.b16 %v3988, %v3984
        %v5221 = vpack.c.b16 %v3989, %v3985
        %v5222 = vpack.c.b16 %v3990, %v3986
        %v5223 = vpack.c.b16 %v3995, %v3991
        %v5224 = vpack.c.b16 %v3996, %v3992
        %v5225 = vpack.c.b16 %v3997, %v3993
        %v5226 = vpack.c.b16 %v3998, %v3994
        %v5227 = vpack.c.b16 %v4003, %v3999
        %v5228 = vpack.c.b16 %v4004, %v4000
        %v5229 = vpack.c.b16 %v4005, %v4001
        %v5230 = vpack.c.b16 %v4006, %v4002
        %v5231 = vpack.c.b16 %v4011, %v4007
        %v5232 = vpack.c.b16 %v4012, %v4008
        %v5233 = vpack.c.b16 %v4013, %v4009
        %v5234 = vpack.c.b16 %v4014, %v4010
        %v5235 = vpack.c.b16 %v4019, %v4015
        %v5236 = vpack.c.b16 %v4020, %v4016
        %v5237 = vpack.c.b16 %v4021, %v4017
        %v5238 = vpack.c.b16 %v4022, %v4018
        %v5239 = vpack.c.b16 %v4027, %v4023
        %v5240 = vpack.c.b16 %v4028, %v4024
        %v5241 = vpack.c.b16 %v4029, %v4025
        %v5242 = vpack.c.b16 %v4030, %v4026
        %v5243 = vpack.c.b16 %v4035, %v4031
        %v5244 = vpack.c.b16 %v4036, %v4032
        %v5245 = vpack.c.b16 %v4037, %v4033
        %v5246 = vpack.c.b16 %v4038, %v4034
        %v5247 = vpack.c.b16 %v4043, %v4039
        %v5248 = vpack.c.b16 %v4044, %v4040
        %v5249 = vpack.c.b16 %v4045, %v4041
        %v5250 = vpack.c.b16 %v4046, %v4042
        %v5251 = vpack.c.b16 %v4051, %v4047
        %v5252 = vpack.c.b16 %v4052, %v4048
        %v5253 = vpack.c.b16 %v4053, %v4049
        %v5254 = vpack.c.b16 %v4054, %v4050
        %v5255 = vpack.c.b16 %v4059, %v4055
        %v5256 = vpack.c.b16 %v4060, %v4056
        %v5257 = vpack.c.b16 %v4061, %v4057
        %v5258 = vpack.c.b16 %v4062, %v4058
        %v5259 = vpack.c.b16 %v4067, %v4063
        %v5260 = vpack.c.b16 %v4068, %v4064
        %v5261 = vpack.c.b16 %v4069, %v4065
        %v5262 = vpack.c.b16 %v4070, %v4066
        %v5263 = vpack.c.b16 %v4075, %v4071
        %v5264 = vpack.c.b16 %v4076, %v4072
        %v5265 = vpack.c.b16 %v4077, %v4073
        %v5266 = vpack.c.b16 %v4078, %v4074
        %v5267 = vpack.c.b16 %v4083, %v4079
        %v5268 = vpack.c.b16 %v4084, %v4080
        %v5269 = vpack.c.b16 %v4085, %v4081
        %v5270 = vpack.c.b16 %v4086, %v4082
        %v5271 = vpack.c.b16 %v4091, %v4087
        %v5272 = vpack.c.b16 %v4092, %v4088
        %v5273 = vpack.c.b16 %v4093, %v4089
        %v5274 = vpack.c.b16 %v4094, %v4090
        %v5275 = vpack.c.b16 %v4099, %v4095
        %v5276 = vpack.c.b16 %v4100, %v4096
        %v5277 = vpack.c.b16 %v4101, %v4097
        %v5278 = vpack.c.b16 %v4102, %v4098
        %v5279 = vpack.c.b16 %v4107, %v4103
        %v5280 = vpack.c.b16 %v4108, %v4104
        %v5281 = vpack.c.b16 %v4109, %v4105
        %v5282 = vpack.c.b16 %v4110, %v4106
        %v5283 = vpack.c.b16 %v4115, %v4111
        %v5284 = vpack.c.b16 %v4116, %v4112
        %v5285 = vpack.c.b16 %v4117, %v4113
        %v5286 = vpack.c.b16 %v4118, %v4114
        %v5287 = vpack.c.b16 %v4123, %v4119
        %v5288 = vpack.c.b16 %v4124, %v4120
        %v5289 = vpack.c.b16 %v4125, %v4121
        %v5290 = vpack.c.b16 %v4126, %v4122
        %v5291 = vpack.c.b16 %v4131, %v4127
        %v5292 = vpack.c.b16 %v4132, %v4128
        %v5293 = vpack.c.b16 %v4133, %v4129
        %v5294 = vpack.c.b16 %v4134, %v4130
        %v5295 = vpack.c.b16 %v4139, %v4135
        %v5296 = vpack.c.b16 %v4140, %v4136
        %v5297 = vpack.c.b16 %v4141, %v4137
        %v5298 = vpack.c.b16 %v4142, %v4138
        %v5299 = vpack.c.b16 %v4147, %v4143
        %v5300 = vpack.c.b16 %v4148, %v4144
        %v5301 = vpack.c.b16 %v4149, %v4145
        %v5302 = vpack.c.b16 %v4150, %v4146
        %v5303 = vpack.c.b16 %v4155, %v4151
        %v5304 = vpack.c.b16 %v4156, %v4152
        %v5305 = vpack.c.b16 %v4157, %v4153
        %v5306 = vpack.c.b16 %v4158, %v4154
        %v5307 = vpack.c.b16 %v4163, %v4159
        %v5308 = vpack.c.b16 %v4164, %v4160
        %v5309 = vpack.c.b16 %v4165, %v4161
        %v5310 = vpack.c.b16 %v4166, %v4162
        %v5311 = vpack.c.b16 %v4171, %v4167
        %v5312 = vpack.c.b16 %v4172, %v4168
        %v5313 = vpack.c.b16 %v4173, %v4169
        %v5314 = vpack.c.b16 %v4174, %v4170
        %v5315 = vpack.c.b16 %v4179, %v4175
        %v5316 = vpack.c.b16 %v4180, %v4176
        %v5317 = vpack.c.b16 %v4181, %v4177
        %v5318 = vpack.c.b16 %v4182, %v4178
        %v5319 = vpack.c.b16 %v4187, %v4183
        %v5320 = vpack.c.b16 %v4188, %v4184
        %v5321 = vpack.c.b16 %v4189, %v4185
        %v5322 = vpack.c.b16 %v4190, %v4186
        %v5323 = vpack.c.b16 %v4195, %v4191
        %v5324 = vpack.c.b16 %v4196, %v4192
        %v5325 = vpack.c.b16 %v4197, %v4193
        %v5326 = vpack.c.b16 %v4198, %v4194
        %v5327 = vpack.c.b16 %v4203, %v4199
        %v5328 = vpack.c.b16 %v4204, %v4200
        %v5329 = vpack.c.b16 %v4205, %v4201
        %v5330 = vpack.c.b16 %v4206, %v4202
        %v5331 = vpack.c.b16 %v4211, %v4207
        %v5332 = vpack.c.b16 %v4212, %v4208
        %v5333 = vpack.c.b16 %v4213, %v4209
        %v5334 = vpack.c.b16 %v4214, %v4210
        %v5335 = vpack.c.b16 %v4219, %v4215
        %v5336 = vpack.c.b16 %v4220, %v4216
        %v5337 = vpack.c.b16 %v4221, %v4217
        %v5338 = vpack.c.b16 %v4222, %v4218
        %v5339 = vpack.c.b16 %v4227, %v4223
        %v5340 = vpack.c.b16 %v4228, %v4224
        %v5341 = vpack.c.b16 %v4229, %v4225
        %v5342 = vpack.c.b16 %v4230, %v4226
        %v5343 = vpack.c.b16 %v4235, %v4231
        %v5344 = vpack.c.b16 %v4236, %v4232
        %v5345 = vpack.c.b16 %v4237, %v4233
        %v5346 = vpack.c.b16 %v4238, %v4234
        %v5347 = vpack.c.b16 %v4243, %v4239
        %v5348 = vpack.c.b16 %v4244, %v4240
        %v5349 = vpack.c.b16 %v4245, %v4241
        %v5350 = vpack.c.b16 %v4246, %v4242
        %v5351 = vpack.c.b16 %v4251, %v4247
        %v5352 = vpack.c.b16 %v4252, %v4248
        %v5353 = vpack.c.b16 %v4253, %v4249
        %v5354 = vpack.c.b16 %v4254, %v4250
        %v5355 = vpack.c.b16 %v4259, %v4255
        %v5356 = vpack.c.b16 %v4260, %v4256
        %v5357 = vpack.c.b16 %v4261, %v4257
        %v5358 = vpack.c.b16 %v4262, %v4258
        %v5359 = vpack.c.b16 %v4267, %v4263
        %v5360 = vpack.c.b16 %v4268, %v4264
        %v5361 = vpack.c.b16 %v4269, %v4265
        %v5362 = vpack.c.b16 %v4270, %v4266
        %v5363 = vpack.c.b16 %v4275, %v4271
        %v5364 = vpack.c.b16 %v4276, %v4272
        %v5365 = vpack.c.b16 %v4277, %v4273
        %v5366 = vpack.c.b16 %v4278, %v4274
        %v5367 = vpack.c.b16 %v4283, %v4279
        %v5368 = vpack.c.b16 %v4284, %v4280
        %v5369 = vpack.c.b16 %v4285, %v4281
        %v5370 = vpack.c.b16 %v4286, %v4282
        %v5371 = vpack.c.b16 %v4291, %v4287
        %v5372 = vpack.c.b16 %v4292, %v4288
        %v5373 = vpack.c.b16 %v4293, %v4289
        %v5374 = vpack.c.b16 %v4294, %v4290
        %v5375 = vpack.c.b16 %v4299, %v4295
        %v5376 = vpack.c.b16 %v4300, %v4296
        %v5377 = vpack.c.b16 %v4301, %v4297
        %v5378 = vpack.c.b16 %v4302, %v4298
        %v5379 = vpack.c.b16 %v4307, %v4303
        %v5380 = vpack.c.b16 %v4308, %v4304
        %v5381 = vpack.c.b16 %v4309, %v4305
        %v5382 = vpack.c.b16 %v4310, %v4306
        %v5383 = vpack.c.b16 %v4315, %v4311
        %v5384 = vpack.c.b16 %v4316, %v4312
        %v5385 = vpack.c.b16 %v4317, %v4313
        %v5386 = vpack.c.b16 %v4318, %v4314
        %v5387 = vpack.c.b16 %v4323, %v4319
        %v5388 = vpack.c.b16 %v4324, %v4320
        %v5389 = vpack.c.b16 %v4325, %v4321
        %v5390 = vpack.c.b16 %v4326, %v4322
        %v5391 = vpack.c.b16 %v4331, %v4327
        %v5392 = vpack.c.b16 %v4332, %v4328
        %v5393 = vpack.c.b16 %v4333, %v4329
        %v5394 = vpack.c.b16 %v4334, %v4330
        %v5395 = vpack.c.b16 %v4339, %v4335
        %v5396 = vpack.c.b16 %v4340, %v4336
        %v5397 = vpack.c.b16 %v4341, %v4337
        %v5398 = vpack.c.b16 %v4342, %v4338
        %v5399 = vpack.c.b16 %v4347, %v4343
        %v5400 = vpack.c.b16 %v4348, %v4344
        %v5401 = vpack.c.b16 %v4349, %v4345
        %v5402 = vpack.c.b16 %v4350, %v4346
        %v5403 = vpack.c.b16 %v4355, %v4351
        %v5404 = vpack.c.b16 %v4356, %v4352
        %v5405 = vpack.c.b16 %v4357, %v4353
        %v5406 = vpack.c.b16 %v4358, %v4354
        %v5407 = vpack.c.b16 %v4363, %v4359
        %v5408 = vpack.c.b16 %v4364, %v4360
        %v5409 = vpack.c.b16 %v4365, %v4361
        %v5410 = vpack.c.b16 %v4366, %v4362
        %v5411 = vpack.c.b16 %v4371, %v4367
        %v5412 = vpack.c.b16 %v4372, %v4368
        %v5413 = vpack.c.b16 %v4373, %v4369
        %v5414 = vpack.c.b16 %v4374, %v4370
        %v5415 = vpack.c.b16 %v4379, %v4375
        %v5416 = vpack.c.b16 %v4380, %v4376
        %v5417 = vpack.c.b16 %v4381, %v4377
        %v5418 = vpack.c.b16 %v4382, %v4378
        %v5419 = vpack.c.b16 %v4387, %v4383
        %v5420 = vpack.c.b16 %v4388, %v4384
        %v5421 = vpack.c.b16 %v4389, %v4385
        %v5422 = vpack.c.b16 %v4390, %v4386
        %v5423 = vpack.c.b16 %v4395, %v4391
        %v5424 = vpack.c.b16 %v4396, %v4392
        %v5425 = vpack.c.b16 %v4397, %v4393
        %v5426 = vpack.c.b16 %v4398, %v4394
        %v5427 = vpack.c.b16 %v4403, %v4399
        %v5428 = vpack.c.b16 %v4404, %v4400
        %v5429 = vpack.c.b16 %v4405, %v4401
        %v5430 = vpack.c.b16 %v4406, %v4402
        %6455 = vmatpush.bf16.msra.mxu0 %v4435
        %6456 = vmatpush.bf16.msra.mxu0 %v4431
        %6457 = vmatpush.bf16.msra.mxu0 %v4427
        %6458 = vmatpush.bf16.msra.mxu0 %v4423
        %6459 = vmatpush.bf16.msra.mxu0 %v4419
        %6460 = vmatpush.bf16.msra.mxu0 %v4415
        %6461 = vmatpush.bf16.msra.mxu0 %v4411
        %6462 = vmatpush.bf16.msra.mxu0 %v4407
        %6463 = vmatmul.bf16.gmra.mxu0 %v1265
        %v6464 = vpop.f32.mrf.mxu0
        %v6465 = vadd.f32 0.0, %v6464
        %v6466 = vpop.f32.mrf.mxu0
        %6467 = vdwg.mxu0
        %6468 = vmatpush.bf16.msra.mxu0 %v4467
        %6469 = vmatpush.bf16.msra.mxu0 %v4463
        %6470 = vmatpush.bf16.msra.mxu0 %v4459
        %6471 = vmatpush.bf16.msra.mxu0 %v4455
        %6472 = vmatpush.bf16.msra.mxu0 %v4451
        %6473 = vmatpush.bf16.msra.mxu0 %v4447
        %6474 = vmatpush.bf16.msra.mxu0 %v4443
        %6475 = vmatpush.bf16.msra.mxu0 %v4439
        %6476 = vmatmul.bf16.gmra.mxu0 %v1266
        %v6477 = vpop.f32.mrf.mxu0
        %v6478 = vadd.f32 %v6465, %v6477
        %v6479 = vpop.f32.mrf.mxu0
        %6480 = vdwg.mxu0
        %6481 = vmatpush.bf16.msra.mxu0 %v4499
        %6482 = vmatpush.bf16.msra.mxu0 %v4495
        %6483 = vmatpush.bf16.msra.mxu0 %v4491
        %6484 = vmatpush.bf16.msra.mxu0 %v4487
        %6485 = vmatpush.bf16.msra.mxu0 %v4483
        %6486 = vmatpush.bf16.msra.mxu0 %v4479
        %6487 = vmatpush.bf16.msra.mxu0 %v4475
        %6488 = vmatpush.bf16.msra.mxu0 %v4471
        %6489 = vmatmul.bf16.gmra.mxu0 %v1267
        %v6490 = vpop.f32.mrf.mxu0
        %v6491 = vadd.f32 %v6478, %v6490
        %v6492 = vpop.f32.mrf.mxu0
        %6493 = vdwg.mxu0
        %6494 = vmatpush.bf16.msra.mxu0 %v4531
        %6495 = vmatpush.bf16.msra.mxu0 %v4527
        %6496 = vmatpush.bf16.msra.mxu0 %v4523
        %6497 = vmatpush.bf16.msra.mxu0 %v4519
        %6498 = vmatpush.bf16.msra.mxu0 %v4515
        %6499 = vmatpush.bf16.msra.mxu0 %v4511
        %6500 = vmatpush.bf16.msra.mxu0 %v4507
        %6501 = vmatpush.bf16.msra.mxu0 %v4503
        %6502 = vmatmul.bf16.gmra.mxu0 %v1268
        %v6503 = vpop.f32.mrf.mxu0
        %v6504 = vadd.f32 %v6491, %v6503
        %v6505 = vpop.f32.mrf.mxu0
        %6506 = vdwg.mxu0
        %6507 = vmatpush.bf16.msra.mxu0 %v4563
        %6508 = vmatpush.bf16.msra.mxu0 %v4559
        %6509 = vmatpush.bf16.msra.mxu0 %v4555
        %6510 = vmatpush.bf16.msra.mxu0 %v4551
        %6511 = vmatpush.bf16.msra.mxu0 %v4547
        %6512 = vmatpush.bf16.msra.mxu0 %v4543
        %6513 = vmatpush.bf16.msra.mxu0 %v4539
        %6514 = vmatpush.bf16.msra.mxu0 %v4535
        %6515 = vmatmul.bf16.gmra.mxu0 %v1269
        %v6516 = vpop.f32.mrf.mxu0
        %v6517 = vadd.f32 %v6504, %v6516
        %v6518 = vpop.f32.mrf.mxu0
        %6519 = vdwg.mxu0
        %6520 = vmatpush.bf16.msra.mxu0 %v4595
        %6521 = vmatpush.bf16.msra.mxu0 %v4591
        %6522 = vmatpush.bf16.msra.mxu0 %v4587
        %6523 = vmatpush.bf16.msra.mxu0 %v4583
        %6524 = vmatpush.bf16.msra.mxu0 %v4579
        %6525 = vmatpush.bf16.msra.mxu0 %v4575
        %6526 = vmatpush.bf16.msra.mxu0 %v4571
        %6527 = vmatpush.bf16.msra.mxu0 %v4567
        %6528 = vmatmul.bf16.gmra.mxu0 %v1270
        %v6529 = vpop.f32.mrf.mxu0
        %v6530 = vadd.f32 %v6517, %v6529
        %v6531 = vpop.f32.mrf.mxu0
        %6532 = vdwg.mxu0
        %6533 = vmatpush.bf16.msra.mxu0 %v4627
        %6534 = vmatpush.bf16.msra.mxu0 %v4623
        %6535 = vmatpush.bf16.msra.mxu0 %v4619
        %6536 = vmatpush.bf16.msra.mxu0 %v4615
        %6537 = vmatpush.bf16.msra.mxu0 %v4611
        %6538 = vmatpush.bf16.msra.mxu0 %v4607
        %6539 = vmatpush.bf16.msra.mxu0 %v4603
        %6540 = vmatpush.bf16.msra.mxu0 %v4599
        %6541 = vmatmul.bf16.gmra.mxu0 %v1271
        %v6542 = vpop.f32.mrf.mxu0
        %v6543 = vadd.f32 %v6530, %v6542
        %v6544 = vpop.f32.mrf.mxu0
        %6545 = vdwg.mxu0
        %6546 = vmatpush.bf16.msra.mxu0 %v4659
        %6547 = vmatpush.bf16.msra.mxu0 %v4655
        %6548 = vmatpush.bf16.msra.mxu0 %v4651
        %6549 = vmatpush.bf16.msra.mxu0 %v4647
        %6550 = vmatpush.bf16.msra.mxu0 %v4643
        %6551 = vmatpush.bf16.msra.mxu0 %v4639
        %6552 = vmatpush.bf16.msra.mxu0 %v4635
        %6553 = vmatpush.bf16.msra.mxu0 %v4631
        %6554 = vmatmul.bf16.gmra.mxu0 %v1272
        %v6555 = vpop.f32.mrf.mxu0
        %v6556 = vadd.f32 %v6543, %v6555
        %v6557 = vpop.f32.mrf.mxu0
        %6558 = vdwg.mxu0
        %6559 = vmatpush.bf16.msra.mxu0 %v4691
        %6560 = vmatpush.bf16.msra.mxu0 %v4687
        %6561 = vmatpush.bf16.msra.mxu0 %v4683
        %6562 = vmatpush.bf16.msra.mxu0 %v4679
        %6563 = vmatpush.bf16.msra.mxu0 %v4675
        %6564 = vmatpush.bf16.msra.mxu0 %v4671
        %6565 = vmatpush.bf16.msra.mxu0 %v4667
        %6566 = vmatpush.bf16.msra.mxu0 %v4663
        %6567 = vmatmul.bf16.gmra.mxu0 %v1275
        %v6568 = vpop.f32.mrf.mxu0
        %v6569 = vadd.f32 %v6556, %v6568
        %v6570 = vpop.f32.mrf.mxu0
        %6571 = vdwg.mxu0
        %6572 = vmatpush.bf16.msra.mxu0 %v4723
        %6573 = vmatpush.bf16.msra.mxu0 %v4719
        %6574 = vmatpush.bf16.msra.mxu0 %v4715
        %6575 = vmatpush.bf16.msra.mxu0 %v4711
        %6576 = vmatpush.bf16.msra.mxu0 %v4707
        %6577 = vmatpush.bf16.msra.mxu0 %v4703
        %6578 = vmatpush.bf16.msra.mxu0 %v4699
        %6579 = vmatpush.bf16.msra.mxu0 %v4695
        %6580 = vmatmul.bf16.gmra.mxu0 %v1276
        %v6581 = vpop.f32.mrf.mxu0
        %v6582 = vadd.f32 %v6569, %v6581
        %v6583 = vpop.f32.mrf.mxu0
        %6584 = vdwg.mxu0
        %6585 = vmatpush.bf16.msra.mxu0 %v4755
        %6586 = vmatpush.bf16.msra.mxu0 %v4751
        %6587 = vmatpush.bf16.msra.mxu0 %v4747
        %6588 = vmatpush.bf16.msra.mxu0 %v4743
        %6589 = vmatpush.bf16.msra.mxu0 %v4739
        %6590 = vmatpush.bf16.msra.mxu0 %v4735
        %6591 = vmatpush.bf16.msra.mxu0 %v4731
        %6592 = vmatpush.bf16.msra.mxu0 %v4727
        %6593 = vmatmul.bf16.gmra.mxu0 %v1277
        %v6594 = vpop.f32.mrf.mxu0
        %v6595 = vadd.f32 %v6582, %v6594
        %v6596 = vpop.f32.mrf.mxu0
        %6597 = vdwg.mxu0
        %6598 = vmatpush.bf16.msra.mxu0 %v4787
        %6599 = vmatpush.bf16.msra.mxu0 %v4783
        %6600 = vmatpush.bf16.msra.mxu0 %v4779
        %6601 = vmatpush.bf16.msra.mxu0 %v4775
        %6602 = vmatpush.bf16.msra.mxu0 %v4771
        %6603 = vmatpush.bf16.msra.mxu0 %v4767
        %6604 = vmatpush.bf16.msra.mxu0 %v4763
        %6605 = vmatpush.bf16.msra.mxu0 %v4759
        %6606 = vmatmul.bf16.gmra.mxu0 %v1278
        %v6607 = vpop.f32.mrf.mxu0
        %v6608 = vadd.f32 %v6595, %v6607
        %v6609 = vpop.f32.mrf.mxu0
        %6610 = vdwg.mxu0
        %6611 = vmatpush.bf16.msra.mxu0 %v4819
        %6612 = vmatpush.bf16.msra.mxu0 %v4815
        %6613 = vmatpush.bf16.msra.mxu0 %v4811
        %6614 = vmatpush.bf16.msra.mxu0 %v4807
        %6615 = vmatpush.bf16.msra.mxu0 %v4803
        %6616 = vmatpush.bf16.msra.mxu0 %v4799
        %6617 = vmatpush.bf16.msra.mxu0 %v4795
        %6618 = vmatpush.bf16.msra.mxu0 %v4791
        %6619 = vmatmul.bf16.gmra.mxu0 %v1279
        %v6620 = vpop.f32.mrf.mxu0
        %v6621 = vadd.f32 %v6608, %v6620
        %v6622 = vpop.f32.mrf.mxu0
        %6623 = vdwg.mxu0
        %6624 = vmatpush.bf16.msra.mxu0 %v4851
        %6625 = vmatpush.bf16.msra.mxu0 %v4847
        %6626 = vmatpush.bf16.msra.mxu0 %v4843
        %6627 = vmatpush.bf16.msra.mxu0 %v4839
        %6628 = vmatpush.bf16.msra.mxu0 %v4835
        %6629 = vmatpush.bf16.msra.mxu0 %v4831
        %6630 = vmatpush.bf16.msra.mxu0 %v4827
        %6631 = vmatpush.bf16.msra.mxu0 %v4823
        %6632 = vmatmul.bf16.gmra.mxu0 %v1280
        %v6633 = vpop.f32.mrf.mxu0
        %v6634 = vadd.f32 %v6621, %v6633
        %v6635 = vpop.f32.mrf.mxu0
        %6636 = vdwg.mxu0
        %6637 = vmatpush.bf16.msra.mxu0 %v4883
        %6638 = vmatpush.bf16.msra.mxu0 %v4879
        %6639 = vmatpush.bf16.msra.mxu0 %v4875
        %6640 = vmatpush.bf16.msra.mxu0 %v4871
        %6641 = vmatpush.bf16.msra.mxu0 %v4867
        %6642 = vmatpush.bf16.msra.mxu0 %v4863
        %6643 = vmatpush.bf16.msra.mxu0 %v4859
        %6644 = vmatpush.bf16.msra.mxu0 %v4855
        %6645 = vmatmul.bf16.gmra.mxu0 %v1281
        %v6646 = vpop.f32.mrf.mxu0
        %v6647 = vadd.f32 %v6634, %v6646
        %v6648 = vpop.f32.mrf.mxu0
        %6649 = vdwg.mxu0
        %6650 = vmatpush.bf16.msra.mxu0 %v4915
        %6651 = vmatpush.bf16.msra.mxu0 %v4911
        %6652 = vmatpush.bf16.msra.mxu0 %v4907
        %6653 = vmatpush.bf16.msra.mxu0 %v4903
        %6654 = vmatpush.bf16.msra.mxu0 %v4899
        %6655 = vmatpush.bf16.msra.mxu0 %v4895
        %6656 = vmatpush.bf16.msra.mxu0 %v4891
        %6657 = vmatpush.bf16.msra.mxu0 %v4887
        %6658 = vmatmul.bf16.gmra.mxu0 %v1282
        %v6659 = vpop.f32.mrf.mxu0
        %v6660 = vadd.f32 %v6647, %v6659
        %v6661 = vpop.f32.mrf.mxu0
        %6662 = vdwg.mxu0
        %6663 = vmatpush.bf16.msra.mxu0 %v4947
        %6664 = vmatpush.bf16.msra.mxu0 %v4943
        %6665 = vmatpush.bf16.msra.mxu0 %v4939
        %6666 = vmatpush.bf16.msra.mxu0 %v4935
        %6667 = vmatpush.bf16.msra.mxu0 %v4931
        %6668 = vmatpush.bf16.msra.mxu0 %v4927
        %6669 = vmatpush.bf16.msra.mxu0 %v4923
        %6670 = vmatpush.bf16.msra.mxu0 %v4919
        %6671 = vmatmul.bf16.gmra.mxu0 %v1285
        %v6672 = vpop.f32.mrf.mxu0
        %v6673 = vadd.f32 %v6660, %v6672
        %v6674 = vpop.f32.mrf.mxu0
        %6675 = vdwg.mxu0
        %6676 = vmatpush.bf16.msra.mxu0 %v4979
        %6677 = vmatpush.bf16.msra.mxu0 %v4975
        %6678 = vmatpush.bf16.msra.mxu0 %v4971
        %6679 = vmatpush.bf16.msra.mxu0 %v4967
        %6680 = vmatpush.bf16.msra.mxu0 %v4963
        %6681 = vmatpush.bf16.msra.mxu0 %v4959
        %6682 = vmatpush.bf16.msra.mxu0 %v4955
        %6683 = vmatpush.bf16.msra.mxu0 %v4951
        %6684 = vmatmul.bf16.gmra.mxu0 %v1286
        %v6685 = vpop.f32.mrf.mxu0
        %v6686 = vadd.f32 %v6673, %v6685
        %v6687 = vpop.f32.mrf.mxu0
        %6688 = vdwg.mxu0
        %6689 = vmatpush.bf16.msra.mxu0 %v5011
        %6690 = vmatpush.bf16.msra.mxu0 %v5007
        %6691 = vmatpush.bf16.msra.mxu0 %v5003
        %6692 = vmatpush.bf16.msra.mxu0 %v4999
        %6693 = vmatpush.bf16.msra.mxu0 %v4995
        %6694 = vmatpush.bf16.msra.mxu0 %v4991
        %6695 = vmatpush.bf16.msra.mxu0 %v4987
        %6696 = vmatpush.bf16.msra.mxu0 %v4983
        %6697 = vmatmul.bf16.gmra.mxu0 %v1287
        %v6698 = vpop.f32.mrf.mxu0
        %v6699 = vadd.f32 %v6686, %v6698
        %v6700 = vpop.f32.mrf.mxu0
        %6701 = vdwg.mxu0
        %6702 = vmatpush.bf16.msra.mxu0 %v5043
        %6703 = vmatpush.bf16.msra.mxu0 %v5039
        %6704 = vmatpush.bf16.msra.mxu0 %v5035
        %6705 = vmatpush.bf16.msra.mxu0 %v5031
        %6706 = vmatpush.bf16.msra.mxu0 %v5027
        %6707 = vmatpush.bf16.msra.mxu0 %v5023
        %6708 = vmatpush.bf16.msra.mxu0 %v5019
        %6709 = vmatpush.bf16.msra.mxu0 %v5015
        %6710 = vmatmul.bf16.gmra.mxu0 %v1288
        %v6711 = vpop.f32.mrf.mxu0
        %v6712 = vadd.f32 %v6699, %v6711
        %v6713 = vpop.f32.mrf.mxu0
        %6714 = vdwg.mxu0
        %6715 = vmatpush.bf16.msra.mxu0 %v5075
        %6716 = vmatpush.bf16.msra.mxu0 %v5071
        %6717 = vmatpush.bf16.msra.mxu0 %v5067
        %6718 = vmatpush.bf16.msra.mxu0 %v5063
        %6719 = vmatpush.bf16.msra.mxu0 %v5059
        %6720 = vmatpush.bf16.msra.mxu0 %v5055
        %6721 = vmatpush.bf16.msra.mxu0 %v5051
        %6722 = vmatpush.bf16.msra.mxu0 %v5047
        %6723 = vmatmul.bf16.gmra.mxu0 %v1289
        %v6724 = vpop.f32.mrf.mxu0
        %v6725 = vadd.f32 %v6712, %v6724
        %v6726 = vpop.f32.mrf.mxu0
        %6727 = vdwg.mxu0
        %6728 = vmatpush.bf16.msra.mxu0 %v5107
        %6729 = vmatpush.bf16.msra.mxu0 %v5103
        %6730 = vmatpush.bf16.msra.mxu0 %v5099
        %6731 = vmatpush.bf16.msra.mxu0 %v5095
        %6732 = vmatpush.bf16.msra.mxu0 %v5091
        %6733 = vmatpush.bf16.msra.mxu0 %v5087
        %6734 = vmatpush.bf16.msra.mxu0 %v5083
        %6735 = vmatpush.bf16.msra.mxu0 %v5079
        %6736 = vmatmul.bf16.gmra.mxu0 %v1290
        %v6737 = vpop.f32.mrf.mxu0
        %v6738 = vadd.f32 %v6725, %v6737
        %v6739 = vpop.f32.mrf.mxu0
        %6740 = vdwg.mxu0
        %6741 = vmatpush.bf16.msra.mxu0 %v5139
        %6742 = vmatpush.bf16.msra.mxu0 %v5135
        %6743 = vmatpush.bf16.msra.mxu0 %v5131
        %6744 = vmatpush.bf16.msra.mxu0 %v5127
        %6745 = vmatpush.bf16.msra.mxu0 %v5123
        %6746 = vmatpush.bf16.msra.mxu0 %v5119
        %6747 = vmatpush.bf16.msra.mxu0 %v5115
        %6748 = vmatpush.bf16.msra.mxu0 %v5111
        %6749 = vmatmul.bf16.gmra.mxu0 %v1291
        %v6750 = vpop.f32.mrf.mxu0
        %v6751 = vadd.f32 %v6738, %v6750
        %v6752 = vpop.f32.mrf.mxu0
        %6753 = vdwg.mxu0
        %6754 = vmatpush.bf16.msra.mxu0 %v5171
        %6755 = vmatpush.bf16.msra.mxu0 %v5167
        %6756 = vmatpush.bf16.msra.mxu0 %v5163
        %6757 = vmatpush.bf16.msra.mxu0 %v5159
        %6758 = vmatpush.bf16.msra.mxu0 %v5155
        %6759 = vmatpush.bf16.msra.mxu0 %v5151
        %6760 = vmatpush.bf16.msra.mxu0 %v5147
        %6761 = vmatpush.bf16.msra.mxu0 %v5143
        %6762 = vmatmul.bf16.gmra.mxu0 %v1292
        %v6763 = vpop.f32.mrf.mxu0
        %v6764 = vadd.f32 %v6751, %v6763
        %v6765 = vpop.f32.mrf.mxu0
        %6766 = vdwg.mxu0
        %6767 = vmatpush.bf16.msra.mxu0 %v5203
        %6768 = vmatpush.bf16.msra.mxu0 %v5199
        %6769 = vmatpush.bf16.msra.mxu0 %v5195
        %6770 = vmatpush.bf16.msra.mxu0 %v5191
        %6771 = vmatpush.bf16.msra.mxu0 %v5187
        %6772 = vmatpush.bf16.msra.mxu0 %v5183
        %6773 = vmatpush.bf16.msra.mxu0 %v5179
        %6774 = vmatpush.bf16.msra.mxu0 %v5175
        %6775 = vmatmul.bf16.gmra.mxu0 %v1295
        %v6776 = vpop.f32.mrf.mxu0
        %v6777 = vadd.f32 %v6764, %v6776
        %v6778 = vpop.f32.mrf.mxu0
        %6779 = vdwg.mxu0
        %6780 = vmatpush.bf16.msra.mxu0 %v5235
        %6781 = vmatpush.bf16.msra.mxu0 %v5231
        %6782 = vmatpush.bf16.msra.mxu0 %v5227
        %6783 = vmatpush.bf16.msra.mxu0 %v5223
        %6784 = vmatpush.bf16.msra.mxu0 %v5219
        %6785 = vmatpush.bf16.msra.mxu0 %v5215
        %6786 = vmatpush.bf16.msra.mxu0 %v5211
        %6787 = vmatpush.bf16.msra.mxu0 %v5207
        %6788 = vmatmul.bf16.gmra.mxu0 %v1296
        %v6789 = vpop.f32.mrf.mxu0
        %v6790 = vadd.f32 %v6777, %v6789
        %v6791 = vpop.f32.mrf.mxu0
        %6792 = vdwg.mxu0
        %6793 = vmatpush.bf16.msra.mxu0 %v5267
        %6794 = vmatpush.bf16.msra.mxu0 %v5263
        %6795 = vmatpush.bf16.msra.mxu0 %v5259
        %6796 = vmatpush.bf16.msra.mxu0 %v5255
        %6797 = vmatpush.bf16.msra.mxu0 %v5251
        %6798 = vmatpush.bf16.msra.mxu0 %v5247
        %6799 = vmatpush.bf16.msra.mxu0 %v5243
        %6800 = vmatpush.bf16.msra.mxu0 %v5239
        %6801 = vmatmul.bf16.gmra.mxu0 %v1297
        %v6802 = vpop.f32.mrf.mxu0
        %v6803 = vadd.f32 %v6790, %v6802
        %v6804 = vpop.f32.mrf.mxu0
        %6805 = vdwg.mxu0
        %6806 = vmatpush.bf16.msra.mxu0 %v5299
        %6807 = vmatpush.bf16.msra.mxu0 %v5295
        %6808 = vmatpush.bf16.msra.mxu0 %v5291
        %6809 = vmatpush.bf16.msra.mxu0 %v5287
        %6810 = vmatpush.bf16.msra.mxu0 %v5283
        %6811 = vmatpush.bf16.msra.mxu0 %v5279
        %6812 = vmatpush.bf16.msra.mxu0 %v5275
        %6813 = vmatpush.bf16.msra.mxu0 %v5271
        %6814 = vmatmul.bf16.gmra.mxu0 %v1298
        %v6815 = vpop.f32.mrf.mxu0
        %v6816 = vadd.f32 %v6803, %v6815
        %v6817 = vpop.f32.mrf.mxu0
        %6818 = vdwg.mxu0
        %6819 = vmatpush.bf16.msra.mxu0 %v5331
        %6820 = vmatpush.bf16.msra.mxu0 %v5327
        %6821 = vmatpush.bf16.msra.mxu0 %v5323
        %6822 = vmatpush.bf16.msra.mxu0 %v5319
        %6823 = vmatpush.bf16.msra.mxu0 %v5315
        %6824 = vmatpush.bf16.msra.mxu0 %v5311
        %6825 = vmatpush.bf16.msra.mxu0 %v5307
        %6826 = vmatpush.bf16.msra.mxu0 %v5303
        %6827 = vmatmul.bf16.gmra.mxu0 %v1299
        %v6828 = vpop.f32.mrf.mxu0
        %v6829 = vadd.f32 %v6816, %v6828
        %v6830 = vpop.f32.mrf.mxu0
        %6831 = vdwg.mxu0
        %6832 = vmatpush.bf16.msra.mxu0 %v5363
        %6833 = vmatpush.bf16.msra.mxu0 %v5359
        %6834 = vmatpush.bf16.msra.mxu0 %v5355
        %6835 = vmatpush.bf16.msra.mxu0 %v5351
        %6836 = vmatpush.bf16.msra.mxu0 %v5347
        %6837 = vmatpush.bf16.msra.mxu0 %v5343
        %6838 = vmatpush.bf16.msra.mxu0 %v5339
        %6839 = vmatpush.bf16.msra.mxu0 %v5335
        %6840 = vmatmul.bf16.gmra.mxu0 %v1300
        %v6841 = vpop.f32.mrf.mxu0
        %v6842 = vadd.f32 %v6829, %v6841
        %v6843 = vpop.f32.mrf.mxu0
        %6844 = vdwg.mxu0
        %6845 = vmatpush.bf16.msra.mxu0 %v5395
        %6846 = vmatpush.bf16.msra.mxu0 %v5391
        %6847 = vmatpush.bf16.msra.mxu0 %v5387
        %6848 = vmatpush.bf16.msra.mxu0 %v5383
        %6849 = vmatpush.bf16.msra.mxu0 %v5379
        %6850 = vmatpush.bf16.msra.mxu0 %v5375
        %6851 = vmatpush.bf16.msra.mxu0 %v5371
        %6852 = vmatpush.bf16.msra.mxu0 %v5367
        %6853 = vmatmul.bf16.gmra.mxu0 %v1301
        %v6854 = vpop.f32.mrf.mxu0
        %v6855 = vadd.f32 %v6842, %v6854
        %v6856 = vpop.f32.mrf.mxu0
        %6857 = vdwg.mxu0
        %6858 = vmatpush.bf16.msra.mxu0 %v5427
        %6859 = vmatpush.bf16.msra.mxu0 %v5423
        %6860 = vmatpush.bf16.msra.mxu0 %v5419
        %6861 = vmatpush.bf16.msra.mxu0 %v5415
        %6862 = vmatpush.bf16.msra.mxu0 %v5411
        %6863 = vmatpush.bf16.msra.mxu0 %v5407
        %6864 = vmatpush.bf16.msra.mxu0 %v5403
        %6865 = vmatpush.bf16.msra.mxu0 %v5399
        %6866 = vmatmul.bf16.gmra.mxu0 %v1302
        %v6867 = vpop.f32.mrf.mxu0
        %v6868 = vadd.f32 %v6855, %v6867
        %v6869 = vpop.f32.mrf.mxu0
        %6870 = vdwg.mxu0
        %6871 = vmatpush.bf16.msra.mxu0 %v4436
        %6872 = vmatpush.bf16.msra.mxu0 %v4432
        %6873 = vmatpush.bf16.msra.mxu0 %v4428
        %6874 = vmatpush.bf16.msra.mxu0 %v4424
        %6875 = vmatpush.bf16.msra.mxu0 %v4420
        %6876 = vmatpush.bf16.msra.mxu0 %v4416
        %6877 = vmatpush.bf16.msra.mxu0 %v4412
        %6878 = vmatpush.bf16.msra.mxu0 %v4408
        %6879 = vmatmul.bf16.gmra.mxu0 %v1265
        %v6880 = vpop.f32.mrf.mxu0
        %v6881 = vadd.f32 0.0, %v6880
        %v6882 = vpop.f32.mrf.mxu0
        %6883 = vdwg.mxu0
        %6884 = vmatpush.bf16.msra.mxu0 %v4468
        %6885 = vmatpush.bf16.msra.mxu0 %v4464
        %6886 = vmatpush.bf16.msra.mxu0 %v4460
        %6887 = vmatpush.bf16.msra.mxu0 %v4456
        %6888 = vmatpush.bf16.msra.mxu0 %v4452
        %6889 = vmatpush.bf16.msra.mxu0 %v4448
        %6890 = vmatpush.bf16.msra.mxu0 %v4444
        %6891 = vmatpush.bf16.msra.mxu0 %v4440
        %6892 = vmatmul.bf16.gmra.mxu0 %v1266
        %v6893 = vpop.f32.mrf.mxu0
        %v6894 = vadd.f32 %v6881, %v6893
        %v6895 = vpop.f32.mrf.mxu0
        %6896 = vdwg.mxu0
        %6897 = vmatpush.bf16.msra.mxu0 %v4500
        %6898 = vmatpush.bf16.msra.mxu0 %v4496
        %6899 = vmatpush.bf16.msra.mxu0 %v4492
        %6900 = vmatpush.bf16.msra.mxu0 %v4488
        %6901 = vmatpush.bf16.msra.mxu0 %v4484
        %6902 = vmatpush.bf16.msra.mxu0 %v4480
        %6903 = vmatpush.bf16.msra.mxu0 %v4476
        %6904 = vmatpush.bf16.msra.mxu0 %v4472
        %6905 = vmatmul.bf16.gmra.mxu0 %v1267
        %v6906 = vpop.f32.mrf.mxu0
        %v6907 = vadd.f32 %v6894, %v6906
        %v6908 = vpop.f32.mrf.mxu0
        %6909 = vdwg.mxu0
        %6910 = vmatpush.bf16.msra.mxu0 %v4532
        %6911 = vmatpush.bf16.msra.mxu0 %v4528
        %6912 = vmatpush.bf16.msra.mxu0 %v4524
        %6913 = vmatpush.bf16.msra.mxu0 %v4520
        %6914 = vmatpush.bf16.msra.mxu0 %v4516
        %6915 = vmatpush.bf16.msra.mxu0 %v4512
        %6916 = vmatpush.bf16.msra.mxu0 %v4508
        %6917 = vmatpush.bf16.msra.mxu0 %v4504
        %6918 = vmatmul.bf16.gmra.mxu0 %v1268
        %v6919 = vpop.f32.mrf.mxu0
        %v6920 = vadd.f32 %v6907, %v6919
        %v6921 = vpop.f32.mrf.mxu0
        %6922 = vdwg.mxu0
        %6923 = vmatpush.bf16.msra.mxu0 %v4564
        %6924 = vmatpush.bf16.msra.mxu0 %v4560
        %6925 = vmatpush.bf16.msra.mxu0 %v4556
        %6926 = vmatpush.bf16.msra.mxu0 %v4552
        %6927 = vmatpush.bf16.msra.mxu0 %v4548
        %6928 = vmatpush.bf16.msra.mxu0 %v4544
        %6929 = vmatpush.bf16.msra.mxu0 %v4540
        %6930 = vmatpush.bf16.msra.mxu0 %v4536
        %6931 = vmatmul.bf16.gmra.mxu0 %v1269
        %v6932 = vpop.f32.mrf.mxu0
        %v6933 = vadd.f32 %v6920, %v6932
        %v6934 = vpop.f32.mrf.mxu0
        %6935 = vdwg.mxu0
        %6936 = vmatpush.bf16.msra.mxu0 %v4596
        %6937 = vmatpush.bf16.msra.mxu0 %v4592
        %6938 = vmatpush.bf16.msra.mxu0 %v4588
        %6939 = vmatpush.bf16.msra.mxu0 %v4584
        %6940 = vmatpush.bf16.msra.mxu0 %v4580
        %6941 = vmatpush.bf16.msra.mxu0 %v4576
        %6942 = vmatpush.bf16.msra.mxu0 %v4572
        %6943 = vmatpush.bf16.msra.mxu0 %v4568
        %6944 = vmatmul.bf16.gmra.mxu0 %v1270
        %v6945 = vpop.f32.mrf.mxu0
        %v6946 = vadd.f32 %v6933, %v6945
        %v6947 = vpop.f32.mrf.mxu0
        %6948 = vdwg.mxu0
        %6949 = vmatpush.bf16.msra.mxu0 %v4628
        %6950 = vmatpush.bf16.msra.mxu0 %v4624
        %6951 = vmatpush.bf16.msra.mxu0 %v4620
        %6952 = vmatpush.bf16.msra.mxu0 %v4616
        %6953 = vmatpush.bf16.msra.mxu0 %v4612
        %6954 = vmatpush.bf16.msra.mxu0 %v4608
        %6955 = vmatpush.bf16.msra.mxu0 %v4604
        %6956 = vmatpush.bf16.msra.mxu0 %v4600
        %6957 = vmatmul.bf16.gmra.mxu0 %v1271
        %v6958 = vpop.f32.mrf.mxu0
        %v6959 = vadd.f32 %v6946, %v6958
        %v6960 = vpop.f32.mrf.mxu0
        %6961 = vdwg.mxu0
        %6962 = vmatpush.bf16.msra.mxu0 %v4660
        %6963 = vmatpush.bf16.msra.mxu0 %v4656
        %6964 = vmatpush.bf16.msra.mxu0 %v4652
        %6965 = vmatpush.bf16.msra.mxu0 %v4648
        %6966 = vmatpush.bf16.msra.mxu0 %v4644
        %6967 = vmatpush.bf16.msra.mxu0 %v4640
        %6968 = vmatpush.bf16.msra.mxu0 %v4636
        %6969 = vmatpush.bf16.msra.mxu0 %v4632
        %6970 = vmatmul.bf16.gmra.mxu0 %v1272
        %v6971 = vpop.f32.mrf.mxu0
        %v6972 = vadd.f32 %v6959, %v6971
        %v6973 = vpop.f32.mrf.mxu0
        %6974 = vdwg.mxu0
        %6975 = vmatpush.bf16.msra.mxu0 %v4692
        %6976 = vmatpush.bf16.msra.mxu0 %v4688
        %6977 = vmatpush.bf16.msra.mxu0 %v4684
        %6978 = vmatpush.bf16.msra.mxu0 %v4680
        %6979 = vmatpush.bf16.msra.mxu0 %v4676
        %6980 = vmatpush.bf16.msra.mxu0 %v4672
        %6981 = vmatpush.bf16.msra.mxu0 %v4668
        %6982 = vmatpush.bf16.msra.mxu0 %v4664
        %6983 = vmatmul.bf16.gmra.mxu0 %v1275
        %v6984 = vpop.f32.mrf.mxu0
        %v6985 = vadd.f32 %v6972, %v6984
        %v6986 = vpop.f32.mrf.mxu0
        %6987 = vdwg.mxu0
        %6988 = vmatpush.bf16.msra.mxu0 %v4724
        %6989 = vmatpush.bf16.msra.mxu0 %v4720
        %6990 = vmatpush.bf16.msra.mxu0 %v4716
        %6991 = vmatpush.bf16.msra.mxu0 %v4712
        %6992 = vmatpush.bf16.msra.mxu0 %v4708
        %6993 = vmatpush.bf16.msra.mxu0 %v4704
        %6994 = vmatpush.bf16.msra.mxu0 %v4700
        %6995 = vmatpush.bf16.msra.mxu0 %v4696
        %6996 = vmatmul.bf16.gmra.mxu0 %v1276
        %v6997 = vpop.f32.mrf.mxu0
        %v6998 = vadd.f32 %v6985, %v6997
        %v6999 = vpop.f32.mrf.mxu0
        %7000 = vdwg.mxu0
        %7001 = vmatpush.bf16.msra.mxu0 %v4756
        %7002 = vmatpush.bf16.msra.mxu0 %v4752
        %7003 = vmatpush.bf16.msra.mxu0 %v4748
        %7004 = vmatpush.bf16.msra.mxu0 %v4744
        %7005 = vmatpush.bf16.msra.mxu0 %v4740
        %7006 = vmatpush.bf16.msra.mxu0 %v4736
        %7007 = vmatpush.bf16.msra.mxu0 %v4732
        %7008 = vmatpush.bf16.msra.mxu0 %v4728
        %7009 = vmatmul.bf16.gmra.mxu0 %v1277
        %v7010 = vpop.f32.mrf.mxu0
        %v7011 = vadd.f32 %v6998, %v7010
        %v7012 = vpop.f32.mrf.mxu0
        %7013 = vdwg.mxu0
        %7014 = vmatpush.bf16.msra.mxu0 %v4788
        %7015 = vmatpush.bf16.msra.mxu0 %v4784
        %7016 = vmatpush.bf16.msra.mxu0 %v4780
        %7017 = vmatpush.bf16.msra.mxu0 %v4776
        %7018 = vmatpush.bf16.msra.mxu0 %v4772
        %7019 = vmatpush.bf16.msra.mxu0 %v4768
        %7020 = vmatpush.bf16.msra.mxu0 %v4764
        %7021 = vmatpush.bf16.msra.mxu0 %v4760
        %7022 = vmatmul.bf16.gmra.mxu0 %v1278
        %v7023 = vpop.f32.mrf.mxu0
        %v7024 = vadd.f32 %v7011, %v7023
        %v7025 = vpop.f32.mrf.mxu0
        %7026 = vdwg.mxu0
        %7027 = vmatpush.bf16.msra.mxu0 %v4820
        %7028 = vmatpush.bf16.msra.mxu0 %v4816
        %7029 = vmatpush.bf16.msra.mxu0 %v4812
        %7030 = vmatpush.bf16.msra.mxu0 %v4808
        %7031 = vmatpush.bf16.msra.mxu0 %v4804
        %7032 = vmatpush.bf16.msra.mxu0 %v4800
        %7033 = vmatpush.bf16.msra.mxu0 %v4796
        %7034 = vmatpush.bf16.msra.mxu0 %v4792
        %7035 = vmatmul.bf16.gmra.mxu0 %v1279
        %v7036 = vpop.f32.mrf.mxu0
        %v7037 = vadd.f32 %v7024, %v7036
        %v7038 = vpop.f32.mrf.mxu0
        %7039 = vdwg.mxu0
        %7040 = vmatpush.bf16.msra.mxu0 %v4852
        %7041 = vmatpush.bf16.msra.mxu0 %v4848
        %7042 = vmatpush.bf16.msra.mxu0 %v4844
        %7043 = vmatpush.bf16.msra.mxu0 %v4840
        %7044 = vmatpush.bf16.msra.mxu0 %v4836
        %7045 = vmatpush.bf16.msra.mxu0 %v4832
        %7046 = vmatpush.bf16.msra.mxu0 %v4828
        %7047 = vmatpush.bf16.msra.mxu0 %v4824
        %7048 = vmatmul.bf16.gmra.mxu0 %v1280
        %v7049 = vpop.f32.mrf.mxu0
        %v7050 = vadd.f32 %v7037, %v7049
        %v7051 = vpop.f32.mrf.mxu0
        %7052 = vdwg.mxu0
        %7053 = vmatpush.bf16.msra.mxu0 %v4884
        %7054 = vmatpush.bf16.msra.mxu0 %v4880
        %7055 = vmatpush.bf16.msra.mxu0 %v4876
        %7056 = vmatpush.bf16.msra.mxu0 %v4872
        %7057 = vmatpush.bf16.msra.mxu0 %v4868
        %7058 = vmatpush.bf16.msra.mxu0 %v4864
        %7059 = vmatpush.bf16.msra.mxu0 %v4860
        %7060 = vmatpush.bf16.msra.mxu0 %v4856
        %7061 = vmatmul.bf16.gmra.mxu0 %v1281
        %v7062 = vpop.f32.mrf.mxu0
        %v7063 = vadd.f32 %v7050, %v7062
        %v7064 = vpop.f32.mrf.mxu0
        %7065 = vdwg.mxu0
        %7066 = vmatpush.bf16.msra.mxu0 %v4916
        %7067 = vmatpush.bf16.msra.mxu0 %v4912
        %7068 = vmatpush.bf16.msra.mxu0 %v4908
        %7069 = vmatpush.bf16.msra.mxu0 %v4904
        %7070 = vmatpush.bf16.msra.mxu0 %v4900
        %7071 = vmatpush.bf16.msra.mxu0 %v4896
        %7072 = vmatpush.bf16.msra.mxu0 %v4892
        %7073 = vmatpush.bf16.msra.mxu0 %v4888
        %7074 = vmatmul.bf16.gmra.mxu0 %v1282
        %v7075 = vpop.f32.mrf.mxu0
        %v7076 = vadd.f32 %v7063, %v7075
        %v7077 = vpop.f32.mrf.mxu0
        %7078 = vdwg.mxu0
        %7079 = vmatpush.bf16.msra.mxu0 %v4948
        %7080 = vmatpush.bf16.msra.mxu0 %v4944
        %7081 = vmatpush.bf16.msra.mxu0 %v4940
        %7082 = vmatpush.bf16.msra.mxu0 %v4936
        %7083 = vmatpush.bf16.msra.mxu0 %v4932
        %7084 = vmatpush.bf16.msra.mxu0 %v4928
        %7085 = vmatpush.bf16.msra.mxu0 %v4924
        %7086 = vmatpush.bf16.msra.mxu0 %v4920
        %7087 = vmatmul.bf16.gmra.mxu0 %v1285
        %v7088 = vpop.f32.mrf.mxu0
        %v7089 = vadd.f32 %v7076, %v7088
        %v7090 = vpop.f32.mrf.mxu0
        %7091 = vdwg.mxu0
        %7092 = vmatpush.bf16.msra.mxu0 %v4980
        %7093 = vmatpush.bf16.msra.mxu0 %v4976
        %7094 = vmatpush.bf16.msra.mxu0 %v4972
        %7095 = vmatpush.bf16.msra.mxu0 %v4968
        %7096 = vmatpush.bf16.msra.mxu0 %v4964
        %7097 = vmatpush.bf16.msra.mxu0 %v4960
        %7098 = vmatpush.bf16.msra.mxu0 %v4956
        %7099 = vmatpush.bf16.msra.mxu0 %v4952
        %7100 = vmatmul.bf16.gmra.mxu0 %v1286
        %v7101 = vpop.f32.mrf.mxu0
        %v7102 = vadd.f32 %v7089, %v7101
        %v7103 = vpop.f32.mrf.mxu0
        %7104 = vdwg.mxu0
        %7105 = vmatpush.bf16.msra.mxu0 %v5012
        %7106 = vmatpush.bf16.msra.mxu0 %v5008
        %7107 = vmatpush.bf16.msra.mxu0 %v5004
        %7108 = vmatpush.bf16.msra.mxu0 %v5000
        %7109 = vmatpush.bf16.msra.mxu0 %v4996
        %7110 = vmatpush.bf16.msra.mxu0 %v4992
        %7111 = vmatpush.bf16.msra.mxu0 %v4988
        %7112 = vmatpush.bf16.msra.mxu0 %v4984
        %7113 = vmatmul.bf16.gmra.mxu0 %v1287
        %v7114 = vpop.f32.mrf.mxu0
        %v7115 = vadd.f32 %v7102, %v7114
        %v7116 = vpop.f32.mrf.mxu0
        %7117 = vdwg.mxu0
        %7118 = vmatpush.bf16.msra.mxu0 %v5044
        %7119 = vmatpush.bf16.msra.mxu0 %v5040
        %7120 = vmatpush.bf16.msra.mxu0 %v5036
        %7121 = vmatpush.bf16.msra.mxu0 %v5032
        %7122 = vmatpush.bf16.msra.mxu0 %v5028
        %7123 = vmatpush.bf16.msra.mxu0 %v5024
        %7124 = vmatpush.bf16.msra.mxu0 %v5020
        %7125 = vmatpush.bf16.msra.mxu0 %v5016
        %7126 = vmatmul.bf16.gmra.mxu0 %v1288
        %v7127 = vpop.f32.mrf.mxu0
        %v7128 = vadd.f32 %v7115, %v7127
        %v7129 = vpop.f32.mrf.mxu0
        %7130 = vdwg.mxu0
        %7131 = vmatpush.bf16.msra.mxu0 %v5076
        %7132 = vmatpush.bf16.msra.mxu0 %v5072
        %7133 = vmatpush.bf16.msra.mxu0 %v5068
        %7134 = vmatpush.bf16.msra.mxu0 %v5064
        %7135 = vmatpush.bf16.msra.mxu0 %v5060
        %7136 = vmatpush.bf16.msra.mxu0 %v5056
        %7137 = vmatpush.bf16.msra.mxu0 %v5052
        %7138 = vmatpush.bf16.msra.mxu0 %v5048
        %7139 = vmatmul.bf16.gmra.mxu0 %v1289
        %v7140 = vpop.f32.mrf.mxu0
        %v7141 = vadd.f32 %v7128, %v7140
        %v7142 = vpop.f32.mrf.mxu0
        %7143 = vdwg.mxu0
        %7144 = vmatpush.bf16.msra.mxu0 %v5108
        %7145 = vmatpush.bf16.msra.mxu0 %v5104
        %7146 = vmatpush.bf16.msra.mxu0 %v5100
        %7147 = vmatpush.bf16.msra.mxu0 %v5096
        %7148 = vmatpush.bf16.msra.mxu0 %v5092
        %7149 = vmatpush.bf16.msra.mxu0 %v5088
        %7150 = vmatpush.bf16.msra.mxu0 %v5084
        %7151 = vmatpush.bf16.msra.mxu0 %v5080
        %7152 = vmatmul.bf16.gmra.mxu0 %v1290
        %v7153 = vpop.f32.mrf.mxu0
        %v7154 = vadd.f32 %v7141, %v7153
        %v7155 = vpop.f32.mrf.mxu0
        %7156 = vdwg.mxu0
        %7157 = vmatpush.bf16.msra.mxu0 %v5140
        %7158 = vmatpush.bf16.msra.mxu0 %v5136
        %7159 = vmatpush.bf16.msra.mxu0 %v5132
        %7160 = vmatpush.bf16.msra.mxu0 %v5128
        %7161 = vmatpush.bf16.msra.mxu0 %v5124
        %7162 = vmatpush.bf16.msra.mxu0 %v5120
        %7163 = vmatpush.bf16.msra.mxu0 %v5116
        %7164 = vmatpush.bf16.msra.mxu0 %v5112
        %7165 = vmatmul.bf16.gmra.mxu0 %v1291
        %v7166 = vpop.f32.mrf.mxu0
        %v7167 = vadd.f32 %v7154, %v7166
        %v7168 = vpop.f32.mrf.mxu0
        %7169 = vdwg.mxu0
        %7170 = vmatpush.bf16.msra.mxu0 %v5172
        %7171 = vmatpush.bf16.msra.mxu0 %v5168
        %7172 = vmatpush.bf16.msra.mxu0 %v5164
        %7173 = vmatpush.bf16.msra.mxu0 %v5160
        %7174 = vmatpush.bf16.msra.mxu0 %v5156
        %7175 = vmatpush.bf16.msra.mxu0 %v5152
        %7176 = vmatpush.bf16.msra.mxu0 %v5148
        %7177 = vmatpush.bf16.msra.mxu0 %v5144
        %7178 = vmatmul.bf16.gmra.mxu0 %v1292
        %v7179 = vpop.f32.mrf.mxu0
        %v7180 = vadd.f32 %v7167, %v7179
        %v7181 = vpop.f32.mrf.mxu0
        %7182 = vdwg.mxu0
        %7183 = vmatpush.bf16.msra.mxu0 %v5204
        %7184 = vmatpush.bf16.msra.mxu0 %v5200
        %7185 = vmatpush.bf16.msra.mxu0 %v5196
        %7186 = vmatpush.bf16.msra.mxu0 %v5192
        %7187 = vmatpush.bf16.msra.mxu0 %v5188
        %7188 = vmatpush.bf16.msra.mxu0 %v5184
        %7189 = vmatpush.bf16.msra.mxu0 %v5180
        %7190 = vmatpush.bf16.msra.mxu0 %v5176
        %7191 = vmatmul.bf16.gmra.mxu0 %v1295
        %v7192 = vpop.f32.mrf.mxu0
        %v7193 = vadd.f32 %v7180, %v7192
        %v7194 = vpop.f32.mrf.mxu0
        %7195 = vdwg.mxu0
        %7196 = vmatpush.bf16.msra.mxu0 %v5236
        %7197 = vmatpush.bf16.msra.mxu0 %v5232
        %7198 = vmatpush.bf16.msra.mxu0 %v5228
        %7199 = vmatpush.bf16.msra.mxu0 %v5224
        %7200 = vmatpush.bf16.msra.mxu0 %v5220
        %7201 = vmatpush.bf16.msra.mxu0 %v5216
        %7202 = vmatpush.bf16.msra.mxu0 %v5212
        %7203 = vmatpush.bf16.msra.mxu0 %v5208
        %7204 = vmatmul.bf16.gmra.mxu0 %v1296
        %v7205 = vpop.f32.mrf.mxu0
        %v7206 = vadd.f32 %v7193, %v7205
        %v7207 = vpop.f32.mrf.mxu0
        %7208 = vdwg.mxu0
        %7209 = vmatpush.bf16.msra.mxu0 %v5268
        %7210 = vmatpush.bf16.msra.mxu0 %v5264
        %7211 = vmatpush.bf16.msra.mxu0 %v5260
        %7212 = vmatpush.bf16.msra.mxu0 %v5256
        %7213 = vmatpush.bf16.msra.mxu0 %v5252
        %7214 = vmatpush.bf16.msra.mxu0 %v5248
        %7215 = vmatpush.bf16.msra.mxu0 %v5244
        %7216 = vmatpush.bf16.msra.mxu0 %v5240
        %7217 = vmatmul.bf16.gmra.mxu0 %v1297
        %v7218 = vpop.f32.mrf.mxu0
        %v7219 = vadd.f32 %v7206, %v7218
        %v7220 = vpop.f32.mrf.mxu0
        %7221 = vdwg.mxu0
        %7222 = vmatpush.bf16.msra.mxu0 %v5300
        %7223 = vmatpush.bf16.msra.mxu0 %v5296
        %7224 = vmatpush.bf16.msra.mxu0 %v5292
        %7225 = vmatpush.bf16.msra.mxu0 %v5288
        %7226 = vmatpush.bf16.msra.mxu0 %v5284
        %7227 = vmatpush.bf16.msra.mxu0 %v5280
        %7228 = vmatpush.bf16.msra.mxu0 %v5276
        %7229 = vmatpush.bf16.msra.mxu0 %v5272
        %7230 = vmatmul.bf16.gmra.mxu0 %v1298
        %v7231 = vpop.f32.mrf.mxu0
        %v7232 = vadd.f32 %v7219, %v7231
        %v7233 = vpop.f32.mrf.mxu0
        %7234 = vdwg.mxu0
        %7235 = vmatpush.bf16.msra.mxu0 %v5332
        %7236 = vmatpush.bf16.msra.mxu0 %v5328
        %7237 = vmatpush.bf16.msra.mxu0 %v5324
        %7238 = vmatpush.bf16.msra.mxu0 %v5320
        %7239 = vmatpush.bf16.msra.mxu0 %v5316
        %7240 = vmatpush.bf16.msra.mxu0 %v5312
        %7241 = vmatpush.bf16.msra.mxu0 %v5308
        %7242 = vmatpush.bf16.msra.mxu0 %v5304
        %7243 = vmatmul.bf16.gmra.mxu0 %v1299
        %v7244 = vpop.f32.mrf.mxu0
        %v7245 = vadd.f32 %v7232, %v7244
        %v7246 = vpop.f32.mrf.mxu0
        %7247 = vdwg.mxu0
        %7248 = vmatpush.bf16.msra.mxu0 %v5364
        %7249 = vmatpush.bf16.msra.mxu0 %v5360
        %7250 = vmatpush.bf16.msra.mxu0 %v5356
        %7251 = vmatpush.bf16.msra.mxu0 %v5352
        %7252 = vmatpush.bf16.msra.mxu0 %v5348
        %7253 = vmatpush.bf16.msra.mxu0 %v5344
        %7254 = vmatpush.bf16.msra.mxu0 %v5340
        %7255 = vmatpush.bf16.msra.mxu0 %v5336
        %7256 = vmatmul.bf16.gmra.mxu0 %v1300
        %v7257 = vpop.f32.mrf.mxu0
        %v7258 = vadd.f32 %v7245, %v7257
        %v7259 = vpop.f32.mrf.mxu0
        %7260 = vdwg.mxu0
        %7261 = vmatpush.bf16.msra.mxu0 %v5396
        %7262 = vmatpush.bf16.msra.mxu0 %v5392
        %7263 = vmatpush.bf16.msra.mxu0 %v5388
        %7264 = vmatpush.bf16.msra.mxu0 %v5384
        %7265 = vmatpush.bf16.msra.mxu0 %v5380
        %7266 = vmatpush.bf16.msra.mxu0 %v5376
        %7267 = vmatpush.bf16.msra.mxu0 %v5372
        %7268 = vmatpush.bf16.msra.mxu0 %v5368
        %7269 = vmatmul.bf16.gmra.mxu0 %v1301
        %v7270 = vpop.f32.mrf.mxu0
        %v7271 = vadd.f32 %v7258, %v7270
        %v7272 = vpop.f32.mrf.mxu0
        %7273 = vdwg.mxu0
        %7274 = vmatpush.bf16.msra.mxu0 %v5428
        %7275 = vmatpush.bf16.msra.mxu0 %v5424
        %7276 = vmatpush.bf16.msra.mxu0 %v5420
        %7277 = vmatpush.bf16.msra.mxu0 %v5416
        %7278 = vmatpush.bf16.msra.mxu0 %v5412
        %7279 = vmatpush.bf16.msra.mxu0 %v5408
        %7280 = vmatpush.bf16.msra.mxu0 %v5404
        %7281 = vmatpush.bf16.msra.mxu0 %v5400
        %7282 = vmatmul.bf16.gmra.mxu0 %v1302
        %v7283 = vpop.f32.mrf.mxu0
        %v7284 = vadd.f32 %v7271, %v7283
        %v7285 = vpop.f32.mrf.mxu0
        %7286 = vdwg.mxu0
        %7287 = vmatpush.bf16.msra.mxu0 %v4437
        %7288 = vmatpush.bf16.msra.mxu0 %v4433
        %7289 = vmatpush.bf16.msra.mxu0 %v4429
        %7290 = vmatpush.bf16.msra.mxu0 %v4425
        %7291 = vmatpush.bf16.msra.mxu0 %v4421
        %7292 = vmatpush.bf16.msra.mxu0 %v4417
        %7293 = vmatpush.bf16.msra.mxu0 %v4413
        %7294 = vmatpush.bf16.msra.mxu0 %v4409
        %7295 = vmatmul.bf16.gmra.mxu0 %v1265
        %v7296 = vpop.f32.mrf.mxu0
        %v7297 = vadd.f32 0.0, %v7296
        %v7298 = vpop.f32.mrf.mxu0
        %7299 = vdwg.mxu0
        %7300 = vmatpush.bf16.msra.mxu0 %v4469
        %7301 = vmatpush.bf16.msra.mxu0 %v4465
        %7302 = vmatpush.bf16.msra.mxu0 %v4461
        %7303 = vmatpush.bf16.msra.mxu0 %v4457
        %7304 = vmatpush.bf16.msra.mxu0 %v4453
        %7305 = vmatpush.bf16.msra.mxu0 %v4449
        %7306 = vmatpush.bf16.msra.mxu0 %v4445
        %7307 = vmatpush.bf16.msra.mxu0 %v4441
        %7308 = vmatmul.bf16.gmra.mxu0 %v1266
        %v7309 = vpop.f32.mrf.mxu0
        %v7310 = vadd.f32 %v7297, %v7309
        %v7311 = vpop.f32.mrf.mxu0
        %7312 = vdwg.mxu0
        %7313 = vmatpush.bf16.msra.mxu0 %v4501
        %7314 = vmatpush.bf16.msra.mxu0 %v4497
        %7315 = vmatpush.bf16.msra.mxu0 %v4493
        %7316 = vmatpush.bf16.msra.mxu0 %v4489
        %7317 = vmatpush.bf16.msra.mxu0 %v4485
        %7318 = vmatpush.bf16.msra.mxu0 %v4481
        %7319 = vmatpush.bf16.msra.mxu0 %v4477
        %7320 = vmatpush.bf16.msra.mxu0 %v4473
        %7321 = vmatmul.bf16.gmra.mxu0 %v1267
        %v7322 = vpop.f32.mrf.mxu0
        %v7323 = vadd.f32 %v7310, %v7322
        %v7324 = vpop.f32.mrf.mxu0
        %7325 = vdwg.mxu0
        %7326 = vmatpush.bf16.msra.mxu0 %v4533
        %7327 = vmatpush.bf16.msra.mxu0 %v4529
        %7328 = vmatpush.bf16.msra.mxu0 %v4525
        %7329 = vmatpush.bf16.msra.mxu0 %v4521
        %7330 = vmatpush.bf16.msra.mxu0 %v4517
        %7331 = vmatpush.bf16.msra.mxu0 %v4513
        %7332 = vmatpush.bf16.msra.mxu0 %v4509
        %7333 = vmatpush.bf16.msra.mxu0 %v4505
        %7334 = vmatmul.bf16.gmra.mxu0 %v1268
        %v7335 = vpop.f32.mrf.mxu0
        %v7336 = vadd.f32 %v7323, %v7335
        %v7337 = vpop.f32.mrf.mxu0
        %7338 = vdwg.mxu0
        %7339 = vmatpush.bf16.msra.mxu0 %v4565
        %7340 = vmatpush.bf16.msra.mxu0 %v4561
        %7341 = vmatpush.bf16.msra.mxu0 %v4557
        %7342 = vmatpush.bf16.msra.mxu0 %v4553
        %7343 = vmatpush.bf16.msra.mxu0 %v4549
        %7344 = vmatpush.bf16.msra.mxu0 %v4545
        %7345 = vmatpush.bf16.msra.mxu0 %v4541
        %7346 = vmatpush.bf16.msra.mxu0 %v4537
        %7347 = vmatmul.bf16.gmra.mxu0 %v1269
        %v7348 = vpop.f32.mrf.mxu0
        %v7349 = vadd.f32 %v7336, %v7348
        %v7350 = vpop.f32.mrf.mxu0
        %7351 = vdwg.mxu0
        %7352 = vmatpush.bf16.msra.mxu0 %v4597
        %7353 = vmatpush.bf16.msra.mxu0 %v4593
        %7354 = vmatpush.bf16.msra.mxu0 %v4589
        %7355 = vmatpush.bf16.msra.mxu0 %v4585
        %7356 = vmatpush.bf16.msra.mxu0 %v4581
        %7357 = vmatpush.bf16.msra.mxu0 %v4577
        %7358 = vmatpush.bf16.msra.mxu0 %v4573
        %7359 = vmatpush.bf16.msra.mxu0 %v4569
        %7360 = vmatmul.bf16.gmra.mxu0 %v1270
        %v7361 = vpop.f32.mrf.mxu0
        %v7362 = vadd.f32 %v7349, %v7361
        %v7363 = vpop.f32.mrf.mxu0
        %7364 = vdwg.mxu0
        %7365 = vmatpush.bf16.msra.mxu0 %v4629
        %7366 = vmatpush.bf16.msra.mxu0 %v4625
        %7367 = vmatpush.bf16.msra.mxu0 %v4621
        %7368 = vmatpush.bf16.msra.mxu0 %v4617
        %7369 = vmatpush.bf16.msra.mxu0 %v4613
        %7370 = vmatpush.bf16.msra.mxu0 %v4609
        %7371 = vmatpush.bf16.msra.mxu0 %v4605
        %7372 = vmatpush.bf16.msra.mxu0 %v4601
        %7373 = vmatmul.bf16.gmra.mxu0 %v1271
        %v7374 = vpop.f32.mrf.mxu0
        %v7375 = vadd.f32 %v7362, %v7374
        %v7376 = vpop.f32.mrf.mxu0
        %7377 = vdwg.mxu0
        %7378 = vmatpush.bf16.msra.mxu0 %v4661
        %7379 = vmatpush.bf16.msra.mxu0 %v4657
        %7380 = vmatpush.bf16.msra.mxu0 %v4653
        %7381 = vmatpush.bf16.msra.mxu0 %v4649
        %7382 = vmatpush.bf16.msra.mxu0 %v4645
        %7383 = vmatpush.bf16.msra.mxu0 %v4641
        %7384 = vmatpush.bf16.msra.mxu0 %v4637
        %7385 = vmatpush.bf16.msra.mxu0 %v4633
        %7386 = vmatmul.bf16.gmra.mxu0 %v1272
        %v7387 = vpop.f32.mrf.mxu0
        %v7388 = vadd.f32 %v7375, %v7387
        %v7389 = vpop.f32.mrf.mxu0
        %7390 = vdwg.mxu0
        %7391 = vmatpush.bf16.msra.mxu0 %v4693
        %7392 = vmatpush.bf16.msra.mxu0 %v4689
        %7393 = vmatpush.bf16.msra.mxu0 %v4685
        %7394 = vmatpush.bf16.msra.mxu0 %v4681
        %7395 = vmatpush.bf16.msra.mxu0 %v4677
        %7396 = vmatpush.bf16.msra.mxu0 %v4673
        %7397 = vmatpush.bf16.msra.mxu0 %v4669
        %7398 = vmatpush.bf16.msra.mxu0 %v4665
        %7399 = vmatmul.bf16.gmra.mxu0 %v1275
        %v7400 = vpop.f32.mrf.mxu0
        %v7401 = vadd.f32 %v7388, %v7400
        %v7402 = vpop.f32.mrf.mxu0
        %7403 = vdwg.mxu0
        %7404 = vmatpush.bf16.msra.mxu0 %v4725
        %7405 = vmatpush.bf16.msra.mxu0 %v4721
        %7406 = vmatpush.bf16.msra.mxu0 %v4717
        %7407 = vmatpush.bf16.msra.mxu0 %v4713
        %7408 = vmatpush.bf16.msra.mxu0 %v4709
        %7409 = vmatpush.bf16.msra.mxu0 %v4705
        %7410 = vmatpush.bf16.msra.mxu0 %v4701
        %7411 = vmatpush.bf16.msra.mxu0 %v4697
        %7412 = vmatmul.bf16.gmra.mxu0 %v1276
        %v7413 = vpop.f32.mrf.mxu0
        %v7414 = vadd.f32 %v7401, %v7413
        %v7415 = vpop.f32.mrf.mxu0
        %7416 = vdwg.mxu0
        %7417 = vmatpush.bf16.msra.mxu0 %v4757
        %7418 = vmatpush.bf16.msra.mxu0 %v4753
        %7419 = vmatpush.bf16.msra.mxu0 %v4749
        %7420 = vmatpush.bf16.msra.mxu0 %v4745
        %7421 = vmatpush.bf16.msra.mxu0 %v4741
        %7422 = vmatpush.bf16.msra.mxu0 %v4737
        %7423 = vmatpush.bf16.msra.mxu0 %v4733
        %7424 = vmatpush.bf16.msra.mxu0 %v4729
        %7425 = vmatmul.bf16.gmra.mxu0 %v1277
        %v7426 = vpop.f32.mrf.mxu0
        %v7427 = vadd.f32 %v7414, %v7426
        %v7428 = vpop.f32.mrf.mxu0
        %7429 = vdwg.mxu0
        %7430 = vmatpush.bf16.msra.mxu0 %v4789
        %7431 = vmatpush.bf16.msra.mxu0 %v4785
        %7432 = vmatpush.bf16.msra.mxu0 %v4781
        %7433 = vmatpush.bf16.msra.mxu0 %v4777
        %7434 = vmatpush.bf16.msra.mxu0 %v4773
        %7435 = vmatpush.bf16.msra.mxu0 %v4769
        %7436 = vmatpush.bf16.msra.mxu0 %v4765
        %7437 = vmatpush.bf16.msra.mxu0 %v4761
        %7438 = vmatmul.bf16.gmra.mxu0 %v1278
        %v7439 = vpop.f32.mrf.mxu0
        %v7440 = vadd.f32 %v7427, %v7439
        %v7441 = vpop.f32.mrf.mxu0
        %7442 = vdwg.mxu0
        %7443 = vmatpush.bf16.msra.mxu0 %v4821
        %7444 = vmatpush.bf16.msra.mxu0 %v4817
        %7445 = vmatpush.bf16.msra.mxu0 %v4813
        %7446 = vmatpush.bf16.msra.mxu0 %v4809
        %7447 = vmatpush.bf16.msra.mxu0 %v4805
        %7448 = vmatpush.bf16.msra.mxu0 %v4801
        %7449 = vmatpush.bf16.msra.mxu0 %v4797
        %7450 = vmatpush.bf16.msra.mxu0 %v4793
        %7451 = vmatmul.bf16.gmra.mxu0 %v1279
        %v7452 = vpop.f32.mrf.mxu0
        %v7453 = vadd.f32 %v7440, %v7452
        %v7454 = vpop.f32.mrf.mxu0
        %7455 = vdwg.mxu0
        %7456 = vmatpush.bf16.msra.mxu0 %v4853
        %7457 = vmatpush.bf16.msra.mxu0 %v4849
        %7458 = vmatpush.bf16.msra.mxu0 %v4845
        %7459 = vmatpush.bf16.msra.mxu0 %v4841
        %7460 = vmatpush.bf16.msra.mxu0 %v4837
        %7461 = vmatpush.bf16.msra.mxu0 %v4833
        %7462 = vmatpush.bf16.msra.mxu0 %v4829
        %7463 = vmatpush.bf16.msra.mxu0 %v4825
        %7464 = vmatmul.bf16.gmra.mxu0 %v1280
        %v7465 = vpop.f32.mrf.mxu0
        %v7466 = vadd.f32 %v7453, %v7465
        %v7467 = vpop.f32.mrf.mxu0
        %7468 = vdwg.mxu0
        %7469 = vmatpush.bf16.msra.mxu0 %v4885
        %7470 = vmatpush.bf16.msra.mxu0 %v4881
        %7471 = vmatpush.bf16.msra.mxu0 %v4877
        %7472 = vmatpush.bf16.msra.mxu0 %v4873
        %7473 = vmatpush.bf16.msra.mxu0 %v4869
        %7474 = vmatpush.bf16.msra.mxu0 %v4865
        %7475 = vmatpush.bf16.msra.mxu0 %v4861
        %7476 = vmatpush.bf16.msra.mxu0 %v4857
        %7477 = vmatmul.bf16.gmra.mxu0 %v1281
        %v7478 = vpop.f32.mrf.mxu0
        %v7479 = vadd.f32 %v7466, %v7478
        %v7480 = vpop.f32.mrf.mxu0
        %7481 = vdwg.mxu0
        %7482 = vmatpush.bf16.msra.mxu0 %v4917
        %7483 = vmatpush.bf16.msra.mxu0 %v4913
        %7484 = vmatpush.bf16.msra.mxu0 %v4909
        %7485 = vmatpush.bf16.msra.mxu0 %v4905
        %7486 = vmatpush.bf16.msra.mxu0 %v4901
        %7487 = vmatpush.bf16.msra.mxu0 %v4897
        %7488 = vmatpush.bf16.msra.mxu0 %v4893
        %7489 = vmatpush.bf16.msra.mxu0 %v4889
        %7490 = vmatmul.bf16.gmra.mxu0 %v1282
        %v7491 = vpop.f32.mrf.mxu0
        %v7492 = vadd.f32 %v7479, %v7491
        %v7493 = vpop.f32.mrf.mxu0
        %7494 = vdwg.mxu0
        %7495 = vmatpush.bf16.msra.mxu0 %v4949
        %7496 = vmatpush.bf16.msra.mxu0 %v4945
        %7497 = vmatpush.bf16.msra.mxu0 %v4941
        %7498 = vmatpush.bf16.msra.mxu0 %v4937
        %7499 = vmatpush.bf16.msra.mxu0 %v4933
        %7500 = vmatpush.bf16.msra.mxu0 %v4929
        %7501 = vmatpush.bf16.msra.mxu0 %v4925
        %7502 = vmatpush.bf16.msra.mxu0 %v4921
        %7503 = vmatmul.bf16.gmra.mxu0 %v1285
        %v7504 = vpop.f32.mrf.mxu0
        %v7505 = vadd.f32 %v7492, %v7504
        %v7506 = vpop.f32.mrf.mxu0
        %7507 = vdwg.mxu0
        %7508 = vmatpush.bf16.msra.mxu0 %v4981
        %7509 = vmatpush.bf16.msra.mxu0 %v4977
        %7510 = vmatpush.bf16.msra.mxu0 %v4973
        %7511 = vmatpush.bf16.msra.mxu0 %v4969
        %7512 = vmatpush.bf16.msra.mxu0 %v4965
        %7513 = vmatpush.bf16.msra.mxu0 %v4961
        %7514 = vmatpush.bf16.msra.mxu0 %v4957
        %7515 = vmatpush.bf16.msra.mxu0 %v4953
        %7516 = vmatmul.bf16.gmra.mxu0 %v1286
        %v7517 = vpop.f32.mrf.mxu0
        %v7518 = vadd.f32 %v7505, %v7517
        %v7519 = vpop.f32.mrf.mxu0
        %7520 = vdwg.mxu0
        %7521 = vmatpush.bf16.msra.mxu0 %v5013
        %7522 = vmatpush.bf16.msra.mxu0 %v5009
        %7523 = vmatpush.bf16.msra.mxu0 %v5005
        %7524 = vmatpush.bf16.msra.mxu0 %v5001
        %7525 = vmatpush.bf16.msra.mxu0 %v4997
        %7526 = vmatpush.bf16.msra.mxu0 %v4993
        %7527 = vmatpush.bf16.msra.mxu0 %v4989
        %7528 = vmatpush.bf16.msra.mxu0 %v4985
        %7529 = vmatmul.bf16.gmra.mxu0 %v1287
        %v7530 = vpop.f32.mrf.mxu0
        %v7531 = vadd.f32 %v7518, %v7530
        %v7532 = vpop.f32.mrf.mxu0
        %7533 = vdwg.mxu0
        %7534 = vmatpush.bf16.msra.mxu0 %v5045
        %7535 = vmatpush.bf16.msra.mxu0 %v5041
        %7536 = vmatpush.bf16.msra.mxu0 %v5037
        %7537 = vmatpush.bf16.msra.mxu0 %v5033
        %7538 = vmatpush.bf16.msra.mxu0 %v5029
        %7539 = vmatpush.bf16.msra.mxu0 %v5025
        %7540 = vmatpush.bf16.msra.mxu0 %v5021
        %7541 = vmatpush.bf16.msra.mxu0 %v5017
        %7542 = vmatmul.bf16.gmra.mxu0 %v1288
        %v7543 = vpop.f32.mrf.mxu0
        %v7544 = vadd.f32 %v7531, %v7543
        %v7545 = vpop.f32.mrf.mxu0
        %7546 = vdwg.mxu0
        %7547 = vmatpush.bf16.msra.mxu0 %v5077
        %7548 = vmatpush.bf16.msra.mxu0 %v5073
        %7549 = vmatpush.bf16.msra.mxu0 %v5069
        %7550 = vmatpush.bf16.msra.mxu0 %v5065
        %7551 = vmatpush.bf16.msra.mxu0 %v5061
        %7552 = vmatpush.bf16.msra.mxu0 %v5057
        %7553 = vmatpush.bf16.msra.mxu0 %v5053
        %7554 = vmatpush.bf16.msra.mxu0 %v5049
        %7555 = vmatmul.bf16.gmra.mxu0 %v1289
        %v7556 = vpop.f32.mrf.mxu0
        %v7557 = vadd.f32 %v7544, %v7556
        %v7558 = vpop.f32.mrf.mxu0
        %7559 = vdwg.mxu0
        %7560 = vmatpush.bf16.msra.mxu0 %v5109
        %7561 = vmatpush.bf16.msra.mxu0 %v5105
        %7562 = vmatpush.bf16.msra.mxu0 %v5101
        %7563 = vmatpush.bf16.msra.mxu0 %v5097
        %7564 = vmatpush.bf16.msra.mxu0 %v5093
        %7565 = vmatpush.bf16.msra.mxu0 %v5089
        %7566 = vmatpush.bf16.msra.mxu0 %v5085
        %7567 = vmatpush.bf16.msra.mxu0 %v5081
        %7568 = vmatmul.bf16.gmra.mxu0 %v1290
        %v7569 = vpop.f32.mrf.mxu0
        %v7570 = vadd.f32 %v7557, %v7569
        %v7571 = vpop.f32.mrf.mxu0
        %7572 = vdwg.mxu0
        %7573 = vmatpush.bf16.msra.mxu0 %v5141
        %7574 = vmatpush.bf16.msra.mxu0 %v5137
        %7575 = vmatpush.bf16.msra.mxu0 %v5133
        %7576 = vmatpush.bf16.msra.mxu0 %v5129
        %7577 = vmatpush.bf16.msra.mxu0 %v5125
        %7578 = vmatpush.bf16.msra.mxu0 %v5121
        %7579 = vmatpush.bf16.msra.mxu0 %v5117
        %7580 = vmatpush.bf16.msra.mxu0 %v5113
        %7581 = vmatmul.bf16.gmra.mxu0 %v1291
        %v7582 = vpop.f32.mrf.mxu0
        %v7583 = vadd.f32 %v7570, %v7582
        %v7584 = vpop.f32.mrf.mxu0
        %7585 = vdwg.mxu0
        %7586 = vmatpush.bf16.msra.mxu0 %v5173
        %7587 = vmatpush.bf16.msra.mxu0 %v5169
        %7588 = vmatpush.bf16.msra.mxu0 %v5165
        %7589 = vmatpush.bf16.msra.mxu0 %v5161
        %7590 = vmatpush.bf16.msra.mxu0 %v5157
        %7591 = vmatpush.bf16.msra.mxu0 %v5153
        %7592 = vmatpush.bf16.msra.mxu0 %v5149
        %7593 = vmatpush.bf16.msra.mxu0 %v5145
        %7594 = vmatmul.bf16.gmra.mxu0 %v1292
        %v7595 = vpop.f32.mrf.mxu0
        %v7596 = vadd.f32 %v7583, %v7595
        %v7597 = vpop.f32.mrf.mxu0
        %7598 = vdwg.mxu0
        %7599 = vmatpush.bf16.msra.mxu0 %v5205
        %7600 = vmatpush.bf16.msra.mxu0 %v5201
        %7601 = vmatpush.bf16.msra.mxu0 %v5197
        %7602 = vmatpush.bf16.msra.mxu0 %v5193
        %7603 = vmatpush.bf16.msra.mxu0 %v5189
        %7604 = vmatpush.bf16.msra.mxu0 %v5185
        %7605 = vmatpush.bf16.msra.mxu0 %v5181
        %7606 = vmatpush.bf16.msra.mxu0 %v5177
        %7607 = vmatmul.bf16.gmra.mxu0 %v1295
        %v7608 = vpop.f32.mrf.mxu0
        %v7609 = vadd.f32 %v7596, %v7608
        %v7610 = vpop.f32.mrf.mxu0
        %7611 = vdwg.mxu0
        %7612 = vmatpush.bf16.msra.mxu0 %v5237
        %7613 = vmatpush.bf16.msra.mxu0 %v5233
        %7614 = vmatpush.bf16.msra.mxu0 %v5229
        %7615 = vmatpush.bf16.msra.mxu0 %v5225
        %7616 = vmatpush.bf16.msra.mxu0 %v5221
        %7617 = vmatpush.bf16.msra.mxu0 %v5217
        %7618 = vmatpush.bf16.msra.mxu0 %v5213
        %7619 = vmatpush.bf16.msra.mxu0 %v5209
        %7620 = vmatmul.bf16.gmra.mxu0 %v1296
        %v7621 = vpop.f32.mrf.mxu0
        %v7622 = vadd.f32 %v7609, %v7621
        %v7623 = vpop.f32.mrf.mxu0
        %7624 = vdwg.mxu0
        %7625 = vmatpush.bf16.msra.mxu0 %v5269
        %7626 = vmatpush.bf16.msra.mxu0 %v5265
        %7627 = vmatpush.bf16.msra.mxu0 %v5261
        %7628 = vmatpush.bf16.msra.mxu0 %v5257
        %7629 = vmatpush.bf16.msra.mxu0 %v5253
        %7630 = vmatpush.bf16.msra.mxu0 %v5249
        %7631 = vmatpush.bf16.msra.mxu0 %v5245
        %7632 = vmatpush.bf16.msra.mxu0 %v5241
        %7633 = vmatmul.bf16.gmra.mxu0 %v1297
        %v7634 = vpop.f32.mrf.mxu0
        %v7635 = vadd.f32 %v7622, %v7634
        %v7636 = vpop.f32.mrf.mxu0
        %7637 = vdwg.mxu0
        %7638 = vmatpush.bf16.msra.mxu0 %v5301
        %7639 = vmatpush.bf16.msra.mxu0 %v5297
        %7640 = vmatpush.bf16.msra.mxu0 %v5293
        %7641 = vmatpush.bf16.msra.mxu0 %v5289
        %7642 = vmatpush.bf16.msra.mxu0 %v5285
        %7643 = vmatpush.bf16.msra.mxu0 %v5281
        %7644 = vmatpush.bf16.msra.mxu0 %v5277
        %7645 = vmatpush.bf16.msra.mxu0 %v5273
        %7646 = vmatmul.bf16.gmra.mxu0 %v1298
        %v7647 = vpop.f32.mrf.mxu0
        %v7648 = vadd.f32 %v7635, %v7647
        %v7649 = vpop.f32.mrf.mxu0
        %7650 = vdwg.mxu0
        %7651 = vmatpush.bf16.msra.mxu0 %v5333
        %7652 = vmatpush.bf16.msra.mxu0 %v5329
        %7653 = vmatpush.bf16.msra.mxu0 %v5325
        %7654 = vmatpush.bf16.msra.mxu0 %v5321
        %7655 = vmatpush.bf16.msra.mxu0 %v5317
        %7656 = vmatpush.bf16.msra.mxu0 %v5313
        %7657 = vmatpush.bf16.msra.mxu0 %v5309
        %7658 = vmatpush.bf16.msra.mxu0 %v5305
        %7659 = vmatmul.bf16.gmra.mxu0 %v1299
        %v7660 = vpop.f32.mrf.mxu0
        %v7661 = vadd.f32 %v7648, %v7660
        %v7662 = vpop.f32.mrf.mxu0
        %7663 = vdwg.mxu0
        %7664 = vmatpush.bf16.msra.mxu0 %v5365
        %7665 = vmatpush.bf16.msra.mxu0 %v5361
        %7666 = vmatpush.bf16.msra.mxu0 %v5357
        %7667 = vmatpush.bf16.msra.mxu0 %v5353
        %7668 = vmatpush.bf16.msra.mxu0 %v5349
        %7669 = vmatpush.bf16.msra.mxu0 %v5345
        %7670 = vmatpush.bf16.msra.mxu0 %v5341
        %7671 = vmatpush.bf16.msra.mxu0 %v5337
        %7672 = vmatmul.bf16.gmra.mxu0 %v1300
        %v7673 = vpop.f32.mrf.mxu0
        %v7674 = vadd.f32 %v7661, %v7673
        %v7675 = vpop.f32.mrf.mxu0
        %7676 = vdwg.mxu0
        %7677 = vmatpush.bf16.msra.mxu0 %v5397
        %7678 = vmatpush.bf16.msra.mxu0 %v5393
        %7679 = vmatpush.bf16.msra.mxu0 %v5389
        %7680 = vmatpush.bf16.msra.mxu0 %v5385
        %7681 = vmatpush.bf16.msra.mxu0 %v5381
        %7682 = vmatpush.bf16.msra.mxu0 %v5377
        %7683 = vmatpush.bf16.msra.mxu0 %v5373
        %7684 = vmatpush.bf16.msra.mxu0 %v5369
        %7685 = vmatmul.bf16.gmra.mxu0 %v1301
        %v7686 = vpop.f32.mrf.mxu0
        %v7687 = vadd.f32 %v7674, %v7686
        %v7688 = vpop.f32.mrf.mxu0
        %7689 = vdwg.mxu0
        %7690 = vmatpush.bf16.msra.mxu0 %v5429
        %7691 = vmatpush.bf16.msra.mxu0 %v5425
        %7692 = vmatpush.bf16.msra.mxu0 %v5421
        %7693 = vmatpush.bf16.msra.mxu0 %v5417
        %7694 = vmatpush.bf16.msra.mxu0 %v5413
        %7695 = vmatpush.bf16.msra.mxu0 %v5409
        %7696 = vmatpush.bf16.msra.mxu0 %v5405
        %7697 = vmatpush.bf16.msra.mxu0 %v5401
        %7698 = vmatmul.bf16.gmra.mxu0 %v1302
        %v7699 = vpop.f32.mrf.mxu0
        %v7700 = vadd.f32 %v7687, %v7699
        %v7701 = vpop.f32.mrf.mxu0
        %7702 = vdwg.mxu0
        %7703 = vmatpush.bf16.msra.mxu0 %v4438
        %7704 = vmatpush.bf16.msra.mxu0 %v4434
        %7705 = vmatpush.bf16.msra.mxu0 %v4430
        %7706 = vmatpush.bf16.msra.mxu0 %v4426
        %7707 = vmatpush.bf16.msra.mxu0 %v4422
        %7708 = vmatpush.bf16.msra.mxu0 %v4418
        %7709 = vmatpush.bf16.msra.mxu0 %v4414
        %7710 = vmatpush.bf16.msra.mxu0 %v4410
        %7711 = vmatmul.bf16.gmra.mxu0 %v1265
        %v7712 = vpop.f32.mrf.mxu0
        %v7713 = vadd.f32 0.0, %v7712
        %v7714 = vpop.f32.mrf.mxu0
        %7715 = vdwg.mxu0
        %7716 = vmatpush.bf16.msra.mxu0 %v4470
        %7717 = vmatpush.bf16.msra.mxu0 %v4466
        %7718 = vmatpush.bf16.msra.mxu0 %v4462
        %7719 = vmatpush.bf16.msra.mxu0 %v4458
        %7720 = vmatpush.bf16.msra.mxu0 %v4454
        %7721 = vmatpush.bf16.msra.mxu0 %v4450
        %7722 = vmatpush.bf16.msra.mxu0 %v4446
        %7723 = vmatpush.bf16.msra.mxu0 %v4442
        %7724 = vmatmul.bf16.gmra.mxu0 %v1266
        %v7725 = vpop.f32.mrf.mxu0
        %v7726 = vadd.f32 %v7713, %v7725
        %v7727 = vpop.f32.mrf.mxu0
        %7728 = vdwg.mxu0
        %7729 = vmatpush.bf16.msra.mxu0 %v4502
        %7730 = vmatpush.bf16.msra.mxu0 %v4498
        %7731 = vmatpush.bf16.msra.mxu0 %v4494
        %7732 = vmatpush.bf16.msra.mxu0 %v4490
        %7733 = vmatpush.bf16.msra.mxu0 %v4486
        %7734 = vmatpush.bf16.msra.mxu0 %v4482
        %7735 = vmatpush.bf16.msra.mxu0 %v4478
        %7736 = vmatpush.bf16.msra.mxu0 %v4474
        %7737 = vmatmul.bf16.gmra.mxu0 %v1267
        %v7738 = vpop.f32.mrf.mxu0
        %v7739 = vadd.f32 %v7726, %v7738
        %v7740 = vpop.f32.mrf.mxu0
        %7741 = vdwg.mxu0
        %7742 = vmatpush.bf16.msra.mxu0 %v4534
        %7743 = vmatpush.bf16.msra.mxu0 %v4530
        %7744 = vmatpush.bf16.msra.mxu0 %v4526
        %7745 = vmatpush.bf16.msra.mxu0 %v4522
        %7746 = vmatpush.bf16.msra.mxu0 %v4518
        %7747 = vmatpush.bf16.msra.mxu0 %v4514
        %7748 = vmatpush.bf16.msra.mxu0 %v4510
        %7749 = vmatpush.bf16.msra.mxu0 %v4506
        %7750 = vmatmul.bf16.gmra.mxu0 %v1268
        %v7751 = vpop.f32.mrf.mxu0
        %v7752 = vadd.f32 %v7739, %v7751
        %v7753 = vpop.f32.mrf.mxu0
        %7754 = vdwg.mxu0
        %7755 = vmatpush.bf16.msra.mxu0 %v4566
        %7756 = vmatpush.bf16.msra.mxu0 %v4562
        %7757 = vmatpush.bf16.msra.mxu0 %v4558
        %7758 = vmatpush.bf16.msra.mxu0 %v4554
        %7759 = vmatpush.bf16.msra.mxu0 %v4550
        %7760 = vmatpush.bf16.msra.mxu0 %v4546
        %7761 = vmatpush.bf16.msra.mxu0 %v4542
        %7762 = vmatpush.bf16.msra.mxu0 %v4538
        %7763 = vmatmul.bf16.gmra.mxu0 %v1269
        %v7764 = vpop.f32.mrf.mxu0
        %v7765 = vadd.f32 %v7752, %v7764
        %v7766 = vpop.f32.mrf.mxu0
        %7767 = vdwg.mxu0
        %7768 = vmatpush.bf16.msra.mxu0 %v4598
        %7769 = vmatpush.bf16.msra.mxu0 %v4594
        %7770 = vmatpush.bf16.msra.mxu0 %v4590
        %7771 = vmatpush.bf16.msra.mxu0 %v4586
        %7772 = vmatpush.bf16.msra.mxu0 %v4582
        %7773 = vmatpush.bf16.msra.mxu0 %v4578
        %7774 = vmatpush.bf16.msra.mxu0 %v4574
        %7775 = vmatpush.bf16.msra.mxu0 %v4570
        %7776 = vmatmul.bf16.gmra.mxu0 %v1270
        %v7777 = vpop.f32.mrf.mxu0
        %v7778 = vadd.f32 %v7765, %v7777
        %v7779 = vpop.f32.mrf.mxu0
        %7780 = vdwg.mxu0
        %7781 = vmatpush.bf16.msra.mxu0 %v4630
        %7782 = vmatpush.bf16.msra.mxu0 %v4626
        %7783 = vmatpush.bf16.msra.mxu0 %v4622
        %7784 = vmatpush.bf16.msra.mxu0 %v4618
        %7785 = vmatpush.bf16.msra.mxu0 %v4614
        %7786 = vmatpush.bf16.msra.mxu0 %v4610
        %7787 = vmatpush.bf16.msra.mxu0 %v4606
        %7788 = vmatpush.bf16.msra.mxu0 %v4602
        %7789 = vmatmul.bf16.gmra.mxu0 %v1271
        %v7790 = vpop.f32.mrf.mxu0
        %v7791 = vadd.f32 %v7778, %v7790
        %v7792 = vpop.f32.mrf.mxu0
        %7793 = vdwg.mxu0
        %7794 = vmatpush.bf16.msra.mxu0 %v4662
        %7795 = vmatpush.bf16.msra.mxu0 %v4658
        %7796 = vmatpush.bf16.msra.mxu0 %v4654
        %7797 = vmatpush.bf16.msra.mxu0 %v4650
        %7798 = vmatpush.bf16.msra.mxu0 %v4646
        %7799 = vmatpush.bf16.msra.mxu0 %v4642
        %7800 = vmatpush.bf16.msra.mxu0 %v4638
        %7801 = vmatpush.bf16.msra.mxu0 %v4634
        %7802 = vmatmul.bf16.gmra.mxu0 %v1272
        %v7803 = vpop.f32.mrf.mxu0
        %v7804 = vadd.f32 %v7791, %v7803
        %v7805 = vpop.f32.mrf.mxu0
        %7806 = vdwg.mxu0
        %7807 = vmatpush.bf16.msra.mxu0 %v4694
        %7808 = vmatpush.bf16.msra.mxu0 %v4690
        %7809 = vmatpush.bf16.msra.mxu0 %v4686
        %7810 = vmatpush.bf16.msra.mxu0 %v4682
        %7811 = vmatpush.bf16.msra.mxu0 %v4678
        %7812 = vmatpush.bf16.msra.mxu0 %v4674
        %7813 = vmatpush.bf16.msra.mxu0 %v4670
        %7814 = vmatpush.bf16.msra.mxu0 %v4666
        %7815 = vmatmul.bf16.gmra.mxu0 %v1275
        %v7816 = vpop.f32.mrf.mxu0
        %v7817 = vadd.f32 %v7804, %v7816
        %v7818 = vpop.f32.mrf.mxu0
        %7819 = vdwg.mxu0
        %7820 = vmatpush.bf16.msra.mxu0 %v4726
        %7821 = vmatpush.bf16.msra.mxu0 %v4722
        %7822 = vmatpush.bf16.msra.mxu0 %v4718
        %7823 = vmatpush.bf16.msra.mxu0 %v4714
        %7824 = vmatpush.bf16.msra.mxu0 %v4710
        %7825 = vmatpush.bf16.msra.mxu0 %v4706
        %7826 = vmatpush.bf16.msra.mxu0 %v4702
        %7827 = vmatpush.bf16.msra.mxu0 %v4698
        %7828 = vmatmul.bf16.gmra.mxu0 %v1276
        %v7829 = vpop.f32.mrf.mxu0
        %v7830 = vadd.f32 %v7817, %v7829
        %v7831 = vpop.f32.mrf.mxu0
        %7832 = vdwg.mxu0
        %7833 = vmatpush.bf16.msra.mxu0 %v4758
        %7834 = vmatpush.bf16.msra.mxu0 %v4754
        %7835 = vmatpush.bf16.msra.mxu0 %v4750
        %7836 = vmatpush.bf16.msra.mxu0 %v4746
        %7837 = vmatpush.bf16.msra.mxu0 %v4742
        %7838 = vmatpush.bf16.msra.mxu0 %v4738
        %7839 = vmatpush.bf16.msra.mxu0 %v4734
        %7840 = vmatpush.bf16.msra.mxu0 %v4730
        %7841 = vmatmul.bf16.gmra.mxu0 %v1277
        %v7842 = vpop.f32.mrf.mxu0
        %v7843 = vadd.f32 %v7830, %v7842
        %v7844 = vpop.f32.mrf.mxu0
        %7845 = vdwg.mxu0
        %7846 = vmatpush.bf16.msra.mxu0 %v4790
        %7847 = vmatpush.bf16.msra.mxu0 %v4786
        %7848 = vmatpush.bf16.msra.mxu0 %v4782
        %7849 = vmatpush.bf16.msra.mxu0 %v4778
        %7850 = vmatpush.bf16.msra.mxu0 %v4774
        %7851 = vmatpush.bf16.msra.mxu0 %v4770
        %7852 = vmatpush.bf16.msra.mxu0 %v4766
        %7853 = vmatpush.bf16.msra.mxu0 %v4762
        %7854 = vmatmul.bf16.gmra.mxu0 %v1278
        %v7855 = vpop.f32.mrf.mxu0
        %v7856 = vadd.f32 %v7843, %v7855
        %v7857 = vpop.f32.mrf.mxu0
        %7858 = vdwg.mxu0
        %7859 = vmatpush.bf16.msra.mxu0 %v4822
        %7860 = vmatpush.bf16.msra.mxu0 %v4818
        %7861 = vmatpush.bf16.msra.mxu0 %v4814
        %7862 = vmatpush.bf16.msra.mxu0 %v4810
        %7863 = vmatpush.bf16.msra.mxu0 %v4806
        %7864 = vmatpush.bf16.msra.mxu0 %v4802
        %7865 = vmatpush.bf16.msra.mxu0 %v4798
        %7866 = vmatpush.bf16.msra.mxu0 %v4794
        %7867 = vmatmul.bf16.gmra.mxu0 %v1279
        %v7868 = vpop.f32.mrf.mxu0
        %v7869 = vadd.f32 %v7856, %v7868
        %v7870 = vpop.f32.mrf.mxu0
        %7871 = vdwg.mxu0
        %7872 = vmatpush.bf16.msra.mxu0 %v4854
        %7873 = vmatpush.bf16.msra.mxu0 %v4850
        %7874 = vmatpush.bf16.msra.mxu0 %v4846
        %7875 = vmatpush.bf16.msra.mxu0 %v4842
        %7876 = vmatpush.bf16.msra.mxu0 %v4838
        %7877 = vmatpush.bf16.msra.mxu0 %v4834
        %7878 = vmatpush.bf16.msra.mxu0 %v4830
        %7879 = vmatpush.bf16.msra.mxu0 %v4826
        %7880 = vmatmul.bf16.gmra.mxu0 %v1280
        %v7881 = vpop.f32.mrf.mxu0
        %v7882 = vadd.f32 %v7869, %v7881
        %v7883 = vpop.f32.mrf.mxu0
        %7884 = vdwg.mxu0
        %7885 = vmatpush.bf16.msra.mxu0 %v4886
        %7886 = vmatpush.bf16.msra.mxu0 %v4882
        %7887 = vmatpush.bf16.msra.mxu0 %v4878
        %7888 = vmatpush.bf16.msra.mxu0 %v4874
        %7889 = vmatpush.bf16.msra.mxu0 %v4870
        %7890 = vmatpush.bf16.msra.mxu0 %v4866
        %7891 = vmatpush.bf16.msra.mxu0 %v4862
        %7892 = vmatpush.bf16.msra.mxu0 %v4858
        %7893 = vmatmul.bf16.gmra.mxu0 %v1281
        %v7894 = vpop.f32.mrf.mxu0
        %v7895 = vadd.f32 %v7882, %v7894
        %v7896 = vpop.f32.mrf.mxu0
        %7897 = vdwg.mxu0
        %7898 = vmatpush.bf16.msra.mxu0 %v4918
        %7899 = vmatpush.bf16.msra.mxu0 %v4914
        %7900 = vmatpush.bf16.msra.mxu0 %v4910
        %7901 = vmatpush.bf16.msra.mxu0 %v4906
        %7902 = vmatpush.bf16.msra.mxu0 %v4902
        %7903 = vmatpush.bf16.msra.mxu0 %v4898
        %7904 = vmatpush.bf16.msra.mxu0 %v4894
        %7905 = vmatpush.bf16.msra.mxu0 %v4890
        %7906 = vmatmul.bf16.gmra.mxu0 %v1282
        %v7907 = vpop.f32.mrf.mxu0
        %v7908 = vadd.f32 %v7895, %v7907
        %v7909 = vpop.f32.mrf.mxu0
        %7910 = vdwg.mxu0
        %7911 = vmatpush.bf16.msra.mxu0 %v4950
        %7912 = vmatpush.bf16.msra.mxu0 %v4946
        %7913 = vmatpush.bf16.msra.mxu0 %v4942
        %7914 = vmatpush.bf16.msra.mxu0 %v4938
        %7915 = vmatpush.bf16.msra.mxu0 %v4934
        %7916 = vmatpush.bf16.msra.mxu0 %v4930
        %7917 = vmatpush.bf16.msra.mxu0 %v4926
        %7918 = vmatpush.bf16.msra.mxu0 %v4922
        %7919 = vmatmul.bf16.gmra.mxu0 %v1285
        %v7920 = vpop.f32.mrf.mxu0
        %v7921 = vadd.f32 %v7908, %v7920
        %v7922 = vpop.f32.mrf.mxu0
        %7923 = vdwg.mxu0
        %7924 = vmatpush.bf16.msra.mxu0 %v4982
        %7925 = vmatpush.bf16.msra.mxu0 %v4978
        %7926 = vmatpush.bf16.msra.mxu0 %v4974
        %7927 = vmatpush.bf16.msra.mxu0 %v4970
        %7928 = vmatpush.bf16.msra.mxu0 %v4966
        %7929 = vmatpush.bf16.msra.mxu0 %v4962
        %7930 = vmatpush.bf16.msra.mxu0 %v4958
        %7931 = vmatpush.bf16.msra.mxu0 %v4954
        %7932 = vmatmul.bf16.gmra.mxu0 %v1286
        %v7933 = vpop.f32.mrf.mxu0
        %v7934 = vadd.f32 %v7921, %v7933
        %v7935 = vpop.f32.mrf.mxu0
        %7936 = vdwg.mxu0
        %7937 = vmatpush.bf16.msra.mxu0 %v5014
        %7938 = vmatpush.bf16.msra.mxu0 %v5010
        %7939 = vmatpush.bf16.msra.mxu0 %v5006
        %7940 = vmatpush.bf16.msra.mxu0 %v5002
        %7941 = vmatpush.bf16.msra.mxu0 %v4998
        %7942 = vmatpush.bf16.msra.mxu0 %v4994
        %7943 = vmatpush.bf16.msra.mxu0 %v4990
        %7944 = vmatpush.bf16.msra.mxu0 %v4986
        %7945 = vmatmul.bf16.gmra.mxu0 %v1287
        %v7946 = vpop.f32.mrf.mxu0
        %v7947 = vadd.f32 %v7934, %v7946
        %v7948 = vpop.f32.mrf.mxu0
        %7949 = vdwg.mxu0
        %7950 = vmatpush.bf16.msra.mxu0 %v5046
        %7951 = vmatpush.bf16.msra.mxu0 %v5042
        %7952 = vmatpush.bf16.msra.mxu0 %v5038
        %7953 = vmatpush.bf16.msra.mxu0 %v5034
        %7954 = vmatpush.bf16.msra.mxu0 %v5030
        %7955 = vmatpush.bf16.msra.mxu0 %v5026
        %7956 = vmatpush.bf16.msra.mxu0 %v5022
        %7957 = vmatpush.bf16.msra.mxu0 %v5018
        %7958 = vmatmul.bf16.gmra.mxu0 %v1288
        %v7959 = vpop.f32.mrf.mxu0
        %v7960 = vadd.f32 %v7947, %v7959
        %v7961 = vpop.f32.mrf.mxu0
        %7962 = vdwg.mxu0
        %7963 = vmatpush.bf16.msra.mxu0 %v5078
        %7964 = vmatpush.bf16.msra.mxu0 %v5074
        %7965 = vmatpush.bf16.msra.mxu0 %v5070
        %7966 = vmatpush.bf16.msra.mxu0 %v5066
        %7967 = vmatpush.bf16.msra.mxu0 %v5062
        %7968 = vmatpush.bf16.msra.mxu0 %v5058
        %7969 = vmatpush.bf16.msra.mxu0 %v5054
        %7970 = vmatpush.bf16.msra.mxu0 %v5050
        %7971 = vmatmul.bf16.gmra.mxu0 %v1289
        %v7972 = vpop.f32.mrf.mxu0
        %v7973 = vadd.f32 %v7960, %v7972
        %v7974 = vpop.f32.mrf.mxu0
        %7975 = vdwg.mxu0
        %7976 = vmatpush.bf16.msra.mxu0 %v5110
        %7977 = vmatpush.bf16.msra.mxu0 %v5106
        %7978 = vmatpush.bf16.msra.mxu0 %v5102
        %7979 = vmatpush.bf16.msra.mxu0 %v5098
        %7980 = vmatpush.bf16.msra.mxu0 %v5094
        %7981 = vmatpush.bf16.msra.mxu0 %v5090
        %7982 = vmatpush.bf16.msra.mxu0 %v5086
        %7983 = vmatpush.bf16.msra.mxu0 %v5082
        %7984 = vmatmul.bf16.gmra.mxu0 %v1290
        %v7985 = vpop.f32.mrf.mxu0
        %v7986 = vadd.f32 %v7973, %v7985
        %v7987 = vpop.f32.mrf.mxu0
        %7988 = vdwg.mxu0
        %7989 = vmatpush.bf16.msra.mxu0 %v5142
        %7990 = vmatpush.bf16.msra.mxu0 %v5138
        %7991 = vmatpush.bf16.msra.mxu0 %v5134
        %7992 = vmatpush.bf16.msra.mxu0 %v5130
        %7993 = vmatpush.bf16.msra.mxu0 %v5126
        %7994 = vmatpush.bf16.msra.mxu0 %v5122
        %7995 = vmatpush.bf16.msra.mxu0 %v5118
        %7996 = vmatpush.bf16.msra.mxu0 %v5114
        %7997 = vmatmul.bf16.gmra.mxu0 %v1291
        %v7998 = vpop.f32.mrf.mxu0
        %v7999 = vadd.f32 %v7986, %v7998
        %v8000 = vpop.f32.mrf.mxu0
        %8001 = vdwg.mxu0
        %8002 = vmatpush.bf16.msra.mxu0 %v5174
        %8003 = vmatpush.bf16.msra.mxu0 %v5170
        %8004 = vmatpush.bf16.msra.mxu0 %v5166
        %8005 = vmatpush.bf16.msra.mxu0 %v5162
        %8006 = vmatpush.bf16.msra.mxu0 %v5158
        %8007 = vmatpush.bf16.msra.mxu0 %v5154
        %8008 = vmatpush.bf16.msra.mxu0 %v5150
        %8009 = vmatpush.bf16.msra.mxu0 %v5146
        %8010 = vmatmul.bf16.gmra.mxu0 %v1292
        %v8011 = vpop.f32.mrf.mxu0
        %v8012 = vadd.f32 %v7999, %v8011
        %v8013 = vpop.f32.mrf.mxu0
        %8014 = vdwg.mxu0
        %8015 = vmatpush.bf16.msra.mxu0 %v5206
        %8016 = vmatpush.bf16.msra.mxu0 %v5202
        %8017 = vmatpush.bf16.msra.mxu0 %v5198
        %8018 = vmatpush.bf16.msra.mxu0 %v5194
        %8019 = vmatpush.bf16.msra.mxu0 %v5190
        %8020 = vmatpush.bf16.msra.mxu0 %v5186
        %8021 = vmatpush.bf16.msra.mxu0 %v5182
        %8022 = vmatpush.bf16.msra.mxu0 %v5178
        %8023 = vmatmul.bf16.gmra.mxu0 %v1295
        %v8024 = vpop.f32.mrf.mxu0
        %v8025 = vadd.f32 %v8012, %v8024
        %v8026 = vpop.f32.mrf.mxu0
        %8027 = vdwg.mxu0
        %8028 = vmatpush.bf16.msra.mxu0 %v5238
        %8029 = vmatpush.bf16.msra.mxu0 %v5234
        %8030 = vmatpush.bf16.msra.mxu0 %v5230
        %8031 = vmatpush.bf16.msra.mxu0 %v5226
        %8032 = vmatpush.bf16.msra.mxu0 %v5222
        %8033 = vmatpush.bf16.msra.mxu0 %v5218
        %8034 = vmatpush.bf16.msra.mxu0 %v5214
        %8035 = vmatpush.bf16.msra.mxu0 %v5210
        %8036 = vmatmul.bf16.gmra.mxu0 %v1296
        %v8037 = vpop.f32.mrf.mxu0
        %v8038 = vadd.f32 %v8025, %v8037
        %v8039 = vpop.f32.mrf.mxu0
        %8040 = vdwg.mxu0
        %8041 = vmatpush.bf16.msra.mxu0 %v5270
        %8042 = vmatpush.bf16.msra.mxu0 %v5266
        %8043 = vmatpush.bf16.msra.mxu0 %v5262
        %8044 = vmatpush.bf16.msra.mxu0 %v5258
        %8045 = vmatpush.bf16.msra.mxu0 %v5254
        %8046 = vmatpush.bf16.msra.mxu0 %v5250
        %8047 = vmatpush.bf16.msra.mxu0 %v5246
        %8048 = vmatpush.bf16.msra.mxu0 %v5242
        %8049 = vmatmul.bf16.gmra.mxu0 %v1297
        %v8050 = vpop.f32.mrf.mxu0
        %v8051 = vadd.f32 %v8038, %v8050
        %v8052 = vpop.f32.mrf.mxu0
        %8053 = vdwg.mxu0
        %8054 = vmatpush.bf16.msra.mxu0 %v5302
        %8055 = vmatpush.bf16.msra.mxu0 %v5298
        %8056 = vmatpush.bf16.msra.mxu0 %v5294
        %8057 = vmatpush.bf16.msra.mxu0 %v5290
        %8058 = vmatpush.bf16.msra.mxu0 %v5286
        %8059 = vmatpush.bf16.msra.mxu0 %v5282
        %8060 = vmatpush.bf16.msra.mxu0 %v5278
        %8061 = vmatpush.bf16.msra.mxu0 %v5274
        %8062 = vmatmul.bf16.gmra.mxu0 %v1298
        %v8063 = vpop.f32.mrf.mxu0
        %v8064 = vadd.f32 %v8051, %v8063
        %v8065 = vpop.f32.mrf.mxu0
        %8066 = vdwg.mxu0
        %8067 = vmatpush.bf16.msra.mxu0 %v5334
        %8068 = vmatpush.bf16.msra.mxu0 %v5330
        %8069 = vmatpush.bf16.msra.mxu0 %v5326
        %8070 = vmatpush.bf16.msra.mxu0 %v5322
        %8071 = vmatpush.bf16.msra.mxu0 %v5318
        %8072 = vmatpush.bf16.msra.mxu0 %v5314
        %8073 = vmatpush.bf16.msra.mxu0 %v5310
        %8074 = vmatpush.bf16.msra.mxu0 %v5306
        %8075 = vmatmul.bf16.gmra.mxu0 %v1299
        %v8076 = vpop.f32.mrf.mxu0
        %v8077 = vadd.f32 %v8064, %v8076
        %v8078 = vpop.f32.mrf.mxu0
        %8079 = vdwg.mxu0
        %8080 = vmatpush.bf16.msra.mxu0 %v5366
        %8081 = vmatpush.bf16.msra.mxu0 %v5362
        %8082 = vmatpush.bf16.msra.mxu0 %v5358
        %8083 = vmatpush.bf16.msra.mxu0 %v5354
        %8084 = vmatpush.bf16.msra.mxu0 %v5350
        %8085 = vmatpush.bf16.msra.mxu0 %v5346
        %8086 = vmatpush.bf16.msra.mxu0 %v5342
        %8087 = vmatpush.bf16.msra.mxu0 %v5338
        %8088 = vmatmul.bf16.gmra.mxu0 %v1300
        %v8089 = vpop.f32.mrf.mxu0
        %v8090 = vadd.f32 %v8077, %v8089
        %v8091 = vpop.f32.mrf.mxu0
        %8092 = vdwg.mxu0
        %8093 = vmatpush.bf16.msra.mxu0 %v5398
        %8094 = vmatpush.bf16.msra.mxu0 %v5394
        %8095 = vmatpush.bf16.msra.mxu0 %v5390
        %8096 = vmatpush.bf16.msra.mxu0 %v5386
        %8097 = vmatpush.bf16.msra.mxu0 %v5382
        %8098 = vmatpush.bf16.msra.mxu0 %v5378
        %8099 = vmatpush.bf16.msra.mxu0 %v5374
        %8100 = vmatpush.bf16.msra.mxu0 %v5370
        %8101 = vmatmul.bf16.gmra.mxu0 %v1301
        %v8102 = vpop.f32.mrf.mxu0
        %v8103 = vadd.f32 %v8090, %v8102
        %v8104 = vpop.f32.mrf.mxu0
        %8105 = vdwg.mxu0
        %8106 = vmatpush.bf16.msra.mxu0 %v5430
        %8107 = vmatpush.bf16.msra.mxu0 %v5426
        %8108 = vmatpush.bf16.msra.mxu0 %v5422
        %8109 = vmatpush.bf16.msra.mxu0 %v5418
        %8110 = vmatpush.bf16.msra.mxu0 %v5414
        %8111 = vmatpush.bf16.msra.mxu0 %v5410
        %8112 = vmatpush.bf16.msra.mxu0 %v5406
        %8113 = vmatpush.bf16.msra.mxu0 %v5402
        %8114 = vmatmul.bf16.gmra.mxu0 %v1302
        %v8115 = vpop.f32.mrf.mxu0
        %v8116 = vadd.f32 %v8103, %v8115
        %v8117 = vpop.f32.mrf.mxu0
        %8118 = vdwg.mxu0
        %v8123 = vrot.slane %v7284, 6
        %v8124 = vrot.slane %v7700, 4
        %v8125 = vrot.slane %v8116, 2
        %vm8126 = vcmask 1041408
        %v8127 = vsel %vm8126, %v6868, %v8123
        %vm8128 = vcmask 1045508
        %v8129 = vsel %vm8128, %v8124, %v8125
        %vm8130 = vcmask 1043456
        %v8131 = vsel %vm8130, %v8127, %v8129
        %v8133 = vadd.f32 %v232, %v8131
        %8134 = vst [vmem:[#allocation2] sm:$0xff] %v8133
        %p8135 = scmp.eq.s32.totalorder %s24, 1
        // Predicated region
        $region45: #{decoder_forward.3} parent=31 // pred_check
          %p8136 = pneg %p8135
        $region46: #{decoder_forward.3} parent=31 // pred_check_branch
          %8138 = sbr.rel (%p8136) target = $region48
        $region47: #{decoder_forward.3} parent=31 // pred_region
          %v8139 = vld [vmem:[#allocation2] sm:$0xff]
          %v8140 = vld [vmem:[#allocation6] sm:$0xf]
          %v8142 = vperm.slane %v8140, 0
          %v8143 = vperm.slane %v8140, 1
          %v8144 = vperm.slane %v8140, 2
          %v8145 = vperm.slane %v8140, 3
          %v8146 = vrot.slane %v8143, 6
          %v8147 = vrot.slane %v8144, 4
          %v8148 = vrot.slane %v8145, 2
          %v8149 = vsel %vm8126, %v8142, %v8146
          %v8150 = vsel %vm8128, %v8147, %v8148
          %v8151 = vsel %vm8130, %v8149, %v8150
          %v8153 = vadd.f32 %v8139, %v8151
          %8154 = vst [vmem:[#allocation8] sm:$0xff] %v8153
        $region48: #{decoder_forward.3} parent=31 // pred_fallthru
          _
        // Predicated region
        $region49: #{decoder_forward.3} parent=31 // pred_check
          %p8155 = pneg %p124
        $region50: #{decoder_forward.3} parent=31 // pred_check_branch
          %8157 = sbr.rel (%p8155) target = $region52
        $region51: #{decoder_forward.3} parent=31 // pred_region
          %s8158 = smul.u32 4, %s23
          %8160 = vsyncadd [#allocation5], 0
          %s8161 = smul.addr %s8158, 2
          %s8162 = scalar_lea.hbm %s3, %s8161
          %s8164 = sshll.u32 [#allocation8], 4
          %s8165 = int_to_ptr.vmem [resolvable:$true] %s8164
          %s8166 = sshll.u32 %s8162, 4
          %s8167 = int_to_ptr.hbm [resolvable:$true] %s8166
          %8169 = dma.vmem_to_hbm [thread:$0]  %s8165, 128, %s8167, [#allocation5]
        $region52: #{decoder_forward.3} parent=31 // pred_fallthru
          _
        // Predicated region
        $region53: #{decoder_forward.3} parent=31 // pred_check
          %p8170 = pneg %p124
        $region54: #{decoder_forward.3} parent=31 // pred_check_branch
          %8172 = sbr.rel (%p8170) target = $region56
        $region55: #{decoder_forward.3} parent=31 // pred_region
          %8174 = dma.done [#allocation5], 128
        $region56: #{decoder_forward.3} parent=31 // pred_fallthru
          _
      $region32: #{decoder_forward.3} parent=5 // pred_fallthru
        _
      %p8175 = scmp.le.s32.totalorder 2, %s14
      // Predicated region
      $region57: #{decoder_forward.3} parent=5 // pred_check
        %p8176 = pneg %p8175
      $region58: #{decoder_forward.3} parent=5 // pred_check_branch
        %8178 = sbr.rel (%p8176) target = $region60
      $region59: #{decoder_forward.3} parent=5 // pred_region
        %s8179 = ssub.s32 %s14, 2
      $region60: #{decoder_forward.3} parent=5 // pred_fallthru
        _
    $region6: #{decoder_forward.3} parent=1 // loop_footer
      %s18 = sadd.s32 1, %s14
    $region7: #{decoder_forward.3} parent=1 // loop_footer_branch
      %13 = sbr.rel target = $region3
    $region8: #{decoder_forward.3} parent=1 // loop_exit
      _
    %8180 = vsyncpa [#allocation4], 1
    %s8181 = scalar_lea.sflag [#allocation4], 1
    %8182 = vsyncpa %s8181, 1
    %8183 = vsyncpa [#allocation7], 1
    %8184 = vsyncpa [#allocation5], 1
    %s8185 = scalar_lea.sflag [#allocation5], 1
    %8186 = vsyncpa %s8185, 1

</llo_original>
